<compile_context>
chip_gen: v7x
topology: tpu7x:2x2x1
jax: 0.10.0
libtpu: 0.0.40
codegen_flags: <defaults>
</compile_context>

<pallas_src>
import functools

import jax
import jax.numpy as jnp
from jax import lax
from jax.experimental import pallas as pl
from jax.experimental.pallas import tpu as pltpu

# ---------------- model config (small but consistent with the module) ----------------
NODE_DIM = 8
EDGE_DIM = 4
HIDDEN = 32
OUTPUT_DIM = 64
NUM_LAYERS = 3
HEADS = 4
NEG_SLOPE = 0.2
BN_EPS = 1e-5
S2S_STEPS = 3

N_NODES = 16
N_EDGES = 32  # ring graph, both directions


# ---------------------------------------------------------------------------
# single fused Pallas kernel: the whole forward pass
# ---------------------------------------------------------------------------
def _fused_gnn_kernel(
    x_ref, ea_ref, src_ref, tgt_ref,
    node_w_ref, node_b_ref, edge_w_ref, edge_b_ref,
    lin_w_ref, lin_edge_w_ref, att_src_ref, att_dst_ref, att_edge_ref, gat_bias_ref,
    bn_gamma_ref, bn_beta_ref,
    lstm_wih_ref, lstm_whh_ref, lstm_b_ref,
    out1_w_ref, out1_b_ref, out2_w_ref, out2_b_ref,
    o_ref, *, n, e_cnt,
):
    f32 = jnp.float32

    # ---- graph structure: built once, no scatters (iota compares + MXU matmuls) ----
    row_ids = lax.broadcasted_iota(jnp.int32, (n, e_cnt), 0)
    t_onehot = (row_ids == tgt_ref[...]).astype(f32)            # [N,E]  T[i,e]=1 iff tgt[e]==i
    col_ids = lax.broadcasted_iota(jnp.int32, (e_cnt, n), 1)
    s_onehot = (col_ids == src_ref[...]).astype(f32)            # [E,N]  S[e,j]=1 iff src[e]==j
    eye = (lax.broadcasted_iota(jnp.int32, (n, n), 0)
           == lax.broadcasted_iota(jnp.int32, (n, n), 1)).astype(f32)
    adj = jnp.dot(t_onehot, s_onehot, preferred_element_type=f32) + eye   # with self loops
    in_deg = jnp.sum(t_onehot, axis=-1, keepdims=True)                    # [N,1]
    t_mean = t_onehot / jnp.maximum(in_deg, 1.0)                          # per-target mean op

    # ---- embeddings ----
    h = jnp.dot(x_ref[...], node_w_ref[...], preferred_element_type=f32) + node_b_ref[...]
    e = jnp.dot(ea_ref[...], edge_w_ref[...], preferred_element_type=f32) + edge_b_ref[...]
    e = e / jnp.maximum(jnp.sqrt(jnp.sum(e * e, axis=-1, keepdims=True)), 1e-12)  # F.normalize
    loop_attr = jnp.dot(t_mean, e, preferred_element_type=f32)   # fill_value='mean' self-loop attrs

    # ---- 3 x (GATConv + BN + ReLU + residual), fully unrolled, all VMEM-resident ----
    for l in range(NUM_LAYERS):
        res = h
        x_proj = jnp.dot(h, lin_w_ref[l], preferred_element_type=f32)               # [N, H*D]
        e_proj = jnp.dot(e, lin_edge_w_ref[l], preferred_element_type=f32)          # [E, H*D]
        lp_proj = jnp.dot(loop_attr, lin_edge_w_ref[l], preferred_element_type=f32)  # [N, H*D]
        a_src_w = att_src_ref[l]      # [1, H*D]
        a_dst_w = att_dst_ref[l]      # [1, H*D]
        a_edge_w = att_edge_ref[l]    # [1, H*D]

        acc = jnp.zeros((n, HIDDEN), f32)
        for hd in range(HEADS):                              # unrolled — no per-head grid
            sl = slice(hd * HIDDEN, (hd + 1) * HIDDEN)
            xh = x_proj[:, sl]                                                        # [N, D]
            # attention terms
            a_src_row = lax.dot_general(a_src_w[:, sl], xh,
                                        (((1,), (1,)), ((), ())),
                                        preferred_element_type=f32)                   # [1, N]
            a_dst_col = jnp.sum(xh * a_dst_w[:, sl], axis=-1, keepdims=True)          # [N, 1]
            a_e_col = jnp.sum(e_proj[:, sl] * a_edge_w[:, sl], axis=-1, keepdims=True)    # [E,1]
            a_lp_col = jnp.sum(lp_proj[:, sl] * a_edge_w[:, sl], axis=-1, keepdims=True)  # [N,1]
            # dense [target, source] scores via one-hot matmuls (no scatter)
            scores = jnp.dot(t_onehot, a_e_col * s_onehot, preferred_element_type=f32)  # edge term
            scores = scores + eye * a_lp_col               # self-loop edge term
            scores = scores + a_dst_col + a_src_row        # target (rows) + source (cols) terms
            scores = jnp.where(scores > 0, scores, NEG_SLOPE * scores)   # LeakyReLU(0.2)
            scores = jnp.where(adj > 0.0, scores, -1e30)                 # mask non-edges (once)
            m = jnp.max(scores, axis=-1, keepdims=True)
            p = jnp.exp(scores - m)
            attn = p * pl.reciprocal(jnp.sum(p, axis=-1, keepdims=True), approx=True)
            acc = acc + jnp.dot(attn, xh, preferred_element_type=f32)
        h_gat = acc * (1.0 / HEADS) + gat_bias_ref[l]        # mean over heads + bias

        # BatchNorm1d (batch statistics) + ReLU + residual
        mu = jnp.mean(h_gat, axis=0, keepdims=True)
        var = jnp.mean(jnp.square(h_gat - mu), axis=0, keepdims=True)
        y = (h_gat - mu) * lax.rsqrt(var + BN_EPS) * bn_gamma_ref[l] + bn_beta_ref[l]
        h = jnp.maximum(y, 0.0) + res

    # ---- Set2Set(processing_steps=3), single graph; q_star kept split as [hh, rr] ----
    wih_h = lstm_wih_ref[:HIDDEN, :]
    wih_r = lstm_wih_ref[HIDDEN:, :]
    whh = lstm_whh_ref[...]
    lb = lstm_b_ref[...]
    hh = jnp.zeros((1, HIDDEN), f32)
    cc = jnp.zeros((1, HIDDEN), f32)
    rr = jnp.zeros((1, HIDDEN), f32)
    for _ in range(S2S_STEPS):
        gates = (jnp.dot(hh, wih_h, preferred_element_type=f32)
                 + jnp.dot(rr, wih_r, preferred_element_type=f32)
                 + jnp.dot(hh, whh, preferred_element_type=f32) + lb)
        ig = jax.nn.sigmoid(gates[:, 0 * HIDDEN:1 * HIDDEN])
        fg = jax.nn.sigmoid(gates[:, 1 * HIDDEN:2 * HIDDEN])
        gg = jnp.tanh(gates[:, 2 * HIDDEN:3 * HIDDEN])
        og = jax.nn.sigmoid(gates[:, 3 * HIDDEN:4 * HIDDEN])
        cc = fg * cc + ig * gg
        hh = og * jnp.tanh(cc)
        sc = jnp.sum(h * hh, axis=-1, keepdims=True)                  # [N,1] logits
        m = jnp.max(sc, axis=0, keepdims=True)
        p = jnp.exp(sc - m)
        a = p * pl.reciprocal(jnp.sum(p, axis=0, keepdims=True), approx=True)
        rr = jnp.sum(a * h, axis=0, keepdims=True)                    # [1, D] readout

    # ---- MLP head + L2 normalize (dropout = identity in eval) ----
    g1 = (jnp.dot(hh, out1_w_ref[:HIDDEN, :], preferred_element_type=f32)
          + jnp.dot(rr, out1_w_ref[HIDDEN:, :], preferred_element_type=f32)
          + out1_b_ref[...])
    g1 = jnp.maximum(g1, 0.0)
    g2 = jnp.dot(g1, out2_w_ref[...], preferred_element_type=f32) + out2_b_ref[...]
    g2 = jnp.maximum(g2, 0.0)
    o_ref[...] = g2 / jnp.maximum(jnp.sqrt(jnp.sum(g2 * g2, axis=-1, keepdims=True)), 1e-12)


# ---------------------------------------------------------------------------
# wrapper: one pallas_call for the whole forward
# ---------------------------------------------------------------------------
def gnn_encoder_forward(params, x, edge_index, edge_attr):
    n = x.shape[0]
    e_cnt = edge_attr.shape[0]
    src_col = edge_index[0].reshape(e_cnt, 1).astype(jnp.int32)   # sources as a column
    tgt_row = edge_index[1].reshape(1, e_cnt).astype(jnp.int32)   # targets as a row
    return pl.pallas_call(
        functools.partial(_fused_gnn_kernel, n=n, e_cnt=e_cnt),
        out_shape=jax.ShapeDtypeStruct((1, OUTPUT_DIM), jnp.float32),
        compiler_params=pltpu.CompilerParams(),
    )(x, edge_attr, src_col, tgt_row,
      params["node_w"], params["node_b"], params["edge_w"], params["edge_b"],
      params["lin_w"], params["lin_edge_w"],
      params["att_src"], params["att_dst"], params["att_edge"], params["gat_bias"],
      params["bn_gamma"], params["bn_beta"],
      params["lstm_wih_t"], params["lstm_whh_t"], params["lstm_b"],
      params["out1_w"], params["out1_b"], params["out2_w"], params["out2_b"])


# ---------------------------------------------------------------------------
# deterministic parameter init (per-layer GAT params stacked on a leading layer axis)
# ---------------------------------------------------------------------------
def init_params(key):
    def nrm(k, shape):
        return jax.random.normal(k, shape, jnp.float32) * 0.1

    keys = iter(jax.random.split(key, 64))
    return {
        "node_w": nrm(next(keys), (NODE_DIM, HIDDEN)),
        "node_b": nrm(next(keys), (1, HIDDEN)),
        "edge_w": nrm(next(keys), (EDGE_DIM, HIDDEN)),
        "edge_b": nrm(next(keys), (1, HIDDEN)),
        "lin_w": nrm(next(keys), (NUM_LAYERS, HIDDEN, HEADS * HIDDEN)),
        "lin_edge_w": nrm(next(keys), (NUM_LAYERS, HIDDEN, HEADS * HIDDEN)),
        # attention vectors flattened head-major to match the [*, heads*HIDDEN] projections
        "att_src": nrm(next(keys), (NUM_LAYERS, 1, HEADS * HIDDEN)),
        "att_dst": nrm(next(keys), (NUM_LAYERS, 1, HEADS * HIDDEN)),
        "att_edge": nrm(next(keys), (NUM_LAYERS, 1, HEADS * HIDDEN)),
        "gat_bias": nrm(next(keys), (NUM_LAYERS, 1, HIDDEN)),
        "bn_gamma": jnp.ones((NUM_LAYERS, 1, HIDDEN), jnp.float32),
        "bn_beta": jnp.zeros((NUM_LAYERS, 1, HIDDEN), jnp.float32),
        # LSTM weights stored transposed (x @ W); bias = b_ih + b_hh combined; gate order i,f,g,o
        "lstm_wih_t": nrm(next(keys), (2 * HIDDEN, 4 * HIDDEN)),
        "lstm_whh_t": nrm(next(keys), (HIDDEN, 4 * HIDDEN)),
        "lstm_b": nrm(next(keys), (1, 4 * HIDDEN)),
        "out1_w": nrm(next(keys), (2 * HIDDEN, HIDDEN)),
        "out1_b": nrm(next(keys), (1, HIDDEN)),
        "out2_w": nrm(next(keys), (HIDDEN, OUTPUT_DIM)),
        "out2_b": nrm(next(keys), (1, OUTPUT_DIM)),
    }


if __name__ == "__main__":
    key = jax.random.PRNGKey(0)
    kp, kx, ke = jax.random.split(key, 3)

    params = init_params(kp)

    # small graph: ring of 16 nodes, bidirectional edges (no self loops, no duplicates)
    x = jax.random.normal(kx, (N_NODES, NODE_DIM), jnp.float32)
    idx = jnp.arange(N_NODES, dtype=jnp.int32)
    src = jnp.concatenate([idx, (idx + 1) % N_NODES])
    tgt = jnp.concatenate([(idx + 1) % N_NODES, idx])
    edge_index = jnp.stack([src, tgt], axis=0)                      # [2, 32]
    edge_attr = jax.random.normal(ke, (N_EDGES, EDGE_DIM), jnp.float32)

    fwd = jax.jit(gnn_encoder_forward)
    out = fwd(params, x, edge_index, edge_attr)
    out = jax.block_until_ready(out)

    assert out.shape == (1, OUTPUT_DIM), out.shape
    assert bool(jnp.all(jnp.isfinite(out)))
    print("KERNEL_OK")
</pallas_src>

<mosaic_0001>
module attributes {stable_mosaic.version = 11 : i64} {
  func.func @_fused_gnn_kernel(%arg0: memref<16x8xf32, #tpu.memory_space<vmem>>, %arg1: memref<32x4xf32, #tpu.memory_space<vmem>>, %arg2: memref<32x1xi32, #tpu.memory_space<vmem>>, %arg3: memref<1x32xi32, #tpu.memory_space<vmem>>, %arg4: memref<8x32xf32, #tpu.memory_space<vmem>>, %arg5: memref<1x32xf32, #tpu.memory_space<vmem>>, %arg6: memref<4x32xf32, #tpu.memory_space<vmem>>, %arg7: memref<1x32xf32, #tpu.memory_space<vmem>>, %arg8: memref<3x32x128xf32, #tpu.memory_space<vmem>>, %arg9: memref<3x32x128xf32, #tpu.memory_space<vmem>>, %arg10: memref<3x1x128xf32, #tpu.memory_space<vmem>>, %arg11: memref<3x1x128xf32, #tpu.memory_space<vmem>>, %arg12: memref<3x1x128xf32, #tpu.memory_space<vmem>>, %arg13: memref<3x1x32xf32, #tpu.memory_space<vmem>>, %arg14: memref<3x1x32xf32, #tpu.memory_space<vmem>>, %arg15: memref<3x1x32xf32, #tpu.memory_space<vmem>>, %arg16: memref<64x128xf32, #tpu.memory_space<vmem>>, %arg17: memref<32x128xf32, #tpu.memory_space<vmem>>, %arg18: memref<1x128xf32, #tpu.memory_space<vmem>>, %arg19: memref<64x32xf32, #tpu.memory_space<vmem>>, %arg20: memref<1x32xf32, #tpu.memory_space<vmem>>, %arg21: memref<32x64xf32, #tpu.memory_space<vmem>>, %arg22: memref<1x64xf32, #tpu.memory_space<vmem>>, %arg23: memref<1x64xf32, #tpu.memory_space<vmem>>) attributes {dimension_semantics = [], scalar_prefetch = 0 : i64, scratch_operands = 0 : i64, tpu.core_type = #tpu.core_type<tc>} {
    %0 = tpu.iota {dimensions = array<i32: 0>} : vector<16x32xi32>
    %c0 = arith.constant 0 : index
    %c0_0 = arith.constant 0 : index
    %1 = vector.load %arg3[%c0, %c0_0] : memref<1x32xi32, #tpu.memory_space<vmem>>, vector<1x32xi32>
    %2 = vector.broadcast %1 : vector<1x32xi32> to vector<16x32xi32>
    %3 = arith.cmpi eq, %0, %2 : vector<16x32xi32>
    %4 = arith.extui %3 : vector<16x32xi1> to vector<16x32xi32>
    %5 = arith.sitofp %4 : vector<16x32xi32> to vector<16x32xf32>
    %6 = tpu.iota {dimensions = array<i32: 1>} : vector<32x16xi32>
    %c0_1 = arith.constant 0 : index
    %c0_2 = arith.constant 0 : index
    %7 = vector.load %arg2[%c0_1, %c0_2] : memref<32x1xi32, #tpu.memory_space<vmem>>, vector<32x1xi32>
    %8 = vector.broadcast %7 : vector<32x1xi32> to vector<32x16xi32>
    %9 = arith.cmpi eq, %6, %8 : vector<32x16xi32>
    %10 = arith.extui %9 : vector<32x16xi1> to vector<32x16xi32>
    %11 = arith.sitofp %10 : vector<32x16xi32> to vector<32x16xf32>
    %12 = tpu.iota {dimensions = array<i32: 0>} : vector<16x16xi32>
    %13 = tpu.iota {dimensions = array<i32: 1>} : vector<16x16xi32>
    %14 = arith.cmpi eq, %12, %13 : vector<16x16xi32>
    %15 = arith.extui %14 : vector<16x16xi1> to vector<16x16xi32>
    %16 = arith.sitofp %15 : vector<16x16xi32> to vector<16x16xf32>
    %cst = arith.constant dense<0.000000e+00> : vector<16x16xf32>
    %17 = tpu.matmul %5, %11, %cst {dimension_numbers = #tpu.dot_dimension_numbers<[1], [0], [0], [1], [0, 0, 1, 1], [], []>} : vector<16x32xf32>, vector<32x16xf32>, vector<16x16xf32> -> vector<16x16xf32>
    %18 = arith.addf %17, %16 : vector<16x16xf32>
    %cst_3 = arith.constant dense<0.000000e+00> : vector<16xf32>
    %19 = vector.multi_reduction <add>, %5, %cst_3 [1] : vector<16x32xf32> to vector<16xf32>
    %20 = vector.shape_cast %19 : vector<16xf32> to vector<16x1xf32>
    %cst_4 = arith.constant 1.000000e+00 : f32
    %21 = vector.broadcast %cst_4 : f32 to vector<16x1xf32>
    %22 = arith.maximumf %20, %21 : vector<16x1xf32>
    %23 = vector.broadcast %22 : vector<16x1xf32> to vector<16x32xf32>
    %24 = arith.divf %5, %23 : vector<16x32xf32>
    %c0_5 = arith.constant 0 : index
    %c0_6 = arith.constant 0 : index
    %25 = vector.load %arg0[%c0_5, %c0_6] : memref<16x8xf32, #tpu.memory_space<vmem>>, vector<16x8xf32>
    %c0_7 = arith.constant 0 : index
    %c0_8 = arith.constant 0 : index
    %26 = vector.load %arg4[%c0_7, %c0_8] : memref<8x32xf32, #tpu.memory_space<vmem>>, vector<8x32xf32>
    %cst_9 = arith.constant dense<0.000000e+00> : vector<16x32xf32>
    %27 = tpu.matmul %25, %26, %cst_9 {dimension_numbers = #tpu.dot_dimension_numbers<[1], [0], [0], [1], [0, 0, 1, 1], [], []>} : vector<16x8xf32>, vector<8x32xf32>, vector<16x32xf32> -> vector<16x32xf32>
    %c0_10 = arith.constant 0 : index
    %c0_11 = arith.constant 0 : index
    %28 = vector.load %arg5[%c0_10, %c0_11] : memref<1x32xf32, #tpu.memory_space<vmem>>, vector<1x32xf32>
    %29 = vector.broadcast %28 : vector<1x32xf32> to vector<16x32xf32>
    %30 = arith.addf %27, %29 : vector<16x32xf32>
    %c0_12 = arith.constant 0 : index
    %c0_13 = arith.constant 0 : index
    %31 = vector.load %arg1[%c0_12, %c0_13] : memref<32x4xf32, #tpu.memory_space<vmem>>, vector<32x4xf32>
    %c0_14 = arith.constant 0 : index
    %c0_15 = arith.constant 0 : index
    %32 = vector.load %arg6[%c0_14, %c0_15] : memref<4x32xf32, #tpu.memory_space<vmem>>, vector<4x32xf32>
    %cst_16 = arith.constant dense<0.000000e+00> : vector<32x32xf32>
    %33 = tpu.matmul %31, %32, %cst_16 {dimension_numbers = #tpu.dot_dimension_numbers<[1], [0], [0], [1], [0, 0, 1, 1], [], []>} : vector<32x4xf32>, vector<4x32xf32>, vector<32x32xf32> -> vector<32x32xf32>
    %c0_17 = arith.constant 0 : index
    %c0_18 = arith.constant 0 : index
    %34 = vector.load %arg7[%c0_17, %c0_18] : memref<1x32xf32, #tpu.memory_space<vmem>>, vector<1x32xf32>
    %35 = vector.broadcast %34 : vector<1x32xf32> to vector<32x32xf32>
    %36 = arith.addf %33, %35 : vector<32x32xf32>
    %37 = arith.mulf %36, %36 : vector<32x32xf32>
    %cst_19 = arith.constant dense<0.000000e+00> : vector<32xf32>
    %38 = vector.multi_reduction <add>, %37, %cst_19 [1] : vector<32x32xf32> to vector<32xf32>
    %39 = vector.shape_cast %38 : vector<32xf32> to vector<32x1xf32>
    %40 = math.sqrt %39 : vector<32x1xf32>
    %cst_20 = arith.constant 9.99999996E-13 : f32
    %41 = vector.broadcast %cst_20 : f32 to vector<32x1xf32>
    %42 = arith.maximumf %40, %41 : vector<32x1xf32>
    %43 = vector.broadcast %42 : vector<32x1xf32> to vector<32x32xf32>
    %44 = arith.divf %36, %43 : vector<32x32xf32>
    %cst_21 = arith.constant dense<0.000000e+00> : vector<16x32xf32>
    %45 = tpu.matmul %24, %44, %cst_21 {dimension_numbers = #tpu.dot_dimension_numbers<[1], [0], [0], [1], [0, 0, 1, 1], [], []>} : vector<16x32xf32>, vector<32x32xf32>, vector<16x32xf32> -> vector<16x32xf32>
    %c0_22 = arith.constant 0 : index
    %c0_23 = arith.constant 0 : index
    %c0_24 = arith.constant 0 : index
    %46 = vector.load %arg8[%c0_22, %c0_23, %c0_24] : memref<3x32x128xf32, #tpu.memory_space<vmem>>, vector<1x32x128xf32>
    %47 = vector.shape_cast %46 : vector<1x32x128xf32> to vector<32x128xf32>
    %cst_25 = arith.constant dense<0.000000e+00> : vector<16x128xf32>
    %48 = tpu.matmul %30, %47, %cst_25 {dimension_numbers = #tpu.dot_dimension_numbers<[1], [0], [0], [1], [0, 0, 1, 1], [], []>} : vector<16x32xf32>, vector<32x128xf32>, vector<16x128xf32> -> vector<16x128xf32>
    %c0_26 = arith.constant 0 : index
    %c0_27 = arith.constant 0 : index
    %c0_28 = arith.constant 0 : index
    %49 = vector.load %arg9[%c0_26, %c0_27, %c0_28] : memref<3x32x128xf32, #tpu.memory_space<vmem>>, vector<1x32x128xf32>
    %50 = vector.shape_cast %49 : vector<1x32x128xf32> to vector<32x128xf32>
    %cst_29 = arith.constant dense<0.000000e+00> : vector<32x128xf32>
    %51 = tpu.matmul %44, %50, %cst_29 {dimension_numbers = #tpu.dot_dimension_numbers<[1], [0], [0], [1], [0, 0, 1, 1], [], []>} : vector<32x32xf32>, vector<32x128xf32>, vector<32x128xf32> -> vector<32x128xf32>
    %c0_30 = arith.constant 0 : index
    %c0_31 = arith.constant 0 : index
    %c0_32 = arith.constant 0 : index
    %52 = vector.load %arg9[%c0_30, %c0_31, %c0_32] : memref<3x32x128xf32, #tpu.memory_space<vmem>>, vector<1x32x128xf32>
    %53 = vector.shape_cast %52 : vector<1x32x128xf32> to vector<32x128xf32>
    %cst_33 = arith.constant dense<0.000000e+00> : vector<16x128xf32>
    %54 = tpu.matmul %45, %53, %cst_33 {dimension_numbers = #tpu.dot_dimension_numbers<[1], [0], [0], [1], [0, 0, 1, 1], [], []>} : vector<16x32xf32>, vector<32x128xf32>, vector<16x128xf32> -> vector<16x128xf32>
    %c0_34 = arith.constant 0 : index
    %c0_35 = arith.constant 0 : index
    %c0_36 = arith.constant 0 : index
    %55 = vector.load %arg10[%c0_34, %c0_35, %c0_36] : memref<3x1x128xf32, #tpu.memory_space<vmem>>, vector<1x1x128xf32>
    %56 = vector.shape_cast %55 : vector<1x1x128xf32> to vector<1x128xf32>
    %c0_37 = arith.constant 0 : index
    %c0_38 = arith.constant 0 : index
    %c0_39 = arith.constant 0 : index
    %57 = vector.load %arg11[%c0_37, %c0_38, %c0_39] : memref<3x1x128xf32, #tpu.memory_space<vmem>>, vector<1x1x128xf32>
    %58 = vector.shape_cast %57 : vector<1x1x128xf32> to vector<1x128xf32>
    %c0_40 = arith.constant 0 : index
    %c0_41 = arith.constant 0 : index
    %c0_42 = arith.constant 0 : index
    %59 = vector.load %arg12[%c0_40, %c0_41, %c0_42] : memref<3x1x128xf32, #tpu.memory_space<vmem>>, vector<1x1x128xf32>
    %60 = vector.shape_cast %59 : vector<1x1x128xf32> to vector<1x128xf32>
    %cst_43 = arith.constant 0.000000e+00 : f32
    %61 = vector.broadcast %cst_43 : f32 to vector<16x32xf32>
    %62 = vector.extract_strided_slice %48 {offsets = [0, 0], sizes = [16, 32], strides = [1, 1]} : vector<16x128xf32> to vector<16x32xf32>
    %63 = vector.extract_strided_slice %56 {offsets = [0, 0], sizes = [1, 32], strides = [1, 1]} : vector<1x128xf32> to vector<1x32xf32>
    %cst_44 = arith.constant dense<0.000000e+00> : vector<1x16xf32>
    %64 = tpu.matmul %63, %62, %cst_44 {dimension_numbers = #tpu.dot_dimension_numbers<[1], [1], [0], [0], [0, 0, 1, 0], [], []>} : vector<1x32xf32>, vector<16x32xf32>, vector<1x16xf32> -> vector<1x16xf32>
    %65 = vector.extract_strided_slice %58 {offsets = [0, 0], sizes = [1, 32], strides = [1, 1]} : vector<1x128xf32> to vector<1x32xf32>
    %66 = vector.broadcast %65 : vector<1x32xf32> to vector<16x32xf32>
    %67 = arith.mulf %62, %66 : vector<16x32xf32>
    %cst_45 = arith.constant dense<0.000000e+00> : vector<16xf32>
    %68 = vector.multi_reduction <add>, %67, %cst_45 [1] : vector<16x32xf32> to vector<16xf32>
    %69 = vector.shape_cast %68 : vector<16xf32> to vector<16x1xf32>
    %70 = vector.extract_strided_slice %51 {offsets = [0, 0], sizes = [32, 32], strides = [1, 1]} : vector<32x128xf32> to vector<32x32xf32>
    %71 = vector.extract_strided_slice %60 {offsets = [0, 0], sizes = [1, 32], strides = [1, 1]} : vector<1x128xf32> to vector<1x32xf32>
    %72 = vector.broadcast %71 : vector<1x32xf32> to vector<32x32xf32>
    %73 = arith.mulf %70, %72 : vector<32x32xf32>
    %cst_46 = arith.constant dense<0.000000e+00> : vector<32xf32>
    %74 = vector.multi_reduction <add>, %73, %cst_46 [1] : vector<32x32xf32> to vector<32xf32>
    %75 = vector.shape_cast %74 : vector<32xf32> to vector<32x1xf32>
    %76 = vector.extract_strided_slice %54 {offsets = [0, 0], sizes = [16, 32], strides = [1, 1]} : vector<16x128xf32> to vector<16x32xf32>
    %77 = vector.extract_strided_slice %60 {offsets = [0, 0], sizes = [1, 32], strides = [1, 1]} : vector<1x128xf32> to vector<1x32xf32>
    %78 = vector.broadcast %77 : vector<1x32xf32> to vector<16x32xf32>
    %79 = arith.mulf %76, %78 : vector<16x32xf32>
    %cst_47 = arith.constant dense<0.000000e+00> : vector<16xf32>
    %80 = vector.multi_reduction <add>, %79, %cst_47 [1] : vector<16x32xf32> to vector<16xf32>
    %81 = vector.shape_cast %80 : vector<16xf32> to vector<16x1xf32>
    %82 = vector.broadcast %75 : vector<32x1xf32> to vector<32x16xf32>
    %83 = arith.mulf %82, %11 : vector<32x16xf32>
    %cst_48 = arith.constant dense<0.000000e+00> : vector<16x16xf32>
    %84 = tpu.matmul %5, %83, %cst_48 {dimension_numbers = #tpu.dot_dimension_numbers<[1], [0], [0], [1], [0, 0, 1, 1], [], []>} : vector<16x32xf32>, vector<32x16xf32>, vector<16x16xf32> -> vector<16x16xf32>
    %85 = vector.broadcast %81 : vector<16x1xf32> to vector<16x16xf32>
    %86 = arith.mulf %16, %85 : vector<16x16xf32>
    %87 = arith.addf %84, %86 : vector<16x16xf32>
    %88 = vector.broadcast %69 : vector<16x1xf32> to vector<16x16xf32>
    %89 = arith.addf %87, %88 : vector<16x16xf32>
    %90 = vector.broadcast %64 : vector<1x16xf32> to vector<16x16xf32>
    %91 = arith.addf %89, %90 : vector<16x16xf32>
    %cst_49 = arith.constant 0.000000e+00 : f32
    %92 = vector.broadcast %cst_49 : f32 to vector<16x16xf32>
    %93 = arith.cmpf ogt, %91, %92 : vector<16x16xf32>
    %cst_50 = arith.constant 2.000000e-01 : f32
    %94 = vector.broadcast %cst_50 : f32 to vector<16x16xf32>
    %95 = arith.mulf %94, %91 : vector<16x16xf32>
    %96 = arith.select %93, %91, %95 : vector<16x16xi1>, vector<16x16xf32>
    %cst_51 = arith.constant 0.000000e+00 : f32
    %97 = vector.broadcast %cst_51 : f32 to vector<16x16xf32>
    %98 = arith.cmpf ogt, %18, %97 : vector<16x16xf32>
    %cst_52 = arith.constant -1.000000e+30 : f32
    %99 = vector.broadcast %cst_52 : f32 to vector<16x16xf32>
    %100 = arith.select %98, %96, %99 : vector<16x16xi1>, vector<16x16xf32>
    %cst_53 = arith.constant dense<0xFF800000> : vector<16xf32>
    %101 = vector.multi_reduction <maximumf>, %100, %cst_53 [1] : vector<16x16xf32> to vector<16xf32>
    %102 = vector.shape_cast %101 : vector<16xf32> to vector<16x1xf32>
    %103 = vector.broadcast %102 : vector<16x1xf32> to vector<16x16xf32>
    %104 = arith.subf %100, %103 : vector<16x16xf32>
    %105 = math.exp %104 : vector<16x16xf32>
    %cst_54 = arith.constant dense<0.000000e+00> : vector<16xf32>
    %106 = vector.multi_reduction <add>, %105, %cst_54 [1] : vector<16x16xf32> to vector<16xf32>
    %107 = vector.shape_cast %106 : vector<16xf32> to vector<16x1xf32>
    %108 = tpu.reciprocal %107 {approx = true} : vector<16x1xf32> -> vector<16x1xf32>
    %109 = vector.broadcast %108 : vector<16x1xf32> to vector<16x16xf32>
    %110 = arith.mulf %105, %109 : vector<16x16xf32>
    %cst_55 = arith.constant dense<0.000000e+00> : vector<16x32xf32>
    %111 = tpu.matmul %110, %62, %cst_55 {dimension_numbers = #tpu.dot_dimension_numbers<[1], [0], [0], [1], [0, 0, 1, 1], [], []>} : vector<16x16xf32>, vector<16x32xf32>, vector<16x32xf32> -> vector<16x32xf32>
    %112 = arith.addf %61, %111 : vector<16x32xf32>
    %113 = vector.extract_strided_slice %48 {offsets = [0, 32], sizes = [16, 32], strides = [1, 1]} : vector<16x128xf32> to vector<16x32xf32>
    %114 = vector.extract_strided_slice %56 {offsets = [0, 32], sizes = [1, 32], strides = [1, 1]} : vector<1x128xf32> to vector<1x32xf32>
    %cst_56 = arith.constant dense<0.000000e+00> : vector<1x16xf32>
    %115 = tpu.matmul %114, %113, %cst_56 {dimension_numbers = #tpu.dot_dimension_numbers<[1], [1], [0], [0], [0, 0, 1, 0], [], []>} : vector<1x32xf32>, vector<16x32xf32>, vector<1x16xf32> -> vector<1x16xf32>
    %116 = vector.extract_strided_slice %58 {offsets = [0, 32], sizes = [1, 32], strides = [1, 1]} : vector<1x128xf32> to vector<1x32xf32>
    %117 = vector.broadcast %116 : vector<1x32xf32> to vector<16x32xf32>
    %118 = arith.mulf %113, %117 : vector<16x32xf32>
    %cst_57 = arith.constant dense<0.000000e+00> : vector<16xf32>
    %119 = vector.multi_reduction <add>, %118, %cst_57 [1] : vector<16x32xf32> to vector<16xf32>
    %120 = vector.shape_cast %119 : vector<16xf32> to vector<16x1xf32>
    %121 = vector.extract_strided_slice %51 {offsets = [0, 32], sizes = [32, 32], strides = [1, 1]} : vector<32x128xf32> to vector<32x32xf32>
    %122 = vector.extract_strided_slice %60 {offsets = [0, 32], sizes = [1, 32], strides = [1, 1]} : vector<1x128xf32> to vector<1x32xf32>
    %123 = vector.broadcast %122 : vector<1x32xf32> to vector<32x32xf32>
    %124 = arith.mulf %121, %123 : vector<32x32xf32>
    %cst_58 = arith.constant dense<0.000000e+00> : vector<32xf32>
    %125 = vector.multi_reduction <add>, %124, %cst_58 [1] : vector<32x32xf32> to vector<32xf32>
    %126 = vector.shape_cast %125 : vector<32xf32> to vector<32x1xf32>
    %127 = vector.extract_strided_slice %54 {offsets = [0, 32], sizes = [16, 32], strides = [1, 1]} : vector<16x128xf32> to vector<16x32xf32>
    %128 = vector.extract_strided_slice %60 {offsets = [0, 32], sizes = [1, 32], strides = [1, 1]} : vector<1x128xf32> to vector<1x32xf32>
    %129 = vector.broadcast %128 : vector<1x32xf32> to vector<16x32xf32>
    %130 = arith.mulf %127, %129 : vector<16x32xf32>
    %cst_59 = arith.constant dense<0.000000e+00> : vector<16xf32>
    %131 = vector.multi_reduction <add>, %130, %cst_59 [1] : vector<16x32xf32> to vector<16xf32>
    %132 = vector.shape_cast %131 : vector<16xf32> to vector<16x1xf32>
    %133 = vector.broadcast %126 : vector<32x1xf32> to vector<32x16xf32>
    %134 = arith.mulf %133, %11 : vector<32x16xf32>
    %cst_60 = arith.constant dense<0.000000e+00> : vector<16x16xf32>
    %135 = tpu.matmul %5, %134, %cst_60 {dimension_numbers = #tpu.dot_dimension_numbers<[1], [0], [0], [1], [0, 0, 1, 1], [], []>} : vector<16x32xf32>, vector<32x16xf32>, vector<16x16xf32> -> vector<16x16xf32>
    %136 = vector.broadcast %132 : vector<16x1xf32> to vector<16x16xf32>
    %137 = arith.mulf %16, %136 : vector<16x16xf32>
    %138 = arith.addf %135, %137 : vector<16x16xf32>
    %139 = vector.broadcast %120 : vector<16x1xf32> to vector<16x16xf32>
    %140 = arith.addf %138, %139 : vector<16x16xf32>
    %141 = vector.broadcast %115 : vector<1x16xf32> to vector<16x16xf32>
    %142 = arith.addf %140, %141 : vector<16x16xf32>
    %cst_61 = arith.constant 0.000000e+00 : f32
    %143 = vector.broadcast %cst_61 : f32 to vector<16x16xf32>
    %144 = arith.cmpf ogt, %142, %143 : vector<16x16xf32>
    %cst_62 = arith.constant 2.000000e-01 : f32
    %145 = vector.broadcast %cst_62 : f32 to vector<16x16xf32>
    %146 = arith.mulf %145, %142 : vector<16x16xf32>
    %147 = arith.select %144, %142, %146 : vector<16x16xi1>, vector<16x16xf32>
    %cst_63 = arith.constant 0.000000e+00 : f32
    %148 = vector.broadcast %cst_63 : f32 to vector<16x16xf32>
    %149 = arith.cmpf ogt, %18, %148 : vector<16x16xf32>
    %cst_64 = arith.constant -1.000000e+30 : f32
    %150 = vector.broadcast %cst_64 : f32 to vector<16x16xf32>
    %151 = arith.select %149, %147, %150 : vector<16x16xi1>, vector<16x16xf32>
    %cst_65 = arith.constant dense<0xFF800000> : vector<16xf32>
    %152 = vector.multi_reduction <maximumf>, %151, %cst_65 [1] : vector<16x16xf32> to vector<16xf32>
    %153 = vector.shape_cast %152 : vector<16xf32> to vector<16x1xf32>
    %154 = vector.broadcast %153 : vector<16x1xf32> to vector<16x16xf32>
    %155 = arith.subf %151, %154 : vector<16x16xf32>
    %156 = math.exp %155 : vector<16x16xf32>
    %cst_66 = arith.constant dense<0.000000e+00> : vector<16xf32>
    %157 = vector.multi_reduction <add>, %156, %cst_66 [1] : vector<16x16xf32> to vector<16xf32>
    %158 = vector.shape_cast %157 : vector<16xf32> to vector<16x1xf32>
    %159 = tpu.reciprocal %158 {approx = true} : vector<16x1xf32> -> vector<16x1xf32>
    %160 = vector.broadcast %159 : vector<16x1xf32> to vector<16x16xf32>
    %161 = arith.mulf %156, %160 : vector<16x16xf32>
    %cst_67 = arith.constant dense<0.000000e+00> : vector<16x32xf32>
    %162 = tpu.matmul %161, %113, %cst_67 {dimension_numbers = #tpu.dot_dimension_numbers<[1], [0], [0], [1], [0, 0, 1, 1], [], []>} : vector<16x16xf32>, vector<16x32xf32>, vector<16x32xf32> -> vector<16x32xf32>
    %163 = arith.addf %112, %162 : vector<16x32xf32>
    %164 = vector.extract_strided_slice %48 {offsets = [0, 64], sizes = [16, 32], strides = [1, 1]} : vector<16x128xf32> to vector<16x32xf32>
    %165 = vector.extract_strided_slice %56 {offsets = [0, 64], sizes = [1, 32], strides = [1, 1]} : vector<1x128xf32> to vector<1x32xf32>
    %cst_68 = arith.constant dense<0.000000e+00> : vector<1x16xf32>
    %166 = tpu.matmul %165, %164, %cst_68 {dimension_numbers = #tpu.dot_dimension_numbers<[1], [1], [0], [0], [0, 0, 1, 0], [], []>} : vector<1x32xf32>, vector<16x32xf32>, vector<1x16xf32> -> vector<1x16xf32>
    %167 = vector.extract_strided_slice %58 {offsets = [0, 64], sizes = [1, 32], strides = [1, 1]} : vector<1x128xf32> to vector<1x32xf32>
    %168 = vector.broadcast %167 : vector<1x32xf32> to vector<16x32xf32>
    %169 = arith.mulf %164, %168 : vector<16x32xf32>
    %cst_69 = arith.constant dense<0.000000e+00> : vector<16xf32>
    %170 = vector.multi_reduction <add>, %169, %cst_69 [1] : vector<16x32xf32> to vector<16xf32>
    %171 = vector.shape_cast %170 : vector<16xf32> to vector<16x1xf32>
    %172 = vector.extract_strided_slice %51 {offsets = [0, 64], sizes = [32, 32], strides = [1, 1]} : vector<32x128xf32> to vector<32x32xf32>
    %173 = vector.extract_strided_slice %60 {offsets = [0, 64], sizes = [1, 32], strides = [1, 1]} : vector<1x128xf32> to vector<1x32xf32>
    %174 = vector.broadcast %173 : vector<1x32xf32> to vector<32x32xf32>
    %175 = arith.mulf %172, %174 : vector<32x32xf32>
    %cst_70 = arith.constant dense<0.000000e+00> : vector<32xf32>
    %176 = vector.multi_reduction <add>, %175, %cst_70 [1] : vector<32x32xf32> to vector<32xf32>
    %177 = vector.shape_cast %176 : vector<32xf32> to vector<32x1xf32>
    %178 = vector.extract_strided_slice %54 {offsets = [0, 64], sizes = [16, 32], strides = [1, 1]} : vector<16x128xf32> to vector<16x32xf32>
    %179 = vector.extract_strided_slice %60 {offsets = [0, 64], sizes = [1, 32], strides = [1, 1]} : vector<1x128xf32> to vector<1x32xf32>
    %180 = vector.broadcast %179 : vector<1x32xf32> to vector<16x32xf32>
    %181 = arith.mulf %178, %180 : vector<16x32xf32>
    %cst_71 = arith.constant dense<0.000000e+00> : vector<16xf32>
    %182 = vector.multi_reduction <add>, %181, %cst_71 [1] : vector<16x32xf32> to vector<16xf32>
    %183 = vector.shape_cast %182 : vector<16xf32> to vector<16x1xf32>
    %184 = vector.broadcast %177 : vector<32x1xf32> to vector<32x16xf32>
    %185 = arith.mulf %184, %11 : vector<32x16xf32>
    %cst_72 = arith.constant dense<0.000000e+00> : vector<16x16xf32>
    %186 = tpu.matmul %5, %185, %cst_72 {dimension_numbers = #tpu.dot_dimension_numbers<[1], [0], [0], [1], [0, 0, 1, 1], [], []>} : vector<16x32xf32>, vector<32x16xf32>, vector<16x16xf32> -> vector<16x16xf32>
    %187 = vector.broadcast %183 : vector<16x1xf32> to vector<16x16xf32>
    %188 = arith.mulf %16, %187 : vector<16x16xf32>
    %189 = arith.addf %186, %188 : vector<16x16xf32>
    %190 = vector.broadcast %171 : vector<16x1xf32> to vector<16x16xf32>
    %191 = arith.addf %189, %190 : vector<16x16xf32>
    %192 = vector.broadcast %166 : vector<1x16xf32> to vector<16x16xf32>
    %193 = arith.addf %191, %192 : vector<16x16xf32>
    %cst_73 = arith.constant 0.000000e+00 : f32
    %194 = vector.broadcast %cst_73 : f32 to vector<16x16xf32>
    %195 = arith.cmpf ogt, %193, %194 : vector<16x16xf32>
    %cst_74 = arith.constant 2.000000e-01 : f32
    %196 = vector.broadcast %cst_74 : f32 to vector<16x16xf32>
    %197 = arith.mulf %196, %193 : vector<16x16xf32>
    %198 = arith.select %195, %193, %197 : vector<16x16xi1>, vector<16x16xf32>
    %cst_75 = arith.constant 0.000000e+00 : f32
    %199 = vector.broadcast %cst_75 : f32 to vector<16x16xf32>
    %200 = arith.cmpf ogt, %18, %199 : vector<16x16xf32>
    %cst_76 = arith.constant -1.000000e+30 : f32
    %201 = vector.broadcast %cst_76 : f32 to vector<16x16xf32>
    %202 = arith.select %200, %198, %201 : vector<16x16xi1>, vector<16x16xf32>
    %cst_77 = arith.constant dense<0xFF800000> : vector<16xf32>
    %203 = vector.multi_reduction <maximumf>, %202, %cst_77 [1] : vector<16x16xf32> to vector<16xf32>
    %204 = vector.shape_cast %203 : vector<16xf32> to vector<16x1xf32>
    %205 = vector.broadcast %204 : vector<16x1xf32> to vector<16x16xf32>
    %206 = arith.subf %202, %205 : vector<16x16xf32>
    %207 = math.exp %206 : vector<16x16xf32>
    %cst_78 = arith.constant dense<0.000000e+00> : vector<16xf32>
    %208 = vector.multi_reduction <add>, %207, %cst_78 [1] : vector<16x16xf32> to vector<16xf32>
    %209 = vector.shape_cast %208 : vector<16xf32> to vector<16x1xf32>
    %210 = tpu.reciprocal %209 {approx = true} : vector<16x1xf32> -> vector<16x1xf32>
    %211 = vector.broadcast %210 : vector<16x1xf32> to vector<16x16xf32>
    %212 = arith.mulf %207, %211 : vector<16x16xf32>
    %cst_79 = arith.constant dense<0.000000e+00> : vector<16x32xf32>
    %213 = tpu.matmul %212, %164, %cst_79 {dimension_numbers = #tpu.dot_dimension_numbers<[1], [0], [0], [1], [0, 0, 1, 1], [], []>} : vector<16x16xf32>, vector<16x32xf32>, vector<16x32xf32> -> vector<16x32xf32>
    %214 = arith.addf %163, %213 : vector<16x32xf32>
    %215 = vector.extract_strided_slice %48 {offsets = [0, 96], sizes = [16, 32], strides = [1, 1]} : vector<16x128xf32> to vector<16x32xf32>
    %216 = vector.extract_strided_slice %56 {offsets = [0, 96], sizes = [1, 32], strides = [1, 1]} : vector<1x128xf32> to vector<1x32xf32>
    %cst_80 = arith.constant dense<0.000000e+00> : vector<1x16xf32>
    %217 = tpu.matmul %216, %215, %cst_80 {dimension_numbers = #tpu.dot_dimension_numbers<[1], [1], [0], [0], [0, 0, 1, 0], [], []>} : vector<1x32xf32>, vector<16x32xf32>, vector<1x16xf32> -> vector<1x16xf32>
    %218 = vector.extract_strided_slice %58 {offsets = [0, 96], sizes = [1, 32], strides = [1, 1]} : vector<1x128xf32> to vector<1x32xf32>
    %219 = vector.broadcast %218 : vector<1x32xf32> to vector<16x32xf32>
    %220 = arith.mulf %215, %219 : vector<16x32xf32>
    %cst_81 = arith.constant dense<0.000000e+00> : vector<16xf32>
    %221 = vector.multi_reduction <add>, %220, %cst_81 [1] : vector<16x32xf32> to vector<16xf32>
    %222 = vector.shape_cast %221 : vector<16xf32> to vector<16x1xf32>
    %223 = vector.extract_strided_slice %51 {offsets = [0, 96], sizes = [32, 32], strides = [1, 1]} : vector<32x128xf32> to vector<32x32xf32>
    %224 = vector.extract_strided_slice %60 {offsets = [0, 96], sizes = [1, 32], strides = [1, 1]} : vector<1x128xf32> to vector<1x32xf32>
    %225 = vector.broadcast %224 : vector<1x32xf32> to vector<32x32xf32>
    %226 = arith.mulf %223, %225 : vector<32x32xf32>
    %cst_82 = arith.constant dense<0.000000e+00> : vector<32xf32>
    %227 = vector.multi_reduction <add>, %226, %cst_82 [1] : vector<32x32xf32> to vector<32xf32>
    %228 = vector.shape_cast %227 : vector<32xf32> to vector<32x1xf32>
    %229 = vector.extract_strided_slice %54 {offsets = [0, 96], sizes = [16, 32], strides = [1, 1]} : vector<16x128xf32> to vector<16x32xf32>
    %230 = vector.extract_strided_slice %60 {offsets = [0, 96], sizes = [1, 32], strides = [1, 1]} : vector<1x128xf32> to vector<1x32xf32>
    %231 = vector.broadcast %230 : vector<1x32xf32> to vector<16x32xf32>
    %232 = arith.mulf %229, %231 : vector<16x32xf32>
    %cst_83 = arith.constant dense<0.000000e+00> : vector<16xf32>
    %233 = vector.multi_reduction <add>, %232, %cst_83 [1] : vector<16x32xf32> to vector<16xf32>
    %234 = vector.shape_cast %233 : vector<16xf32> to vector<16x1xf32>
    %235 = vector.broadcast %228 : vector<32x1xf32> to vector<32x16xf32>
    %236 = arith.mulf %235, %11 : vector<32x16xf32>
    %cst_84 = arith.constant dense<0.000000e+00> : vector<16x16xf32>
    %237 = tpu.matmul %5, %236, %cst_84 {dimension_numbers = #tpu.dot_dimension_numbers<[1], [0], [0], [1], [0, 0, 1, 1], [], []>} : vector<16x32xf32>, vector<32x16xf32>, vector<16x16xf32> -> vector<16x16xf32>
    %238 = vector.broadcast %234 : vector<16x1xf32> to vector<16x16xf32>
    %239 = arith.mulf %16, %238 : vector<16x16xf32>
    %240 = arith.addf %237, %239 : vector<16x16xf32>
    %241 = vector.broadcast %222 : vector<16x1xf32> to vector<16x16xf32>
    %242 = arith.addf %240, %241 : vector<16x16xf32>
    %243 = vector.broadcast %217 : vector<1x16xf32> to vector<16x16xf32>
    %244 = arith.addf %242, %243 : vector<16x16xf32>
    %cst_85 = arith.constant 0.000000e+00 : f32
    %245 = vector.broadcast %cst_85 : f32 to vector<16x16xf32>
    %246 = arith.cmpf ogt, %244, %245 : vector<16x16xf32>
    %cst_86 = arith.constant 2.000000e-01 : f32
    %247 = vector.broadcast %cst_86 : f32 to vector<16x16xf32>
    %248 = arith.mulf %247, %244 : vector<16x16xf32>
    %249 = arith.select %246, %244, %248 : vector<16x16xi1>, vector<16x16xf32>
    %cst_87 = arith.constant 0.000000e+00 : f32
    %250 = vector.broadcast %cst_87 : f32 to vector<16x16xf32>
    %251 = arith.cmpf ogt, %18, %250 : vector<16x16xf32>
    %cst_88 = arith.constant -1.000000e+30 : f32
    %252 = vector.broadcast %cst_88 : f32 to vector<16x16xf32>
    %253 = arith.select %251, %249, %252 : vector<16x16xi1>, vector<16x16xf32>
    %cst_89 = arith.constant dense<0xFF800000> : vector<16xf32>
    %254 = vector.multi_reduction <maximumf>, %253, %cst_89 [1] : vector<16x16xf32> to vector<16xf32>
    %255 = vector.shape_cast %254 : vector<16xf32> to vector<16x1xf32>
    %256 = vector.broadcast %255 : vector<16x1xf32> to vector<16x16xf32>
    %257 = arith.subf %253, %256 : vector<16x16xf32>
    %258 = math.exp %257 : vector<16x16xf32>
    %cst_90 = arith.constant dense<0.000000e+00> : vector<16xf32>
    %259 = vector.multi_reduction <add>, %258, %cst_90 [1] : vector<16x16xf32> to vector<16xf32>
    %260 = vector.shape_cast %259 : vector<16xf32> to vector<16x1xf32>
    %261 = tpu.reciprocal %260 {approx = true} : vector<16x1xf32> -> vector<16x1xf32>
    %262 = vector.broadcast %261 : vector<16x1xf32> to vector<16x16xf32>
    %263 = arith.mulf %258, %262 : vector<16x16xf32>
    %cst_91 = arith.constant dense<0.000000e+00> : vector<16x32xf32>
    %264 = tpu.matmul %263, %215, %cst_91 {dimension_numbers = #tpu.dot_dimension_numbers<[1], [0], [0], [1], [0, 0, 1, 1], [], []>} : vector<16x16xf32>, vector<16x32xf32>, vector<16x32xf32> -> vector<16x32xf32>
    %265 = arith.addf %214, %264 : vector<16x32xf32>
    %cst_92 = arith.constant 2.500000e-01 : f32
    %266 = vector.broadcast %cst_92 : f32 to vector<16x32xf32>
    %267 = arith.mulf %265, %266 : vector<16x32xf32>
    %c0_93 = arith.constant 0 : index
    %c0_94 = arith.constant 0 : index
    %c0_95 = arith.constant 0 : index
    %268 = vector.load %arg13[%c0_93, %c0_94, %c0_95] : memref<3x1x32xf32, #tpu.memory_space<vmem>>, vector<1x1x32xf32>
    %269 = vector.shape_cast %268 : vector<1x1x32xf32> to vector<1x32xf32>
    %270 = vector.broadcast %269 : vector<1x32xf32> to vector<16x32xf32>
    %271 = arith.addf %267, %270 : vector<16x32xf32>
    %cst_96 = arith.constant dense<0.000000e+00> : vector<32xf32>
    %272 = vector.multi_reduction <add>, %271, %cst_96 [0] : vector<16x32xf32> to vector<32xf32>
    %273 = vector.shape_cast %272 : vector<32xf32> to vector<1x32xf32>
    %cst_97 = arith.constant 1.600000e+01 : f32
    %274 = vector.broadcast %cst_97 : f32 to vector<1x32xf32>
    %275 = arith.divf %273, %274 : vector<1x32xf32>
    %276 = vector.broadcast %275 : vector<1x32xf32> to vector<16x32xf32>
    %277 = arith.subf %271, %276 : vector<16x32xf32>
    %278 = arith.mulf %277, %277 : vector<16x32xf32>
    %cst_98 = arith.constant dense<0.000000e+00> : vector<32xf32>
    %279 = vector.multi_reduction <add>, %278, %cst_98 [0] : vector<16x32xf32> to vector<32xf32>
    %280 = vector.shape_cast %279 : vector<32xf32> to vector<1x32xf32>
    %cst_99 = arith.constant 1.600000e+01 : f32
    %281 = vector.broadcast %cst_99 : f32 to vector<1x32xf32>
    %282 = arith.divf %280, %281 : vector<1x32xf32>
    %283 = vector.broadcast %275 : vector<1x32xf32> to vector<16x32xf32>
    %284 = arith.subf %271, %283 : vector<16x32xf32>
    %cst_100 = arith.constant 9.99999974E-6 : f32
    %285 = vector.broadcast %cst_100 : f32 to vector<1x32xf32>
    %286 = arith.addf %282, %285 : vector<1x32xf32>
    %287 = math.rsqrt %286 : vector<1x32xf32>
    %288 = vector.broadcast %287 : vector<1x32xf32> to vector<16x32xf32>
    %289 = arith.mulf %284, %288 : vector<16x32xf32>
    %c0_101 = arith.constant 0 : index
    %c0_102 = arith.constant 0 : index
    %c0_103 = arith.constant 0 : index
    %290 = vector.load %arg14[%c0_101, %c0_102, %c0_103] : memref<3x1x32xf32, #tpu.memory_space<vmem>>, vector<1x1x32xf32>
    %291 = vector.shape_cast %290 : vector<1x1x32xf32> to vector<1x32xf32>
    %292 = vector.broadcast %291 : vector<1x32xf32> to vector<16x32xf32>
    %293 = arith.mulf %289, %292 : vector<16x32xf32>
    %c0_104 = arith.constant 0 : index
    %c0_105 = arith.constant 0 : index
    %c0_106 = arith.constant 0 : index
    %294 = vector.load %arg15[%c0_104, %c0_105, %c0_106] : memref<3x1x32xf32, #tpu.memory_space<vmem>>, vector<1x1x32xf32>
    %295 = vector.shape_cast %294 : vector<1x1x32xf32> to vector<1x32xf32>
    %296 = vector.broadcast %295 : vector<1x32xf32> to vector<16x32xf32>
    %297 = arith.addf %293, %296 : vector<16x32xf32>
    %cst_107 = arith.constant 0.000000e+00 : f32
    %298 = vector.broadcast %cst_107 : f32 to vector<16x32xf32>
    %299 = arith.maximumf %297, %298 : vector<16x32xf32>
    %300 = arith.addf %299, %30 : vector<16x32xf32>
    %c1 = arith.constant 1 : index
    %c0_108 = arith.constant 0 : index
    %c0_109 = arith.constant 0 : index
    %301 = vector.load %arg8[%c1, %c0_108, %c0_109] : memref<3x32x128xf32, #tpu.memory_space<vmem>>, vector<1x32x128xf32>
    %302 = vector.shape_cast %301 : vector<1x32x128xf32> to vector<32x128xf32>
    %cst_110 = arith.constant dense<0.000000e+00> : vector<16x128xf32>
    %303 = tpu.matmul %300, %302, %cst_110 {dimension_numbers = #tpu.dot_dimension_numbers<[1], [0], [0], [1], [0, 0, 1, 1], [], []>} : vector<16x32xf32>, vector<32x128xf32>, vector<16x128xf32> -> vector<16x128xf32>
    %c1_111 = arith.constant 1 : index
    %c0_112 = arith.constant 0 : index
    %c0_113 = arith.constant 0 : index
    %304 = vector.load %arg9[%c1_111, %c0_112, %c0_113] : memref<3x32x128xf32, #tpu.memory_space<vmem>>, vector<1x32x128xf32>
    %305 = vector.shape_cast %304 : vector<1x32x128xf32> to vector<32x128xf32>
    %cst_114 = arith.constant dense<0.000000e+00> : vector<32x128xf32>
    %306 = tpu.matmul %44, %305, %cst_114 {dimension_numbers = #tpu.dot_dimension_numbers<[1], [0], [0], [1], [0, 0, 1, 1], [], []>} : vector<32x32xf32>, vector<32x128xf32>, vector<32x128xf32> -> vector<32x128xf32>
    %c1_115 = arith.constant 1 : index
    %c0_116 = arith.constant 0 : index
    %c0_117 = arith.constant 0 : index
    %307 = vector.load %arg9[%c1_115, %c0_116, %c0_117] : memref<3x32x128xf32, #tpu.memory_space<vmem>>, vector<1x32x128xf32>
    %308 = vector.shape_cast %307 : vector<1x32x128xf32> to vector<32x128xf32>
    %cst_118 = arith.constant dense<0.000000e+00> : vector<16x128xf32>
    %309 = tpu.matmul %45, %308, %cst_118 {dimension_numbers = #tpu.dot_dimension_numbers<[1], [0], [0], [1], [0, 0, 1, 1], [], []>} : vector<16x32xf32>, vector<32x128xf32>, vector<16x128xf32> -> vector<16x128xf32>
    %c1_119 = arith.constant 1 : index
    %c0_120 = arith.constant 0 : index
    %c0_121 = arith.constant 0 : index
    %310 = vector.load %arg10[%c1_119, %c0_120, %c0_121] : memref<3x1x128xf32, #tpu.memory_space<vmem>>, vector<1x1x128xf32>
    %311 = vector.shape_cast %310 : vector<1x1x128xf32> to vector<1x128xf32>
    %c1_122 = arith.constant 1 : index
    %c0_123 = arith.constant 0 : index
    %c0_124 = arith.constant 0 : index
    %312 = vector.load %arg11[%c1_122, %c0_123, %c0_124] : memref<3x1x128xf32, #tpu.memory_space<vmem>>, vector<1x1x128xf32>
    %313 = vector.shape_cast %312 : vector<1x1x128xf32> to vector<1x128xf32>
    %c1_125 = arith.constant 1 : index
    %c0_126 = arith.constant 0 : index
    %c0_127 = arith.constant 0 : index
    %314 = vector.load %arg12[%c1_125, %c0_126, %c0_127] : memref<3x1x128xf32, #tpu.memory_space<vmem>>, vector<1x1x128xf32>
    %315 = vector.shape_cast %314 : vector<1x1x128xf32> to vector<1x128xf32>
    %cst_128 = arith.constant 0.000000e+00 : f32
    %316 = vector.broadcast %cst_128 : f32 to vector<16x32xf32>
    %317 = vector.extract_strided_slice %303 {offsets = [0, 0], sizes = [16, 32], strides = [1, 1]} : vector<16x128xf32> to vector<16x32xf32>
    %318 = vector.extract_strided_slice %311 {offsets = [0, 0], sizes = [1, 32], strides = [1, 1]} : vector<1x128xf32> to vector<1x32xf32>
    %cst_129 = arith.constant dense<0.000000e+00> : vector<1x16xf32>
    %319 = tpu.matmul %318, %317, %cst_129 {dimension_numbers = #tpu.dot_dimension_numbers<[1], [1], [0], [0], [0, 0, 1, 0], [], []>} : vector<1x32xf32>, vector<16x32xf32>, vector<1x16xf32> -> vector<1x16xf32>
    %320 = vector.extract_strided_slice %313 {offsets = [0, 0], sizes = [1, 32], strides = [1, 1]} : vector<1x128xf32> to vector<1x32xf32>
    %321 = vector.broadcast %320 : vector<1x32xf32> to vector<16x32xf32>
    %322 = arith.mulf %317, %321 : vector<16x32xf32>
    %cst_130 = arith.constant dense<0.000000e+00> : vector<16xf32>
    %323 = vector.multi_reduction <add>, %322, %cst_130 [1] : vector<16x32xf32> to vector<16xf32>
    %324 = vector.shape_cast %323 : vector<16xf32> to vector<16x1xf32>
    %325 = vector.extract_strided_slice %306 {offsets = [0, 0], sizes = [32, 32], strides = [1, 1]} : vector<32x128xf32> to vector<32x32xf32>
    %326 = vector.extract_strided_slice %315 {offsets = [0, 0], sizes = [1, 32], strides = [1, 1]} : vector<1x128xf32> to vector<1x32xf32>
    %327 = vector.broadcast %326 : vector<1x32xf32> to vector<32x32xf32>
    %328 = arith.mulf %325, %327 : vector<32x32xf32>
    %cst_131 = arith.constant dense<0.000000e+00> : vector<32xf32>
    %329 = vector.multi_reduction <add>, %328, %cst_131 [1] : vector<32x32xf32> to vector<32xf32>
    %330 = vector.shape_cast %329 : vector<32xf32> to vector<32x1xf32>
    %331 = vector.extract_strided_slice %309 {offsets = [0, 0], sizes = [16, 32], strides = [1, 1]} : vector<16x128xf32> to vector<16x32xf32>
    %332 = vector.extract_strided_slice %315 {offsets = [0, 0], sizes = [1, 32], strides = [1, 1]} : vector<1x128xf32> to vector<1x32xf32>
    %333 = vector.broadcast %332 : vector<1x32xf32> to vector<16x32xf32>
    %334 = arith.mulf %331, %333 : vector<16x32xf32>
    %cst_132 = arith.constant dense<0.000000e+00> : vector<16xf32>
    %335 = vector.multi_reduction <add>, %334, %cst_132 [1] : vector<16x32xf32> to vector<16xf32>
    %336 = vector.shape_cast %335 : vector<16xf32> to vector<16x1xf32>
    %337 = vector.broadcast %330 : vector<32x1xf32> to vector<32x16xf32>
    %338 = arith.mulf %337, %11 : vector<32x16xf32>
    %cst_133 = arith.constant dense<0.000000e+00> : vector<16x16xf32>
    %339 = tpu.matmul %5, %338, %cst_133 {dimension_numbers = #tpu.dot_dimension_numbers<[1], [0], [0], [1], [0, 0, 1, 1], [], []>} : vector<16x32xf32>, vector<32x16xf32>, vector<16x16xf32> -> vector<16x16xf32>
    %340 = vector.broadcast %336 : vector<16x1xf32> to vector<16x16xf32>
    %341 = arith.mulf %16, %340 : vector<16x16xf32>
    %342 = arith.addf %339, %341 : vector<16x16xf32>
    %343 = vector.broadcast %324 : vector<16x1xf32> to vector<16x16xf32>
    %344 = arith.addf %342, %343 : vector<16x16xf32>
    %345 = vector.broadcast %319 : vector<1x16xf32> to vector<16x16xf32>
    %346 = arith.addf %344, %345 : vector<16x16xf32>
    %cst_134 = arith.constant 0.000000e+00 : f32
    %347 = vector.broadcast %cst_134 : f32 to vector<16x16xf32>
    %348 = arith.cmpf ogt, %346, %347 : vector<16x16xf32>
    %cst_135 = arith.constant 2.000000e-01 : f32
    %349 = vector.broadcast %cst_135 : f32 to vector<16x16xf32>
    %350 = arith.mulf %349, %346 : vector<16x16xf32>
    %351 = arith.select %348, %346, %350 : vector<16x16xi1>, vector<16x16xf32>
    %cst_136 = arith.constant 0.000000e+00 : f32
    %352 = vector.broadcast %cst_136 : f32 to vector<16x16xf32>
    %353 = arith.cmpf ogt, %18, %352 : vector<16x16xf32>
    %cst_137 = arith.constant -1.000000e+30 : f32
    %354 = vector.broadcast %cst_137 : f32 to vector<16x16xf32>
    %355 = arith.select %353, %351, %354 : vector<16x16xi1>, vector<16x16xf32>
    %cst_138 = arith.constant dense<0xFF800000> : vector<16xf32>
    %356 = vector.multi_reduction <maximumf>, %355, %cst_138 [1] : vector<16x16xf32> to vector<16xf32>
    %357 = vector.shape_cast %356 : vector<16xf32> to vector<16x1xf32>
    %358 = vector.broadcast %357 : vector<16x1xf32> to vector<16x16xf32>
    %359 = arith.subf %355, %358 : vector<16x16xf32>
    %360 = math.exp %359 : vector<16x16xf32>
    %cst_139 = arith.constant dense<0.000000e+00> : vector<16xf32>
    %361 = vector.multi_reduction <add>, %360, %cst_139 [1] : vector<16x16xf32> to vector<16xf32>
    %362 = vector.shape_cast %361 : vector<16xf32> to vector<16x1xf32>
    %363 = tpu.reciprocal %362 {approx = true} : vector<16x1xf32> -> vector<16x1xf32>
    %364 = vector.broadcast %363 : vector<16x1xf32> to vector<16x16xf32>
    %365 = arith.mulf %360, %364 : vector<16x16xf32>
    %cst_140 = arith.constant dense<0.000000e+00> : vector<16x32xf32>
    %366 = tpu.matmul %365, %317, %cst_140 {dimension_numbers = #tpu.dot_dimension_numbers<[1], [0], [0], [1], [0, 0, 1, 1], [], []>} : vector<16x16xf32>, vector<16x32xf32>, vector<16x32xf32> -> vector<16x32xf32>
    %367 = arith.addf %316, %366 : vector<16x32xf32>
    %368 = vector.extract_strided_slice %303 {offsets = [0, 32], sizes = [16, 32], strides = [1, 1]} : vector<16x128xf32> to vector<16x32xf32>
    %369 = vector.extract_strided_slice %311 {offsets = [0, 32], sizes = [1, 32], strides = [1, 1]} : vector<1x128xf32> to vector<1x32xf32>
    %cst_141 = arith.constant dense<0.000000e+00> : vector<1x16xf32>
    %370 = tpu.matmul %369, %368, %cst_141 {dimension_numbers = #tpu.dot_dimension_numbers<[1], [1], [0], [0], [0, 0, 1, 0], [], []>} : vector<1x32xf32>, vector<16x32xf32>, vector<1x16xf32> -> vector<1x16xf32>
    %371 = vector.extract_strided_slice %313 {offsets = [0, 32], sizes = [1, 32], strides = [1, 1]} : vector<1x128xf32> to vector<1x32xf32>
    %372 = vector.broadcast %371 : vector<1x32xf32> to vector<16x32xf32>
    %373 = arith.mulf %368, %372 : vector<16x32xf32>
    %cst_142 = arith.constant dense<0.000000e+00> : vector<16xf32>
    %374 = vector.multi_reduction <add>, %373, %cst_142 [1] : vector<16x32xf32> to vector<16xf32>
    %375 = vector.shape_cast %374 : vector<16xf32> to vector<16x1xf32>
    %376 = vector.extract_strided_slice %306 {offsets = [0, 32], sizes = [32, 32], strides = [1, 1]} : vector<32x128xf32> to vector<32x32xf32>
    %377 = vector.extract_strided_slice %315 {offsets = [0, 32], sizes = [1, 32], strides = [1, 1]} : vector<1x128xf32> to vector<1x32xf32>
    %378 = vector.broadcast %377 : vector<1x32xf32> to vector<32x32xf32>
    %379 = arith.mulf %376, %378 : vector<32x32xf32>
    %cst_143 = arith.constant dense<0.000000e+00> : vector<32xf32>
    %380 = vector.multi_reduction <add>, %379, %cst_143 [1] : vector<32x32xf32> to vector<32xf32>
    %381 = vector.shape_cast %380 : vector<32xf32> to vector<32x1xf32>
    %382 = vector.extract_strided_slice %309 {offsets = [0, 32], sizes = [16, 32], strides = [1, 1]} : vector<16x128xf32> to vector<16x32xf32>
    %383 = vector.extract_strided_slice %315 {offsets = [0, 32], sizes = [1, 32], strides = [1, 1]} : vector<1x128xf32> to vector<1x32xf32>
    %384 = vector.broadcast %383 : vector<1x32xf32> to vector<16x32xf32>
    %385 = arith.mulf %382, %384 : vector<16x32xf32>
    %cst_144 = arith.constant dense<0.000000e+00> : vector<16xf32>
    %386 = vector.multi_reduction <add>, %385, %cst_144 [1] : vector<16x32xf32> to vector<16xf32>
    %387 = vector.shape_cast %386 : vector<16xf32> to vector<16x1xf32>
    %388 = vector.broadcast %381 : vector<32x1xf32> to vector<32x16xf32>
    %389 = arith.mulf %388, %11 : vector<32x16xf32>
    %cst_145 = arith.constant dense<0.000000e+00> : vector<16x16xf32>
    %390 = tpu.matmul %5, %389, %cst_145 {dimension_numbers = #tpu.dot_dimension_numbers<[1], [0], [0], [1], [0, 0, 1, 1], [], []>} : vector<16x32xf32>, vector<32x16xf32>, vector<16x16xf32> -> vector<16x16xf32>
    %391 = vector.broadcast %387 : vector<16x1xf32> to vector<16x16xf32>
    %392 = arith.mulf %16, %391 : vector<16x16xf32>
    %393 = arith.addf %390, %392 : vector<16x16xf32>
    %394 = vector.broadcast %375 : vector<16x1xf32> to vector<16x16xf32>
    %395 = arith.addf %393, %394 : vector<16x16xf32>
    %396 = vector.broadcast %370 : vector<1x16xf32> to vector<16x16xf32>
    %397 = arith.addf %395, %396 : vector<16x16xf32>
    %cst_146 = arith.constant 0.000000e+00 : f32
    %398 = vector.broadcast %cst_146 : f32 to vector<16x16xf32>
    %399 = arith.cmpf ogt, %397, %398 : vector<16x16xf32>
    %cst_147 = arith.constant 2.000000e-01 : f32
    %400 = vector.broadcast %cst_147 : f32 to vector<16x16xf32>
    %401 = arith.mulf %400, %397 : vector<16x16xf32>
    %402 = arith.select %399, %397, %401 : vector<16x16xi1>, vector<16x16xf32>
    %cst_148 = arith.constant 0.000000e+00 : f32
    %403 = vector.broadcast %cst_148 : f32 to vector<16x16xf32>
    %404 = arith.cmpf ogt, %18, %403 : vector<16x16xf32>
    %cst_149 = arith.constant -1.000000e+30 : f32
    %405 = vector.broadcast %cst_149 : f32 to vector<16x16xf32>
    %406 = arith.select %404, %402, %405 : vector<16x16xi1>, vector<16x16xf32>
    %cst_150 = arith.constant dense<0xFF800000> : vector<16xf32>
    %407 = vector.multi_reduction <maximumf>, %406, %cst_150 [1] : vector<16x16xf32> to vector<16xf32>
    %408 = vector.shape_cast %407 : vector<16xf32> to vector<16x1xf32>
    %409 = vector.broadcast %408 : vector<16x1xf32> to vector<16x16xf32>
    %410 = arith.subf %406, %409 : vector<16x16xf32>
    %411 = math.exp %410 : vector<16x16xf32>
    %cst_151 = arith.constant dense<0.000000e+00> : vector<16xf32>
    %412 = vector.multi_reduction <add>, %411, %cst_151 [1] : vector<16x16xf32> to vector<16xf32>
    %413 = vector.shape_cast %412 : vector<16xf32> to vector<16x1xf32>
    %414 = tpu.reciprocal %413 {approx = true} : vector<16x1xf32> -> vector<16x1xf32>
    %415 = vector.broadcast %414 : vector<16x1xf32> to vector<16x16xf32>
    %416 = arith.mulf %411, %415 : vector<16x16xf32>
    %cst_152 = arith.constant dense<0.000000e+00> : vector<16x32xf32>
    %417 = tpu.matmul %416, %368, %cst_152 {dimension_numbers = #tpu.dot_dimension_numbers<[1], [0], [0], [1], [0, 0, 1, 1], [], []>} : vector<16x16xf32>, vector<16x32xf32>, vector<16x32xf32> -> vector<16x32xf32>
    %418 = arith.addf %367, %417 : vector<16x32xf32>
    %419 = vector.extract_strided_slice %303 {offsets = [0, 64], sizes = [16, 32], strides = [1, 1]} : vector<16x128xf32> to vector<16x32xf32>
    %420 = vector.extract_strided_slice %311 {offsets = [0, 64], sizes = [1, 32], strides = [1, 1]} : vector<1x128xf32> to vector<1x32xf32>
    %cst_153 = arith.constant dense<0.000000e+00> : vector<1x16xf32>
    %421 = tpu.matmul %420, %419, %cst_153 {dimension_numbers = #tpu.dot_dimension_numbers<[1], [1], [0], [0], [0, 0, 1, 0], [], []>} : vector<1x32xf32>, vector<16x32xf32>, vector<1x16xf32> -> vector<1x16xf32>
    %422 = vector.extract_strided_slice %313 {offsets = [0, 64], sizes = [1, 32], strides = [1, 1]} : vector<1x128xf32> to vector<1x32xf32>
    %423 = vector.broadcast %422 : vector<1x32xf32> to vector<16x32xf32>
    %424 = arith.mulf %419, %423 : vector<16x32xf32>
    %cst_154 = arith.constant dense<0.000000e+00> : vector<16xf32>
    %425 = vector.multi_reduction <add>, %424, %cst_154 [1] : vector<16x32xf32> to vector<16xf32>
    %426 = vector.shape_cast %425 : vector<16xf32> to vector<16x1xf32>
    %427 = vector.extract_strided_slice %306 {offsets = [0, 64], sizes = [32, 32], strides = [1, 1]} : vector<32x128xf32> to vector<32x32xf32>
    %428 = vector.extract_strided_slice %315 {offsets = [0, 64], sizes = [1, 32], strides = [1, 1]} : vector<1x128xf32> to vector<1x32xf32>
    %429 = vector.broadcast %428 : vector<1x32xf32> to vector<32x32xf32>
    %430 = arith.mulf %427, %429 : vector<32x32xf32>
    %cst_155 = arith.constant dense<0.000000e+00> : vector<32xf32>
    %431 = vector.multi_reduction <add>, %430, %cst_155 [1] : vector<32x32xf32> to vector<32xf32>
    %432 = vector.shape_cast %431 : vector<32xf32> to vector<32x1xf32>
    %433 = vector.extract_strided_slice %309 {offsets = [0, 64], sizes = [16, 32], strides = [1, 1]} : vector<16x128xf32> to vector<16x32xf32>
    %434 = vector.extract_strided_slice %315 {offsets = [0, 64], sizes = [1, 32], strides = [1, 1]} : vector<1x128xf32> to vector<1x32xf32>
    %435 = vector.broadcast %434 : vector<1x32xf32> to vector<16x32xf32>
    %436 = arith.mulf %433, %435 : vector<16x32xf32>
    %cst_156 = arith.constant dense<0.000000e+00> : vector<16xf32>
    %437 = vector.multi_reduction <add>, %436, %cst_156 [1] : vector<16x32xf32> to vector<16xf32>
    %438 = vector.shape_cast %437 : vector<16xf32> to vector<16x1xf32>
    %439 = vector.broadcast %432 : vector<32x1xf32> to vector<32x16xf32>
    %440 = arith.mulf %439, %11 : vector<32x16xf32>
    %cst_157 = arith.constant dense<0.000000e+00> : vector<16x16xf32>
    %441 = tpu.matmul %5, %440, %cst_157 {dimension_numbers = #tpu.dot_dimension_numbers<[1], [0], [0], [1], [0, 0, 1, 1], [], []>} : vector<16x32xf32>, vector<32x16xf32>, vector<16x16xf32> -> vector<16x16xf32>
    %442 = vector.broadcast %438 : vector<16x1xf32> to vector<16x16xf32>
    %443 = arith.mulf %16, %442 : vector<16x16xf32>
    %444 = arith.addf %441, %443 : vector<16x16xf32>
    %445 = vector.broadcast %426 : vector<16x1xf32> to vector<16x16xf32>
    %446 = arith.addf %444, %445 : vector<16x16xf32>
    %447 = vector.broadcast %421 : vector<1x16xf32> to vector<16x16xf32>
    %448 = arith.addf %446, %447 : vector<16x16xf32>
    %cst_158 = arith.constant 0.000000e+00 : f32
    %449 = vector.broadcast %cst_158 : f32 to vector<16x16xf32>
    %450 = arith.cmpf ogt, %448, %449 : vector<16x16xf32>
    %cst_159 = arith.constant 2.000000e-01 : f32
    %451 = vector.broadcast %cst_159 : f32 to vector<16x16xf32>
    %452 = arith.mulf %451, %448 : vector<16x16xf32>
    %453 = arith.select %450, %448, %452 : vector<16x16xi1>, vector<16x16xf32>
    %cst_160 = arith.constant 0.000000e+00 : f32
    %454 = vector.broadcast %cst_160 : f32 to vector<16x16xf32>
    %455 = arith.cmpf ogt, %18, %454 : vector<16x16xf32>
    %cst_161 = arith.constant -1.000000e+30 : f32
    %456 = vector.broadcast %cst_161 : f32 to vector<16x16xf32>
    %457 = arith.select %455, %453, %456 : vector<16x16xi1>, vector<16x16xf32>
    %cst_162 = arith.constant dense<0xFF800000> : vector<16xf32>
    %458 = vector.multi_reduction <maximumf>, %457, %cst_162 [1] : vector<16x16xf32> to vector<16xf32>
    %459 = vector.shape_cast %458 : vector<16xf32> to vector<16x1xf32>
    %460 = vector.broadcast %459 : vector<16x1xf32> to vector<16x16xf32>
    %461 = arith.subf %457, %460 : vector<16x16xf32>
    %462 = math.exp %461 : vector<16x16xf32>
    %cst_163 = arith.constant dense<0.000000e+00> : vector<16xf32>
    %463 = vector.multi_reduction <add>, %462, %cst_163 [1] : vector<16x16xf32> to vector<16xf32>
    %464 = vector.shape_cast %463 : vector<16xf32> to vector<16x1xf32>
    %465 = tpu.reciprocal %464 {approx = true} : vector<16x1xf32> -> vector<16x1xf32>
    %466 = vector.broadcast %465 : vector<16x1xf32> to vector<16x16xf32>
    %467 = arith.mulf %462, %466 : vector<16x16xf32>
    %cst_164 = arith.constant dense<0.000000e+00> : vector<16x32xf32>
    %468 = tpu.matmul %467, %419, %cst_164 {dimension_numbers = #tpu.dot_dimension_numbers<[1], [0], [0], [1], [0, 0, 1, 1], [], []>} : vector<16x16xf32>, vector<16x32xf32>, vector<16x32xf32> -> vector<16x32xf32>
    %469 = arith.addf %418, %468 : vector<16x32xf32>
    %470 = vector.extract_strided_slice %303 {offsets = [0, 96], sizes = [16, 32], strides = [1, 1]} : vector<16x128xf32> to vector<16x32xf32>
    %471 = vector.extract_strided_slice %311 {offsets = [0, 96], sizes = [1, 32], strides = [1, 1]} : vector<1x128xf32> to vector<1x32xf32>
    %cst_165 = arith.constant dense<0.000000e+00> : vector<1x16xf32>
    %472 = tpu.matmul %471, %470, %cst_165 {dimension_numbers = #tpu.dot_dimension_numbers<[1], [1], [0], [0], [0, 0, 1, 0], [], []>} : vector<1x32xf32>, vector<16x32xf32>, vector<1x16xf32> -> vector<1x16xf32>
    %473 = vector.extract_strided_slice %313 {offsets = [0, 96], sizes = [1, 32], strides = [1, 1]} : vector<1x128xf32> to vector<1x32xf32>
    %474 = vector.broadcast %473 : vector<1x32xf32> to vector<16x32xf32>
    %475 = arith.mulf %470, %474 : vector<16x32xf32>
    %cst_166 = arith.constant dense<0.000000e+00> : vector<16xf32>
    %476 = vector.multi_reduction <add>, %475, %cst_166 [1] : vector<16x32xf32> to vector<16xf32>
    %477 = vector.shape_cast %476 : vector<16xf32> to vector<16x1xf32>
    %478 = vector.extract_strided_slice %306 {offsets = [0, 96], sizes = [32, 32], strides = [1, 1]} : vector<32x128xf32> to vector<32x32xf32>
    %479 = vector.extract_strided_slice %315 {offsets = [0, 96], sizes = [1, 32], strides = [1, 1]} : vector<1x128xf32> to vector<1x32xf32>
    %480 = vector.broadcast %479 : vector<1x32xf32> to vector<32x32xf32>
    %481 = arith.mulf %478, %480 : vector<32x32xf32>
    %cst_167 = arith.constant dense<0.000000e+00> : vector<32xf32>
    %482 = vector.multi_reduction <add>, %481, %cst_167 [1] : vector<32x32xf32> to vector<32xf32>
    %483 = vector.shape_cast %482 : vector<32xf32> to vector<32x1xf32>
    %484 = vector.extract_strided_slice %309 {offsets = [0, 96], sizes = [16, 32], strides = [1, 1]} : vector<16x128xf32> to vector<16x32xf32>
    %485 = vector.extract_strided_slice %315 {offsets = [0, 96], sizes = [1, 32], strides = [1, 1]} : vector<1x128xf32> to vector<1x32xf32>
    %486 = vector.broadcast %485 : vector<1x32xf32> to vector<16x32xf32>
    %487 = arith.mulf %484, %486 : vector<16x32xf32>
    %cst_168 = arith.constant dense<0.000000e+00> : vector<16xf32>
    %488 = vector.multi_reduction <add>, %487, %cst_168 [1] : vector<16x32xf32> to vector<16xf32>
    %489 = vector.shape_cast %488 : vector<16xf32> to vector<16x1xf32>
    %490 = vector.broadcast %483 : vector<32x1xf32> to vector<32x16xf32>
    %491 = arith.mulf %490, %11 : vector<32x16xf32>
    %cst_169 = arith.constant dense<0.000000e+00> : vector<16x16xf32>
    %492 = tpu.matmul %5, %491, %cst_169 {dimension_numbers = #tpu.dot_dimension_numbers<[1], [0], [0], [1], [0, 0, 1, 1], [], []>} : vector<16x32xf32>, vector<32x16xf32>, vector<16x16xf32> -> vector<16x16xf32>
    %493 = vector.broadcast %489 : vector<16x1xf32> to vector<16x16xf32>
    %494 = arith.mulf %16, %493 : vector<16x16xf32>
    %495 = arith.addf %492, %494 : vector<16x16xf32>
    %496 = vector.broadcast %477 : vector<16x1xf32> to vector<16x16xf32>
    %497 = arith.addf %495, %496 : vector<16x16xf32>
    %498 = vector.broadcast %472 : vector<1x16xf32> to vector<16x16xf32>
    %499 = arith.addf %497, %498 : vector<16x16xf32>
    %cst_170 = arith.constant 0.000000e+00 : f32
    %500 = vector.broadcast %cst_170 : f32 to vector<16x16xf32>
    %501 = arith.cmpf ogt, %499, %500 : vector<16x16xf32>
    %cst_171 = arith.constant 2.000000e-01 : f32
    %502 = vector.broadcast %cst_171 : f32 to vector<16x16xf32>
    %503 = arith.mulf %502, %499 : vector<16x16xf32>
    %504 = arith.select %501, %499, %503 : vector<16x16xi1>, vector<16x16xf32>
    %cst_172 = arith.constant 0.000000e+00 : f32
    %505 = vector.broadcast %cst_172 : f32 to vector<16x16xf32>
    %506 = arith.cmpf ogt, %18, %505 : vector<16x16xf32>
    %cst_173 = arith.constant -1.000000e+30 : f32
    %507 = vector.broadcast %cst_173 : f32 to vector<16x16xf32>
    %508 = arith.select %506, %504, %507 : vector<16x16xi1>, vector<16x16xf32>
    %cst_174 = arith.constant dense<0xFF800000> : vector<16xf32>
    %509 = vector.multi_reduction <maximumf>, %508, %cst_174 [1] : vector<16x16xf32> to vector<16xf32>
    %510 = vector.shape_cast %509 : vector<16xf32> to vector<16x1xf32>
    %511 = vector.broadcast %510 : vector<16x1xf32> to vector<16x16xf32>
    %512 = arith.subf %508, %511 : vector<16x16xf32>
    %513 = math.exp %512 : vector<16x16xf32>
    %cst_175 = arith.constant dense<0.000000e+00> : vector<16xf32>
    %514 = vector.multi_reduction <add>, %513, %cst_175 [1] : vector<16x16xf32> to vector<16xf32>
    %515 = vector.shape_cast %514 : vector<16xf32> to vector<16x1xf32>
    %516 = tpu.reciprocal %515 {approx = true} : vector<16x1xf32> -> vector<16x1xf32>
    %517 = vector.broadcast %516 : vector<16x1xf32> to vector<16x16xf32>
    %518 = arith.mulf %513, %517 : vector<16x16xf32>
    %cst_176 = arith.constant dense<0.000000e+00> : vector<16x32xf32>
    %519 = tpu.matmul %518, %470, %cst_176 {dimension_numbers = #tpu.dot_dimension_numbers<[1], [0], [0], [1], [0, 0, 1, 1], [], []>} : vector<16x16xf32>, vector<16x32xf32>, vector<16x32xf32> -> vector<16x32xf32>
    %520 = arith.addf %469, %519 : vector<16x32xf32>
    %cst_177 = arith.constant 2.500000e-01 : f32
    %521 = vector.broadcast %cst_177 : f32 to vector<16x32xf32>
    %522 = arith.mulf %520, %521 : vector<16x32xf32>
    %c1_178 = arith.constant 1 : index
    %c0_179 = arith.constant 0 : index
    %c0_180 = arith.constant 0 : index
    %523 = vector.load %arg13[%c1_178, %c0_179, %c0_180] : memref<3x1x32xf32, #tpu.memory_space<vmem>>, vector<1x1x32xf32>
    %524 = vector.shape_cast %523 : vector<1x1x32xf32> to vector<1x32xf32>
    %525 = vector.broadcast %524 : vector<1x32xf32> to vector<16x32xf32>
    %526 = arith.addf %522, %525 : vector<16x32xf32>
    %cst_181 = arith.constant dense<0.000000e+00> : vector<32xf32>
    %527 = vector.multi_reduction <add>, %526, %cst_181 [0] : vector<16x32xf32> to vector<32xf32>
    %528 = vector.shape_cast %527 : vector<32xf32> to vector<1x32xf32>
    %cst_182 = arith.constant 1.600000e+01 : f32
    %529 = vector.broadcast %cst_182 : f32 to vector<1x32xf32>
    %530 = arith.divf %528, %529 : vector<1x32xf32>
    %531 = vector.broadcast %530 : vector<1x32xf32> to vector<16x32xf32>
    %532 = arith.subf %526, %531 : vector<16x32xf32>
    %533 = arith.mulf %532, %532 : vector<16x32xf32>
    %cst_183 = arith.constant dense<0.000000e+00> : vector<32xf32>
    %534 = vector.multi_reduction <add>, %533, %cst_183 [0] : vector<16x32xf32> to vector<32xf32>
    %535 = vector.shape_cast %534 : vector<32xf32> to vector<1x32xf32>
    %cst_184 = arith.constant 1.600000e+01 : f32
    %536 = vector.broadcast %cst_184 : f32 to vector<1x32xf32>
    %537 = arith.divf %535, %536 : vector<1x32xf32>
    %538 = vector.broadcast %530 : vector<1x32xf32> to vector<16x32xf32>
    %539 = arith.subf %526, %538 : vector<16x32xf32>
    %cst_185 = arith.constant 9.99999974E-6 : f32
    %540 = vector.broadcast %cst_185 : f32 to vector<1x32xf32>
    %541 = arith.addf %537, %540 : vector<1x32xf32>
    %542 = math.rsqrt %541 : vector<1x32xf32>
    %543 = vector.broadcast %542 : vector<1x32xf32> to vector<16x32xf32>
    %544 = arith.mulf %539, %543 : vector<16x32xf32>
    %c1_186 = arith.constant 1 : index
    %c0_187 = arith.constant 0 : index
    %c0_188 = arith.constant 0 : index
    %545 = vector.load %arg14[%c1_186, %c0_187, %c0_188] : memref<3x1x32xf32, #tpu.memory_space<vmem>>, vector<1x1x32xf32>
    %546 = vector.shape_cast %545 : vector<1x1x32xf32> to vector<1x32xf32>
    %547 = vector.broadcast %546 : vector<1x32xf32> to vector<16x32xf32>
    %548 = arith.mulf %544, %547 : vector<16x32xf32>
    %c1_189 = arith.constant 1 : index
    %c0_190 = arith.constant 0 : index
    %c0_191 = arith.constant 0 : index
    %549 = vector.load %arg15[%c1_189, %c0_190, %c0_191] : memref<3x1x32xf32, #tpu.memory_space<vmem>>, vector<1x1x32xf32>
    %550 = vector.shape_cast %549 : vector<1x1x32xf32> to vector<1x32xf32>
    %551 = vector.broadcast %550 : vector<1x32xf32> to vector<16x32xf32>
    %552 = arith.addf %548, %551 : vector<16x32xf32>
    %cst_192 = arith.constant 0.000000e+00 : f32
    %553 = vector.broadcast %cst_192 : f32 to vector<16x32xf32>
    %554 = arith.maximumf %552, %553 : vector<16x32xf32>
    %555 = arith.addf %554, %300 : vector<16x32xf32>
    %c2 = arith.constant 2 : index
    %c0_193 = arith.constant 0 : index
    %c0_194 = arith.constant 0 : index
    %556 = vector.load %arg8[%c2, %c0_193, %c0_194] : memref<3x32x128xf32, #tpu.memory_space<vmem>>, vector<1x32x128xf32>
    %557 = vector.shape_cast %556 : vector<1x32x128xf32> to vector<32x128xf32>
    %cst_195 = arith.constant dense<0.000000e+00> : vector<16x128xf32>
    %558 = tpu.matmul %555, %557, %cst_195 {dimension_numbers = #tpu.dot_dimension_numbers<[1], [0], [0], [1], [0, 0, 1, 1], [], []>} : vector<16x32xf32>, vector<32x128xf32>, vector<16x128xf32> -> vector<16x128xf32>
    %c2_196 = arith.constant 2 : index
    %c0_197 = arith.constant 0 : index
    %c0_198 = arith.constant 0 : index
    %559 = vector.load %arg9[%c2_196, %c0_197, %c0_198] : memref<3x32x128xf32, #tpu.memory_space<vmem>>, vector<1x32x128xf32>
    %560 = vector.shape_cast %559 : vector<1x32x128xf32> to vector<32x128xf32>
    %cst_199 = arith.constant dense<0.000000e+00> : vector<32x128xf32>
    %561 = tpu.matmul %44, %560, %cst_199 {dimension_numbers = #tpu.dot_dimension_numbers<[1], [0], [0], [1], [0, 0, 1, 1], [], []>} : vector<32x32xf32>, vector<32x128xf32>, vector<32x128xf32> -> vector<32x128xf32>
    %c2_200 = arith.constant 2 : index
    %c0_201 = arith.constant 0 : index
    %c0_202 = arith.constant 0 : index
    %562 = vector.load %arg9[%c2_200, %c0_201, %c0_202] : memref<3x32x128xf32, #tpu.memory_space<vmem>>, vector<1x32x128xf32>
    %563 = vector.shape_cast %562 : vector<1x32x128xf32> to vector<32x128xf32>
    %cst_203 = arith.constant dense<0.000000e+00> : vector<16x128xf32>
    %564 = tpu.matmul %45, %563, %cst_203 {dimension_numbers = #tpu.dot_dimension_numbers<[1], [0], [0], [1], [0, 0, 1, 1], [], []>} : vector<16x32xf32>, vector<32x128xf32>, vector<16x128xf32> -> vector<16x128xf32>
    %c2_204 = arith.constant 2 : index
    %c0_205 = arith.constant 0 : index
    %c0_206 = arith.constant 0 : index
    %565 = vector.load %arg10[%c2_204, %c0_205, %c0_206] : memref<3x1x128xf32, #tpu.memory_space<vmem>>, vector<1x1x128xf32>
    %566 = vector.shape_cast %565 : vector<1x1x128xf32> to vector<1x128xf32>
    %c2_207 = arith.constant 2 : index
    %c0_208 = arith.constant 0 : index
    %c0_209 = arith.constant 0 : index
    %567 = vector.load %arg11[%c2_207, %c0_208, %c0_209] : memref<3x1x128xf32, #tpu.memory_space<vmem>>, vector<1x1x128xf32>
    %568 = vector.shape_cast %567 : vector<1x1x128xf32> to vector<1x128xf32>
    %c2_210 = arith.constant 2 : index
    %c0_211 = arith.constant 0 : index
    %c0_212 = arith.constant 0 : index
    %569 = vector.load %arg12[%c2_210, %c0_211, %c0_212] : memref<3x1x128xf32, #tpu.memory_space<vmem>>, vector<1x1x128xf32>
    %570 = vector.shape_cast %569 : vector<1x1x128xf32> to vector<1x128xf32>
    %cst_213 = arith.constant 0.000000e+00 : f32
    %571 = vector.broadcast %cst_213 : f32 to vector<16x32xf32>
    %572 = vector.extract_strided_slice %558 {offsets = [0, 0], sizes = [16, 32], strides = [1, 1]} : vector<16x128xf32> to vector<16x32xf32>
    %573 = vector.extract_strided_slice %566 {offsets = [0, 0], sizes = [1, 32], strides = [1, 1]} : vector<1x128xf32> to vector<1x32xf32>
    %cst_214 = arith.constant dense<0.000000e+00> : vector<1x16xf32>
    %574 = tpu.matmul %573, %572, %cst_214 {dimension_numbers = #tpu.dot_dimension_numbers<[1], [1], [0], [0], [0, 0, 1, 0], [], []>} : vector<1x32xf32>, vector<16x32xf32>, vector<1x16xf32> -> vector<1x16xf32>
    %575 = vector.extract_strided_slice %568 {offsets = [0, 0], sizes = [1, 32], strides = [1, 1]} : vector<1x128xf32> to vector<1x32xf32>
    %576 = vector.broadcast %575 : vector<1x32xf32> to vector<16x32xf32>
    %577 = arith.mulf %572, %576 : vector<16x32xf32>
    %cst_215 = arith.constant dense<0.000000e+00> : vector<16xf32>
    %578 = vector.multi_reduction <add>, %577, %cst_215 [1] : vector<16x32xf32> to vector<16xf32>
    %579 = vector.shape_cast %578 : vector<16xf32> to vector<16x1xf32>
    %580 = vector.extract_strided_slice %561 {offsets = [0, 0], sizes = [32, 32], strides = [1, 1]} : vector<32x128xf32> to vector<32x32xf32>
    %581 = vector.extract_strided_slice %570 {offsets = [0, 0], sizes = [1, 32], strides = [1, 1]} : vector<1x128xf32> to vector<1x32xf32>
    %582 = vector.broadcast %581 : vector<1x32xf32> to vector<32x32xf32>
    %583 = arith.mulf %580, %582 : vector<32x32xf32>
    %cst_216 = arith.constant dense<0.000000e+00> : vector<32xf32>
    %584 = vector.multi_reduction <add>, %583, %cst_216 [1] : vector<32x32xf32> to vector<32xf32>
    %585 = vector.shape_cast %584 : vector<32xf32> to vector<32x1xf32>
    %586 = vector.extract_strided_slice %564 {offsets = [0, 0], sizes = [16, 32], strides = [1, 1]} : vector<16x128xf32> to vector<16x32xf32>
    %587 = vector.extract_strided_slice %570 {offsets = [0, 0], sizes = [1, 32], strides = [1, 1]} : vector<1x128xf32> to vector<1x32xf32>
    %588 = vector.broadcast %587 : vector<1x32xf32> to vector<16x32xf32>
    %589 = arith.mulf %586, %588 : vector<16x32xf32>
    %cst_217 = arith.constant dense<0.000000e+00> : vector<16xf32>
    %590 = vector.multi_reduction <add>, %589, %cst_217 [1] : vector<16x32xf32> to vector<16xf32>
    %591 = vector.shape_cast %590 : vector<16xf32> to vector<16x1xf32>
    %592 = vector.broadcast %585 : vector<32x1xf32> to vector<32x16xf32>
    %593 = arith.mulf %592, %11 : vector<32x16xf32>
    %cst_218 = arith.constant dense<0.000000e+00> : vector<16x16xf32>
    %594 = tpu.matmul %5, %593, %cst_218 {dimension_numbers = #tpu.dot_dimension_numbers<[1], [0], [0], [1], [0, 0, 1, 1], [], []>} : vector<16x32xf32>, vector<32x16xf32>, vector<16x16xf32> -> vector<16x16xf32>
    %595 = vector.broadcast %591 : vector<16x1xf32> to vector<16x16xf32>
    %596 = arith.mulf %16, %595 : vector<16x16xf32>
    %597 = arith.addf %594, %596 : vector<16x16xf32>
    %598 = vector.broadcast %579 : vector<16x1xf32> to vector<16x16xf32>
    %599 = arith.addf %597, %598 : vector<16x16xf32>
    %600 = vector.broadcast %574 : vector<1x16xf32> to vector<16x16xf32>
    %601 = arith.addf %599, %600 : vector<16x16xf32>
    %cst_219 = arith.constant 0.000000e+00 : f32
    %602 = vector.broadcast %cst_219 : f32 to vector<16x16xf32>
    %603 = arith.cmpf ogt, %601, %602 : vector<16x16xf32>
    %cst_220 = arith.constant 2.000000e-01 : f32
    %604 = vector.broadcast %cst_220 : f32 to vector<16x16xf32>
    %605 = arith.mulf %604, %601 : vector<16x16xf32>
    %606 = arith.select %603, %601, %605 : vector<16x16xi1>, vector<16x16xf32>
    %cst_221 = arith.constant 0.000000e+00 : f32
    %607 = vector.broadcast %cst_221 : f32 to vector<16x16xf32>
    %608 = arith.cmpf ogt, %18, %607 : vector<16x16xf32>
    %cst_222 = arith.constant -1.000000e+30 : f32
    %609 = vector.broadcast %cst_222 : f32 to vector<16x16xf32>
    %610 = arith.select %608, %606, %609 : vector<16x16xi1>, vector<16x16xf32>
    %cst_223 = arith.constant dense<0xFF800000> : vector<16xf32>
    %611 = vector.multi_reduction <maximumf>, %610, %cst_223 [1] : vector<16x16xf32> to vector<16xf32>
    %612 = vector.shape_cast %611 : vector<16xf32> to vector<16x1xf32>
    %613 = vector.broadcast %612 : vector<16x1xf32> to vector<16x16xf32>
    %614 = arith.subf %610, %613 : vector<16x16xf32>
    %615 = math.exp %614 : vector<16x16xf32>
    %cst_224 = arith.constant dense<0.000000e+00> : vector<16xf32>
    %616 = vector.multi_reduction <add>, %615, %cst_224 [1] : vector<16x16xf32> to vector<16xf32>
    %617 = vector.shape_cast %616 : vector<16xf32> to vector<16x1xf32>
    %618 = tpu.reciprocal %617 {approx = true} : vector<16x1xf32> -> vector<16x1xf32>
    %619 = vector.broadcast %618 : vector<16x1xf32> to vector<16x16xf32>
    %620 = arith.mulf %615, %619 : vector<16x16xf32>
    %cst_225 = arith.constant dense<0.000000e+00> : vector<16x32xf32>
    %621 = tpu.matmul %620, %572, %cst_225 {dimension_numbers = #tpu.dot_dimension_numbers<[1], [0], [0], [1], [0, 0, 1, 1], [], []>} : vector<16x16xf32>, vector<16x32xf32>, vector<16x32xf32> -> vector<16x32xf32>
    %622 = arith.addf %571, %621 : vector<16x32xf32>
    %623 = vector.extract_strided_slice %558 {offsets = [0, 32], sizes = [16, 32], strides = [1, 1]} : vector<16x128xf32> to vector<16x32xf32>
    %624 = vector.extract_strided_slice %566 {offsets = [0, 32], sizes = [1, 32], strides = [1, 1]} : vector<1x128xf32> to vector<1x32xf32>
    %cst_226 = arith.constant dense<0.000000e+00> : vector<1x16xf32>
    %625 = tpu.matmul %624, %623, %cst_226 {dimension_numbers = #tpu.dot_dimension_numbers<[1], [1], [0], [0], [0, 0, 1, 0], [], []>} : vector<1x32xf32>, vector<16x32xf32>, vector<1x16xf32> -> vector<1x16xf32>
    %626 = vector.extract_strided_slice %568 {offsets = [0, 32], sizes = [1, 32], strides = [1, 1]} : vector<1x128xf32> to vector<1x32xf32>
    %627 = vector.broadcast %626 : vector<1x32xf32> to vector<16x32xf32>
    %628 = arith.mulf %623, %627 : vector<16x32xf32>
    %cst_227 = arith.constant dense<0.000000e+00> : vector<16xf32>
    %629 = vector.multi_reduction <add>, %628, %cst_227 [1] : vector<16x32xf32> to vector<16xf32>
    %630 = vector.shape_cast %629 : vector<16xf32> to vector<16x1xf32>
    %631 = vector.extract_strided_slice %561 {offsets = [0, 32], sizes = [32, 32], strides = [1, 1]} : vector<32x128xf32> to vector<32x32xf32>
    %632 = vector.extract_strided_slice %570 {offsets = [0, 32], sizes = [1, 32], strides = [1, 1]} : vector<1x128xf32> to vector<1x32xf32>
    %633 = vector.broadcast %632 : vector<1x32xf32> to vector<32x32xf32>
    %634 = arith.mulf %631, %633 : vector<32x32xf32>
    %cst_228 = arith.constant dense<0.000000e+00> : vector<32xf32>
    %635 = vector.multi_reduction <add>, %634, %cst_228 [1] : vector<32x32xf32> to vector<32xf32>
    %636 = vector.shape_cast %635 : vector<32xf32> to vector<32x1xf32>
    %637 = vector.extract_strided_slice %564 {offsets = [0, 32], sizes = [16, 32], strides = [1, 1]} : vector<16x128xf32> to vector<16x32xf32>
    %638 = vector.extract_strided_slice %570 {offsets = [0, 32], sizes = [1, 32], strides = [1, 1]} : vector<1x128xf32> to vector<1x32xf32>
    %639 = vector.broadcast %638 : vector<1x32xf32> to vector<16x32xf32>
    %640 = arith.mulf %637, %639 : vector<16x32xf32>
    %cst_229 = arith.constant dense<0.000000e+00> : vector<16xf32>
    %641 = vector.multi_reduction <add>, %640, %cst_229 [1] : vector<16x32xf32> to vector<16xf32>
    %642 = vector.shape_cast %641 : vector<16xf32> to vector<16x1xf32>
    %643 = vector.broadcast %636 : vector<32x1xf32> to vector<32x16xf32>
    %644 = arith.mulf %643, %11 : vector<32x16xf32>
    %cst_230 = arith.constant dense<0.000000e+00> : vector<16x16xf32>
    %645 = tpu.matmul %5, %644, %cst_230 {dimension_numbers = #tpu.dot_dimension_numbers<[1], [0], [0], [1], [0, 0, 1, 1], [], []>} : vector<16x32xf32>, vector<32x16xf32>, vector<16x16xf32> -> vector<16x16xf32>
    %646 = vector.broadcast %642 : vector<16x1xf32> to vector<16x16xf32>
    %647 = arith.mulf %16, %646 : vector<16x16xf32>
    %648 = arith.addf %645, %647 : vector<16x16xf32>
    %649 = vector.broadcast %630 : vector<16x1xf32> to vector<16x16xf32>
    %650 = arith.addf %648, %649 : vector<16x16xf32>
    %651 = vector.broadcast %625 : vector<1x16xf32> to vector<16x16xf32>
    %652 = arith.addf %650, %651 : vector<16x16xf32>
    %cst_231 = arith.constant 0.000000e+00 : f32
    %653 = vector.broadcast %cst_231 : f32 to vector<16x16xf32>
    %654 = arith.cmpf ogt, %652, %653 : vector<16x16xf32>
    %cst_232 = arith.constant 2.000000e-01 : f32
    %655 = vector.broadcast %cst_232 : f32 to vector<16x16xf32>
    %656 = arith.mulf %655, %652 : vector<16x16xf32>
    %657 = arith.select %654, %652, %656 : vector<16x16xi1>, vector<16x16xf32>
    %cst_233 = arith.constant 0.000000e+00 : f32
    %658 = vector.broadcast %cst_233 : f32 to vector<16x16xf32>
    %659 = arith.cmpf ogt, %18, %658 : vector<16x16xf32>
    %cst_234 = arith.constant -1.000000e+30 : f32
    %660 = vector.broadcast %cst_234 : f32 to vector<16x16xf32>
    %661 = arith.select %659, %657, %660 : vector<16x16xi1>, vector<16x16xf32>
    %cst_235 = arith.constant dense<0xFF800000> : vector<16xf32>
    %662 = vector.multi_reduction <maximumf>, %661, %cst_235 [1] : vector<16x16xf32> to vector<16xf32>
    %663 = vector.shape_cast %662 : vector<16xf32> to vector<16x1xf32>
    %664 = vector.broadcast %663 : vector<16x1xf32> to vector<16x16xf32>
    %665 = arith.subf %661, %664 : vector<16x16xf32>
    %666 = math.exp %665 : vector<16x16xf32>
    %cst_236 = arith.constant dense<0.000000e+00> : vector<16xf32>
    %667 = vector.multi_reduction <add>, %666, %cst_236 [1] : vector<16x16xf32> to vector<16xf32>
    %668 = vector.shape_cast %667 : vector<16xf32> to vector<16x1xf32>
    %669 = tpu.reciprocal %668 {approx = true} : vector<16x1xf32> -> vector<16x1xf32>
    %670 = vector.broadcast %669 : vector<16x1xf32> to vector<16x16xf32>
    %671 = arith.mulf %666, %670 : vector<16x16xf32>
    %cst_237 = arith.constant dense<0.000000e+00> : vector<16x32xf32>
    %672 = tpu.matmul %671, %623, %cst_237 {dimension_numbers = #tpu.dot_dimension_numbers<[1], [0], [0], [1], [0, 0, 1, 1], [], []>} : vector<16x16xf32>, vector<16x32xf32>, vector<16x32xf32> -> vector<16x32xf32>
    %673 = arith.addf %622, %672 : vector<16x32xf32>
    %674 = vector.extract_strided_slice %558 {offsets = [0, 64], sizes = [16, 32], strides = [1, 1]} : vector<16x128xf32> to vector<16x32xf32>
    %675 = vector.extract_strided_slice %566 {offsets = [0, 64], sizes = [1, 32], strides = [1, 1]} : vector<1x128xf32> to vector<1x32xf32>
    %cst_238 = arith.constant dense<0.000000e+00> : vector<1x16xf32>
    %676 = tpu.matmul %675, %674, %cst_238 {dimension_numbers = #tpu.dot_dimension_numbers<[1], [1], [0], [0], [0, 0, 1, 0], [], []>} : vector<1x32xf32>, vector<16x32xf32>, vector<1x16xf32> -> vector<1x16xf32>
    %677 = vector.extract_strided_slice %568 {offsets = [0, 64], sizes = [1, 32], strides = [1, 1]} : vector<1x128xf32> to vector<1x32xf32>
    %678 = vector.broadcast %677 : vector<1x32xf32> to vector<16x32xf32>
    %679 = arith.mulf %674, %678 : vector<16x32xf32>
    %cst_239 = arith.constant dense<0.000000e+00> : vector<16xf32>
    %680 = vector.multi_reduction <add>, %679, %cst_239 [1] : vector<16x32xf32> to vector<16xf32>
    %681 = vector.shape_cast %680 : vector<16xf32> to vector<16x1xf32>
    %682 = vector.extract_strided_slice %561 {offsets = [0, 64], sizes = [32, 32], strides = [1, 1]} : vector<32x128xf32> to vector<32x32xf32>
    %683 = vector.extract_strided_slice %570 {offsets = [0, 64], sizes = [1, 32], strides = [1, 1]} : vector<1x128xf32> to vector<1x32xf32>
    %684 = vector.broadcast %683 : vector<1x32xf32> to vector<32x32xf32>
    %685 = arith.mulf %682, %684 : vector<32x32xf32>
    %cst_240 = arith.constant dense<0.000000e+00> : vector<32xf32>
    %686 = vector.multi_reduction <add>, %685, %cst_240 [1] : vector<32x32xf32> to vector<32xf32>
    %687 = vector.shape_cast %686 : vector<32xf32> to vector<32x1xf32>
    %688 = vector.extract_strided_slice %564 {offsets = [0, 64], sizes = [16, 32], strides = [1, 1]} : vector<16x128xf32> to vector<16x32xf32>
    %689 = vector.extract_strided_slice %570 {offsets = [0, 64], sizes = [1, 32], strides = [1, 1]} : vector<1x128xf32> to vector<1x32xf32>
    %690 = vector.broadcast %689 : vector<1x32xf32> to vector<16x32xf32>
    %691 = arith.mulf %688, %690 : vector<16x32xf32>
    %cst_241 = arith.constant dense<0.000000e+00> : vector<16xf32>
    %692 = vector.multi_reduction <add>, %691, %cst_241 [1] : vector<16x32xf32> to vector<16xf32>
    %693 = vector.shape_cast %692 : vector<16xf32> to vector<16x1xf32>
    %694 = vector.broadcast %687 : vector<32x1xf32> to vector<32x16xf32>
    %695 = arith.mulf %694, %11 : vector<32x16xf32>
    %cst_242 = arith.constant dense<0.000000e+00> : vector<16x16xf32>
    %696 = tpu.matmul %5, %695, %cst_242 {dimension_numbers = #tpu.dot_dimension_numbers<[1], [0], [0], [1], [0, 0, 1, 1], [], []>} : vector<16x32xf32>, vector<32x16xf32>, vector<16x16xf32> -> vector<16x16xf32>
    %697 = vector.broadcast %693 : vector<16x1xf32> to vector<16x16xf32>
    %698 = arith.mulf %16, %697 : vector<16x16xf32>
    %699 = arith.addf %696, %698 : vector<16x16xf32>
    %700 = vector.broadcast %681 : vector<16x1xf32> to vector<16x16xf32>
    %701 = arith.addf %699, %700 : vector<16x16xf32>
    %702 = vector.broadcast %676 : vector<1x16xf32> to vector<16x16xf32>
    %703 = arith.addf %701, %702 : vector<16x16xf32>
    %cst_243 = arith.constant 0.000000e+00 : f32
    %704 = vector.broadcast %cst_243 : f32 to vector<16x16xf32>
    %705 = arith.cmpf ogt, %703, %704 : vector<16x16xf32>
    %cst_244 = arith.constant 2.000000e-01 : f32
    %706 = vector.broadcast %cst_244 : f32 to vector<16x16xf32>
    %707 = arith.mulf %706, %703 : vector<16x16xf32>
    %708 = arith.select %705, %703, %707 : vector<16x16xi1>, vector<16x16xf32>
    %cst_245 = arith.constant 0.000000e+00 : f32
    %709 = vector.broadcast %cst_245 : f32 to vector<16x16xf32>
    %710 = arith.cmpf ogt, %18, %709 : vector<16x16xf32>
    %cst_246 = arith.constant -1.000000e+30 : f32
    %711 = vector.broadcast %cst_246 : f32 to vector<16x16xf32>
    %712 = arith.select %710, %708, %711 : vector<16x16xi1>, vector<16x16xf32>
    %cst_247 = arith.constant dense<0xFF800000> : vector<16xf32>
    %713 = vector.multi_reduction <maximumf>, %712, %cst_247 [1] : vector<16x16xf32> to vector<16xf32>
    %714 = vector.shape_cast %713 : vector<16xf32> to vector<16x1xf32>
    %715 = vector.broadcast %714 : vector<16x1xf32> to vector<16x16xf32>
    %716 = arith.subf %712, %715 : vector<16x16xf32>
    %717 = math.exp %716 : vector<16x16xf32>
    %cst_248 = arith.constant dense<0.000000e+00> : vector<16xf32>
    %718 = vector.multi_reduction <add>, %717, %cst_248 [1] : vector<16x16xf32> to vector<16xf32>
    %719 = vector.shape_cast %718 : vector<16xf32> to vector<16x1xf32>
    %720 = tpu.reciprocal %719 {approx = true} : vector<16x1xf32> -> vector<16x1xf32>
    %721 = vector.broadcast %720 : vector<16x1xf32> to vector<16x16xf32>
    %722 = arith.mulf %717, %721 : vector<16x16xf32>
    %cst_249 = arith.constant dense<0.000000e+00> : vector<16x32xf32>
    %723 = tpu.matmul %722, %674, %cst_249 {dimension_numbers = #tpu.dot_dimension_numbers<[1], [0], [0], [1], [0, 0, 1, 1], [], []>} : vector<16x16xf32>, vector<16x32xf32>, vector<16x32xf32> -> vector<16x32xf32>
    %724 = arith.addf %673, %723 : vector<16x32xf32>
    %725 = vector.extract_strided_slice %558 {offsets = [0, 96], sizes = [16, 32], strides = [1, 1]} : vector<16x128xf32> to vector<16x32xf32>
    %726 = vector.extract_strided_slice %566 {offsets = [0, 96], sizes = [1, 32], strides = [1, 1]} : vector<1x128xf32> to vector<1x32xf32>
    %cst_250 = arith.constant dense<0.000000e+00> : vector<1x16xf32>
    %727 = tpu.matmul %726, %725, %cst_250 {dimension_numbers = #tpu.dot_dimension_numbers<[1], [1], [0], [0], [0, 0, 1, 0], [], []>} : vector<1x32xf32>, vector<16x32xf32>, vector<1x16xf32> -> vector<1x16xf32>
    %728 = vector.extract_strided_slice %568 {offsets = [0, 96], sizes = [1, 32], strides = [1, 1]} : vector<1x128xf32> to vector<1x32xf32>
    %729 = vector.broadcast %728 : vector<1x32xf32> to vector<16x32xf32>
    %730 = arith.mulf %725, %729 : vector<16x32xf32>
    %cst_251 = arith.constant dense<0.000000e+00> : vector<16xf32>
    %731 = vector.multi_reduction <add>, %730, %cst_251 [1] : vector<16x32xf32> to vector<16xf32>
    %732 = vector.shape_cast %731 : vector<16xf32> to vector<16x1xf32>
    %733 = vector.extract_strided_slice %561 {offsets = [0, 96], sizes = [32, 32], strides = [1, 1]} : vector<32x128xf32> to vector<32x32xf32>
    %734 = vector.extract_strided_slice %570 {offsets = [0, 96], sizes = [1, 32], strides = [1, 1]} : vector<1x128xf32> to vector<1x32xf32>
    %735 = vector.broadcast %734 : vector<1x32xf32> to vector<32x32xf32>
    %736 = arith.mulf %733, %735 : vector<32x32xf32>
    %cst_252 = arith.constant dense<0.000000e+00> : vector<32xf32>
    %737 = vector.multi_reduction <add>, %736, %cst_252 [1] : vector<32x32xf32> to vector<32xf32>
    %738 = vector.shape_cast %737 : vector<32xf32> to vector<32x1xf32>
    %739 = vector.extract_strided_slice %564 {offsets = [0, 96], sizes = [16, 32], strides = [1, 1]} : vector<16x128xf32> to vector<16x32xf32>
    %740 = vector.extract_strided_slice %570 {offsets = [0, 96], sizes = [1, 32], strides = [1, 1]} : vector<1x128xf32> to vector<1x32xf32>
    %741 = vector.broadcast %740 : vector<1x32xf32> to vector<16x32xf32>
    %742 = arith.mulf %739, %741 : vector<16x32xf32>
    %cst_253 = arith.constant dense<0.000000e+00> : vector<16xf32>
    %743 = vector.multi_reduction <add>, %742, %cst_253 [1] : vector<16x32xf32> to vector<16xf32>
    %744 = vector.shape_cast %743 : vector<16xf32> to vector<16x1xf32>
    %745 = vector.broadcast %738 : vector<32x1xf32> to vector<32x16xf32>
    %746 = arith.mulf %745, %11 : vector<32x16xf32>
    %cst_254 = arith.constant dense<0.000000e+00> : vector<16x16xf32>
    %747 = tpu.matmul %5, %746, %cst_254 {dimension_numbers = #tpu.dot_dimension_numbers<[1], [0], [0], [1], [0, 0, 1, 1], [], []>} : vector<16x32xf32>, vector<32x16xf32>, vector<16x16xf32> -> vector<16x16xf32>
    %748 = vector.broadcast %744 : vector<16x1xf32> to vector<16x16xf32>
    %749 = arith.mulf %16, %748 : vector<16x16xf32>
    %750 = arith.addf %747, %749 : vector<16x16xf32>
    %751 = vector.broadcast %732 : vector<16x1xf32> to vector<16x16xf32>
    %752 = arith.addf %750, %751 : vector<16x16xf32>
    %753 = vector.broadcast %727 : vector<1x16xf32> to vector<16x16xf32>
    %754 = arith.addf %752, %753 : vector<16x16xf32>
    %cst_255 = arith.constant 0.000000e+00 : f32
    %755 = vector.broadcast %cst_255 : f32 to vector<16x16xf32>
    %756 = arith.cmpf ogt, %754, %755 : vector<16x16xf32>
    %cst_256 = arith.constant 2.000000e-01 : f32
    %757 = vector.broadcast %cst_256 : f32 to vector<16x16xf32>
    %758 = arith.mulf %757, %754 : vector<16x16xf32>
    %759 = arith.select %756, %754, %758 : vector<16x16xi1>, vector<16x16xf32>
    %cst_257 = arith.constant 0.000000e+00 : f32
    %760 = vector.broadcast %cst_257 : f32 to vector<16x16xf32>
    %761 = arith.cmpf ogt, %18, %760 : vector<16x16xf32>
    %cst_258 = arith.constant -1.000000e+30 : f32
    %762 = vector.broadcast %cst_258 : f32 to vector<16x16xf32>
    %763 = arith.select %761, %759, %762 : vector<16x16xi1>, vector<16x16xf32>
    %cst_259 = arith.constant dense<0xFF800000> : vector<16xf32>
    %764 = vector.multi_reduction <maximumf>, %763, %cst_259 [1] : vector<16x16xf32> to vector<16xf32>
    %765 = vector.shape_cast %764 : vector<16xf32> to vector<16x1xf32>
    %766 = vector.broadcast %765 : vector<16x1xf32> to vector<16x16xf32>
    %767 = arith.subf %763, %766 : vector<16x16xf32>
    %768 = math.exp %767 : vector<16x16xf32>
    %cst_260 = arith.constant dense<0.000000e+00> : vector<16xf32>
    %769 = vector.multi_reduction <add>, %768, %cst_260 [1] : vector<16x16xf32> to vector<16xf32>
    %770 = vector.shape_cast %769 : vector<16xf32> to vector<16x1xf32>
    %771 = tpu.reciprocal %770 {approx = true} : vector<16x1xf32> -> vector<16x1xf32>
    %772 = vector.broadcast %771 : vector<16x1xf32> to vector<16x16xf32>
    %773 = arith.mulf %768, %772 : vector<16x16xf32>
    %cst_261 = arith.constant dense<0.000000e+00> : vector<16x32xf32>
    %774 = tpu.matmul %773, %725, %cst_261 {dimension_numbers = #tpu.dot_dimension_numbers<[1], [0], [0], [1], [0, 0, 1, 1], [], []>} : vector<16x16xf32>, vector<16x32xf32>, vector<16x32xf32> -> vector<16x32xf32>
    %775 = arith.addf %724, %774 : vector<16x32xf32>
    %cst_262 = arith.constant 2.500000e-01 : f32
    %776 = vector.broadcast %cst_262 : f32 to vector<16x32xf32>
    %777 = arith.mulf %775, %776 : vector<16x32xf32>
    %c2_263 = arith.constant 2 : index
    %c0_264 = arith.constant 0 : index
    %c0_265 = arith.constant 0 : index
    %778 = vector.load %arg13[%c2_263, %c0_264, %c0_265] : memref<3x1x32xf32, #tpu.memory_space<vmem>>, vector<1x1x32xf32>
    %779 = vector.shape_cast %778 : vector<1x1x32xf32> to vector<1x32xf32>
    %780 = vector.broadcast %779 : vector<1x32xf32> to vector<16x32xf32>
    %781 = arith.addf %777, %780 : vector<16x32xf32>
    %cst_266 = arith.constant dense<0.000000e+00> : vector<32xf32>
    %782 = vector.multi_reduction <add>, %781, %cst_266 [0] : vector<16x32xf32> to vector<32xf32>
    %783 = vector.shape_cast %782 : vector<32xf32> to vector<1x32xf32>
    %cst_267 = arith.constant 1.600000e+01 : f32
    %784 = vector.broadcast %cst_267 : f32 to vector<1x32xf32>
    %785 = arith.divf %783, %784 : vector<1x32xf32>
    %786 = vector.broadcast %785 : vector<1x32xf32> to vector<16x32xf32>
    %787 = arith.subf %781, %786 : vector<16x32xf32>
    %788 = arith.mulf %787, %787 : vector<16x32xf32>
    %cst_268 = arith.constant dense<0.000000e+00> : vector<32xf32>
    %789 = vector.multi_reduction <add>, %788, %cst_268 [0] : vector<16x32xf32> to vector<32xf32>
    %790 = vector.shape_cast %789 : vector<32xf32> to vector<1x32xf32>
    %cst_269 = arith.constant 1.600000e+01 : f32
    %791 = vector.broadcast %cst_269 : f32 to vector<1x32xf32>
    %792 = arith.divf %790, %791 : vector<1x32xf32>
    %793 = vector.broadcast %785 : vector<1x32xf32> to vector<16x32xf32>
    %794 = arith.subf %781, %793 : vector<16x32xf32>
    %cst_270 = arith.constant 9.99999974E-6 : f32
    %795 = vector.broadcast %cst_270 : f32 to vector<1x32xf32>
    %796 = arith.addf %792, %795 : vector<1x32xf32>
    %797 = math.rsqrt %796 : vector<1x32xf32>
    %798 = vector.broadcast %797 : vector<1x32xf32> to vector<16x32xf32>
    %799 = arith.mulf %794, %798 : vector<16x32xf32>
    %c2_271 = arith.constant 2 : index
    %c0_272 = arith.constant 0 : index
    %c0_273 = arith.constant 0 : index
    %800 = vector.load %arg14[%c2_271, %c0_272, %c0_273] : memref<3x1x32xf32, #tpu.memory_space<vmem>>, vector<1x1x32xf32>
    %801 = vector.shape_cast %800 : vector<1x1x32xf32> to vector<1x32xf32>
    %802 = vector.broadcast %801 : vector<1x32xf32> to vector<16x32xf32>
    %803 = arith.mulf %799, %802 : vector<16x32xf32>
    %c2_274 = arith.constant 2 : index
    %c0_275 = arith.constant 0 : index
    %c0_276 = arith.constant 0 : index
    %804 = vector.load %arg15[%c2_274, %c0_275, %c0_276] : memref<3x1x32xf32, #tpu.memory_space<vmem>>, vector<1x1x32xf32>
    %805 = vector.shape_cast %804 : vector<1x1x32xf32> to vector<1x32xf32>
    %806 = vector.broadcast %805 : vector<1x32xf32> to vector<16x32xf32>
    %807 = arith.addf %803, %806 : vector<16x32xf32>
    %cst_277 = arith.constant 0.000000e+00 : f32
    %808 = vector.broadcast %cst_277 : f32 to vector<16x32xf32>
    %809 = arith.maximumf %807, %808 : vector<16x32xf32>
    %810 = arith.addf %809, %555 : vector<16x32xf32>
    %c0_278 = arith.constant 0 : index
    %c0_279 = arith.constant 0 : index
    %811 = vector.load %arg16[%c0_278, %c0_279] : memref<64x128xf32, #tpu.memory_space<vmem>>, vector<32x128xf32>
    %c32 = arith.constant 32 : index
    %c0_280 = arith.constant 0 : index
    %812 = vector.load %arg16[%c32, %c0_280] : memref<64x128xf32, #tpu.memory_space<vmem>>, vector<32x128xf32>
    %c0_281 = arith.constant 0 : index
    %c0_282 = arith.constant 0 : index
    %813 = vector.load %arg17[%c0_281, %c0_282] : memref<32x128xf32, #tpu.memory_space<vmem>>, vector<32x128xf32>
    %c0_283 = arith.constant 0 : index
    %c0_284 = arith.constant 0 : index
    %814 = vector.load %arg18[%c0_283, %c0_284] : memref<1x128xf32, #tpu.memory_space<vmem>>, vector<1x128xf32>
    %cst_285 = arith.constant 0.000000e+00 : f32
    %815 = vector.broadcast %cst_285 : f32 to vector<1x32xf32>
    %cst_286 = arith.constant 0.000000e+00 : f32
    %816 = vector.broadcast %cst_286 : f32 to vector<1x32xf32>
    %cst_287 = arith.constant 0.000000e+00 : f32
    %817 = vector.broadcast %cst_287 : f32 to vector<1x32xf32>
    %cst_288 = arith.constant dense<0.000000e+00> : vector<1x128xf32>
    %818 = tpu.matmul %815, %811, %cst_288 {dimension_numbers = #tpu.dot_dimension_numbers<[1], [0], [0], [1], [0, 0, 1, 1], [], []>} : vector<1x32xf32>, vector<32x128xf32>, vector<1x128xf32> -> vector<1x128xf32>
    %cst_289 = arith.constant dense<0.000000e+00> : vector<1x128xf32>
    %819 = tpu.matmul %817, %812, %cst_289 {dimension_numbers = #tpu.dot_dimension_numbers<[1], [0], [0], [1], [0, 0, 1, 1], [], []>} : vector<1x32xf32>, vector<32x128xf32>, vector<1x128xf32> -> vector<1x128xf32>
    %820 = arith.addf %818, %819 : vector<1x128xf32>
    %cst_290 = arith.constant dense<0.000000e+00> : vector<1x128xf32>
    %821 = tpu.matmul %815, %813, %cst_290 {dimension_numbers = #tpu.dot_dimension_numbers<[1], [0], [0], [1], [0, 0, 1, 1], [], []>} : vector<1x32xf32>, vector<32x128xf32>, vector<1x128xf32> -> vector<1x128xf32>
    %822 = arith.addf %820, %821 : vector<1x128xf32>
    %823 = arith.addf %822, %814 : vector<1x128xf32>
    %824 = vector.extract_strided_slice %823 {offsets = [0, 0], sizes = [1, 32], strides = [1, 1]} : vector<1x128xf32> to vector<1x32xf32>
    %825 = arith.negf %824 : vector<1x32xf32>
    %826 = math.exp %825 : vector<1x32xf32>
    %cst_291 = arith.constant 1.000000e+00 : f32
    %827 = vector.broadcast %cst_291 : f32 to vector<1x32xf32>
    %828 = arith.addf %827, %826 : vector<1x32xf32>
    %829 = arith.divf %827, %828 : vector<1x32xf32>
    %830 = vector.extract_strided_slice %823 {offsets = [0, 32], sizes = [1, 32], strides = [1, 1]} : vector<1x128xf32> to vector<1x32xf32>
    %831 = arith.negf %830 : vector<1x32xf32>
    %832 = math.exp %831 : vector<1x32xf32>
    %cst_292 = arith.constant 1.000000e+00 : f32
    %833 = vector.broadcast %cst_292 : f32 to vector<1x32xf32>
    %834 = arith.addf %833, %832 : vector<1x32xf32>
    %835 = arith.divf %833, %834 : vector<1x32xf32>
    %836 = vector.extract_strided_slice %823 {offsets = [0, 64], sizes = [1, 32], strides = [1, 1]} : vector<1x128xf32> to vector<1x32xf32>
    %837 = math.tanh %836 : vector<1x32xf32>
    %838 = vector.extract_strided_slice %823 {offsets = [0, 96], sizes = [1, 32], strides = [1, 1]} : vector<1x128xf32> to vector<1x32xf32>
    %839 = arith.negf %838 : vector<1x32xf32>
    %840 = math.exp %839 : vector<1x32xf32>
    %cst_293 = arith.constant 1.000000e+00 : f32
    %841 = vector.broadcast %cst_293 : f32 to vector<1x32xf32>
    %842 = arith.addf %841, %840 : vector<1x32xf32>
    %843 = arith.divf %841, %842 : vector<1x32xf32>
    %844 = arith.mulf %835, %816 : vector<1x32xf32>
    %845 = arith.mulf %829, %837 : vector<1x32xf32>
    %846 = arith.addf %844, %845 : vector<1x32xf32>
    %847 = math.tanh %846 : vector<1x32xf32>
    %848 = arith.mulf %843, %847 : vector<1x32xf32>
    %849 = vector.broadcast %848 : vector<1x32xf32> to vector<16x32xf32>
    %850 = arith.mulf %810, %849 : vector<16x32xf32>
    %cst_294 = arith.constant dense<0.000000e+00> : vector<16xf32>
    %851 = vector.multi_reduction <add>, %850, %cst_294 [1] : vector<16x32xf32> to vector<16xf32>
    %852 = vector.shape_cast %851 : vector<16xf32> to vector<16x1xf32>
    %cst_295 = arith.constant dense<0xFF800000> : vector<1xf32>
    %853 = vector.multi_reduction <maximumf>, %852, %cst_295 [0] : vector<16x1xf32> to vector<1xf32>
    %854 = vector.shape_cast %853 : vector<1xf32> to vector<1x1xf32>
    %855 = vector.broadcast %854 : vector<1x1xf32> to vector<16x1xf32>
    %856 = arith.subf %852, %855 : vector<16x1xf32>
    %857 = math.exp %856 : vector<16x1xf32>
    %cst_296 = arith.constant dense<0.000000e+00> : vector<1xf32>
    %858 = vector.multi_reduction <add>, %857, %cst_296 [0] : vector<16x1xf32> to vector<1xf32>
    %859 = vector.shape_cast %858 : vector<1xf32> to vector<1x1xf32>
    %860 = tpu.reciprocal %859 {approx = true} : vector<1x1xf32> -> vector<1x1xf32>
    %861 = vector.broadcast %860 : vector<1x1xf32> to vector<16x1xf32>
    %862 = arith.mulf %857, %861 : vector<16x1xf32>
    %863 = vector.broadcast %862 : vector<16x1xf32> to vector<16x32xf32>
    %864 = arith.mulf %863, %810 : vector<16x32xf32>
    %cst_297 = arith.constant dense<0.000000e+00> : vector<32xf32>
    %865 = vector.multi_reduction <add>, %864, %cst_297 [0] : vector<16x32xf32> to vector<32xf32>
    %866 = vector.shape_cast %865 : vector<32xf32> to vector<1x32xf32>
    %cst_298 = arith.constant dense<0.000000e+00> : vector<1x128xf32>
    %867 = tpu.matmul %848, %811, %cst_298 {dimension_numbers = #tpu.dot_dimension_numbers<[1], [0], [0], [1], [0, 0, 1, 1], [], []>} : vector<1x32xf32>, vector<32x128xf32>, vector<1x128xf32> -> vector<1x128xf32>
    %cst_299 = arith.constant dense<0.000000e+00> : vector<1x128xf32>
    %868 = tpu.matmul %866, %812, %cst_299 {dimension_numbers = #tpu.dot_dimension_numbers<[1], [0], [0], [1], [0, 0, 1, 1], [], []>} : vector<1x32xf32>, vector<32x128xf32>, vector<1x128xf32> -> vector<1x128xf32>
    %869 = arith.addf %867, %868 : vector<1x128xf32>
    %cst_300 = arith.constant dense<0.000000e+00> : vector<1x128xf32>
    %870 = tpu.matmul %848, %813, %cst_300 {dimension_numbers = #tpu.dot_dimension_numbers<[1], [0], [0], [1], [0, 0, 1, 1], [], []>} : vector<1x32xf32>, vector<32x128xf32>, vector<1x128xf32> -> vector<1x128xf32>
    %871 = arith.addf %869, %870 : vector<1x128xf32>
    %872 = arith.addf %871, %814 : vector<1x128xf32>
    %873 = vector.extract_strided_slice %872 {offsets = [0, 0], sizes = [1, 32], strides = [1, 1]} : vector<1x128xf32> to vector<1x32xf32>
    %874 = arith.negf %873 : vector<1x32xf32>
    %875 = math.exp %874 : vector<1x32xf32>
    %cst_301 = arith.constant 1.000000e+00 : f32
    %876 = vector.broadcast %cst_301 : f32 to vector<1x32xf32>
    %877 = arith.addf %876, %875 : vector<1x32xf32>
    %878 = arith.divf %876, %877 : vector<1x32xf32>
    %879 = vector.extract_strided_slice %872 {offsets = [0, 32], sizes = [1, 32], strides = [1, 1]} : vector<1x128xf32> to vector<1x32xf32>
    %880 = arith.negf %879 : vector<1x32xf32>
    %881 = math.exp %880 : vector<1x32xf32>
    %cst_302 = arith.constant 1.000000e+00 : f32
    %882 = vector.broadcast %cst_302 : f32 to vector<1x32xf32>
    %883 = arith.addf %882, %881 : vector<1x32xf32>
    %884 = arith.divf %882, %883 : vector<1x32xf32>
    %885 = vector.extract_strided_slice %872 {offsets = [0, 64], sizes = [1, 32], strides = [1, 1]} : vector<1x128xf32> to vector<1x32xf32>
    %886 = math.tanh %885 : vector<1x32xf32>
    %887 = vector.extract_strided_slice %872 {offsets = [0, 96], sizes = [1, 32], strides = [1, 1]} : vector<1x128xf32> to vector<1x32xf32>
    %888 = arith.negf %887 : vector<1x32xf32>
    %889 = math.exp %888 : vector<1x32xf32>
    %cst_303 = arith.constant 1.000000e+00 : f32
    %890 = vector.broadcast %cst_303 : f32 to vector<1x32xf32>
    %891 = arith.addf %890, %889 : vector<1x32xf32>
    %892 = arith.divf %890, %891 : vector<1x32xf32>
    %893 = arith.mulf %884, %846 : vector<1x32xf32>
    %894 = arith.mulf %878, %886 : vector<1x32xf32>
    %895 = arith.addf %893, %894 : vector<1x32xf32>
    %896 = math.tanh %895 : vector<1x32xf32>
    %897 = arith.mulf %892, %896 : vector<1x32xf32>
    %898 = vector.broadcast %897 : vector<1x32xf32> to vector<16x32xf32>
    %899 = arith.mulf %810, %898 : vector<16x32xf32>
    %cst_304 = arith.constant dense<0.000000e+00> : vector<16xf32>
    %900 = vector.multi_reduction <add>, %899, %cst_304 [1] : vector<16x32xf32> to vector<16xf32>
    %901 = vector.shape_cast %900 : vector<16xf32> to vector<16x1xf32>
    %cst_305 = arith.constant dense<0xFF800000> : vector<1xf32>
    %902 = vector.multi_reduction <maximumf>, %901, %cst_305 [0] : vector<16x1xf32> to vector<1xf32>
    %903 = vector.shape_cast %902 : vector<1xf32> to vector<1x1xf32>
    %904 = vector.broadcast %903 : vector<1x1xf32> to vector<16x1xf32>
    %905 = arith.subf %901, %904 : vector<16x1xf32>
    %906 = math.exp %905 : vector<16x1xf32>
    %cst_306 = arith.constant dense<0.000000e+00> : vector<1xf32>
    %907 = vector.multi_reduction <add>, %906, %cst_306 [0] : vector<16x1xf32> to vector<1xf32>
    %908 = vector.shape_cast %907 : vector<1xf32> to vector<1x1xf32>
    %909 = tpu.reciprocal %908 {approx = true} : vector<1x1xf32> -> vector<1x1xf32>
    %910 = vector.broadcast %909 : vector<1x1xf32> to vector<16x1xf32>
    %911 = arith.mulf %906, %910 : vector<16x1xf32>
    %912 = vector.broadcast %911 : vector<16x1xf32> to vector<16x32xf32>
    %913 = arith.mulf %912, %810 : vector<16x32xf32>
    %cst_307 = arith.constant dense<0.000000e+00> : vector<32xf32>
    %914 = vector.multi_reduction <add>, %913, %cst_307 [0] : vector<16x32xf32> to vector<32xf32>
    %915 = vector.shape_cast %914 : vector<32xf32> to vector<1x32xf32>
    %cst_308 = arith.constant dense<0.000000e+00> : vector<1x128xf32>
    %916 = tpu.matmul %897, %811, %cst_308 {dimension_numbers = #tpu.dot_dimension_numbers<[1], [0], [0], [1], [0, 0, 1, 1], [], []>} : vector<1x32xf32>, vector<32x128xf32>, vector<1x128xf32> -> vector<1x128xf32>
    %cst_309 = arith.constant dense<0.000000e+00> : vector<1x128xf32>
    %917 = tpu.matmul %915, %812, %cst_309 {dimension_numbers = #tpu.dot_dimension_numbers<[1], [0], [0], [1], [0, 0, 1, 1], [], []>} : vector<1x32xf32>, vector<32x128xf32>, vector<1x128xf32> -> vector<1x128xf32>
    %918 = arith.addf %916, %917 : vector<1x128xf32>
    %cst_310 = arith.constant dense<0.000000e+00> : vector<1x128xf32>
    %919 = tpu.matmul %897, %813, %cst_310 {dimension_numbers = #tpu.dot_dimension_numbers<[1], [0], [0], [1], [0, 0, 1, 1], [], []>} : vector<1x32xf32>, vector<32x128xf32>, vector<1x128xf32> -> vector<1x128xf32>
    %920 = arith.addf %918, %919 : vector<1x128xf32>
    %921 = arith.addf %920, %814 : vector<1x128xf32>
    %922 = vector.extract_strided_slice %921 {offsets = [0, 0], sizes = [1, 32], strides = [1, 1]} : vector<1x128xf32> to vector<1x32xf32>
    %923 = arith.negf %922 : vector<1x32xf32>
    %924 = math.exp %923 : vector<1x32xf32>
    %cst_311 = arith.constant 1.000000e+00 : f32
    %925 = vector.broadcast %cst_311 : f32 to vector<1x32xf32>
    %926 = arith.addf %925, %924 : vector<1x32xf32>
    %927 = arith.divf %925, %926 : vector<1x32xf32>
    %928 = vector.extract_strided_slice %921 {offsets = [0, 32], sizes = [1, 32], strides = [1, 1]} : vector<1x128xf32> to vector<1x32xf32>
    %929 = arith.negf %928 : vector<1x32xf32>
    %930 = math.exp %929 : vector<1x32xf32>
    %cst_312 = arith.constant 1.000000e+00 : f32
    %931 = vector.broadcast %cst_312 : f32 to vector<1x32xf32>
    %932 = arith.addf %931, %930 : vector<1x32xf32>
    %933 = arith.divf %931, %932 : vector<1x32xf32>
    %934 = vector.extract_strided_slice %921 {offsets = [0, 64], sizes = [1, 32], strides = [1, 1]} : vector<1x128xf32> to vector<1x32xf32>
    %935 = math.tanh %934 : vector<1x32xf32>
    %936 = vector.extract_strided_slice %921 {offsets = [0, 96], sizes = [1, 32], strides = [1, 1]} : vector<1x128xf32> to vector<1x32xf32>
    %937 = arith.negf %936 : vector<1x32xf32>
    %938 = math.exp %937 : vector<1x32xf32>
    %cst_313 = arith.constant 1.000000e+00 : f32
    %939 = vector.broadcast %cst_313 : f32 to vector<1x32xf32>
    %940 = arith.addf %939, %938 : vector<1x32xf32>
    %941 = arith.divf %939, %940 : vector<1x32xf32>
    %942 = arith.mulf %933, %895 : vector<1x32xf32>
    %943 = arith.mulf %927, %935 : vector<1x32xf32>
    %944 = arith.addf %942, %943 : vector<1x32xf32>
    %945 = math.tanh %944 : vector<1x32xf32>
    %946 = arith.mulf %941, %945 : vector<1x32xf32>
    %947 = vector.broadcast %946 : vector<1x32xf32> to vector<16x32xf32>
    %948 = arith.mulf %810, %947 : vector<16x32xf32>
    %cst_314 = arith.constant dense<0.000000e+00> : vector<16xf32>
    %949 = vector.multi_reduction <add>, %948, %cst_314 [1] : vector<16x32xf32> to vector<16xf32>
    %950 = vector.shape_cast %949 : vector<16xf32> to vector<16x1xf32>
    %cst_315 = arith.constant dense<0xFF800000> : vector<1xf32>
    %951 = vector.multi_reduction <maximumf>, %950, %cst_315 [0] : vector<16x1xf32> to vector<1xf32>
    %952 = vector.shape_cast %951 : vector<1xf32> to vector<1x1xf32>
    %953 = vector.broadcast %952 : vector<1x1xf32> to vector<16x1xf32>
    %954 = arith.subf %950, %953 : vector<16x1xf32>
    %955 = math.exp %954 : vector<16x1xf32>
    %cst_316 = arith.constant dense<0.000000e+00> : vector<1xf32>
    %956 = vector.multi_reduction <add>, %955, %cst_316 [0] : vector<16x1xf32> to vector<1xf32>
    %957 = vector.shape_cast %956 : vector<1xf32> to vector<1x1xf32>
    %958 = tpu.reciprocal %957 {approx = true} : vector<1x1xf32> -> vector<1x1xf32>
    %959 = vector.broadcast %958 : vector<1x1xf32> to vector<16x1xf32>
    %960 = arith.mulf %955, %959 : vector<16x1xf32>
    %961 = vector.broadcast %960 : vector<16x1xf32> to vector<16x32xf32>
    %962 = arith.mulf %961, %810 : vector<16x32xf32>
    %cst_317 = arith.constant dense<0.000000e+00> : vector<32xf32>
    %963 = vector.multi_reduction <add>, %962, %cst_317 [0] : vector<16x32xf32> to vector<32xf32>
    %964 = vector.shape_cast %963 : vector<32xf32> to vector<1x32xf32>
    %c0_318 = arith.constant 0 : index
    %c0_319 = arith.constant 0 : index
    %965 = vector.load %arg19[%c0_318, %c0_319] : memref<64x32xf32, #tpu.memory_space<vmem>>, vector<32x32xf32>
    %cst_320 = arith.constant dense<0.000000e+00> : vector<1x32xf32>
    %966 = tpu.matmul %946, %965, %cst_320 {dimension_numbers = #tpu.dot_dimension_numbers<[1], [0], [0], [1], [0, 0, 1, 1], [], []>} : vector<1x32xf32>, vector<32x32xf32>, vector<1x32xf32> -> vector<1x32xf32>
    %c32_321 = arith.constant 32 : index
    %c0_322 = arith.constant 0 : index
    %967 = vector.load %arg19[%c32_321, %c0_322] : memref<64x32xf32, #tpu.memory_space<vmem>>, vector<32x32xf32>
    %cst_323 = arith.constant dense<0.000000e+00> : vector<1x32xf32>
    %968 = tpu.matmul %964, %967, %cst_323 {dimension_numbers = #tpu.dot_dimension_numbers<[1], [0], [0], [1], [0, 0, 1, 1], [], []>} : vector<1x32xf32>, vector<32x32xf32>, vector<1x32xf32> -> vector<1x32xf32>
    %969 = arith.addf %966, %968 : vector<1x32xf32>
    %c0_324 = arith.constant 0 : index
    %c0_325 = arith.constant 0 : index
    %970 = vector.load %arg20[%c0_324, %c0_325] : memref<1x32xf32, #tpu.memory_space<vmem>>, vector<1x32xf32>
    %971 = arith.addf %969, %970 : vector<1x32xf32>
    %cst_326 = arith.constant 0.000000e+00 : f32
    %972 = vector.broadcast %cst_326 : f32 to vector<1x32xf32>
    %973 = arith.maximumf %971, %972 : vector<1x32xf32>
    %c0_327 = arith.constant 0 : index
    %c0_328 = arith.constant 0 : index
    %974 = vector.load %arg21[%c0_327, %c0_328] : memref<32x64xf32, #tpu.memory_space<vmem>>, vector<32x64xf32>
    %cst_329 = arith.constant dense<0.000000e+00> : vector<1x64xf32>
    %975 = tpu.matmul %973, %974, %cst_329 {dimension_numbers = #tpu.dot_dimension_numbers<[1], [0], [0], [1], [0, 0, 1, 1], [], []>} : vector<1x32xf32>, vector<32x64xf32>, vector<1x64xf32> -> vector<1x64xf32>
    %c0_330 = arith.constant 0 : index
    %c0_331 = arith.constant 0 : index
    %976 = vector.load %arg22[%c0_330, %c0_331] : memref<1x64xf32, #tpu.memory_space<vmem>>, vector<1x64xf32>
    %977 = arith.addf %975, %976 : vector<1x64xf32>
    %cst_332 = arith.constant 0.000000e+00 : f32
    %978 = vector.broadcast %cst_332 : f32 to vector<1x64xf32>
    %979 = arith.maximumf %977, %978 : vector<1x64xf32>
    %980 = arith.mulf %979, %979 : vector<1x64xf32>
    %cst_333 = arith.constant dense<0.000000e+00> : vector<1xf32>
    %981 = vector.multi_reduction <add>, %980, %cst_333 [1] : vector<1x64xf32> to vector<1xf32>
    %982 = vector.shape_cast %981 : vector<1xf32> to vector<1x1xf32>
    %983 = math.sqrt %982 : vector<1x1xf32>
    %cst_334 = arith.constant 9.99999996E-13 : f32
    %984 = vector.broadcast %cst_334 : f32 to vector<1x1xf32>
    %985 = arith.maximumf %983, %984 : vector<1x1xf32>
    %986 = vector.broadcast %985 : vector<1x1xf32> to vector<1x64xf32>
    %987 = arith.divf %979, %986 : vector<1x64xf32>
    %c0_335 = arith.constant 0 : index
    %c0_336 = arith.constant 0 : index
    %988 = vector.load %arg23[%c0_335, %c0_336] : memref<1x64xf32, #tpu.memory_space<vmem>>, vector<1x64xf32>
    tpu.vector_store %arg23[%c0_335, %c0_336], %987 {strides = array<i32>} : memref<1x64xf32, #tpu.memory_space<vmem>>, vector<1x64xf32>,
    return
  }
}

</mosaic_0001>

<llo_original>
// kernel: gnn_encoder_forward.1
$region0: #{gnn_encoder_forward.1}
  #allocation0 [shape = 'u32[]', space=smem, size = 0x4, offset = 0x4, fixed_abs, tag = 'smem constant byte address 0x4 - core index']
  #allocation1 [shape = 'u32[144,128]{1,0:T(1,128)}', space=vmem, size = 0x12000, scoped, tag = 'internal scratch']
  %s0 = inlined_call_operand.vmem [shape: f32[16,8], index: 0, kind: input, shape index: {}]
  %s1 = inlined_call_operand.vmem [shape: f32[32,4], index: 1, kind: input, shape index: {}]
  %s2 = inlined_call_operand.vmem [shape: s32[32,1], index: 2, kind: input, shape index: {}]
  %s3 = inlined_call_operand.vmem [shape: s32[1,32], index: 3, kind: input, shape index: {}]
  %s4 = inlined_call_operand.hbm [shape: f32[8,32], index: 4, kind: input, shape index: {}]
  %s5 = inlined_call_operand.hbm [shape: f32[1,32], index: 5, kind: input, shape index: {}]
  %s6 = inlined_call_operand.hbm [shape: f32[4,32], index: 6, kind: input, shape index: {}]
  %s7 = inlined_call_operand.hbm [shape: f32[1,32], index: 7, kind: input, shape index: {}]
  %s8 = inlined_call_operand.vmem [shape: f32[3,32,128], index: 8, kind: input, shape index: {}]
  %s9 = inlined_call_operand.vmem [shape: f32[3,32,128], index: 9, kind: input, shape index: {}]
  %s10 = inlined_call_operand.hbm [shape: f32[3,1,128], index: 10, kind: input, shape index: {}]
  %s11 = inlined_call_operand.hbm [shape: f32[3,1,128], index: 11, kind: input, shape index: {}]
  %s12 = inlined_call_operand.hbm [shape: f32[3,1,128], index: 12, kind: input, shape index: {}]
  %s13 = inlined_call_operand.hbm [shape: f32[3,1,32], index: 13, kind: input, shape index: {}]
  %s14 = inlined_call_operand.hbm [shape: f32[3,1,32], index: 14, kind: input, shape index: {}]
  %s15 = inlined_call_operand.hbm [shape: f32[3,1,32], index: 15, kind: input, shape index: {}]
  %s16 = inlined_call_operand.hbm [shape: f32[64,128], index: 16, kind: input, shape index: {}]
  %s17 = inlined_call_operand.hbm [shape: f32[32,128], index: 17, kind: input, shape index: {}]
  %s18 = inlined_call_operand.hbm [shape: f32[1,128], index: 18, kind: input, shape index: {}]
  %s19 = inlined_call_operand.vmem [shape: f32[64,32], index: 19, kind: input, shape index: {}]
  %s20 = inlined_call_operand.hbm [shape: f32[1,32], index: 20, kind: input, shape index: {}]
  %s21 = inlined_call_operand.vmem [shape: f32[32,64], index: 21, kind: input, shape index: {}]
  %s22 = inlined_call_operand.hbm [shape: f32[1,64], index: 22, kind: input, shape index: {}]
  %s23 = inlined_call_operand.hbm [shape: f32[1,64], index: 23, kind: output, shape index: {}]
  %s24 = sld [smem:[#allocation0]]
  $region162: #{gnn_encoder_forward.1} parent=0
    _
  %s26 = ssub.s32 1, %s24
  %s27 = scalar_select 0, %s26, %s24
  $region1: #{gnn_encoder_forward.1} parent=0
    #allocation2 [shape = 'u8[4096]{0}', space=vmem, size = 0x1000, scoped, tag = 'input window, operand 4, single buffered']
    #allocation3 [shape = 's32[1]{0}', space=sflag, size = 0x4, scoped, tag = 'scoped memory for gnn_encoder_forward.1']
    #allocation4 [shape = 's32[1]{0}', space=sflag, size = 0x4, scoped, tag = 'scoped memory for gnn_encoder_forward.1']
    #allocation5 [shape = 'u8[512]{0}', space=vmem, size = 0x400, scoped, tag = 'input window, operand 5, single buffered']
    #allocation6 [shape = 's32[1]{0}', space=sflag, size = 0x4, scoped, tag = 'scoped memory for gnn_encoder_forward.1']
    #allocation7 [shape = 'u8[2048]{0}', space=vmem, size = 0x800, scoped, tag = 'input window, operand 6, single buffered']
    #allocation8 [shape = 'u8[512]{0}', space=vmem, size = 0x400, scoped, tag = 'input window, operand 7, single buffered']
    #allocation9 [shape = 's32[1]{0}', space=sflag, size = 0x4, scoped, tag = 'scoped memory for gnn_encoder_forward.1']
    #allocation10 [shape = 'u8[1536]{0}', space=vmem, size = 0x800, scoped, tag = 'input window, operand 10, single buffered']
    #allocation11 [shape = 'u8[1536]{0}', space=vmem, size = 0x800, scoped, tag = 'input window, operand 11, single buffered']
    #allocation12 [shape = 's32[1]{0}', space=sflag, size = 0x4, scoped, tag = 'scoped memory for gnn_encoder_forward.1']
    #allocation13 [shape = 'u8[1536]{0}', space=vmem, size = 0x800, scoped, tag = 'input window, operand 12, single buffered']
    #allocation14 [shape = 'u8[1536]{0}', space=vmem, size = 0x800, scoped, tag = 'input window, operand 13, single buffered']
    #allocation15 [shape = 's32[1]{0}', space=sflag, size = 0x4, scoped, tag = 'scoped memory for gnn_encoder_forward.1']
    #allocation16 [shape = 'u8[1536]{0}', space=vmem, size = 0x800, scoped, tag = 'input window, operand 14, single buffered']
    #allocation17 [shape = 'u8[1536]{0}', space=vmem, size = 0x800, scoped, tag = 'input window, operand 15, single buffered']
    #allocation18 [shape = 's32[1]{0}', space=sflag, size = 0x4, scoped, tag = 'scoped memory for gnn_encoder_forward.1']
    #allocation19 [shape = 'u8[32768]{0}', space=vmem, size = 0x8000, scoped, tag = 'input window, operand 16, single buffered']
    #allocation20 [shape = 'u8[16384]{0}', space=vmem, size = 0x4000, scoped, tag = 'input window, operand 17, single buffered']
    #allocation21 [shape = 's32[1]{0}', space=sflag, size = 0x4, scoped, tag = 'scoped memory for gnn_encoder_forward.1']
    #allocation22 [shape = 'u8[512]{0}', space=vmem, size = 0x400, scoped, tag = 'input window, operand 18, single buffered']
    #allocation23 [shape = 'u8[512]{0}', space=vmem, size = 0x400, scoped, tag = 'input window, operand 20, single buffered']
    #allocation24 [shape = 's32[1]{0}', space=sflag, size = 0x4, scoped, tag = 'scoped memory for gnn_encoder_forward.1']
    #allocation25 [shape = 'u8[512]{0}', space=vmem, size = 0x400, scoped, tag = 'input window, operand 22, single buffered']
    #allocation26 [shape = 'u8[512]{0}', space=vmem, size = 0x400, scoped, tag = 'output window, operand 0, single buffered']
    %28 = vsyncpa [#allocation3], 0
    %29 = vsyncpa [#allocation6], 0
    %30 = vsyncpa [#allocation9], 0
    %31 = vsyncpa [#allocation12], 0
    %32 = vsyncpa [#allocation15], 0
    %33 = vsyncpa [#allocation18], 0
    %34 = vsyncpa [#allocation21], 0
    %35 = vsyncpa [#allocation24], 0
    %36 = vsyncpa [#allocation4], 0
    // Predicated region
    $region2: #{gnn_encoder_forward.1} parent=1 // pred_check
      _
    $region3: #{gnn_encoder_forward.1} parent=1 // pred_check_branch
      %38 = sbr.rel (0) target = $region5
    $region4: #{gnn_encoder_forward.1} parent=1 // pred_region
      _
    $region5: #{gnn_encoder_forward.1} parent=1 // pred_fallthru
      _
    // Predicated region
    $region6: #{gnn_encoder_forward.1} parent=1 // pred_check
      _
    $region7: #{gnn_encoder_forward.1} parent=1 // pred_check_branch
      %40 = sbr.rel (0) target = $region9
    $region8: #{gnn_encoder_forward.1} parent=1 // pred_region
      _
    $region9: #{gnn_encoder_forward.1} parent=1 // pred_fallthru
      _
    // Predicated region
    $region10: #{gnn_encoder_forward.1} parent=1 // pred_check
      _
    $region11: #{gnn_encoder_forward.1} parent=1 // pred_check_branch
      %42 = sbr.rel (0) target = $region13
    $region12: #{gnn_encoder_forward.1} parent=1 // pred_region
      _
    $region13: #{gnn_encoder_forward.1} parent=1 // pred_fallthru
      _
    // Predicated region
    $region14: #{gnn_encoder_forward.1} parent=1 // pred_check
      _
    $region15: #{gnn_encoder_forward.1} parent=1 // pred_check_branch
      %44 = sbr.rel (0) target = $region17
    $region16: #{gnn_encoder_forward.1} parent=1 // pred_region
      _
    $region17: #{gnn_encoder_forward.1} parent=1 // pred_fallthru
      _
    // Predicated region
    $region18: #{gnn_encoder_forward.1} parent=1 // pred_check
      _
    $region19: #{gnn_encoder_forward.1} parent=1 // pred_check_branch
      %46 = sbr.rel (0) target = $region21
    $region20: #{gnn_encoder_forward.1} parent=1 // pred_region
      %s48 = ssub.s32 128, 128
      %49 = vsyncadd [#allocation3], %s48
      %s51 = sshll.u32 [#allocation2], 4
      %s52 = int_to_ptr.vmem [resolvable:$true] %s51
      %54 = dma.hbm_to_vmem [thread:$0]  %s4, 128, %s52, [#allocation3]
    $region21: #{gnn_encoder_forward.1} parent=1 // pred_fallthru
      _
    // Predicated region
    $region22: #{gnn_encoder_forward.1} parent=1 // pred_check
      _
    $region23: #{gnn_encoder_forward.1} parent=1 // pred_check_branch
      %56 = sbr.rel (0) target = $region25
    $region24: #{gnn_encoder_forward.1} parent=1 // pred_region
      %s58 = ssub.s32 16, 16
      %59 = vsyncadd [#allocation6], %s58
      %s61 = sshll.u32 [#allocation5], 4
      %s62 = int_to_ptr.vmem [resolvable:$true] %s61
      %64 = dma.hbm_to_vmem [thread:$0]  %s5, 16, %s62, [#allocation6]
    $region25: #{gnn_encoder_forward.1} parent=1 // pred_fallthru
      _
    // Predicated region
    $region26: #{gnn_encoder_forward.1} parent=1 // pred_check
      _
    $region27: #{gnn_encoder_forward.1} parent=1 // pred_check_branch
      %66 = sbr.rel (0) target = $region29
    $region28: #{gnn_encoder_forward.1} parent=1 // pred_region
      %s68 = ssub.s32 64, 64
      %69 = vsyncadd [#allocation6], %s68
      %s71 = sshll.u32 [#allocation7], 4
      %s72 = int_to_ptr.vmem [resolvable:$true] %s71
      %74 = dma.hbm_to_vmem [thread:$0]  %s6, 64, %s72, [#allocation6]
    $region29: #{gnn_encoder_forward.1} parent=1 // pred_fallthru
      _
    // Predicated region
    $region30: #{gnn_encoder_forward.1} parent=1 // pred_check
      _
    $region31: #{gnn_encoder_forward.1} parent=1 // pred_check_branch
      %76 = sbr.rel (0) target = $region33
    $region32: #{gnn_encoder_forward.1} parent=1 // pred_region
      %s78 = ssub.s32 16, 16
      %79 = vsyncadd [#allocation9], %s78
      %s81 = sshll.u32 [#allocation8], 4
      %s82 = int_to_ptr.vmem [resolvable:$true] %s81
      %84 = dma.hbm_to_vmem [thread:$0]  %s7, 16, %s82, [#allocation9]
    $region33: #{gnn_encoder_forward.1} parent=1 // pred_fallthru
      _
    // Predicated region
    $region34: #{gnn_encoder_forward.1} parent=1 // pred_check
      _
    $region35: #{gnn_encoder_forward.1} parent=1 // pred_check_branch
      %86 = sbr.rel (0) target = $region37
    $region36: #{gnn_encoder_forward.1} parent=1 // pred_region
      _
    $region37: #{gnn_encoder_forward.1} parent=1 // pred_fallthru
      _
    // Predicated region
    $region38: #{gnn_encoder_forward.1} parent=1 // pred_check
      _
    $region39: #{gnn_encoder_forward.1} parent=1 // pred_check_branch
      %88 = sbr.rel (0) target = $region41
    $region40: #{gnn_encoder_forward.1} parent=1 // pred_region
      _
    $region41: #{gnn_encoder_forward.1} parent=1 // pred_fallthru
      _
    // Predicated region
    $region42: #{gnn_encoder_forward.1} parent=1 // pred_check
      _
    $region43: #{gnn_encoder_forward.1} parent=1 // pred_check_branch
      %90 = sbr.rel (0) target = $region45
    $region44: #{gnn_encoder_forward.1} parent=1 // pred_region
      %s92 = ssub.s32 48, 48
      %93 = vsyncadd [#allocation9], %s92
      %s94 = sshll.u32 [#allocation10], 4
      %s95 = int_to_ptr.vmem [resolvable:$true] %s94
      %100 = dma.hbm_to_vmem [thread:$0]  %s10, 48, %s95, [#allocation9], 16, 16, 1
    $region45: #{gnn_encoder_forward.1} parent=1 // pred_fallthru
      _
    // Predicated region
    $region46: #{gnn_encoder_forward.1} parent=1 // pred_check
      _
    $region47: #{gnn_encoder_forward.1} parent=1 // pred_check_branch
      %102 = sbr.rel (0) target = $region49
    $region48: #{gnn_encoder_forward.1} parent=1 // pred_region
      %s104 = ssub.s32 48, 48
      %105 = vsyncadd [#allocation12], %s104
      %s106 = sshll.u32 [#allocation11], 4
      %s107 = int_to_ptr.vmem [resolvable:$true] %s106
      %112 = dma.hbm_to_vmem [thread:$0]  %s11, 48, %s107, [#allocation12], 16, 16, 1
    $region49: #{gnn_encoder_forward.1} parent=1 // pred_fallthru
      _
    // Predicated region
    $region50: #{gnn_encoder_forward.1} parent=1 // pred_check
      _
    $region51: #{gnn_encoder_forward.1} parent=1 // pred_check_branch
      %114 = sbr.rel (0) target = $region53
    $region52: #{gnn_encoder_forward.1} parent=1 // pred_region
      %s116 = ssub.s32 48, 48
      %117 = vsyncadd [#allocation12], %s116
      %s118 = sshll.u32 [#allocation13], 4
      %s119 = int_to_ptr.vmem [resolvable:$true] %s118
      %124 = dma.hbm_to_vmem [thread:$0]  %s12, 48, %s119, [#allocation12], 16, 16, 1
    $region53: #{gnn_encoder_forward.1} parent=1 // pred_fallthru
      _
    // Predicated region
    $region54: #{gnn_encoder_forward.1} parent=1 // pred_check
      _
    $region55: #{gnn_encoder_forward.1} parent=1 // pred_check_branch
      %126 = sbr.rel (0) target = $region57
    $region56: #{gnn_encoder_forward.1} parent=1 // pred_region
      %s128 = ssub.s32 48, 48
      %129 = vsyncadd [#allocation15], %s128
      %s130 = sshll.u32 [#allocation14], 4
      %s131 = int_to_ptr.vmem [resolvable:$true] %s130
      %136 = dma.hbm_to_vmem [thread:$0]  %s13, 48, %s131, [#allocation15], 16, 16, 1
    $region57: #{gnn_encoder_forward.1} parent=1 // pred_fallthru
      _
    // Predicated region
    $region58: #{gnn_encoder_forward.1} parent=1 // pred_check
      _
    $region59: #{gnn_encoder_forward.1} parent=1 // pred_check_branch
      %138 = sbr.rel (0) target = $region61
    $region60: #{gnn_encoder_forward.1} parent=1 // pred_region
      %s140 = ssub.s32 48, 48
      %141 = vsyncadd [#allocation15], %s140
      %s142 = sshll.u32 [#allocation16], 4
      %s143 = int_to_ptr.vmem [resolvable:$true] %s142
      %148 = dma.hbm_to_vmem [thread:$0]  %s14, 48, %s143, [#allocation15], 16, 16, 1
    $region61: #{gnn_encoder_forward.1} parent=1 // pred_fallthru
      _
    // Predicated region
    $region62: #{gnn_encoder_forward.1} parent=1 // pred_check
      _
    $region63: #{gnn_encoder_forward.1} parent=1 // pred_check_branch
      %150 = sbr.rel (0) target = $region65
    $region64: #{gnn_encoder_forward.1} parent=1 // pred_region
      %s152 = ssub.s32 48, 48
      %153 = vsyncadd [#allocation18], %s152
      %s154 = sshll.u32 [#allocation17], 4
      %s155 = int_to_ptr.vmem [resolvable:$true] %s154
      %160 = dma.hbm_to_vmem [thread:$0]  %s15, 48, %s155, [#allocation18], 16, 16, 1
    $region65: #{gnn_encoder_forward.1} parent=1 // pred_fallthru
      _
    // Predicated region
    $region66: #{gnn_encoder_forward.1} parent=1 // pred_check
      _
    $region67: #{gnn_encoder_forward.1} parent=1 // pred_check_branch
      %162 = sbr.rel (0) target = $region69
    $region68: #{gnn_encoder_forward.1} parent=1 // pred_region
      %s164 = ssub.s32 1024, 1024
      %165 = vsyncadd [#allocation18], %s164
      %s166 = sshll.u32 [#allocation19], 4
      %s167 = int_to_ptr.vmem [resolvable:$true] %s166
      %172 = dma.hbm_to_vmem [thread:$0]  %s16, 1024, %s167, [#allocation18], 128, 128, 8
    $region69: #{gnn_encoder_forward.1} parent=1 // pred_fallthru
      _
    // Predicated region
    $region70: #{gnn_encoder_forward.1} parent=1 // pred_check
      _
    $region71: #{gnn_encoder_forward.1} parent=1 // pred_check_branch
      %174 = sbr.rel (0) target = $region73
    $region72: #{gnn_encoder_forward.1} parent=1 // pred_region
      %s176 = ssub.s32 512, 512
      %177 = vsyncadd [#allocation21], %s176
      %s178 = sshll.u32 [#allocation20], 4
      %s179 = int_to_ptr.vmem [resolvable:$true] %s178
      %184 = dma.hbm_to_vmem [thread:$0]  %s17, 512, %s179, [#allocation21], 128, 128, 8
    $region73: #{gnn_encoder_forward.1} parent=1 // pred_fallthru
      _
    // Predicated region
    $region74: #{gnn_encoder_forward.1} parent=1 // pred_check
      _
    $region75: #{gnn_encoder_forward.1} parent=1 // pred_check_branch
      %186 = sbr.rel (0) target = $region77
    $region76: #{gnn_encoder_forward.1} parent=1 // pred_region
      %s188 = ssub.s32 16, 16
      %189 = vsyncadd [#allocation21], %s188
      %s191 = sshll.u32 [#allocation22], 4
      %s192 = int_to_ptr.vmem [resolvable:$true] %s191
      %194 = dma.hbm_to_vmem [thread:$0]  %s18, 16, %s192, [#allocation21]
    $region77: #{gnn_encoder_forward.1} parent=1 // pred_fallthru
      _
    // Predicated region
    $region78: #{gnn_encoder_forward.1} parent=1 // pred_check
      _
    $region79: #{gnn_encoder_forward.1} parent=1 // pred_check_branch
      %196 = sbr.rel (0) target = $region81
    $region80: #{gnn_encoder_forward.1} parent=1 // pred_region
      _
    $region81: #{gnn_encoder_forward.1} parent=1 // pred_fallthru
      _
    // Predicated region
    $region82: #{gnn_encoder_forward.1} parent=1 // pred_check
      _
    $region83: #{gnn_encoder_forward.1} parent=1 // pred_check_branch
      %198 = sbr.rel (0) target = $region85
    $region84: #{gnn_encoder_forward.1} parent=1 // pred_region
      %s200 = ssub.s32 16, 16
      %201 = vsyncadd [#allocation24], %s200
      %s203 = sshll.u32 [#allocation23], 4
      %s204 = int_to_ptr.vmem [resolvable:$true] %s203
      %206 = dma.hbm_to_vmem [thread:$0]  %s20, 16, %s204, [#allocation24]
    $region85: #{gnn_encoder_forward.1} parent=1 // pred_fallthru
      _
    // Predicated region
    $region86: #{gnn_encoder_forward.1} parent=1 // pred_check
      _
    $region87: #{gnn_encoder_forward.1} parent=1 // pred_check_branch
      %208 = sbr.rel (0) target = $region89
    $region88: #{gnn_encoder_forward.1} parent=1 // pred_region
      _
    $region89: #{gnn_encoder_forward.1} parent=1 // pred_fallthru
      _
    // Predicated region
    $region90: #{gnn_encoder_forward.1} parent=1 // pred_check
      _
    $region91: #{gnn_encoder_forward.1} parent=1 // pred_check_branch
      %210 = sbr.rel (0) target = $region93
    $region92: #{gnn_encoder_forward.1} parent=1 // pred_region
      %s212 = ssub.s32 16, 16
      %213 = vsyncadd [#allocation24], %s212
      %s215 = sshll.u32 [#allocation25], 4
      %s216 = int_to_ptr.vmem [resolvable:$true] %s215
      %218 = dma.hbm_to_vmem [thread:$0]  %s22, 16, %s216, [#allocation24]
    $region93: #{gnn_encoder_forward.1} parent=1 // pred_fallthru
      _
    // Predicated region
    $region94: #{gnn_encoder_forward.1} parent=1 // pred_check
      _
    $region95: #{gnn_encoder_forward.1} parent=1 // pred_check_branch
      %220 = sbr.rel (0) target = $region97
    $region96: #{gnn_encoder_forward.1} parent=1 // pred_region
      %221 = dma.done [#allocation3], 128
    $region97: #{gnn_encoder_forward.1} parent=1 // pred_fallthru
      _
    // Predicated region
    $region98: #{gnn_encoder_forward.1} parent=1 // pred_check
      _
    $region99: #{gnn_encoder_forward.1} parent=1 // pred_check_branch
      %223 = sbr.rel (0) target = $region101
    $region100: #{gnn_encoder_forward.1} parent=1 // pred_region
      %224 = dma.done [#allocation6], 16
    $region101: #{gnn_encoder_forward.1} parent=1 // pred_fallthru
      _
    // Predicated region
    $region102: #{gnn_encoder_forward.1} parent=1 // pred_check
      _
    $region103: #{gnn_encoder_forward.1} parent=1 // pred_check_branch
      %226 = sbr.rel (0) target = $region105
    $region104: #{gnn_encoder_forward.1} parent=1 // pred_region
      %227 = dma.done [#allocation6], 64
    $region105: #{gnn_encoder_forward.1} parent=1 // pred_fallthru
      _
    // Predicated region
    $region106: #{gnn_encoder_forward.1} parent=1 // pred_check
      _
    $region107: #{gnn_encoder_forward.1} parent=1 // pred_check_branch
      %229 = sbr.rel (0) target = $region109
    $region108: #{gnn_encoder_forward.1} parent=1 // pred_region
      %230 = dma.done [#allocation9], 16
    $region109: #{gnn_encoder_forward.1} parent=1 // pred_fallthru
      _
    // Predicated region
    $region110: #{gnn_encoder_forward.1} parent=1 // pred_check
      _
    $region111: #{gnn_encoder_forward.1} parent=1 // pred_check_branch
      %232 = sbr.rel (0) target = $region113
    $region112: #{gnn_encoder_forward.1} parent=1 // pred_region
      %233 = dma.done [#allocation9], 48
    $region113: #{gnn_encoder_forward.1} parent=1 // pred_fallthru
      _
    // Predicated region
    $region114: #{gnn_encoder_forward.1} parent=1 // pred_check
      _
    $region115: #{gnn_encoder_forward.1} parent=1 // pred_check_branch
      %235 = sbr.rel (0) target = $region117
    $region116: #{gnn_encoder_forward.1} parent=1 // pred_region
      %236 = dma.done [#allocation12], 48
    $region117: #{gnn_encoder_forward.1} parent=1 // pred_fallthru
      _
    // Predicated region
    $region118: #{gnn_encoder_forward.1} parent=1 // pred_check
      _
    $region119: #{gnn_encoder_forward.1} parent=1 // pred_check_branch
      %238 = sbr.rel (0) target = $region121
    $region120: #{gnn_encoder_forward.1} parent=1 // pred_region
      %239 = dma.done [#allocation12], 48
    $region121: #{gnn_encoder_forward.1} parent=1 // pred_fallthru
      _
    // Predicated region
    $region122: #{gnn_encoder_forward.1} parent=1 // pred_check
      _
    $region123: #{gnn_encoder_forward.1} parent=1 // pred_check_branch
      %241 = sbr.rel (0) target = $region125
    $region124: #{gnn_encoder_forward.1} parent=1 // pred_region
      %242 = dma.done [#allocation15], 48
    $region125: #{gnn_encoder_forward.1} parent=1 // pred_fallthru
      _
    // Predicated region
    $region126: #{gnn_encoder_forward.1} parent=1 // pred_check
      _
    $region127: #{gnn_encoder_forward.1} parent=1 // pred_check_branch
      %244 = sbr.rel (0) target = $region129
    $region128: #{gnn_encoder_forward.1} parent=1 // pred_region
      %245 = dma.done [#allocation15], 48
    $region129: #{gnn_encoder_forward.1} parent=1 // pred_fallthru
      _
    // Predicated region
    $region130: #{gnn_encoder_forward.1} parent=1 // pred_check
      _
    $region131: #{gnn_encoder_forward.1} parent=1 // pred_check_branch
      %247 = sbr.rel (0) target = $region133
    $region132: #{gnn_encoder_forward.1} parent=1 // pred_region
      %248 = dma.done [#allocation18], 48
    $region133: #{gnn_encoder_forward.1} parent=1 // pred_fallthru
      _
    // Predicated region
    $region134: #{gnn_encoder_forward.1} parent=1 // pred_check
      _
    $region135: #{gnn_encoder_forward.1} parent=1 // pred_check_branch
      %250 = sbr.rel (0) target = $region137
    $region136: #{gnn_encoder_forward.1} parent=1 // pred_region
      %251 = dma.done [#allocation18], 1024
    $region137: #{gnn_encoder_forward.1} parent=1 // pred_fallthru
      _
    // Predicated region
    $region138: #{gnn_encoder_forward.1} parent=1 // pred_check
      _
    $region139: #{gnn_encoder_forward.1} parent=1 // pred_check_branch
      %253 = sbr.rel (0) target = $region141
    $region140: #{gnn_encoder_forward.1} parent=1 // pred_region
      %254 = dma.done [#allocation21], 512
    $region141: #{gnn_encoder_forward.1} parent=1 // pred_fallthru
      _
    // Predicated region
    $region142: #{gnn_encoder_forward.1} parent=1 // pred_check
      _
    $region143: #{gnn_encoder_forward.1} parent=1 // pred_check_branch
      %256 = sbr.rel (0) target = $region145
    $region144: #{gnn_encoder_forward.1} parent=1 // pred_region
      %257 = dma.done [#allocation21], 16
    $region145: #{gnn_encoder_forward.1} parent=1 // pred_fallthru
      _
    // Predicated region
    $region146: #{gnn_encoder_forward.1} parent=1 // pred_check
      _
    $region147: #{gnn_encoder_forward.1} parent=1 // pred_check_branch
      %259 = sbr.rel (0) target = $region149
    $region148: #{gnn_encoder_forward.1} parent=1 // pred_region
      %260 = dma.done [#allocation24], 16
    $region149: #{gnn_encoder_forward.1} parent=1 // pred_fallthru
      _
    // Predicated region
    $region150: #{gnn_encoder_forward.1} parent=1 // pred_check
      _
    $region151: #{gnn_encoder_forward.1} parent=1 // pred_check_branch
      %262 = sbr.rel (0) target = $region153
    $region152: #{gnn_encoder_forward.1} parent=1 // pred_region
      %263 = dma.done [#allocation24], 16
    $region153: #{gnn_encoder_forward.1} parent=1 // pred_fallthru
      _
    %v264 = vlaneseq
    %v265 = vshrl.u32 %v264, 7
    %v266 = vadd.s32 %v265, 8
    %v267 = vld [vmem:[%s3] sm:$0x1]
    %v268 = vlaneseq
    %v269 = vshrl.u32 %v268, 7
    %v270 = vsub.s32 0, %v269
    %v271 = vrot.slane %v267, %v270
    %vm272 = vcmp.eq.s32.totalorder %v265, %v271
    %vm273 = vcmp.eq.s32.totalorder %v266, %v271
    %v274 = vsel %vm272, 1, 0
    %v275 = vsel %vm273, 1, 0
    %v276 = vcvt.s32.f32 %v274
    %v277 = vcvt.s32.f32 %v275
    %v278 = vlaneseq
    %v279 = vand.u32 %v278, 127
    %v280 = vld [vmem:[%s2] sm:$0xff]
    %v281 = vld [vmem:[%s2 + $0x8] sm:$0xff]
    %v282 = vld [vmem:[%s2 + $0x10] sm:$0xff]
    %v283 = vld [vmem:[%s2 + $0x18] sm:$0xff]
    %284 = vset.pattern.permute.xlu0 0
    %285 = vperm.xlu0 %284, %v280
    %v286 = vpop.permute.xlu0 %285
    %287 = vset.pattern.permute.xlu0 0
    %288 = vperm.xlu0 %287, %v281
    %v289 = vpop.permute.xlu0 %288
    %290 = vset.pattern.permute.xlu0 0
    %291 = vperm.xlu0 %290, %v282
    %v292 = vpop.permute.xlu0 %291
    %293 = vset.pattern.permute.xlu0 0
    %294 = vperm.xlu0 %293, %v283
    %v295 = vpop.permute.xlu0 %294
    %vm296 = vcmp.eq.s32.totalorder %v279, %v286
    %vm297 = vcmp.eq.s32.totalorder %v279, %v289
    %vm298 = vcmp.eq.s32.totalorder %v279, %v292
    %vm299 = vcmp.eq.s32.totalorder %v279, %v295
    %v300 = vsel %vm296, 1, 0
    %v301 = vsel %vm297, 1, 0
    %v302 = vsel %vm298, 1, 0
    %v303 = vsel %vm299, 1, 0
    %v304 = vcvt.s32.f32 %v300
    %v305 = vcvt.s32.f32 %v301
    %v306 = vcvt.s32.f32 %v302
    %v307 = vcvt.s32.f32 %v303
    %vm308 = vcmp.eq.s32.totalorder %v265, %v279
    %vm309 = vcmp.eq.s32.totalorder %v266, %v279
    %v310 = vsel %vm308, 1, 0
    %v311 = vsel %vm309, 1, 0
    %v312 = vcvt.s32.f32 %v310
    %v313 = vcvt.s32.f32 %v311
    %vm314 = vcmask 261120
    %v316 = vsel %vm314, %v276, 0
    %v319 = vsel %vm314, %v277, 0
    %321 = vmatprep.subr.mxu0 0.0
    %322 = vmatpush1.msra.mxu0 %v304
    %323 = vmatprep.subr.mxu0 0.0
    %324 = vmatpush1.msra.mxu0 %v305
    %325 = vmatprep.subr.mxu0 0.0
    %326 = vmatpush1.msra.mxu0 %v306
    %327 = vmatprep.subr.mxu0 0.0
    %328 = vmatpush1.msra.mxu0 %v307
    %329 = vmatprep.subr.mxu0 0.0
    %330 = vmatpush1.msra.mxu0 0.0
    %331 = vmatprep.subr.mxu0 0.0
    %332 = vmatpush1.msra.mxu0 0.0
    %333 = vmatprep.subr.mxu0 0.0
    %334 = vmatpush1.msra.mxu0 0.0
    %335 = vmatprep.subr.mxu0 0.0
    %336 = vmatpush1.msra.mxu0 0.0
    %337 = vmatprep.subr.mxu0 0.0
    %338 = vmatpush1.msra.mxu0 0.0
    %339 = vmatprep.subr.mxu0 0.0
    %340 = vmatpush1.msra.mxu0 0.0
    %341 = vmatprep.subr.mxu0 0.0
    %342 = vmatpush1.msra.mxu0 0.0
    %343 = vmatprep.subr.mxu0 0.0
    %344 = vmatpush1.msra.mxu0 0.0
    %345 = vmatprep.subr.mxu0 0.0
    %346 = vmatpush1.msra.mxu0 0.0
    %347 = vmatprep.subr.mxu0 0.0
    %348 = vmatpush1.msra.mxu0 0.0
    %349 = vmatprep.subr.mxu0 0.0
    %350 = vmatpush1.msra.mxu0 0.0
    %351 = vmatprep.subr.mxu0 0.0
    %352 = vmatpush1.msra.mxu0 0.0
    %353 = vmatprep.subr.mxu0 0.0
    %354 = vmatpush1.msra.mxu0 0.0
    %355 = vmatprep.subr.mxu0 0.0
    %356 = vmatpush1.msra.mxu0 0.0
    %357 = vmatprep.subr.mxu0 0.0
    %358 = vmatpush1.msra.mxu0 0.0
    %359 = vmatprep.subr.mxu0 0.0
    %360 = vmatpush1.msra.mxu0 0.0
    %361 = vmatprep.subr.mxu0 0.0
    %362 = vmatpush1.msra.mxu0 0.0
    %363 = vmatprep.subr.mxu0 0.0
    %364 = vmatpush1.msra.mxu0 0.0
    %365 = vmatprep.subr.mxu0 0.0
    %366 = vmatpush1.msra.mxu0 0.0
    %367 = vmatprep.subr.mxu0 0.0
    %368 = vmatpush1.msra.mxu0 0.0
    %369 = vmatprep.subr.mxu0 0.0
    %370 = vmatpush1.msra.mxu0 0.0
    %371 = vmatprep.subr.mxu0 0.0
    %372 = vmatpush1.msra.mxu0 0.0
    %373 = vmatprep.subr.mxu0 0.0
    %374 = vmatpush1.msra.mxu0 0.0
    %375 = vmatprep.subr.mxu0 0.0
    %376 = vmatpush1.msra.mxu0 0.0
    %377 = vmatprep.subr.mxu0 0.0
    %378 = vmatpush1.msra.mxu0 0.0
    %379 = vmatprep.subr.mxu0 0.0
    %380 = vmatpush1.msra.mxu0 0.0
    %381 = vmatprep.subr.mxu0 0.0
    %382 = vmatpush1.msra.mxu0 0.0
    %383 = vmatprep.subr.mxu0 0.0
    %384 = vmatpush1.msra.mxu0 0.0
    %385 = vmatprep.mubr.f32.mxu0 0.0
    %386 = vmatmul.mubr.f32.gmra.mrb[0].mxu0 %v316
    %v387 = vpop.f32.mrb[0].mxu0
    %v388 = vadd.f32 %v312, %v387
    %v389 = vpop.f32.mrb[0].mxu0
    %390 = vmatprep.mubr.f32.mxu0 0.0
    %391 = vmatmul.mubr.f32.gmra.mrb[0].mxu0 %v319
    %v392 = vpop.f32.mrb[0].mxu0
    %v393 = vadd.f32 %v313, %v392
    %v394 = vpop.f32.mrb[0].mxu0
    %395 = vdwg.mxu0
    %v396 = vsel %vm314, %v276, 0.0
    %397 = vadd.xlane.f32.xlu0 %v396
    %v398 = vpop.xlane.xlu0 %397
    %v399 = vsel %vm314, %v277, 0.0
    %400 = vadd.xlane.f32.xlu0 %v399
    %v401 = vpop.xlane.xlu0 %400
    %v402 = vmax.f32 %v398, 1.0
    %v403 = vmax.f32 %v401, 1.0
    %v404 = vrcp.pop %v402
    %v405 = vmul.f32 %v276, %v404
    %v406 = vrcp.pop %v403
    %v407 = vmul.f32 %v277, %v406
    %v408 = vld [vmem:[%s0] sm:$0xff]
    %v409 = vld [vmem:[%s0 + $0x8] sm:$0xff]
    %v410 = vld [vmem:[#allocation2] sm:$0xff]
    %v411 = vld [vmem:[#allocation5] sm:$0x1]
    %v413 = vlaneseq
    %v414 = vshrl.u32 %v413, 7
    %v415 = vsub.s32 0, %v414
    %v416 = vrot.slane %v411, %v415
    %vm418 = vcmask 64512
    %v420 = vsel %vm418, %v408, 0
    %v423 = vsel %vm418, %v409, 0
    %425 = vmatprep.subr.mxu0 0.0
    %426 = vmatpush1.msra.mxu0 %v410
    %427 = vmatprep.subr.mxu0 0.0
    %428 = vmatpush1.msra.mxu0 0.0
    %429 = vmatprep.subr.mxu0 0.0
    %430 = vmatpush1.msra.mxu0 0.0
    %431 = vmatprep.subr.mxu0 0.0
    %432 = vmatpush1.msra.mxu0 0.0
    %433 = vmatprep.subr.mxu0 0.0
    %434 = vmatpush1.msra.mxu0 0.0
    %435 = vmatprep.subr.mxu0 0.0
    %436 = vmatpush1.msra.mxu0 0.0
    %437 = vmatprep.subr.mxu0 0.0
    %438 = vmatpush1.msra.mxu0 0.0
    %439 = vmatprep.subr.mxu0 0.0
    %440 = vmatpush1.msra.mxu0 0.0
    %441 = vmatprep.subr.mxu0 0.0
    %442 = vmatpush1.msra.mxu0 0.0
    %443 = vmatprep.subr.mxu0 0.0
    %444 = vmatpush1.msra.mxu0 0.0
    %445 = vmatprep.subr.mxu0 0.0
    %446 = vmatpush1.msra.mxu0 0.0
    %447 = vmatprep.subr.mxu0 0.0
    %448 = vmatpush1.msra.mxu0 0.0
    %449 = vmatprep.subr.mxu0 0.0
    %450 = vmatpush1.msra.mxu0 0.0
    %451 = vmatprep.subr.mxu0 0.0
    %452 = vmatpush1.msra.mxu0 0.0
    %453 = vmatprep.subr.mxu0 0.0
    %454 = vmatpush1.msra.mxu0 0.0
    %455 = vmatprep.subr.mxu0 0.0
    %456 = vmatpush1.msra.mxu0 0.0
    %457 = vmatprep.subr.mxu0 0.0
    %458 = vmatpush1.msra.mxu0 0.0
    %459 = vmatprep.subr.mxu0 0.0
    %460 = vmatpush1.msra.mxu0 0.0
    %461 = vmatprep.subr.mxu0 0.0
    %462 = vmatpush1.msra.mxu0 0.0
    %463 = vmatprep.subr.mxu0 0.0
    %464 = vmatpush1.msra.mxu0 0.0
    %465 = vmatprep.subr.mxu0 0.0
    %466 = vmatpush1.msra.mxu0 0.0
    %467 = vmatprep.subr.mxu0 0.0
    %468 = vmatpush1.msra.mxu0 0.0
    %469 = vmatprep.subr.mxu0 0.0
    %470 = vmatpush1.msra.mxu0 0.0
    %471 = vmatprep.subr.mxu0 0.0
    %472 = vmatpush1.msra.mxu0 0.0
    %473 = vmatprep.subr.mxu0 0.0
    %474 = vmatpush1.msra.mxu0 0.0
    %475 = vmatprep.subr.mxu0 0.0
    %476 = vmatpush1.msra.mxu0 0.0
    %477 = vmatprep.subr.mxu0 0.0
    %478 = vmatpush1.msra.mxu0 0.0
    %479 = vmatprep.subr.mxu0 0.0
    %480 = vmatpush1.msra.mxu0 0.0
    %481 = vmatprep.subr.mxu0 0.0
    %482 = vmatpush1.msra.mxu0 0.0
    %483 = vmatprep.subr.mxu0 0.0
    %484 = vmatpush1.msra.mxu0 0.0
    %485 = vmatprep.subr.mxu0 0.0
    %486 = vmatpush1.msra.mxu0 0.0
    %487 = vmatprep.subr.mxu0 0.0
    %488 = vmatpush1.msra.mxu0 0.0
    %489 = vmatprep.mubr.f32.mxu0 0.0
    %490 = vmatmul.mubr.f32.gmra.mrb[0].mxu0 %v420
    %v491 = vpop.f32.mrb[0].mxu0
    %v492 = vadd.f32 %v416, %v491
    %v493 = vpop.f32.mrb[0].mxu0
    %494 = vmatprep.mubr.f32.mxu0 0.0
    %495 = vmatmul.mubr.f32.gmra.mrb[0].mxu0 %v423
    %v496 = vpop.f32.mrb[0].mxu0
    %v497 = vadd.f32 %v416, %v496
    %v498 = vpop.f32.mrb[0].mxu0
    %499 = vdwg.mxu0
    %v500 = vld [vmem:[%s1] sm:$0xff]
    %v501 = vld [vmem:[%s1 + $0x8] sm:$0xff]
    %v502 = vld [vmem:[%s1 + $0x10] sm:$0xff]
    %v503 = vld [vmem:[%s1 + $0x18] sm:$0xff]
    %v504 = vld [vmem:[#allocation7] sm:$0xf]
    %v505 = vld [vmem:[#allocation8] sm:$0x1]
    %v507 = vlaneseq
    %v508 = vshrl.u32 %v507, 7
    %v509 = vsub.s32 0, %v508
    %v510 = vrot.slane %v505, %v509
    %vm512 = vcmask 31744
    %v514 = vsel %vm512, %v500, 0
    %v517 = vsel %vm512, %v501, 0
    %v520 = vsel %vm512, %v502, 0
    %v523 = vsel %vm512, %v503, 0
    %vm525 = vcmask 1043456
    %v527 = vsel %vm525, %v504, 0
    %529 = vmatprep.subr.mxu0 0.0
    %530 = vmatpush1.msra.mxu0 %v527
    %531 = vmatprep.subr.mxu0 0.0
    %532 = vmatpush1.msra.mxu0 0.0
    %533 = vmatprep.subr.mxu0 0.0
    %534 = vmatpush1.msra.mxu0 0.0
    %535 = vmatprep.subr.mxu0 0.0
    %536 = vmatpush1.msra.mxu0 0.0
    %537 = vmatprep.subr.mxu0 0.0
    %538 = vmatpush1.msra.mxu0 0.0
    %539 = vmatprep.subr.mxu0 0.0
    %540 = vmatpush1.msra.mxu0 0.0
    %541 = vmatprep.subr.mxu0 0.0
    %542 = vmatpush1.msra.mxu0 0.0
    %543 = vmatprep.subr.mxu0 0.0
    %544 = vmatpush1.msra.mxu0 0.0
    %545 = vmatprep.subr.mxu0 0.0
    %546 = vmatpush1.msra.mxu0 0.0
    %547 = vmatprep.subr.mxu0 0.0
    %548 = vmatpush1.msra.mxu0 0.0
    %549 = vmatprep.subr.mxu0 0.0
    %550 = vmatpush1.msra.mxu0 0.0
    %551 = vmatprep.subr.mxu0 0.0
    %552 = vmatpush1.msra.mxu0 0.0
    %553 = vmatprep.subr.mxu0 0.0
    %554 = vmatpush1.msra.mxu0 0.0
    %555 = vmatprep.subr.mxu0 0.0
    %556 = vmatpush1.msra.mxu0 0.0
    %557 = vmatprep.subr.mxu0 0.0
    %558 = vmatpush1.msra.mxu0 0.0
    %559 = vmatprep.subr.mxu0 0.0
    %560 = vmatpush1.msra.mxu0 0.0
    %561 = vmatprep.subr.mxu0 0.0
    %562 = vmatpush1.msra.mxu0 0.0
    %563 = vmatprep.subr.mxu0 0.0
    %564 = vmatpush1.msra.mxu0 0.0
    %565 = vmatprep.subr.mxu0 0.0
    %566 = vmatpush1.msra.mxu0 0.0
    %567 = vmatprep.subr.mxu0 0.0
    %568 = vmatpush1.msra.mxu0 0.0
    %569 = vmatprep.subr.mxu0 0.0
    %570 = vmatpush1.msra.mxu0 0.0
    %571 = vmatprep.subr.mxu0 0.0
    %572 = vmatpush1.msra.mxu0 0.0
    %573 = vmatprep.subr.mxu0 0.0
    %574 = vmatpush1.msra.mxu0 0.0
    %575 = vmatprep.subr.mxu0 0.0
    %576 = vmatpush1.msra.mxu0 0.0
    %577 = vmatprep.subr.mxu0 0.0
    %578 = vmatpush1.msra.mxu0 0.0
    %579 = vmatprep.subr.mxu0 0.0
    %580 = vmatpush1.msra.mxu0 0.0
    %581 = vmatprep.subr.mxu0 0.0
    %582 = vmatpush1.msra.mxu0 0.0
    %583 = vmatprep.subr.mxu0 0.0
    %584 = vmatpush1.msra.mxu0 0.0
    %585 = vmatprep.subr.mxu0 0.0
    %586 = vmatpush1.msra.mxu0 0.0
    %587 = vmatprep.subr.mxu0 0.0
    %588 = vmatpush1.msra.mxu0 0.0
    %589 = vmatprep.subr.mxu0 0.0
    %590 = vmatpush1.msra.mxu0 0.0
    %591 = vmatprep.subr.mxu0 0.0
    %592 = vmatpush1.msra.mxu0 0.0
    %593 = vmatprep.mubr.f32.mxu0 0.0
    %594 = vmatmul.mubr.f32.gmra.mrb[0].mxu0 %v514
    %v595 = vpop.f32.mrb[0].mxu0
    %v596 = vadd.f32 %v510, %v595
    %v597 = vpop.f32.mrb[0].mxu0
    %598 = vmatprep.mubr.f32.mxu0 0.0
    %599 = vmatmul.mubr.f32.gmra.mrb[0].mxu0 %v517
    %v600 = vpop.f32.mrb[0].mxu0
    %v601 = vadd.f32 %v510, %v600
    %v602 = vpop.f32.mrb[0].mxu0
    %603 = vmatprep.mubr.f32.mxu0 0.0
    %604 = vmatmul.mubr.f32.gmra.mrb[0].mxu0 %v520
    %v605 = vpop.f32.mrb[0].mxu0
    %v606 = vadd.f32 %v510, %v605
    %v607 = vpop.f32.mrb[0].mxu0
    %608 = vmatprep.mubr.f32.mxu0 0.0
    %609 = vmatmul.mubr.f32.gmra.mrb[0].mxu0 %v523
    %v610 = vpop.f32.mrb[0].mxu0
    %v611 = vadd.f32 %v510, %v610
    %v612 = vpop.f32.mrb[0].mxu0
    %613 = vdwg.mxu0
    %v614 = vmul.f32 %v596, %v596
    %v615 = vmul.f32 %v601, %v601
    %v616 = vmul.f32 %v606, %v606
    %v617 = vmul.f32 %v611, %v611
    %v618 = vsel %vm314, %v614, 0.0
    %619 = vadd.xlane.f32.xlu0 %v618
    %v620 = vpop.xlane.xlu0 %619
    %v621 = vsel %vm314, %v615, 0.0
    %622 = vadd.xlane.f32.xlu0 %v621
    %v623 = vpop.xlane.xlu0 %622
    %v624 = vsel %vm314, %v616, 0.0
    %625 = vadd.xlane.f32.xlu0 %v624
    %v626 = vpop.xlane.xlu0 %625
    %v627 = vsel %vm314, %v617, 0.0
    %628 = vadd.xlane.f32.xlu0 %v627
    %v629 = vpop.xlane.xlu0 %628
    %v630 = vrsqrt.pop %v620
    %v631 = vmul.f32 %v620, %v630
    %vm632 = vcmp.eq.f32.partialorder %v620, inf
    %v633 = vsel %vm632, %v620, %v631
    %vm634 = vcmp.eq.f32.partialorder %v620, 0.0
    %v635 = vand.u32 %v620, 2147483648
    %v636 = vsel %vm634, %v635, %v633
    %v637 = vrsqrt.pop %v623
    %v638 = vmul.f32 %v623, %v637
    %vm639 = vcmp.eq.f32.partialorder %v623, inf
    %v640 = vsel %vm639, %v623, %v638
    %vm641 = vcmp.eq.f32.partialorder %v623, 0.0
    %v642 = vand.u32 %v623, 2147483648
    %v643 = vsel %vm641, %v642, %v640
    %v644 = vrsqrt.pop %v626
    %v645 = vmul.f32 %v626, %v644
    %vm646 = vcmp.eq.f32.partialorder %v626, inf
    %v647 = vsel %vm646, %v626, %v645
    %vm648 = vcmp.eq.f32.partialorder %v626, 0.0
    %v649 = vand.u32 %v626, 2147483648
    %v650 = vsel %vm648, %v649, %v647
    %v651 = vrsqrt.pop %v629
    %v652 = vmul.f32 %v629, %v651
    %vm653 = vcmp.eq.f32.partialorder %v629, inf
    %v654 = vsel %vm653, %v629, %v652
    %vm655 = vcmp.eq.f32.partialorder %v629, 0.0
    %v656 = vand.u32 %v629, 2147483648
    %v657 = vsel %vm655, %v656, %v654
    %v658 = vmax.f32 %v636, 1e-12
    %v659 = vmax.f32 %v643, 1e-12
    %v660 = vmax.f32 %v650, 1e-12
    %v661 = vmax.f32 %v657, 1e-12
    %v662 = vrcp.pop %v658
    %v663 = vmul.f32 %v596, %v662
    %v664 = vrcp.pop %v659
    %v665 = vmul.f32 %v601, %v664
    %v666 = vrcp.pop %v660
    %v667 = vmul.f32 %v606, %v666
    %v668 = vrcp.pop %v661
    %v669 = vmul.f32 %v611, %v668
    %v671 = vsel %vm314, %v405, 0
    %v674 = vsel %vm314, %v407, 0
    %676 = vmatprep.subr.mxu0 0.0
    %677 = vmatpush1.msra.mxu0 %v663
    %678 = vmatprep.subr.mxu0 0.0
    %679 = vmatpush1.msra.mxu0 %v665
    %680 = vmatprep.subr.mxu0 0.0
    %681 = vmatpush1.msra.mxu0 %v667
    %682 = vmatprep.subr.mxu0 0.0
    %683 = vmatpush1.msra.mxu0 %v669
    %684 = vmatprep.subr.mxu0 0.0
    %685 = vmatpush1.msra.mxu0 0.0
    %686 = vmatprep.subr.mxu0 0.0
    %687 = vmatpush1.msra.mxu0 0.0
    %688 = vmatprep.subr.mxu0 0.0
    %689 = vmatpush1.msra.mxu0 0.0
    %690 = vmatprep.subr.mxu0 0.0
    %691 = vmatpush1.msra.mxu0 0.0
    %692 = vmatprep.subr.mxu0 0.0
    %693 = vmatpush1.msra.mxu0 0.0
    %694 = vmatprep.subr.mxu0 0.0
    %695 = vmatpush1.msra.mxu0 0.0
    %696 = vmatprep.subr.mxu0 0.0
    %697 = vmatpush1.msra.mxu0 0.0
    %698 = vmatprep.subr.mxu0 0.0
    %699 = vmatpush1.msra.mxu0 0.0
    %700 = vmatprep.subr.mxu0 0.0
    %701 = vmatpush1.msra.mxu0 0.0
    %702 = vmatprep.subr.mxu0 0.0
    %703 = vmatpush1.msra.mxu0 0.0
    %704 = vmatprep.subr.mxu0 0.0
    %705 = vmatpush1.msra.mxu0 0.0
    %706 = vmatprep.subr.mxu0 0.0
    %707 = vmatpush1.msra.mxu0 0.0
    %708 = vmatprep.subr.mxu0 0.0
    %709 = vmatpush1.msra.mxu0 0.0
    %710 = vmatprep.subr.mxu0 0.0
    %711 = vmatpush1.msra.mxu0 0.0
    %712 = vmatprep.subr.mxu0 0.0
    %713 = vmatpush1.msra.mxu0 0.0
    %714 = vmatprep.subr.mxu0 0.0
    %715 = vmatpush1.msra.mxu0 0.0
    %716 = vmatprep.subr.mxu0 0.0
    %717 = vmatpush1.msra.mxu0 0.0
    %718 = vmatprep.subr.mxu0 0.0
    %719 = vmatpush1.msra.mxu0 0.0
    %720 = vmatprep.subr.mxu0 0.0
    %721 = vmatpush1.msra.mxu0 0.0
    %722 = vmatprep.subr.mxu0 0.0
    %723 = vmatpush1.msra.mxu0 0.0
    %724 = vmatprep.subr.mxu0 0.0
    %725 = vmatpush1.msra.mxu0 0.0
    %726 = vmatprep.subr.mxu0 0.0
    %727 = vmatpush1.msra.mxu0 0.0
    %728 = vmatprep.subr.mxu0 0.0
    %729 = vmatpush1.msra.mxu0 0.0
    %730 = vmatprep.subr.mxu0 0.0
    %731 = vmatpush1.msra.mxu0 0.0
    %732 = vmatprep.subr.mxu0 0.0
    %733 = vmatpush1.msra.mxu0 0.0
    %734 = vmatprep.subr.mxu0 0.0
    %735 = vmatpush1.msra.mxu0 0.0
    %736 = vmatprep.subr.mxu0 0.0
    %737 = vmatpush1.msra.mxu0 0.0
    %738 = vmatprep.subr.mxu0 0.0
    %739 = vmatpush1.msra.mxu0 0.0
    %740 = vmatprep.mubr.f32.mxu0 0.0
    %741 = vmatmul.mubr.f32.gmra.mrb[0].mxu0 %v671
    %v742 = vpop.f32.mrb[0].mxu0
    %v743 = vadd.f32 0.0, %v742
    %v744 = vpop.f32.mrb[0].mxu0
    %745 = vmatprep.mubr.f32.mxu0 0.0
    %746 = vmatmul.mubr.f32.gmra.mrb[0].mxu0 %v674
    %v747 = vpop.f32.mrb[0].mxu0
    %v748 = vadd.f32 0.0, %v747
    %v749 = vpop.f32.mrb[0].mxu0
    %750 = vdwg.mxu0
    %v751 = vld [vmem:[%s8] sm:$0xff]
    %v752 = vld [vmem:[%s8 + $0x8] sm:$0xff]
    %v753 = vld [vmem:[%s8 + $0x10] sm:$0xff]
    %v754 = vld [vmem:[%s8 + $0x18] sm:$0xff]
    %v756 = vsel %vm314, %v492, 0
    %v759 = vsel %vm314, %v497, 0
    %761 = vmatprep.subr.mxu0 0.0
    %762 = vmatpush1.msra.mxu0 %v751
    %763 = vmatprep.subr.mxu0 0.0
    %764 = vmatpush1.msra.mxu0 %v752
    %765 = vmatprep.subr.mxu0 0.0
    %766 = vmatpush1.msra.mxu0 %v753
    %767 = vmatprep.subr.mxu0 0.0
    %768 = vmatpush1.msra.mxu0 %v754
    %769 = vmatprep.subr.mxu0 0.0
    %770 = vmatpush1.msra.mxu0 0.0
    %771 = vmatprep.subr.mxu0 0.0
    %772 = vmatpush1.msra.mxu0 0.0
    %773 = vmatprep.subr.mxu0 0.0
    %774 = vmatpush1.msra.mxu0 0.0
    %775 = vmatprep.subr.mxu0 0.0
    %776 = vmatpush1.msra.mxu0 0.0
    %777 = vmatprep.subr.mxu0 0.0
    %778 = vmatpush1.msra.mxu0 0.0
    %779 = vmatprep.subr.mxu0 0.0
    %780 = vmatpush1.msra.mxu0 0.0
    %781 = vmatprep.subr.mxu0 0.0
    %782 = vmatpush1.msra.mxu0 0.0
    %783 = vmatprep.subr.mxu0 0.0
    %784 = vmatpush1.msra.mxu0 0.0
    %785 = vmatprep.subr.mxu0 0.0
    %786 = vmatpush1.msra.mxu0 0.0
    %787 = vmatprep.subr.mxu0 0.0
    %788 = vmatpush1.msra.mxu0 0.0
    %789 = vmatprep.subr.mxu0 0.0
    %790 = vmatpush1.msra.mxu0 0.0
    %791 = vmatprep.subr.mxu0 0.0
    %792 = vmatpush1.msra.mxu0 0.0
    %793 = vmatprep.subr.mxu0 0.0
    %794 = vmatpush1.msra.mxu0 0.0
    %795 = vmatprep.subr.mxu0 0.0
    %796 = vmatpush1.msra.mxu0 0.0
    %797 = vmatprep.subr.mxu0 0.0
    %798 = vmatpush1.msra.mxu0 0.0
    %799 = vmatprep.subr.mxu0 0.0
    %800 = vmatpush1.msra.mxu0 0.0
    %801 = vmatprep.subr.mxu0 0.0
    %802 = vmatpush1.msra.mxu0 0.0
    %803 = vmatprep.subr.mxu0 0.0
    %804 = vmatpush1.msra.mxu0 0.0
    %805 = vmatprep.subr.mxu0 0.0
    %806 = vmatpush1.msra.mxu0 0.0
    %807 = vmatprep.subr.mxu0 0.0
    %808 = vmatpush1.msra.mxu0 0.0
    %809 = vmatprep.subr.mxu0 0.0
    %810 = vmatpush1.msra.mxu0 0.0
    %811 = vmatprep.subr.mxu0 0.0
    %812 = vmatpush1.msra.mxu0 0.0
    %813 = vmatprep.subr.mxu0 0.0
    %814 = vmatpush1.msra.mxu0 0.0
    %815 = vmatprep.subr.mxu0 0.0
    %816 = vmatpush1.msra.mxu0 0.0
    %817 = vmatprep.subr.mxu0 0.0
    %818 = vmatpush1.msra.mxu0 0.0
    %819 = vmatprep.subr.mxu0 0.0
    %820 = vmatpush1.msra.mxu0 0.0
    %821 = vmatprep.subr.mxu0 0.0
    %822 = vmatpush1.msra.mxu0 0.0
    %823 = vmatprep.subr.mxu0 0.0
    %824 = vmatpush1.msra.mxu0 0.0
    %825 = vmatprep.mubr.f32.mxu0 0.0
    %826 = vmatmul.mubr.f32.gmra.mrb[0].mxu0 %v756
    %v827 = vpop.f32.mrb[0].mxu0
    %v828 = vadd.f32 0.0, %v827
    %v829 = vpop.f32.mrb[0].mxu0
    %830 = vmatprep.mubr.f32.mxu0 0.0
    %831 = vmatmul.mubr.f32.gmra.mrb[0].mxu0 %v759
    %v832 = vpop.f32.mrb[0].mxu0
    %v833 = vadd.f32 0.0, %v832
    %v834 = vpop.f32.mrb[0].mxu0
    %835 = vdwg.mxu0
    %v836 = vld [vmem:[%s9] sm:$0xff]
    %v837 = vld [vmem:[%s9 + $0x8] sm:$0xff]
    %v838 = vld [vmem:[%s9 + $0x10] sm:$0xff]
    %v839 = vld [vmem:[%s9 + $0x18] sm:$0xff]
    %v841 = vsel %vm314, %v663, 0
    %v844 = vsel %vm314, %v665, 0
    %v847 = vsel %vm314, %v667, 0
    %v850 = vsel %vm314, %v669, 0
    %852 = vmatprep.subr.mxu0 0.0
    %853 = vmatpush1.msra.mxu0 %v836
    %854 = vmatprep.subr.mxu0 0.0
    %855 = vmatpush1.msra.mxu0 %v837
    %856 = vmatprep.subr.mxu0 0.0
    %857 = vmatpush1.msra.mxu0 %v838
    %858 = vmatprep.subr.mxu0 0.0
    %859 = vmatpush1.msra.mxu0 %v839
    %860 = vmatprep.subr.mxu0 0.0
    %861 = vmatpush1.msra.mxu0 0.0
    %862 = vmatprep.subr.mxu0 0.0
    %863 = vmatpush1.msra.mxu0 0.0
    %864 = vmatprep.subr.mxu0 0.0
    %865 = vmatpush1.msra.mxu0 0.0
    %866 = vmatprep.subr.mxu0 0.0
    %867 = vmatpush1.msra.mxu0 0.0
    %868 = vmatprep.subr.mxu0 0.0
    %869 = vmatpush1.msra.mxu0 0.0
    %870 = vmatprep.subr.mxu0 0.0
    %871 = vmatpush1.msra.mxu0 0.0
    %872 = vmatprep.subr.mxu0 0.0
    %873 = vmatpush1.msra.mxu0 0.0
    %874 = vmatprep.subr.mxu0 0.0
    %875 = vmatpush1.msra.mxu0 0.0
    %876 = vmatprep.subr.mxu0 0.0
    %877 = vmatpush1.msra.mxu0 0.0
    %878 = vmatprep.subr.mxu0 0.0
    %879 = vmatpush1.msra.mxu0 0.0
    %880 = vmatprep.subr.mxu0 0.0
    %881 = vmatpush1.msra.mxu0 0.0
    %882 = vmatprep.subr.mxu0 0.0
    %883 = vmatpush1.msra.mxu0 0.0
    %884 = vmatprep.subr.mxu0 0.0
    %885 = vmatpush1.msra.mxu0 0.0
    %886 = vmatprep.subr.mxu0 0.0
    %887 = vmatpush1.msra.mxu0 0.0
    %888 = vmatprep.subr.mxu0 0.0
    %889 = vmatpush1.msra.mxu0 0.0
    %890 = vmatprep.subr.mxu0 0.0
    %891 = vmatpush1.msra.mxu0 0.0
    %892 = vmatprep.subr.mxu0 0.0
    %893 = vmatpush1.msra.mxu0 0.0
    %894 = vmatprep.subr.mxu0 0.0
    %895 = vmatpush1.msra.mxu0 0.0
    %896 = vmatprep.subr.mxu0 0.0
    %897 = vmatpush1.msra.mxu0 0.0
    %898 = vmatprep.subr.mxu0 0.0
    %899 = vmatpush1.msra.mxu0 0.0
    %900 = vmatprep.subr.mxu0 0.0
    %901 = vmatpush1.msra.mxu0 0.0
    %902 = vmatprep.subr.mxu0 0.0
    %903 = vmatpush1.msra.mxu0 0.0
    %904 = vmatprep.subr.mxu0 0.0
    %905 = vmatpush1.msra.mxu0 0.0
    %906 = vmatprep.subr.mxu0 0.0
    %907 = vmatpush1.msra.mxu0 0.0
    %908 = vmatprep.subr.mxu0 0.0
    %909 = vmatpush1.msra.mxu0 0.0
    %910 = vmatprep.subr.mxu0 0.0
    %911 = vmatpush1.msra.mxu0 0.0
    %912 = vmatprep.subr.mxu0 0.0
    %913 = vmatpush1.msra.mxu0 0.0
    %914 = vmatprep.subr.mxu0 0.0
    %915 = vmatpush1.msra.mxu0 0.0
    %916 = vmatprep.mubr.f32.mxu0 0.0
    %917 = vmatmul.mubr.f32.gmra.mrb[0].mxu0 %v841
    %v918 = vpop.f32.mrb[0].mxu0
    %v919 = vadd.f32 0.0, %v918
    %v920 = vpop.f32.mrb[0].mxu0
    %921 = vmatprep.mubr.f32.mxu0 0.0
    %922 = vmatmul.mubr.f32.gmra.mrb[0].mxu0 %v844
    %v923 = vpop.f32.mrb[0].mxu0
    %v924 = vadd.f32 0.0, %v923
    %v925 = vpop.f32.mrb[0].mxu0
    %926 = vmatprep.mubr.f32.mxu0 0.0
    %927 = vmatmul.mubr.f32.gmra.mrb[0].mxu0 %v847
    %v928 = vpop.f32.mrb[0].mxu0
    %v929 = vadd.f32 0.0, %v928
    %v930 = vpop.f32.mrb[0].mxu0
    %931 = vmatprep.mubr.f32.mxu0 0.0
    %932 = vmatmul.mubr.f32.gmra.mrb[0].mxu0 %v850
    %v933 = vpop.f32.mrb[0].mxu0
    %v934 = vadd.f32 0.0, %v933
    %v935 = vpop.f32.mrb[0].mxu0
    %936 = vdwg.mxu0
    %v938 = vsel %vm314, %v743, 0
    %v941 = vsel %vm314, %v748, 0
    %943 = vmatprep.subr.mxu0 0.0
    %944 = vmatpush1.msra.mxu0 %v836
    %945 = vmatprep.subr.mxu0 0.0
    %946 = vmatpush1.msra.mxu0 %v837
    %947 = vmatprep.subr.mxu0 0.0
    %948 = vmatpush1.msra.mxu0 %v838
    %949 = vmatprep.subr.mxu0 0.0
    %950 = vmatpush1.msra.mxu0 %v839
    %951 = vmatprep.subr.mxu0 0.0
    %952 = vmatpush1.msra.mxu0 0.0
    %953 = vmatprep.subr.mxu0 0.0
    %954 = vmatpush1.msra.mxu0 0.0
    %955 = vmatprep.subr.mxu0 0.0
    %956 = vmatpush1.msra.mxu0 0.0
    %957 = vmatprep.subr.mxu0 0.0
    %958 = vmatpush1.msra.mxu0 0.0
    %959 = vmatprep.subr.mxu0 0.0
    %960 = vmatpush1.msra.mxu0 0.0
    %961 = vmatprep.subr.mxu0 0.0
    %962 = vmatpush1.msra.mxu0 0.0
    %963 = vmatprep.subr.mxu0 0.0
    %964 = vmatpush1.msra.mxu0 0.0
    %965 = vmatprep.subr.mxu0 0.0
    %966 = vmatpush1.msra.mxu0 0.0
    %967 = vmatprep.subr.mxu0 0.0
    %968 = vmatpush1.msra.mxu0 0.0
    %969 = vmatprep.subr.mxu0 0.0
    %970 = vmatpush1.msra.mxu0 0.0
    %971 = vmatprep.subr.mxu0 0.0
    %972 = vmatpush1.msra.mxu0 0.0
    %973 = vmatprep.subr.mxu0 0.0
    %974 = vmatpush1.msra.mxu0 0.0
    %975 = vmatprep.subr.mxu0 0.0
    %976 = vmatpush1.msra.mxu0 0.0
    %977 = vmatprep.subr.mxu0 0.0
    %978 = vmatpush1.msra.mxu0 0.0
    %979 = vmatprep.subr.mxu0 0.0
    %980 = vmatpush1.msra.mxu0 0.0
    %981 = vmatprep.subr.mxu0 0.0
    %982 = vmatpush1.msra.mxu0 0.0
    %983 = vmatprep.subr.mxu0 0.0
    %984 = vmatpush1.msra.mxu0 0.0
    %985 = vmatprep.subr.mxu0 0.0
    %986 = vmatpush1.msra.mxu0 0.0
    %987 = vmatprep.subr.mxu0 0.0
    %988 = vmatpush1.msra.mxu0 0.0
    %989 = vmatprep.subr.mxu0 0.0
    %990 = vmatpush1.msra.mxu0 0.0
    %991 = vmatprep.subr.mxu0 0.0
    %992 = vmatpush1.msra.mxu0 0.0
    %993 = vmatprep.subr.mxu0 0.0
    %994 = vmatpush1.msra.mxu0 0.0
    %995 = vmatprep.subr.mxu0 0.0
    %996 = vmatpush1.msra.mxu0 0.0
    %997 = vmatprep.subr.mxu0 0.0
    %998 = vmatpush1.msra.mxu0 0.0
    %999 = vmatprep.subr.mxu0 0.0
    %1000 = vmatpush1.msra.mxu0 0.0
    %1001 = vmatprep.subr.mxu0 0.0
    %1002 = vmatpush1.msra.mxu0 0.0
    %1003 = vmatprep.subr.mxu0 0.0
    %1004 = vmatpush1.msra.mxu0 0.0
    %1005 = vmatprep.subr.mxu0 0.0
    %1006 = vmatpush1.msra.mxu0 0.0
    %1007 = vmatprep.mubr.f32.mxu0 0.0
    %1008 = vmatmul.mubr.f32.gmra.mrb[0].mxu0 %v938
    %v1009 = vpop.f32.mrb[0].mxu0
    %v1010 = vadd.f32 0.0, %v1009
    %v1011 = vpop.f32.mrb[0].mxu0
    %1012 = vmatprep.mubr.f32.mxu0 0.0
    %1013 = vmatmul.mubr.f32.gmra.mrb[0].mxu0 %v941
    %v1014 = vpop.f32.mrb[0].mxu0
    %v1015 = vadd.f32 0.0, %v1014
    %v1016 = vpop.f32.mrb[0].mxu0
    %1017 = vdwg.mxu0
    %v1018 = vld [vmem:[#allocation10] sm:$0x1]
    %v1019 = vld [vmem:[#allocation11] sm:$0x1]
    %v1020 = vld [vmem:[#allocation13] sm:$0x1]
    %v1022 = vsel %vm314, %v1018, 0
    %v1025 = vsel %vm314, %v828, 0
    %v1028 = vsel %vm314, %v833, 0
    %1030 = vmatprep.subr.mxu0 0.0
    %1031 = vmatpush1.xpose.msra.mxu0 %v1025
    %1032 = vmatprep.subr.mxu0 0.0
    %1033 = vmatpush1.xpose.msra.mxu0 %v1028
    %1034 = vmatprep.subr.mxu0 0.0
    %1035 = vmatpush1.xpose.msra.mxu0 0.0
    %1036 = vmatprep.subr.mxu0 0.0
    %1037 = vmatpush1.xpose.msra.mxu0 0.0
    %1038 = vmatprep.subr.mxu0 0.0
    %1039 = vmatpush1.xpose.msra.mxu0 0.0
    %1040 = vmatprep.subr.mxu0 0.0
    %1041 = vmatpush1.xpose.msra.mxu0 0.0
    %1042 = vmatprep.subr.mxu0 0.0
    %1043 = vmatpush1.xpose.msra.mxu0 0.0
    %1044 = vmatprep.subr.mxu0 0.0
    %1045 = vmatpush1.xpose.msra.mxu0 0.0
    %1046 = vmatprep.subr.mxu0 0.0
    %1047 = vmatpush1.xpose.msra.mxu0 0.0
    %1048 = vmatprep.subr.mxu0 0.0
    %1049 = vmatpush1.xpose.msra.mxu0 0.0
    %1050 = vmatprep.subr.mxu0 0.0
    %1051 = vmatpush1.xpose.msra.mxu0 0.0
    %1052 = vmatprep.subr.mxu0 0.0
    %1053 = vmatpush1.xpose.msra.mxu0 0.0
    %1054 = vmatprep.subr.mxu0 0.0
    %1055 = vmatpush1.xpose.msra.mxu0 0.0
    %1056 = vmatprep.subr.mxu0 0.0
    %1057 = vmatpush1.xpose.msra.mxu0 0.0
    %1058 = vmatprep.subr.mxu0 0.0
    %1059 = vmatpush1.xpose.msra.mxu0 0.0
    %1060 = vmatprep.subr.mxu0 0.0
    %1061 = vmatpush1.xpose.msra.mxu0 0.0
    %1062 = vmatprep.subr.mxu0 0.0
    %1063 = vmatpush1.xpose.msra.mxu0 0.0
    %1064 = vmatprep.subr.mxu0 0.0
    %1065 = vmatpush1.xpose.msra.mxu0 0.0
    %1066 = vmatprep.subr.mxu0 0.0
    %1067 = vmatpush1.xpose.msra.mxu0 0.0
    %1068 = vmatprep.subr.mxu0 0.0
    %1069 = vmatpush1.xpose.msra.mxu0 0.0
    %1070 = vmatprep.subr.mxu0 0.0
    %1071 = vmatpush1.xpose.msra.mxu0 0.0
    %1072 = vmatprep.subr.mxu0 0.0
    %1073 = vmatpush1.xpose.msra.mxu0 0.0
    %1074 = vmatprep.subr.mxu0 0.0
    %1075 = vmatpush1.xpose.msra.mxu0 0.0
    %1076 = vmatprep.subr.mxu0 0.0
    %1077 = vmatpush1.xpose.msra.mxu0 0.0
    %1078 = vmatprep.subr.mxu0 0.0
    %1079 = vmatpush1.xpose.msra.mxu0 0.0
    %1080 = vmatprep.subr.mxu0 0.0
    %1081 = vmatpush1.xpose.msra.mxu0 0.0
    %1082 = vmatprep.subr.mxu0 0.0
    %1083 = vmatpush1.xpose.msra.mxu0 0.0
    %1084 = vmatprep.subr.mxu0 0.0
    %1085 = vmatpush1.xpose.msra.mxu0 0.0
    %1086 = vmatprep.subr.mxu0 0.0
    %1087 = vmatpush1.xpose.msra.mxu0 0.0
    %1088 = vmatprep.subr.mxu0 0.0
    %1089 = vmatpush1.xpose.msra.mxu0 0.0
    %1090 = vmatprep.subr.mxu0 0.0
    %1091 = vmatpush1.xpose.msra.mxu0 0.0
    %1092 = vmatprep.subr.mxu0 0.0
    %1093 = vmatpush1.xpose.msra.mxu0 0.0
    %1094 = vmatprep.mubr.f32.mxu0 0.0
    %1095 = vmatmul.mubr.f32.gmra.mrb[0].mxu0 %v1022
    %v1096 = vpop.f32.mrb[0].mxu0
    %v1097 = vadd.f32 0.0, %v1096
    %v1098 = vpop.f32.mrb[0].mxu0
    %1099 = vdwg.mxu0
    %v1101 = vlaneseq
    %v1102 = vshrl.u32 %v1101, 7
    %v1103 = vsub.s32 0, %v1102
    %v1104 = vrot.slane %v1019, %v1103
    %v1106 = vmul.f32 %v828, %v1104
    %v1107 = vmul.f32 %v833, %v1104
    %v1108 = vsel %vm314, %v1106, 0.0
    %1109 = vadd.xlane.f32.xlu0 %v1108
    %v1110 = vpop.xlane.xlu0 %1109
    %v1111 = vsel %vm314, %v1107, 0.0
    %1112 = vadd.xlane.f32.xlu0 %v1111
    %v1113 = vpop.xlane.xlu0 %1112
    %v1115 = vlaneseq
    %v1116 = vshrl.u32 %v1115, 7
    %v1117 = vsub.s32 0, %v1116
    %v1118 = vrot.slane %v1020, %v1117
    %v1120 = vmul.f32 %v919, %v1118
    %v1121 = vmul.f32 %v924, %v1118
    %v1122 = vmul.f32 %v929, %v1118
    %v1123 = vmul.f32 %v934, %v1118
    %v1124 = vsel %vm314, %v1120, 0.0
    %1125 = vadd.xlane.f32.xlu0 %v1124
    %v1126 = vpop.xlane.xlu0 %1125
    %v1127 = vsel %vm314, %v1121, 0.0
    %1128 = vadd.xlane.f32.xlu0 %v1127
    %v1129 = vpop.xlane.xlu0 %1128
    %v1130 = vsel %vm314, %v1122, 0.0
    %1131 = vadd.xlane.f32.xlu0 %v1130
    %v1132 = vpop.xlane.xlu0 %1131
    %v1133 = vsel %vm314, %v1123, 0.0
    %1134 = vadd.xlane.f32.xlu0 %v1133
    %v1135 = vpop.xlane.xlu0 %1134
    %v1136 = vmul.f32 %v1010, %v1118
    %v1137 = vmul.f32 %v1015, %v1118
    %v1138 = vsel %vm314, %v1136, 0.0
    %1139 = vadd.xlane.f32.xlu0 %v1138
    %v1140 = vpop.xlane.xlu0 %1139
    %v1141 = vsel %vm314, %v1137, 0.0
    %1142 = vadd.xlane.f32.xlu0 %v1141
    %v1143 = vpop.xlane.xlu0 %1142
    %v1144 = vmul.f32 %v1126, %v304
    %v1145 = vmul.f32 %v1129, %v305
    %v1146 = vmul.f32 %v1132, %v306
    %v1147 = vmul.f32 %v1135, %v307
    %v1148 = vmul.f32 %v312, %v1140
    %v1149 = vmul.f32 %v313, %v1143
    %1150 = vmatprep.subr.mxu0 0.0
    %1151 = vmatpush1.msra.mxu0 %v1144
    %1152 = vmatprep.subr.mxu0 0.0
    %1153 = vmatpush1.msra.mxu0 %v1145
    %1154 = vmatprep.subr.mxu0 0.0
    %1155 = vmatpush1.msra.mxu0 %v1146
    %1156 = vmatprep.subr.mxu0 0.0
    %1157 = vmatpush1.msra.mxu0 %v1147
    %1158 = vmatprep.subr.mxu0 0.0
    %1159 = vmatpush1.msra.mxu0 0.0
    %1160 = vmatprep.subr.mxu0 0.0
    %1161 = vmatpush1.msra.mxu0 0.0
    %1162 = vmatprep.subr.mxu0 0.0
    %1163 = vmatpush1.msra.mxu0 0.0
    %1164 = vmatprep.subr.mxu0 0.0
    %1165 = vmatpush1.msra.mxu0 0.0
    %1166 = vmatprep.subr.mxu0 0.0
    %1167 = vmatpush1.msra.mxu0 0.0
    %1168 = vmatprep.subr.mxu0 0.0
    %1169 = vmatpush1.msra.mxu0 0.0
    %1170 = vmatprep.subr.mxu0 0.0
    %1171 = vmatpush1.msra.mxu0 0.0
    %1172 = vmatprep.subr.mxu0 0.0
    %1173 = vmatpush1.msra.mxu0 0.0
    %1174 = vmatprep.subr.mxu0 0.0
    %1175 = vmatpush1.msra.mxu0 0.0
    %1176 = vmatprep.subr.mxu0 0.0
    %1177 = vmatpush1.msra.mxu0 0.0
    %1178 = vmatprep.subr.mxu0 0.0
    %1179 = vmatpush1.msra.mxu0 0.0
    %1180 = vmatprep.subr.mxu0 0.0
    %1181 = vmatpush1.msra.mxu0 0.0
    %1182 = vmatprep.subr.mxu0 0.0
    %1183 = vmatpush1.msra.mxu0 0.0
    %1184 = vmatprep.subr.mxu0 0.0
    %1185 = vmatpush1.msra.mxu0 0.0
    %1186 = vmatprep.subr.mxu0 0.0
    %1187 = vmatpush1.msra.mxu0 0.0
    %1188 = vmatprep.subr.mxu0 0.0
    %1189 = vmatpush1.msra.mxu0 0.0
    %1190 = vmatprep.subr.mxu0 0.0
    %1191 = vmatpush1.msra.mxu0 0.0
    %1192 = vmatprep.subr.mxu0 0.0
    %1193 = vmatpush1.msra.mxu0 0.0
    %1194 = vmatprep.subr.mxu0 0.0
    %1195 = vmatpush1.msra.mxu0 0.0
    %1196 = vmatprep.subr.mxu0 0.0
    %1197 = vmatpush1.msra.mxu0 0.0
    %1198 = vmatprep.subr.mxu0 0.0
    %1199 = vmatpush1.msra.mxu0 0.0
    %1200 = vmatprep.subr.mxu0 0.0
    %1201 = vmatpush1.msra.mxu0 0.0
    %1202 = vmatprep.subr.mxu0 0.0
    %1203 = vmatpush1.msra.mxu0 0.0
    %1204 = vmatprep.subr.mxu0 0.0
    %1205 = vmatpush1.msra.mxu0 0.0
    %1206 = vmatprep.subr.mxu0 0.0
    %1207 = vmatpush1.msra.mxu0 0.0
    %1208 = vmatprep.subr.mxu0 0.0
    %1209 = vmatpush1.msra.mxu0 0.0
    %1210 = vmatprep.subr.mxu0 0.0
    %1211 = vmatpush1.msra.mxu0 0.0
    %1212 = vmatprep.subr.mxu0 0.0
    %1213 = vmatpush1.msra.mxu0 0.0
    %1214 = vmatprep.mubr.f32.mxu0 0.0
    %1215 = vmatmul.mubr.f32.gmra.mrb[0].mxu0 %v316
    %v1216 = vpop.f32.mrb[0].mxu0
    %v1217 = vadd.f32 %v1148, %v1216
    %v1218 = vpop.f32.mrb[0].mxu0
    %1219 = vmatprep.mubr.f32.mxu0 0.0
    %1220 = vmatmul.mubr.f32.gmra.mrb[0].mxu0 %v319
    %v1221 = vpop.f32.mrb[0].mxu0
    %v1222 = vadd.f32 %v1149, %v1221
    %v1223 = vpop.f32.mrb[0].mxu0
    %1224 = vdwg.mxu0
    %v1225 = vadd.f32 %v1217, %v1110
    %v1226 = vadd.f32 %v1222, %v1113
    %v1227 = vlaneseq
    %v1228 = vshrl.u32 %v1227, 7
    %v1229 = vsub.s32 0, %v1228
    %v1230 = vrot.slane %v1097, %v1229
    %v1231 = vadd.f32 %v1225, %v1230
    %v1232 = vadd.f32 %v1226, %v1230
    %vm1233 = vcmp.gt.f32.partialorder %v1231, 0.0
    %vm1234 = vcmp.gt.f32.partialorder %v1232, 0.0
    %v1235 = vmul.f32 %v1231, 0.2
    %v1236 = vmul.f32 %v1232, 0.2
    %v1237 = vsel %vm1233, %v1231, %v1235
    %v1238 = vsel %vm1234, %v1232, %v1236
    %vm1239 = vcmp.gt.f32.partialorder %v388, 0.0
    %vm1240 = vcmp.gt.f32.partialorder %v393, 0.0
    %v1241 = vsel %vm1239, %v1237, -1e+30
    %v1242 = vsel %vm1240, %v1238, -1e+30
    %vm1243 = vcmask 130048
    %v1244 = vsel %vm1243, %v1241, -inf
    %1245 = vmax.xlane.f32.xlu0 %v1244
    %v1246 = vpop.xlane.xlu0 %1245
    %v1247 = vsel %vm1243, %v1242, -inf
    %1248 = vmax.xlane.f32.xlu0 %v1247
    %v1249 = vpop.xlane.xlu0 %1248
    %v1250 = vsub.f32 %v1241, %v1246
    %v1251 = vsub.f32 %v1242, %v1249
    %v1252 = vmul.f32 %v1250, 1.442695
    %v1253 = vpow.pop %v1252
    %v1254 = vmul.f32 %v1251, 1.442695
    %v1255 = vpow.pop %v1254
    %v1256 = vsel %vm1243, %v1253, 0.0
    %1257 = vadd.xlane.f32.xlu0 %v1256
    %v1258 = vpop.xlane.xlu0 %1257
    %v1259 = vsel %vm1243, %v1255, 0.0
    %1260 = vadd.xlane.f32.xlu0 %v1259
    %v1261 = vpop.xlane.xlu0 %1260
    %v1262 = vrcp.pop %v1258
    %v1263 = vrcp.pop %v1261
    %v1264 = vmul.f32 %v1253, %v1262
    %v1265 = vmul.f32 %v1255, %v1263
    %v1266 = vlaneseq
    %v1267 = vshrl.u32 %v1266, 7
    %v1268 = vsub.s32 0, %v1267
    %v1269 = vrot.slane %v1018, %v1268
    %1270 = vrot.lane.b32.xlu0 %v1269, 96
    %v1271 = vpop.permute.xlu0 %1270
    %1272 = vrot.lane.b32.xlu0 %v828, 96
    %v1273 = vpop.permute.xlu0 %1272
    %1274 = vrot.lane.b32.xlu0 %v833, 96
    %v1275 = vpop.permute.xlu0 %1274
    %v1276 = vsel %vm314, %v1271, 0
    %v1278 = vsel %vm314, %v1273, 0
    %v1280 = vsel %vm314, %v1275, 0
    %1282 = vmatprep.subr.mxu0 0.0
    %1283 = vmatpush1.xpose.msra.mxu0 %v1278
    %1284 = vmatprep.subr.mxu0 0.0
    %1285 = vmatpush1.xpose.msra.mxu0 %v1280
    %1286 = vmatprep.subr.mxu0 0.0
    %1287 = vmatpush1.xpose.msra.mxu0 0.0
    %1288 = vmatprep.subr.mxu0 0.0
    %1289 = vmatpush1.xpose.msra.mxu0 0.0
    %1290 = vmatprep.subr.mxu0 0.0
    %1291 = vmatpush1.xpose.msra.mxu0 0.0
    %1292 = vmatprep.subr.mxu0 0.0
    %1293 = vmatpush1.xpose.msra.mxu0 0.0
    %1294 = vmatprep.subr.mxu0 0.0
    %1295 = vmatpush1.xpose.msra.mxu0 0.0
    %1296 = vmatprep.subr.mxu0 0.0
    %1297 = vmatpush1.xpose.msra.mxu0 0.0
    %1298 = vmatprep.subr.mxu0 0.0
    %1299 = vmatpush1.xpose.msra.mxu0 0.0
    %1300 = vmatprep.subr.mxu0 0.0
    %1301 = vmatpush1.xpose.msra.mxu0 0.0
    %1302 = vmatprep.subr.mxu0 0.0
    %1303 = vmatpush1.xpose.msra.mxu0 0.0
    %1304 = vmatprep.subr.mxu0 0.0
    %1305 = vmatpush1.xpose.msra.mxu0 0.0
    %1306 = vmatprep.subr.mxu0 0.0
    %1307 = vmatpush1.xpose.msra.mxu0 0.0
    %1308 = vmatprep.subr.mxu0 0.0
    %1309 = vmatpush1.xpose.msra.mxu0 0.0
    %1310 = vmatprep.subr.mxu0 0.0
    %1311 = vmatpush1.xpose.msra.mxu0 0.0
    %1312 = vmatprep.subr.mxu0 0.0
    %1313 = vmatpush1.xpose.msra.mxu0 0.0
    %1314 = vmatprep.subr.mxu0 0.0
    %1315 = vmatpush1.xpose.msra.mxu0 0.0
    %1316 = vmatprep.subr.mxu0 0.0
    %1317 = vmatpush1.xpose.msra.mxu0 0.0
    %1318 = vmatprep.subr.mxu0 0.0
    %1319 = vmatpush1.xpose.msra.mxu0 0.0
    %1320 = vmatprep.subr.mxu0 0.0
    %1321 = vmatpush1.xpose.msra.mxu0 0.0
    %1322 = vmatprep.subr.mxu0 0.0
    %1323 = vmatpush1.xpose.msra.mxu0 0.0
    %1324 = vmatprep.subr.mxu0 0.0
    %1325 = vmatpush1.xpose.msra.mxu0 0.0
    %1326 = vmatprep.subr.mxu0 0.0
    %1327 = vmatpush1.xpose.msra.mxu0 0.0
    %1328 = vmatprep.subr.mxu0 0.0
    %1329 = vmatpush1.xpose.msra.mxu0 0.0
    %1330 = vmatprep.subr.mxu0 0.0
    %1331 = vmatpush1.xpose.msra.mxu0 0.0
    %1332 = vmatprep.subr.mxu0 0.0
    %1333 = vmatpush1.xpose.msra.mxu0 0.0
    %1334 = vmatprep.subr.mxu0 0.0
    %1335 = vmatpush1.xpose.msra.mxu0 0.0
    %1336 = vmatprep.subr.mxu0 0.0
    %1337 = vmatpush1.xpose.msra.mxu0 0.0
    %1338 = vmatprep.subr.mxu0 0.0
    %1339 = vmatpush1.xpose.msra.mxu0 0.0
    %1340 = vmatprep.subr.mxu0 0.0
    %1341 = vmatpush1.xpose.msra.mxu0 0.0
    %1342 = vmatprep.subr.mxu0 0.0
    %1343 = vmatpush1.xpose.msra.mxu0 0.0
    %1344 = vmatprep.subr.mxu0 0.0
    %1345 = vmatpush1.xpose.msra.mxu0 0.0
    %1346 = vmatprep.mubr.f32.mxu0 0.0
    %1347 = vmatmul.mubr.f32.gmra.mrb[0].mxu0 %v1276
    %v1348 = vpop.f32.mrb[0].mxu0
    %v1349 = vadd.f32 0.0, %v1348
    %v1350 = vpop.f32.mrb[0].mxu0
    %1351 = vdwg.mxu0
    %1354 = vrot.lane.b32.xlu0 %v1106, 96
    %v1355 = vpop.permute.xlu0 %1354
    %1356 = vrot.lane.b32.xlu0 %v1107, 96
    %v1357 = vpop.permute.xlu0 %1356
    %v1360 = vsel %vm314, %v1355, 0.0
    %1361 = vadd.xlane.f32.xlu0 %v1360
    %v1362 = vpop.xlane.xlu0 %1361
    %v1363 = vsel %vm314, %v1357, 0.0
    %1364 = vadd.xlane.f32.xlu0 %v1363
    %v1365 = vpop.xlane.xlu0 %1364
    %1370 = vrot.lane.b32.xlu0 %v1120, 96
    %v1371 = vpop.permute.xlu0 %1370
    %1372 = vrot.lane.b32.xlu0 %v1121, 96
    %v1373 = vpop.permute.xlu0 %1372
    %1374 = vrot.lane.b32.xlu0 %v1122, 96
    %v1375 = vpop.permute.xlu0 %1374
    %1376 = vrot.lane.b32.xlu0 %v1123, 96
    %v1377 = vpop.permute.xlu0 %1376
    %v1382 = vsel %vm314, %v1371, 0.0
    %1383 = vadd.xlane.f32.xlu0 %v1382
    %v1384 = vpop.xlane.xlu0 %1383
    %v1385 = vsel %vm314, %v1373, 0.0
    %1386 = vadd.xlane.f32.xlu0 %v1385
    %v1387 = vpop.xlane.xlu0 %1386
    %v1388 = vsel %vm314, %v1375, 0.0
    %1389 = vadd.xlane.f32.xlu0 %v1388
    %v1390 = vpop.xlane.xlu0 %1389
    %v1391 = vsel %vm314, %v1377, 0.0
    %1392 = vadd.xlane.f32.xlu0 %v1391
    %v1393 = vpop.xlane.xlu0 %1392
    %1396 = vrot.lane.b32.xlu0 %v1136, 96
    %v1397 = vpop.permute.xlu0 %1396
    %1398 = vrot.lane.b32.xlu0 %v1137, 96
    %v1399 = vpop.permute.xlu0 %1398
    %v1402 = vsel %vm314, %v1397, 0.0
    %1403 = vadd.xlane.f32.xlu0 %v1402
    %v1404 = vpop.xlane.xlu0 %1403
    %v1405 = vsel %vm314, %v1399, 0.0
    %1406 = vadd.xlane.f32.xlu0 %v1405
    %v1407 = vpop.xlane.xlu0 %1406
    %v1408 = vmul.f32 %v1384, %v304
    %v1409 = vmul.f32 %v1387, %v305
    %v1410 = vmul.f32 %v1390, %v306
    %v1411 = vmul.f32 %v1393, %v307
    %v1412 = vmul.f32 %v312, %v1404
    %v1413 = vmul.f32 %v313, %v1407
    %1414 = vmatprep.subr.mxu0 0.0
    %1415 = vmatpush1.msra.mxu0 %v1408
    %1416 = vmatprep.subr.mxu0 0.0
    %1417 = vmatpush1.msra.mxu0 %v1409
    %1418 = vmatprep.subr.mxu0 0.0
    %1419 = vmatpush1.msra.mxu0 %v1410
    %1420 = vmatprep.subr.mxu0 0.0
    %1421 = vmatpush1.msra.mxu0 %v1411
    %1422 = vmatprep.subr.mxu0 0.0
    %1423 = vmatpush1.msra.mxu0 0.0
    %1424 = vmatprep.subr.mxu0 0.0
    %1425 = vmatpush1.msra.mxu0 0.0
    %1426 = vmatprep.subr.mxu0 0.0
    %1427 = vmatpush1.msra.mxu0 0.0
    %1428 = vmatprep.subr.mxu0 0.0
    %1429 = vmatpush1.msra.mxu0 0.0
    %1430 = vmatprep.subr.mxu0 0.0
    %1431 = vmatpush1.msra.mxu0 0.0
    %1432 = vmatprep.subr.mxu0 0.0
    %1433 = vmatpush1.msra.mxu0 0.0
    %1434 = vmatprep.subr.mxu0 0.0
    %1435 = vmatpush1.msra.mxu0 0.0
    %1436 = vmatprep.subr.mxu0 0.0
    %1437 = vmatpush1.msra.mxu0 0.0
    %1438 = vmatprep.subr.mxu0 0.0
    %1439 = vmatpush1.msra.mxu0 0.0
    %1440 = vmatprep.subr.mxu0 0.0
    %1441 = vmatpush1.msra.mxu0 0.0
    %1442 = vmatprep.subr.mxu0 0.0
    %1443 = vmatpush1.msra.mxu0 0.0
    %1444 = vmatprep.subr.mxu0 0.0
    %1445 = vmatpush1.msra.mxu0 0.0
    %1446 = vmatprep.subr.mxu0 0.0
    %1447 = vmatpush1.msra.mxu0 0.0
    %1448 = vmatprep.subr.mxu0 0.0
    %1449 = vmatpush1.msra.mxu0 0.0
    %1450 = vmatprep.subr.mxu0 0.0
    %1451 = vmatpush1.msra.mxu0 0.0
    %1452 = vmatprep.subr.mxu0 0.0
    %1453 = vmatpush1.msra.mxu0 0.0
    %1454 = vmatprep.subr.mxu0 0.0
    %1455 = vmatpush1.msra.mxu0 0.0
    %1456 = vmatprep.subr.mxu0 0.0
    %1457 = vmatpush1.msra.mxu0 0.0
    %1458 = vmatprep.subr.mxu0 0.0
    %1459 = vmatpush1.msra.mxu0 0.0
    %1460 = vmatprep.subr.mxu0 0.0
    %1461 = vmatpush1.msra.mxu0 0.0
    %1462 = vmatprep.subr.mxu0 0.0
    %1463 = vmatpush1.msra.mxu0 0.0
    %1464 = vmatprep.subr.mxu0 0.0
    %1465 = vmatpush1.msra.mxu0 0.0
    %1466 = vmatprep.subr.mxu0 0.0
    %1467 = vmatpush1.msra.mxu0 0.0
    %1468 = vmatprep.subr.mxu0 0.0
    %1469 = vmatpush1.msra.mxu0 0.0
    %1470 = vmatprep.subr.mxu0 0.0
    %1471 = vmatpush1.msra.mxu0 0.0
    %1472 = vmatprep.subr.mxu0 0.0
    %1473 = vmatpush1.msra.mxu0 0.0
    %1474 = vmatprep.subr.mxu0 0.0
    %1475 = vmatpush1.msra.mxu0 0.0
    %1476 = vmatprep.subr.mxu0 0.0
    %1477 = vmatpush1.msra.mxu0 0.0
    %1478 = vmatprep.mubr.f32.mxu0 0.0
    %1479 = vmatmul.mubr.f32.gmra.mrb[0].mxu0 %v316
    %v1480 = vpop.f32.mrb[0].mxu0
    %v1481 = vadd.f32 %v1412, %v1480
    %v1482 = vpop.f32.mrb[0].mxu0
    %1483 = vmatprep.mubr.f32.mxu0 0.0
    %1484 = vmatmul.mubr.f32.gmra.mrb[0].mxu0 %v319
    %v1485 = vpop.f32.mrb[0].mxu0
    %v1486 = vadd.f32 %v1413, %v1485
    %v1487 = vpop.f32.mrb[0].mxu0
    %1488 = vdwg.mxu0
    %v1489 = vadd.f32 %v1481, %v1362
    %v1490 = vadd.f32 %v1486, %v1365
    %v1491 = vlaneseq
    %v1492 = vshrl.u32 %v1491, 7
    %v1493 = vsub.s32 0, %v1492
    %v1494 = vrot.slane %v1349, %v1493
    %v1495 = vadd.f32 %v1489, %v1494
    %v1496 = vadd.f32 %v1490, %v1494
    %vm1497 = vcmp.gt.f32.partialorder %v1495, 0.0
    %vm1498 = vcmp.gt.f32.partialorder %v1496, 0.0
    %v1499 = vmul.f32 %v1495, 0.2
    %v1500 = vmul.f32 %v1496, 0.2
    %v1501 = vsel %vm1497, %v1495, %v1499
    %v1502 = vsel %vm1498, %v1496, %v1500
    %v1503 = vsel %vm1239, %v1501, -1e+30
    %v1504 = vsel %vm1240, %v1502, -1e+30
    %v1505 = vsel %vm1243, %v1503, -inf
    %1506 = vmax.xlane.f32.xlu0 %v1505
    %v1507 = vpop.xlane.xlu0 %1506
    %v1508 = vsel %vm1243, %v1504, -inf
    %1509 = vmax.xlane.f32.xlu0 %v1508
    %v1510 = vpop.xlane.xlu0 %1509
    %v1511 = vsub.f32 %v1503, %v1507
    %v1512 = vsub.f32 %v1504, %v1510
    %v1513 = vmul.f32 %v1511, 1.442695
    %v1514 = vpow.pop %v1513
    %v1515 = vmul.f32 %v1512, 1.442695
    %v1516 = vpow.pop %v1515
    %v1517 = vsel %vm1243, %v1514, 0.0
    %1518 = vadd.xlane.f32.xlu0 %v1517
    %v1519 = vpop.xlane.xlu0 %1518
    %v1520 = vsel %vm1243, %v1516, 0.0
    %1521 = vadd.xlane.f32.xlu0 %v1520
    %v1522 = vpop.xlane.xlu0 %1521
    %v1523 = vrcp.pop %v1519
    %v1524 = vrcp.pop %v1522
    %v1525 = vmul.f32 %v1514, %v1523
    %v1526 = vmul.f32 %v1516, %v1524
    %v1530 = vsel %vm1243, %v1525, 0
    %v1533 = vsel %vm1243, %v1526, 0
    %1535 = vmatprep.subr.mxu0 0.0
    %1536 = vmatpush1.msra.mxu0 %v1273
    %1537 = vmatprep.subr.mxu0 0.0
    %1538 = vmatpush1.msra.mxu0 %v1275
    %1539 = vmatprep.subr.mxu0 0.0
    %1540 = vmatpush1.msra.mxu0 0.0
    %1541 = vmatprep.subr.mxu0 0.0
    %1542 = vmatpush1.msra.mxu0 0.0
    %1543 = vmatprep.subr.mxu0 0.0
    %1544 = vmatpush1.msra.mxu0 0.0
    %1545 = vmatprep.subr.mxu0 0.0
    %1546 = vmatpush1.msra.mxu0 0.0
    %1547 = vmatprep.subr.mxu0 0.0
    %1548 = vmatpush1.msra.mxu0 0.0
    %1549 = vmatprep.subr.mxu0 0.0
    %1550 = vmatpush1.msra.mxu0 0.0
    %1551 = vmatprep.subr.mxu0 0.0
    %1552 = vmatpush1.msra.mxu0 0.0
    %1553 = vmatprep.subr.mxu0 0.0
    %1554 = vmatpush1.msra.mxu0 0.0
    %1555 = vmatprep.subr.mxu0 0.0
    %1556 = vmatpush1.msra.mxu0 0.0
    %1557 = vmatprep.subr.mxu0 0.0
    %1558 = vmatpush1.msra.mxu0 0.0
    %1559 = vmatprep.subr.mxu0 0.0
    %1560 = vmatpush1.msra.mxu0 0.0
    %1561 = vmatprep.subr.mxu0 0.0
    %1562 = vmatpush1.msra.mxu0 0.0
    %1563 = vmatprep.subr.mxu0 0.0
    %1564 = vmatpush1.msra.mxu0 0.0
    %1565 = vmatprep.subr.mxu0 0.0
    %1566 = vmatpush1.msra.mxu0 0.0
    %1567 = vmatprep.subr.mxu0 0.0
    %1568 = vmatpush1.msra.mxu0 0.0
    %1569 = vmatprep.subr.mxu0 0.0
    %1570 = vmatpush1.msra.mxu0 0.0
    %1571 = vmatprep.subr.mxu0 0.0
    %1572 = vmatpush1.msra.mxu0 0.0
    %1573 = vmatprep.subr.mxu0 0.0
    %1574 = vmatpush1.msra.mxu0 0.0
    %1575 = vmatprep.subr.mxu0 0.0
    %1576 = vmatpush1.msra.mxu0 0.0
    %1577 = vmatprep.subr.mxu0 0.0
    %1578 = vmatpush1.msra.mxu0 0.0
    %1579 = vmatprep.subr.mxu0 0.0
    %1580 = vmatpush1.msra.mxu0 0.0
    %1581 = vmatprep.subr.mxu0 0.0
    %1582 = vmatpush1.msra.mxu0 0.0
    %1583 = vmatprep.subr.mxu0 0.0
    %1584 = vmatpush1.msra.mxu0 0.0
    %1585 = vmatprep.subr.mxu0 0.0
    %1586 = vmatpush1.msra.mxu0 0.0
    %1587 = vmatprep.subr.mxu0 0.0
    %1588 = vmatpush1.msra.mxu0 0.0
    %1589 = vmatprep.subr.mxu0 0.0
    %1590 = vmatpush1.msra.mxu0 0.0
    %1591 = vmatprep.subr.mxu0 0.0
    %1592 = vmatpush1.msra.mxu0 0.0
    %1593 = vmatprep.subr.mxu0 0.0
    %1594 = vmatpush1.msra.mxu0 0.0
    %1595 = vmatprep.subr.mxu0 0.0
    %1596 = vmatpush1.msra.mxu0 0.0
    %1597 = vmatprep.subr.mxu0 0.0
    %1598 = vmatpush1.msra.mxu0 0.0
    %1599 = vmatprep.mubr.f32.mxu0 0.0
    %1600 = vmatmul.mubr.f32.gmra.mrb[0].mxu0 %v1530
    %v1601 = vpop.f32.mrb[0].mxu0
    %v1602 = vadd.f32 0.0, %v1601
    %v1603 = vpop.f32.mrb[0].mxu0
    %1604 = vmatprep.mubr.f32.mxu0 0.0
    %1605 = vmatmul.mubr.f32.gmra.mrb[0].mxu0 %v1533
    %v1606 = vpop.f32.mrb[0].mxu0
    %v1607 = vadd.f32 0.0, %v1606
    %v1608 = vpop.f32.mrb[0].mxu0
    %1609 = vdwg.mxu0
    %v1611 = vsel %vm1243, %v1264, 0
    %v1614 = vsel %vm1243, %v1265, 0
    %1616 = vmatprep.subr.mxu0 0.0
    %1617 = vmatpush1.msra.mxu0 %v828
    %1618 = vmatprep.subr.mxu0 0.0
    %1619 = vmatpush1.msra.mxu0 %v833
    %1620 = vmatprep.subr.mxu0 0.0
    %1621 = vmatpush1.msra.mxu0 0.0
    %1622 = vmatprep.subr.mxu0 0.0
    %1623 = vmatpush1.msra.mxu0 0.0
    %1624 = vmatprep.subr.mxu0 0.0
    %1625 = vmatpush1.msra.mxu0 0.0
    %1626 = vmatprep.subr.mxu0 0.0
    %1627 = vmatpush1.msra.mxu0 0.0
    %1628 = vmatprep.subr.mxu0 0.0
    %1629 = vmatpush1.msra.mxu0 0.0
    %1630 = vmatprep.subr.mxu0 0.0
    %1631 = vmatpush1.msra.mxu0 0.0
    %1632 = vmatprep.subr.mxu0 0.0
    %1633 = vmatpush1.msra.mxu0 0.0
    %1634 = vmatprep.subr.mxu0 0.0
    %1635 = vmatpush1.msra.mxu0 0.0
    %1636 = vmatprep.subr.mxu0 0.0
    %1637 = vmatpush1.msra.mxu0 0.0
    %1638 = vmatprep.subr.mxu0 0.0
    %1639 = vmatpush1.msra.mxu0 0.0
    %1640 = vmatprep.subr.mxu0 0.0
    %1641 = vmatpush1.msra.mxu0 0.0
    %1642 = vmatprep.subr.mxu0 0.0
    %1643 = vmatpush1.msra.mxu0 0.0
    %1644 = vmatprep.subr.mxu0 0.0
    %1645 = vmatpush1.msra.mxu0 0.0
    %1646 = vmatprep.subr.mxu0 0.0
    %1647 = vmatpush1.msra.mxu0 0.0
    %1648 = vmatprep.subr.mxu0 0.0
    %1649 = vmatpush1.msra.mxu0 0.0
    %1650 = vmatprep.subr.mxu0 0.0
    %1651 = vmatpush1.msra.mxu0 0.0
    %1652 = vmatprep.subr.mxu0 0.0
    %1653 = vmatpush1.msra.mxu0 0.0
    %1654 = vmatprep.subr.mxu0 0.0
    %1655 = vmatpush1.msra.mxu0 0.0
    %1656 = vmatprep.subr.mxu0 0.0
    %1657 = vmatpush1.msra.mxu0 0.0
    %1658 = vmatprep.subr.mxu0 0.0
    %1659 = vmatpush1.msra.mxu0 0.0
    %1660 = vmatprep.subr.mxu0 0.0
    %1661 = vmatpush1.msra.mxu0 0.0
    %1662 = vmatprep.subr.mxu0 0.0
    %1663 = vmatpush1.msra.mxu0 0.0
    %1664 = vmatprep.subr.mxu0 0.0
    %1665 = vmatpush1.msra.mxu0 0.0
    %1666 = vmatprep.subr.mxu0 0.0
    %1667 = vmatpush1.msra.mxu0 0.0
    %1668 = vmatprep.subr.mxu0 0.0
    %1669 = vmatpush1.msra.mxu0 0.0
    %1670 = vmatprep.subr.mxu0 0.0
    %1671 = vmatpush1.msra.mxu0 0.0
    %1672 = vmatprep.subr.mxu0 0.0
    %1673 = vmatpush1.msra.mxu0 0.0
    %1674 = vmatprep.subr.mxu0 0.0
    %1675 = vmatpush1.msra.mxu0 0.0
    %1676 = vmatprep.subr.mxu0 0.0
    %1677 = vmatpush1.msra.mxu0 0.0
    %1678 = vmatprep.subr.mxu0 0.0
    %1679 = vmatpush1.msra.mxu0 0.0
    %1680 = vmatprep.mubr.f32.mxu0 0.0
    %1681 = vmatmul.mubr.f32.gmra.mrb[0].mxu0 %v1611
    %v1682 = vpop.f32.mrb[0].mxu0
    %v1683 = vadd.f32 %v1602, %v1682
    %v1684 = vpop.f32.mrb[0].mxu0
    %1685 = vmatprep.mubr.f32.mxu0 0.0
    %1686 = vmatmul.mubr.f32.gmra.mrb[0].mxu0 %v1614
    %v1687 = vpop.f32.mrb[0].mxu0
    %v1688 = vadd.f32 %v1607, %v1687
    %v1689 = vpop.f32.mrb[0].mxu0
    %1690 = vdwg.mxu0
    %1691 = vrot.lane.b32.xlu0 %v1269, 64
    %v1692 = vpop.permute.xlu0 %1691
    %1693 = vrot.lane.b32.xlu0 %v828, 64
    %v1694 = vpop.permute.xlu0 %1693
    %1695 = vrot.lane.b32.xlu0 %v833, 64
    %v1696 = vpop.permute.xlu0 %1695
    %v1697 = vsel %vm314, %v1692, 0
    %v1699 = vsel %vm314, %v1694, 0
    %v1701 = vsel %vm314, %v1696, 0
    %1703 = vmatprep.subr.mxu0 0.0
    %1704 = vmatpush1.xpose.msra.mxu0 %v1699
    %1705 = vmatprep.subr.mxu0 0.0
    %1706 = vmatpush1.xpose.msra.mxu0 %v1701
    %1707 = vmatprep.subr.mxu0 0.0
    %1708 = vmatpush1.xpose.msra.mxu0 0.0
    %1709 = vmatprep.subr.mxu0 0.0
    %1710 = vmatpush1.xpose.msra.mxu0 0.0
    %1711 = vmatprep.subr.mxu0 0.0
    %1712 = vmatpush1.xpose.msra.mxu0 0.0
    %1713 = vmatprep.subr.mxu0 0.0
    %1714 = vmatpush1.xpose.msra.mxu0 0.0
    %1715 = vmatprep.subr.mxu0 0.0
    %1716 = vmatpush1.xpose.msra.mxu0 0.0
    %1717 = vmatprep.subr.mxu0 0.0
    %1718 = vmatpush1.xpose.msra.mxu0 0.0
    %1719 = vmatprep.subr.mxu0 0.0
    %1720 = vmatpush1.xpose.msra.mxu0 0.0
    %1721 = vmatprep.subr.mxu0 0.0
    %1722 = vmatpush1.xpose.msra.mxu0 0.0
    %1723 = vmatprep.subr.mxu0 0.0
    %1724 = vmatpush1.xpose.msra.mxu0 0.0
    %1725 = vmatprep.subr.mxu0 0.0
    %1726 = vmatpush1.xpose.msra.mxu0 0.0
    %1727 = vmatprep.subr.mxu0 0.0
    %1728 = vmatpush1.xpose.msra.mxu0 0.0
    %1729 = vmatprep.subr.mxu0 0.0
    %1730 = vmatpush1.xpose.msra.mxu0 0.0
    %1731 = vmatprep.subr.mxu0 0.0
    %1732 = vmatpush1.xpose.msra.mxu0 0.0
    %1733 = vmatprep.subr.mxu0 0.0
    %1734 = vmatpush1.xpose.msra.mxu0 0.0
    %1735 = vmatprep.subr.mxu0 0.0
    %1736 = vmatpush1.xpose.msra.mxu0 0.0
    %1737 = vmatprep.subr.mxu0 0.0
    %1738 = vmatpush1.xpose.msra.mxu0 0.0
    %1739 = vmatprep.subr.mxu0 0.0
    %1740 = vmatpush1.xpose.msra.mxu0 0.0
    %1741 = vmatprep.subr.mxu0 0.0
    %1742 = vmatpush1.xpose.msra.mxu0 0.0
    %1743 = vmatprep.subr.mxu0 0.0
    %1744 = vmatpush1.xpose.msra.mxu0 0.0
    %1745 = vmatprep.subr.mxu0 0.0
    %1746 = vmatpush1.xpose.msra.mxu0 0.0
    %1747 = vmatprep.subr.mxu0 0.0
    %1748 = vmatpush1.xpose.msra.mxu0 0.0
    %1749 = vmatprep.subr.mxu0 0.0
    %1750 = vmatpush1.xpose.msra.mxu0 0.0
    %1751 = vmatprep.subr.mxu0 0.0
    %1752 = vmatpush1.xpose.msra.mxu0 0.0
    %1753 = vmatprep.subr.mxu0 0.0
    %1754 = vmatpush1.xpose.msra.mxu0 0.0
    %1755 = vmatprep.subr.mxu0 0.0
    %1756 = vmatpush1.xpose.msra.mxu0 0.0
    %1757 = vmatprep.subr.mxu0 0.0
    %1758 = vmatpush1.xpose.msra.mxu0 0.0
    %1759 = vmatprep.subr.mxu0 0.0
    %1760 = vmatpush1.xpose.msra.mxu0 0.0
    %1761 = vmatprep.subr.mxu0 0.0
    %1762 = vmatpush1.xpose.msra.mxu0 0.0
    %1763 = vmatprep.subr.mxu0 0.0
    %1764 = vmatpush1.xpose.msra.mxu0 0.0
    %1765 = vmatprep.subr.mxu0 0.0
    %1766 = vmatpush1.xpose.msra.mxu0 0.0
    %1767 = vmatprep.mubr.f32.mxu0 0.0
    %1768 = vmatmul.mubr.f32.gmra.mrb[0].mxu0 %v1697
    %v1769 = vpop.f32.mrb[0].mxu0
    %v1770 = vadd.f32 0.0, %v1769
    %v1771 = vpop.f32.mrb[0].mxu0
    %1772 = vdwg.mxu0
    %1773 = vrot.lane.b32.xlu0 %v1106, 64
    %v1774 = vpop.permute.xlu0 %1773
    %1775 = vrot.lane.b32.xlu0 %v1107, 64
    %v1776 = vpop.permute.xlu0 %1775
    %v1779 = vsel %vm314, %v1774, 0.0
    %1780 = vadd.xlane.f32.xlu0 %v1779
    %v1781 = vpop.xlane.xlu0 %1780
    %v1782 = vsel %vm314, %v1776, 0.0
    %1783 = vadd.xlane.f32.xlu0 %v1782
    %v1784 = vpop.xlane.xlu0 %1783
    %1785 = vrot.lane.b32.xlu0 %v1120, 64
    %v1786 = vpop.permute.xlu0 %1785
    %1787 = vrot.lane.b32.xlu0 %v1121, 64
    %v1788 = vpop.permute.xlu0 %1787
    %1789 = vrot.lane.b32.xlu0 %v1122, 64
    %v1790 = vpop.permute.xlu0 %1789
    %1791 = vrot.lane.b32.xlu0 %v1123, 64
    %v1792 = vpop.permute.xlu0 %1791
    %v1797 = vsel %vm314, %v1786, 0.0
    %1798 = vadd.xlane.f32.xlu0 %v1797
    %v1799 = vpop.xlane.xlu0 %1798
    %v1800 = vsel %vm314, %v1788, 0.0
    %1801 = vadd.xlane.f32.xlu0 %v1800
    %v1802 = vpop.xlane.xlu0 %1801
    %v1803 = vsel %vm314, %v1790, 0.0
    %1804 = vadd.xlane.f32.xlu0 %v1803
    %v1805 = vpop.xlane.xlu0 %1804
    %v1806 = vsel %vm314, %v1792, 0.0
    %1807 = vadd.xlane.f32.xlu0 %v1806
    %v1808 = vpop.xlane.xlu0 %1807
    %1809 = vrot.lane.b32.xlu0 %v1136, 64
    %v1810 = vpop.permute.xlu0 %1809
    %1811 = vrot.lane.b32.xlu0 %v1137, 64
    %v1812 = vpop.permute.xlu0 %1811
    %v1815 = vsel %vm314, %v1810, 0.0
    %1816 = vadd.xlane.f32.xlu0 %v1815
    %v1817 = vpop.xlane.xlu0 %1816
    %v1818 = vsel %vm314, %v1812, 0.0
    %1819 = vadd.xlane.f32.xlu0 %v1818
    %v1820 = vpop.xlane.xlu0 %1819
    %v1821 = vmul.f32 %v1799, %v304
    %v1822 = vmul.f32 %v1802, %v305
    %v1823 = vmul.f32 %v1805, %v306
    %v1824 = vmul.f32 %v1808, %v307
    %v1825 = vmul.f32 %v312, %v1817
    %v1826 = vmul.f32 %v313, %v1820
    %1827 = vmatprep.subr.mxu0 0.0
    %1828 = vmatpush1.msra.mxu0 %v1821
    %1829 = vmatprep.subr.mxu0 0.0
    %1830 = vmatpush1.msra.mxu0 %v1822
    %1831 = vmatprep.subr.mxu0 0.0
    %1832 = vmatpush1.msra.mxu0 %v1823
    %1833 = vmatprep.subr.mxu0 0.0
    %1834 = vmatpush1.msra.mxu0 %v1824
    %1835 = vmatprep.subr.mxu0 0.0
    %1836 = vmatpush1.msra.mxu0 0.0
    %1837 = vmatprep.subr.mxu0 0.0
    %1838 = vmatpush1.msra.mxu0 0.0
    %1839 = vmatprep.subr.mxu0 0.0
    %1840 = vmatpush1.msra.mxu0 0.0
    %1841 = vmatprep.subr.mxu0 0.0
    %1842 = vmatpush1.msra.mxu0 0.0
    %1843 = vmatprep.subr.mxu0 0.0
    %1844 = vmatpush1.msra.mxu0 0.0
    %1845 = vmatprep.subr.mxu0 0.0
    %1846 = vmatpush1.msra.mxu0 0.0
    %1847 = vmatprep.subr.mxu0 0.0
    %1848 = vmatpush1.msra.mxu0 0.0
    %1849 = vmatprep.subr.mxu0 0.0
    %1850 = vmatpush1.msra.mxu0 0.0
    %1851 = vmatprep.subr.mxu0 0.0
    %1852 = vmatpush1.msra.mxu0 0.0
    %1853 = vmatprep.subr.mxu0 0.0
    %1854 = vmatpush1.msra.mxu0 0.0
    %1855 = vmatprep.subr.mxu0 0.0
    %1856 = vmatpush1.msra.mxu0 0.0
    %1857 = vmatprep.subr.mxu0 0.0
    %1858 = vmatpush1.msra.mxu0 0.0
    %1859 = vmatprep.subr.mxu0 0.0
    %1860 = vmatpush1.msra.mxu0 0.0
    %1861 = vmatprep.subr.mxu0 0.0
    %1862 = vmatpush1.msra.mxu0 0.0
    %1863 = vmatprep.subr.mxu0 0.0
    %1864 = vmatpush1.msra.mxu0 0.0
    %1865 = vmatprep.subr.mxu0 0.0
    %1866 = vmatpush1.msra.mxu0 0.0
    %1867 = vmatprep.subr.mxu0 0.0
    %1868 = vmatpush1.msra.mxu0 0.0
    %1869 = vmatprep.subr.mxu0 0.0
    %1870 = vmatpush1.msra.mxu0 0.0
    %1871 = vmatprep.subr.mxu0 0.0
    %1872 = vmatpush1.msra.mxu0 0.0
    %1873 = vmatprep.subr.mxu0 0.0
    %1874 = vmatpush1.msra.mxu0 0.0
    %1875 = vmatprep.subr.mxu0 0.0
    %1876 = vmatpush1.msra.mxu0 0.0
    %1877 = vmatprep.subr.mxu0 0.0
    %1878 = vmatpush1.msra.mxu0 0.0
    %1879 = vmatprep.subr.mxu0 0.0
    %1880 = vmatpush1.msra.mxu0 0.0
    %1881 = vmatprep.subr.mxu0 0.0
    %1882 = vmatpush1.msra.mxu0 0.0
    %1883 = vmatprep.subr.mxu0 0.0
    %1884 = vmatpush1.msra.mxu0 0.0
    %1885 = vmatprep.subr.mxu0 0.0
    %1886 = vmatpush1.msra.mxu0 0.0
    %1887 = vmatprep.subr.mxu0 0.0
    %1888 = vmatpush1.msra.mxu0 0.0
    %1889 = vmatprep.subr.mxu0 0.0
    %1890 = vmatpush1.msra.mxu0 0.0
    %1891 = vmatprep.mubr.f32.mxu0 0.0
    %1892 = vmatmul.mubr.f32.gmra.mrb[0].mxu0 %v316
    %v1893 = vpop.f32.mrb[0].mxu0
    %v1894 = vadd.f32 %v1825, %v1893
    %v1895 = vpop.f32.mrb[0].mxu0
    %1896 = vmatprep.mubr.f32.mxu0 0.0
    %1897 = vmatmul.mubr.f32.gmra.mrb[0].mxu0 %v319
    %v1898 = vpop.f32.mrb[0].mxu0
    %v1899 = vadd.f32 %v1826, %v1898
    %v1900 = vpop.f32.mrb[0].mxu0
    %1901 = vdwg.mxu0
    %v1902 = vadd.f32 %v1894, %v1781
    %v1903 = vadd.f32 %v1899, %v1784
    %v1904 = vlaneseq
    %v1905 = vshrl.u32 %v1904, 7
    %v1906 = vsub.s32 0, %v1905
    %v1907 = vrot.slane %v1770, %v1906
    %v1908 = vadd.f32 %v1902, %v1907
    %v1909 = vadd.f32 %v1903, %v1907
    %vm1910 = vcmp.gt.f32.partialorder %v1908, 0.0
    %vm1911 = vcmp.gt.f32.partialorder %v1909, 0.0
    %v1912 = vmul.f32 %v1908, 0.2
    %v1913 = vmul.f32 %v1909, 0.2
    %v1914 = vsel %vm1910, %v1908, %v1912
    %v1915 = vsel %vm1911, %v1909, %v1913
    %v1916 = vsel %vm1239, %v1914, -1e+30
    %v1917 = vsel %vm1240, %v1915, -1e+30
    %v1918 = vsel %vm1243, %v1916, -inf
    %1919 = vmax.xlane.f32.xlu0 %v1918
    %v1920 = vpop.xlane.xlu0 %1919
    %v1921 = vsel %vm1243, %v1917, -inf
    %1922 = vmax.xlane.f32.xlu0 %v1921
    %v1923 = vpop.xlane.xlu0 %1922
    %v1924 = vsub.f32 %v1916, %v1920
    %v1925 = vsub.f32 %v1917, %v1923
    %v1926 = vmul.f32 %v1924, 1.442695
    %v1927 = vpow.pop %v1926
    %v1928 = vmul.f32 %v1925, 1.442695
    %v1929 = vpow.pop %v1928
    %v1930 = vsel %vm1243, %v1927, 0.0
    %1931 = vadd.xlane.f32.xlu0 %v1930
    %v1932 = vpop.xlane.xlu0 %1931
    %v1933 = vsel %vm1243, %v1929, 0.0
    %1934 = vadd.xlane.f32.xlu0 %v1933
    %v1935 = vpop.xlane.xlu0 %1934
    %v1936 = vrcp.pop %v1932
    %v1937 = vrcp.pop %v1935
    %v1938 = vmul.f32 %v1927, %v1936
    %v1939 = vmul.f32 %v1929, %v1937
    %v1943 = vsel %vm1243, %v1938, 0
    %v1946 = vsel %vm1243, %v1939, 0
    %1948 = vmatprep.subr.mxu0 0.0
    %1949 = vmatpush1.msra.mxu0 %v1694
    %1950 = vmatprep.subr.mxu0 0.0
    %1951 = vmatpush1.msra.mxu0 %v1696
    %1952 = vmatprep.subr.mxu0 0.0
    %1953 = vmatpush1.msra.mxu0 0.0
    %1954 = vmatprep.subr.mxu0 0.0
    %1955 = vmatpush1.msra.mxu0 0.0
    %1956 = vmatprep.subr.mxu0 0.0
    %1957 = vmatpush1.msra.mxu0 0.0
    %1958 = vmatprep.subr.mxu0 0.0
    %1959 = vmatpush1.msra.mxu0 0.0
    %1960 = vmatprep.subr.mxu0 0.0
    %1961 = vmatpush1.msra.mxu0 0.0
    %1962 = vmatprep.subr.mxu0 0.0
    %1963 = vmatpush1.msra.mxu0 0.0
    %1964 = vmatprep.subr.mxu0 0.0
    %1965 = vmatpush1.msra.mxu0 0.0
    %1966 = vmatprep.subr.mxu0 0.0
    %1967 = vmatpush1.msra.mxu0 0.0
    %1968 = vmatprep.subr.mxu0 0.0
    %1969 = vmatpush1.msra.mxu0 0.0
    %1970 = vmatprep.subr.mxu0 0.0
    %1971 = vmatpush1.msra.mxu0 0.0
    %1972 = vmatprep.subr.mxu0 0.0
    %1973 = vmatpush1.msra.mxu0 0.0
    %1974 = vmatprep.subr.mxu0 0.0
    %1975 = vmatpush1.msra.mxu0 0.0
    %1976 = vmatprep.subr.mxu0 0.0
    %1977 = vmatpush1.msra.mxu0 0.0
    %1978 = vmatprep.subr.mxu0 0.0
    %1979 = vmatpush1.msra.mxu0 0.0
    %1980 = vmatprep.subr.mxu0 0.0
    %1981 = vmatpush1.msra.mxu0 0.0
    %1982 = vmatprep.subr.mxu0 0.0
    %1983 = vmatpush1.msra.mxu0 0.0
    %1984 = vmatprep.subr.mxu0 0.0
    %1985 = vmatpush1.msra.mxu0 0.0
    %1986 = vmatprep.subr.mxu0 0.0
    %1987 = vmatpush1.msra.mxu0 0.0
    %1988 = vmatprep.subr.mxu0 0.0
    %1989 = vmatpush1.msra.mxu0 0.0
    %1990 = vmatprep.subr.mxu0 0.0
    %1991 = vmatpush1.msra.mxu0 0.0
    %1992 = vmatprep.subr.mxu0 0.0
    %1993 = vmatpush1.msra.mxu0 0.0
    %1994 = vmatprep.subr.mxu0 0.0
    %1995 = vmatpush1.msra.mxu0 0.0
    %1996 = vmatprep.subr.mxu0 0.0
    %1997 = vmatpush1.msra.mxu0 0.0
    %1998 = vmatprep.subr.mxu0 0.0
    %1999 = vmatpush1.msra.mxu0 0.0
    %2000 = vmatprep.subr.mxu0 0.0
    %2001 = vmatpush1.msra.mxu0 0.0
    %2002 = vmatprep.subr.mxu0 0.0
    %2003 = vmatpush1.msra.mxu0 0.0
    %2004 = vmatprep.subr.mxu0 0.0
    %2005 = vmatpush1.msra.mxu0 0.0
    %2006 = vmatprep.subr.mxu0 0.0
    %2007 = vmatpush1.msra.mxu0 0.0
    %2008 = vmatprep.subr.mxu0 0.0
    %2009 = vmatpush1.msra.mxu0 0.0
    %2010 = vmatprep.subr.mxu0 0.0
    %2011 = vmatpush1.msra.mxu0 0.0
    %2012 = vmatprep.mubr.f32.mxu0 0.0
    %2013 = vmatmul.mubr.f32.gmra.mrb[0].mxu0 %v1943
    %v2014 = vpop.f32.mrb[0].mxu0
    %v2015 = vadd.f32 0.0, %v2014
    %v2016 = vpop.f32.mrb[0].mxu0
    %2017 = vmatprep.mubr.f32.mxu0 0.0
    %2018 = vmatmul.mubr.f32.gmra.mrb[0].mxu0 %v1946
    %v2019 = vpop.f32.mrb[0].mxu0
    %v2020 = vadd.f32 0.0, %v2019
    %v2021 = vpop.f32.mrb[0].mxu0
    %2022 = vdwg.mxu0
    %v2023 = vadd.f32 %v1683, %v2015
    %v2024 = vadd.f32 %v1688, %v2020
    %2025 = vrot.lane.b32.xlu0 %v1269, 32
    %v2026 = vpop.permute.xlu0 %2025
    %2027 = vrot.lane.b32.xlu0 %v828, 32
    %v2028 = vpop.permute.xlu0 %2027
    %2029 = vrot.lane.b32.xlu0 %v833, 32
    %v2030 = vpop.permute.xlu0 %2029
    %v2031 = vsel %vm314, %v2026, 0
    %v2033 = vsel %vm314, %v2028, 0
    %v2035 = vsel %vm314, %v2030, 0
    %2037 = vmatprep.subr.mxu0 0.0
    %2038 = vmatpush1.xpose.msra.mxu0 %v2033
    %2039 = vmatprep.subr.mxu0 0.0
    %2040 = vmatpush1.xpose.msra.mxu0 %v2035
    %2041 = vmatprep.subr.mxu0 0.0
    %2042 = vmatpush1.xpose.msra.mxu0 0.0
    %2043 = vmatprep.subr.mxu0 0.0
    %2044 = vmatpush1.xpose.msra.mxu0 0.0
    %2045 = vmatprep.subr.mxu0 0.0
    %2046 = vmatpush1.xpose.msra.mxu0 0.0
    %2047 = vmatprep.subr.mxu0 0.0
    %2048 = vmatpush1.xpose.msra.mxu0 0.0
    %2049 = vmatprep.subr.mxu0 0.0
    %2050 = vmatpush1.xpose.msra.mxu0 0.0
    %2051 = vmatprep.subr.mxu0 0.0
    %2052 = vmatpush1.xpose.msra.mxu0 0.0
    %2053 = vmatprep.subr.mxu0 0.0
    %2054 = vmatpush1.xpose.msra.mxu0 0.0
    %2055 = vmatprep.subr.mxu0 0.0
    %2056 = vmatpush1.xpose.msra.mxu0 0.0
    %2057 = vmatprep.subr.mxu0 0.0
    %2058 = vmatpush1.xpose.msra.mxu0 0.0
    %2059 = vmatprep.subr.mxu0 0.0
    %2060 = vmatpush1.xpose.msra.mxu0 0.0
    %2061 = vmatprep.subr.mxu0 0.0
    %2062 = vmatpush1.xpose.msra.mxu0 0.0
    %2063 = vmatprep.subr.mxu0 0.0
    %2064 = vmatpush1.xpose.msra.mxu0 0.0
    %2065 = vmatprep.subr.mxu0 0.0
    %2066 = vmatpush1.xpose.msra.mxu0 0.0
    %2067 = vmatprep.subr.mxu0 0.0
    %2068 = vmatpush1.xpose.msra.mxu0 0.0
    %2069 = vmatprep.subr.mxu0 0.0
    %2070 = vmatpush1.xpose.msra.mxu0 0.0
    %2071 = vmatprep.subr.mxu0 0.0
    %2072 = vmatpush1.xpose.msra.mxu0 0.0
    %2073 = vmatprep.subr.mxu0 0.0
    %2074 = vmatpush1.xpose.msra.mxu0 0.0
    %2075 = vmatprep.subr.mxu0 0.0
    %2076 = vmatpush1.xpose.msra.mxu0 0.0
    %2077 = vmatprep.subr.mxu0 0.0
    %2078 = vmatpush1.xpose.msra.mxu0 0.0
    %2079 = vmatprep.subr.mxu0 0.0
    %2080 = vmatpush1.xpose.msra.mxu0 0.0
    %2081 = vmatprep.subr.mxu0 0.0
    %2082 = vmatpush1.xpose.msra.mxu0 0.0
    %2083 = vmatprep.subr.mxu0 0.0
    %2084 = vmatpush1.xpose.msra.mxu0 0.0
    %2085 = vmatprep.subr.mxu0 0.0
    %2086 = vmatpush1.xpose.msra.mxu0 0.0
    %2087 = vmatprep.subr.mxu0 0.0
    %2088 = vmatpush1.xpose.msra.mxu0 0.0
    %2089 = vmatprep.subr.mxu0 0.0
    %2090 = vmatpush1.xpose.msra.mxu0 0.0
    %2091 = vmatprep.subr.mxu0 0.0
    %2092 = vmatpush1.xpose.msra.mxu0 0.0
    %2093 = vmatprep.subr.mxu0 0.0
    %2094 = vmatpush1.xpose.msra.mxu0 0.0
    %2095 = vmatprep.subr.mxu0 0.0
    %2096 = vmatpush1.xpose.msra.mxu0 0.0
    %2097 = vmatprep.subr.mxu0 0.0
    %2098 = vmatpush1.xpose.msra.mxu0 0.0
    %2099 = vmatprep.subr.mxu0 0.0
    %2100 = vmatpush1.xpose.msra.mxu0 0.0
    %2101 = vmatprep.mubr.f32.mxu0 0.0
    %2102 = vmatmul.mubr.f32.gmra.mrb[0].mxu0 %v2031
    %v2103 = vpop.f32.mrb[0].mxu0
    %v2104 = vadd.f32 0.0, %v2103
    %v2105 = vpop.f32.mrb[0].mxu0
    %2106 = vdwg.mxu0
    %2107 = vrot.lane.b32.xlu0 %v1106, 32
    %v2108 = vpop.permute.xlu0 %2107
    %2109 = vrot.lane.b32.xlu0 %v1107, 32
    %v2110 = vpop.permute.xlu0 %2109
    %v2113 = vsel %vm314, %v2108, 0.0
    %2114 = vadd.xlane.f32.xlu0 %v2113
    %v2115 = vpop.xlane.xlu0 %2114
    %v2116 = vsel %vm314, %v2110, 0.0
    %2117 = vadd.xlane.f32.xlu0 %v2116
    %v2118 = vpop.xlane.xlu0 %2117
    %2119 = vrot.lane.b32.xlu0 %v1120, 32
    %v2120 = vpop.permute.xlu0 %2119
    %2121 = vrot.lane.b32.xlu0 %v1121, 32
    %v2122 = vpop.permute.xlu0 %2121
    %2123 = vrot.lane.b32.xlu0 %v1122, 32
    %v2124 = vpop.permute.xlu0 %2123
    %2125 = vrot.lane.b32.xlu0 %v1123, 32
    %v2126 = vpop.permute.xlu0 %2125
    %v2131 = vsel %vm314, %v2120, 0.0
    %2132 = vadd.xlane.f32.xlu0 %v2131
    %v2133 = vpop.xlane.xlu0 %2132
    %v2134 = vsel %vm314, %v2122, 0.0
    %2135 = vadd.xlane.f32.xlu0 %v2134
    %v2136 = vpop.xlane.xlu0 %2135
    %v2137 = vsel %vm314, %v2124, 0.0
    %2138 = vadd.xlane.f32.xlu0 %v2137
    %v2139 = vpop.xlane.xlu0 %2138
    %v2140 = vsel %vm314, %v2126, 0.0
    %2141 = vadd.xlane.f32.xlu0 %v2140
    %v2142 = vpop.xlane.xlu0 %2141
    %2143 = vrot.lane.b32.xlu0 %v1136, 32
    %v2144 = vpop.permute.xlu0 %2143
    %2145 = vrot.lane.b32.xlu0 %v1137, 32
    %v2146 = vpop.permute.xlu0 %2145
    %v2149 = vsel %vm314, %v2144, 0.0
    %2150 = vadd.xlane.f32.xlu0 %v2149
    %v2151 = vpop.xlane.xlu0 %2150
    %v2152 = vsel %vm314, %v2146, 0.0
    %2153 = vadd.xlane.f32.xlu0 %v2152
    %v2154 = vpop.xlane.xlu0 %2153
    %v2155 = vmul.f32 %v2133, %v304
    %v2156 = vmul.f32 %v2136, %v305
    %v2157 = vmul.f32 %v2139, %v306
    %v2158 = vmul.f32 %v2142, %v307
    %v2159 = vmul.f32 %v312, %v2151
    %v2160 = vmul.f32 %v313, %v2154
    %2161 = vmatprep.subr.mxu0 0.0
    %2162 = vmatpush1.msra.mxu0 %v2155
    %2163 = vmatprep.subr.mxu0 0.0
    %2164 = vmatpush1.msra.mxu0 %v2156
    %2165 = vmatprep.subr.mxu0 0.0
    %2166 = vmatpush1.msra.mxu0 %v2157
    %2167 = vmatprep.subr.mxu0 0.0
    %2168 = vmatpush1.msra.mxu0 %v2158
    %2169 = vmatprep.subr.mxu0 0.0
    %2170 = vmatpush1.msra.mxu0 0.0
    %2171 = vmatprep.subr.mxu0 0.0
    %2172 = vmatpush1.msra.mxu0 0.0
    %2173 = vmatprep.subr.mxu0 0.0
    %2174 = vmatpush1.msra.mxu0 0.0
    %2175 = vmatprep.subr.mxu0 0.0
    %2176 = vmatpush1.msra.mxu0 0.0
    %2177 = vmatprep.subr.mxu0 0.0
    %2178 = vmatpush1.msra.mxu0 0.0
    %2179 = vmatprep.subr.mxu0 0.0
    %2180 = vmatpush1.msra.mxu0 0.0
    %2181 = vmatprep.subr.mxu0 0.0
    %2182 = vmatpush1.msra.mxu0 0.0
    %2183 = vmatprep.subr.mxu0 0.0
    %2184 = vmatpush1.msra.mxu0 0.0
    %2185 = vmatprep.subr.mxu0 0.0
    %2186 = vmatpush1.msra.mxu0 0.0
    %2187 = vmatprep.subr.mxu0 0.0
    %2188 = vmatpush1.msra.mxu0 0.0
    %2189 = vmatprep.subr.mxu0 0.0
    %2190 = vmatpush1.msra.mxu0 0.0
    %2191 = vmatprep.subr.mxu0 0.0
    %2192 = vmatpush1.msra.mxu0 0.0
    %2193 = vmatprep.subr.mxu0 0.0
    %2194 = vmatpush1.msra.mxu0 0.0
    %2195 = vmatprep.subr.mxu0 0.0
    %2196 = vmatpush1.msra.mxu0 0.0
    %2197 = vmatprep.subr.mxu0 0.0
    %2198 = vmatpush1.msra.mxu0 0.0
    %2199 = vmatprep.subr.mxu0 0.0
    %2200 = vmatpush1.msra.mxu0 0.0
    %2201 = vmatprep.subr.mxu0 0.0
    %2202 = vmatpush1.msra.mxu0 0.0
    %2203 = vmatprep.subr.mxu0 0.0
    %2204 = vmatpush1.msra.mxu0 0.0
    %2205 = vmatprep.subr.mxu0 0.0
    %2206 = vmatpush1.msra.mxu0 0.0
    %2207 = vmatprep.subr.mxu0 0.0
    %2208 = vmatpush1.msra.mxu0 0.0
    %2209 = vmatprep.subr.mxu0 0.0
    %2210 = vmatpush1.msra.mxu0 0.0
    %2211 = vmatprep.subr.mxu0 0.0
    %2212 = vmatpush1.msra.mxu0 0.0
    %2213 = vmatprep.subr.mxu0 0.0
    %2214 = vmatpush1.msra.mxu0 0.0
    %2215 = vmatprep.subr.mxu0 0.0
    %2216 = vmatpush1.msra.mxu0 0.0
    %2217 = vmatprep.subr.mxu0 0.0
    %2218 = vmatpush1.msra.mxu0 0.0
    %2219 = vmatprep.subr.mxu0 0.0
    %2220 = vmatpush1.msra.mxu0 0.0
    %2221 = vmatprep.subr.mxu0 0.0
    %2222 = vmatpush1.msra.mxu0 0.0
    %2223 = vmatprep.subr.mxu0 0.0
    %2224 = vmatpush1.msra.mxu0 0.0
    %2225 = vmatprep.mubr.f32.mxu0 0.0
    %2226 = vmatmul.mubr.f32.gmra.mrb[0].mxu0 %v316
    %v2227 = vpop.f32.mrb[0].mxu0
    %v2228 = vadd.f32 %v2159, %v2227
    %v2229 = vpop.f32.mrb[0].mxu0
    %2230 = vmatprep.mubr.f32.mxu0 0.0
    %2231 = vmatmul.mubr.f32.gmra.mrb[0].mxu0 %v319
    %v2232 = vpop.f32.mrb[0].mxu0
    %v2233 = vadd.f32 %v2160, %v2232
    %v2234 = vpop.f32.mrb[0].mxu0
    %2235 = vdwg.mxu0
    %v2236 = vadd.f32 %v2228, %v2115
    %v2237 = vadd.f32 %v2233, %v2118
    %v2238 = vlaneseq
    %v2239 = vshrl.u32 %v2238, 7
    %v2240 = vsub.s32 0, %v2239
    %v2241 = vrot.slane %v2104, %v2240
    %v2242 = vadd.f32 %v2236, %v2241
    %v2243 = vadd.f32 %v2237, %v2241
    %vm2244 = vcmp.gt.f32.partialorder %v2242, 0.0
    %vm2245 = vcmp.gt.f32.partialorder %v2243, 0.0
    %v2246 = vmul.f32 %v2242, 0.2
    %v2247 = vmul.f32 %v2243, 0.2
    %v2248 = vsel %vm2244, %v2242, %v2246
    %v2249 = vsel %vm2245, %v2243, %v2247
    %v2250 = vsel %vm1239, %v2248, -1e+30
    %v2251 = vsel %vm1240, %v2249, -1e+30
    %v2252 = vsel %vm1243, %v2250, -inf
    %2253 = vmax.xlane.f32.xlu0 %v2252
    %v2254 = vpop.xlane.xlu0 %2253
    %v2255 = vsel %vm1243, %v2251, -inf
    %2256 = vmax.xlane.f32.xlu0 %v2255
    %v2257 = vpop.xlane.xlu0 %2256
    %v2258 = vsub.f32 %v2250, %v2254
    %v2259 = vsub.f32 %v2251, %v2257
    %v2260 = vmul.f32 %v2258, 1.442695
    %v2261 = vpow.pop %v2260
    %v2262 = vmul.f32 %v2259, 1.442695
    %v2263 = vpow.pop %v2262
    %v2264 = vsel %vm1243, %v2261, 0.0
    %2265 = vadd.xlane.f32.xlu0 %v2264
    %v2266 = vpop.xlane.xlu0 %2265
    %v2267 = vsel %vm1243, %v2263, 0.0
    %2268 = vadd.xlane.f32.xlu0 %v2267
    %v2269 = vpop.xlane.xlu0 %2268
    %v2270 = vrcp.pop %v2266
    %v2271 = vrcp.pop %v2269
    %v2272 = vmul.f32 %v2261, %v2270
    %v2273 = vmul.f32 %v2263, %v2271
    %v2277 = vsel %vm1243, %v2272, 0
    %v2280 = vsel %vm1243, %v2273, 0
    %2282 = vmatprep.subr.mxu0 0.0
    %2283 = vmatpush1.msra.mxu0 %v2028
    %2284 = vmatprep.subr.mxu0 0.0
    %2285 = vmatpush1.msra.mxu0 %v2030
    %2286 = vmatprep.subr.mxu0 0.0
    %2287 = vmatpush1.msra.mxu0 0.0
    %2288 = vmatprep.subr.mxu0 0.0
    %2289 = vmatpush1.msra.mxu0 0.0
    %2290 = vmatprep.subr.mxu0 0.0
    %2291 = vmatpush1.msra.mxu0 0.0
    %2292 = vmatprep.subr.mxu0 0.0
    %2293 = vmatpush1.msra.mxu0 0.0
    %2294 = vmatprep.subr.mxu0 0.0
    %2295 = vmatpush1.msra.mxu0 0.0
    %2296 = vmatprep.subr.mxu0 0.0
    %2297 = vmatpush1.msra.mxu0 0.0
    %2298 = vmatprep.subr.mxu0 0.0
    %2299 = vmatpush1.msra.mxu0 0.0
    %2300 = vmatprep.subr.mxu0 0.0
    %2301 = vmatpush1.msra.mxu0 0.0
    %2302 = vmatprep.subr.mxu0 0.0
    %2303 = vmatpush1.msra.mxu0 0.0
    %2304 = vmatprep.subr.mxu0 0.0
    %2305 = vmatpush1.msra.mxu0 0.0
    %2306 = vmatprep.subr.mxu0 0.0
    %2307 = vmatpush1.msra.mxu0 0.0
    %2308 = vmatprep.subr.mxu0 0.0
    %2309 = vmatpush1.msra.mxu0 0.0
    %2310 = vmatprep.subr.mxu0 0.0
    %2311 = vmatpush1.msra.mxu0 0.0
    %2312 = vmatprep.subr.mxu0 0.0
    %2313 = vmatpush1.msra.mxu0 0.0
    %2314 = vmatprep.subr.mxu0 0.0
    %2315 = vmatpush1.msra.mxu0 0.0
    %2316 = vmatprep.subr.mxu0 0.0
    %2317 = vmatpush1.msra.mxu0 0.0
    %2318 = vmatprep.subr.mxu0 0.0
    %2319 = vmatpush1.msra.mxu0 0.0
    %2320 = vmatprep.subr.mxu0 0.0
    %2321 = vmatpush1.msra.mxu0 0.0
    %2322 = vmatprep.subr.mxu0 0.0
    %2323 = vmatpush1.msra.mxu0 0.0
    %2324 = vmatprep.subr.mxu0 0.0
    %2325 = vmatpush1.msra.mxu0 0.0
    %2326 = vmatprep.subr.mxu0 0.0
    %2327 = vmatpush1.msra.mxu0 0.0
    %2328 = vmatprep.subr.mxu0 0.0
    %2329 = vmatpush1.msra.mxu0 0.0
    %2330 = vmatprep.subr.mxu0 0.0
    %2331 = vmatpush1.msra.mxu0 0.0
    %2332 = vmatprep.subr.mxu0 0.0
    %2333 = vmatpush1.msra.mxu0 0.0
    %2334 = vmatprep.subr.mxu0 0.0
    %2335 = vmatpush1.msra.mxu0 0.0
    %2336 = vmatprep.subr.mxu0 0.0
    %2337 = vmatpush1.msra.mxu0 0.0
    %2338 = vmatprep.subr.mxu0 0.0
    %2339 = vmatpush1.msra.mxu0 0.0
    %2340 = vmatprep.subr.mxu0 0.0
    %2341 = vmatpush1.msra.mxu0 0.0
    %2342 = vmatprep.subr.mxu0 0.0
    %2343 = vmatpush1.msra.mxu0 0.0
    %2344 = vmatprep.subr.mxu0 0.0
    %2345 = vmatpush1.msra.mxu0 0.0
    %2346 = vmatprep.mubr.f32.mxu0 0.0
    %2347 = vmatmul.mubr.f32.gmra.mrb[0].mxu0 %v2277
    %v2348 = vpop.f32.mrb[0].mxu0
    %v2349 = vadd.f32 0.0, %v2348
    %v2350 = vpop.f32.mrb[0].mxu0
    %2351 = vmatprep.mubr.f32.mxu0 0.0
    %2352 = vmatmul.mubr.f32.gmra.mrb[0].mxu0 %v2280
    %v2353 = vpop.f32.mrb[0].mxu0
    %v2354 = vadd.f32 0.0, %v2353
    %v2355 = vpop.f32.mrb[0].mxu0
    %2356 = vdwg.mxu0
    %v2357 = vadd.f32 %v2023, %v2349
    %v2358 = vadd.f32 %v2024, %v2354
    %v2359 = vmul.f32 %v2357, 0.25
    %v2360 = vmul.f32 %v2358, 0.25
    %v2361 = vld [vmem:[#allocation14] sm:$0x1]
    %v2363 = vlaneseq
    %v2364 = vshrl.u32 %v2363, 7
    %v2365 = vsub.s32 0, %v2364
    %v2366 = vrot.slane %v2361, %v2365
    %v2368 = vadd.f32 %v2359, %v2366
    %v2369 = vadd.f32 %v2360, %v2366
    %v2370 = vsel %vm314, %v2368, 0.0
    %v2371 = vsel %vm314, %v2369, 0.0
    %v2372 = vadd.f32 %v2370, %v2371
    %v2373 = vrot.slane %v2372, 4
    %v2374 = vadd.f32 %v2372, %v2373
    %v2375 = vrot.slane %v2374, 2
    %v2376 = vadd.f32 %v2374, %v2375
    %v2377 = vrot.slane %v2376, 1
    %v2378 = vadd.f32 %v2376, %v2377
    %v2379 = vrcp.pop 16.0
    %v2380 = vmul.f32 %v2378, %v2379
    %v2381 = vsub.f32 %v2368, %v2380
    %v2382 = vsub.f32 %v2369, %v2380
    %v2383 = vmul.f32 %v2381, %v2381
    %v2384 = vmul.f32 %v2382, %v2382
    %v2385 = vsel %vm314, %v2383, 0.0
    %v2386 = vsel %vm314, %v2384, 0.0
    %v2387 = vadd.f32 %v2385, %v2386
    %v2388 = vrot.slane %v2387, 4
    %v2389 = vadd.f32 %v2387, %v2388
    %v2390 = vrot.slane %v2389, 2
    %v2391 = vadd.f32 %v2389, %v2390
    %v2392 = vrot.slane %v2391, 1
    %v2393 = vadd.f32 %v2391, %v2392
    %v2394 = vmul.f32 %v2393, %v2379
    %v2395 = vadd.f32 %v2394, 1e-05
    %v2396 = vrsqrt.pop %v2395
    %v2397 = vmul.f32 %v2381, %v2396
    %v2398 = vmul.f32 %v2382, %v2396
    %v2399 = vld [vmem:[#allocation16] sm:$0x1]
    %v2401 = vlaneseq
    %v2402 = vshrl.u32 %v2401, 7
    %v2403 = vsub.s32 0, %v2402
    %v2404 = vrot.slane %v2399, %v2403
    %v2406 = vmul.f32 %v2397, %v2404
    %v2407 = vmul.f32 %v2398, %v2404
    %v2408 = vld [vmem:[#allocation17] sm:$0x1]
    %v2410 = vlaneseq
    %v2411 = vshrl.u32 %v2410, 7
    %v2412 = vsub.s32 0, %v2411
    %v2413 = vrot.slane %v2408, %v2412
    %v2415 = vadd.f32 %v2406, %v2413
    %v2416 = vadd.f32 %v2407, %v2413
    %v2417 = vmax.f32 %v2415, 0.0
    %v2418 = vmax.f32 %v2416, 0.0
    %v2419 = vadd.f32 %v2417, %v492
    %v2420 = vadd.f32 %v2418, %v497
    %s2421 = scalar_lea.vmem %s8, 32
    %v2422 = vld [vmem:[%s2421] sm:$0xff]
    %v2423 = vld [vmem:[%s2421 + $0x8] sm:$0xff]
    %v2424 = vld [vmem:[%s2421 + $0x10] sm:$0xff]
    %v2425 = vld [vmem:[%s2421 + $0x18] sm:$0xff]
    %v2427 = vsel %vm314, %v2419, 0
    %v2430 = vsel %vm314, %v2420, 0
    %2432 = vmatprep.subr.mxu0 0.0
    %2433 = vmatpush1.msra.mxu0 %v2422
    %2434 = vmatprep.subr.mxu0 0.0
    %2435 = vmatpush1.msra.mxu0 %v2423
    %2436 = vmatprep.subr.mxu0 0.0
    %2437 = vmatpush1.msra.mxu0 %v2424
    %2438 = vmatprep.subr.mxu0 0.0
    %2439 = vmatpush1.msra.mxu0 %v2425
    %2440 = vmatprep.subr.mxu0 0.0
    %2441 = vmatpush1.msra.mxu0 0.0
    %2442 = vmatprep.subr.mxu0 0.0
    %2443 = vmatpush1.msra.mxu0 0.0
    %2444 = vmatprep.subr.mxu0 0.0
    %2445 = vmatpush1.msra.mxu0 0.0
    %2446 = vmatprep.subr.mxu0 0.0
    %2447 = vmatpush1.msra.mxu0 0.0
    %2448 = vmatprep.subr.mxu0 0.0
    %2449 = vmatpush1.msra.mxu0 0.0
    %2450 = vmatprep.subr.mxu0 0.0
    %2451 = vmatpush1.msra.mxu0 0.0
    %2452 = vmatprep.subr.mxu0 0.0
    %2453 = vmatpush1.msra.mxu0 0.0
    %2454 = vmatprep.subr.mxu0 0.0
    %2455 = vmatpush1.msra.mxu0 0.0
    %2456 = vmatprep.subr.mxu0 0.0
    %2457 = vmatpush1.msra.mxu0 0.0
    %2458 = vmatprep.subr.mxu0 0.0
    %2459 = vmatpush1.msra.mxu0 0.0
    %2460 = vmatprep.subr.mxu0 0.0
    %2461 = vmatpush1.msra.mxu0 0.0
    %2462 = vmatprep.subr.mxu0 0.0
    %2463 = vmatpush1.msra.mxu0 0.0
    %2464 = vmatprep.subr.mxu0 0.0
    %2465 = vmatpush1.msra.mxu0 0.0
    %2466 = vmatprep.subr.mxu0 0.0
    %2467 = vmatpush1.msra.mxu0 0.0
    %2468 = vmatprep.subr.mxu0 0.0
    %2469 = vmatpush1.msra.mxu0 0.0
    %2470 = vmatprep.subr.mxu0 0.0
    %2471 = vmatpush1.msra.mxu0 0.0
    %2472 = vmatprep.subr.mxu0 0.0
    %2473 = vmatpush1.msra.mxu0 0.0
    %2474 = vmatprep.subr.mxu0 0.0
    %2475 = vmatpush1.msra.mxu0 0.0
    %2476 = vmatprep.subr.mxu0 0.0
    %2477 = vmatpush1.msra.mxu0 0.0
    %2478 = vmatprep.subr.mxu0 0.0
    %2479 = vmatpush1.msra.mxu0 0.0
    %2480 = vmatprep.subr.mxu0 0.0
    %2481 = vmatpush1.msra.mxu0 0.0
    %2482 = vmatprep.subr.mxu0 0.0
    %2483 = vmatpush1.msra.mxu0 0.0
    %2484 = vmatprep.subr.mxu0 0.0
    %2485 = vmatpush1.msra.mxu0 0.0
    %2486 = vmatprep.subr.mxu0 0.0
    %2487 = vmatpush1.msra.mxu0 0.0
    %2488 = vmatprep.subr.mxu0 0.0
    %2489 = vmatpush1.msra.mxu0 0.0
    %2490 = vmatprep.subr.mxu0 0.0
    %2491 = vmatpush1.msra.mxu0 0.0
    %2492 = vmatprep.subr.mxu0 0.0
    %2493 = vmatpush1.msra.mxu0 0.0
    %2494 = vmatprep.subr.mxu0 0.0
    %2495 = vmatpush1.msra.mxu0 0.0
    %2496 = vmatprep.mubr.f32.mxu0 0.0
    %2497 = vmatmul.mubr.f32.gmra.mrb[0].mxu0 %v2427
    %v2498 = vpop.f32.mrb[0].mxu0
    %v2499 = vadd.f32 0.0, %v2498
    %v2500 = vpop.f32.mrb[0].mxu0
    %2501 = vmatprep.mubr.f32.mxu0 0.0
    %2502 = vmatmul.mubr.f32.gmra.mrb[0].mxu0 %v2430
    %v2503 = vpop.f32.mrb[0].mxu0
    %v2504 = vadd.f32 0.0, %v2503
    %v2505 = vpop.f32.mrb[0].mxu0
    %2506 = vdwg.mxu0
    %s2507 = scalar_lea.vmem %s9, 32
    %v2508 = vld [vmem:[%s2507] sm:$0xff]
    %v2509 = vld [vmem:[%s2507 + $0x8] sm:$0xff]
    %v2510 = vld [vmem:[%s2507 + $0x10] sm:$0xff]
    %v2511 = vld [vmem:[%s2507 + $0x18] sm:$0xff]
    %2512 = vmatprep.subr.mxu0 0.0
    %2513 = vmatpush1.msra.mxu0 %v2508
    %2514 = vmatprep.subr.mxu0 0.0
    %2515 = vmatpush1.msra.mxu0 %v2509
    %2516 = vmatprep.subr.mxu0 0.0
    %2517 = vmatpush1.msra.mxu0 %v2510
    %2518 = vmatprep.subr.mxu0 0.0
    %2519 = vmatpush1.msra.mxu0 %v2511
    %2520 = vmatprep.subr.mxu0 0.0
    %2521 = vmatpush1.msra.mxu0 0.0
    %2522 = vmatprep.subr.mxu0 0.0
    %2523 = vmatpush1.msra.mxu0 0.0
    %2524 = vmatprep.subr.mxu0 0.0
    %2525 = vmatpush1.msra.mxu0 0.0
    %2526 = vmatprep.subr.mxu0 0.0
    %2527 = vmatpush1.msra.mxu0 0.0
    %2528 = vmatprep.subr.mxu0 0.0
    %2529 = vmatpush1.msra.mxu0 0.0
    %2530 = vmatprep.subr.mxu0 0.0
    %2531 = vmatpush1.msra.mxu0 0.0
    %2532 = vmatprep.subr.mxu0 0.0
    %2533 = vmatpush1.msra.mxu0 0.0
    %2534 = vmatprep.subr.mxu0 0.0
    %2535 = vmatpush1.msra.mxu0 0.0
    %2536 = vmatprep.subr.mxu0 0.0
    %2537 = vmatpush1.msra.mxu0 0.0
    %2538 = vmatprep.subr.mxu0 0.0
    %2539 = vmatpush1.msra.mxu0 0.0
    %2540 = vmatprep.subr.mxu0 0.0
    %2541 = vmatpush1.msra.mxu0 0.0
    %2542 = vmatprep.subr.mxu0 0.0
    %2543 = vmatpush1.msra.mxu0 0.0
    %2544 = vmatprep.subr.mxu0 0.0
    %2545 = vmatpush1.msra.mxu0 0.0
    %2546 = vmatprep.subr.mxu0 0.0
    %2547 = vmatpush1.msra.mxu0 0.0
    %2548 = vmatprep.subr.mxu0 0.0
    %2549 = vmatpush1.msra.mxu0 0.0
    %2550 = vmatprep.subr.mxu0 0.0
    %2551 = vmatpush1.msra.mxu0 0.0
    %2552 = vmatprep.subr.mxu0 0.0
    %2553 = vmatpush1.msra.mxu0 0.0
    %2554 = vmatprep.subr.mxu0 0.0
    %2555 = vmatpush1.msra.mxu0 0.0
    %2556 = vmatprep.subr.mxu0 0.0
    %2557 = vmatpush1.msra.mxu0 0.0
    %2558 = vmatprep.subr.mxu0 0.0
    %2559 = vmatpush1.msra.mxu0 0.0
    %2560 = vmatprep.subr.mxu0 0.0
    %2561 = vmatpush1.msra.mxu0 0.0
    %2562 = vmatprep.subr.mxu0 0.0
    %2563 = vmatpush1.msra.mxu0 0.0
    %2564 = vmatprep.subr.mxu0 0.0
    %2565 = vmatpush1.msra.mxu0 0.0
    %2566 = vmatprep.subr.mxu0 0.0
    %2567 = vmatpush1.msra.mxu0 0.0
    %2568 = vmatprep.subr.mxu0 0.0
    %2569 = vmatpush1.msra.mxu0 0.0
    %2570 = vmatprep.subr.mxu0 0.0
    %2571 = vmatpush1.msra.mxu0 0.0
    %2572 = vmatprep.subr.mxu0 0.0
    %2573 = vmatpush1.msra.mxu0 0.0
    %2574 = vmatprep.subr.mxu0 0.0
    %2575 = vmatpush1.msra.mxu0 0.0
    %2576 = vmatprep.mubr.f32.mxu0 0.0
    %2577 = vmatmul.mubr.f32.gmra.mrb[0].mxu0 %v841
    %v2578 = vpop.f32.mrb[0].mxu0
    %v2579 = vadd.f32 0.0, %v2578
    %v2580 = vpop.f32.mrb[0].mxu0
    %2581 = vmatprep.mubr.f32.mxu0 0.0
    %2582 = vmatmul.mubr.f32.gmra.mrb[0].mxu0 %v844
    %v2583 = vpop.f32.mrb[0].mxu0
    %v2584 = vadd.f32 0.0, %v2583
    %v2585 = vpop.f32.mrb[0].mxu0
    %2586 = vmatprep.mubr.f32.mxu0 0.0
    %2587 = vmatmul.mubr.f32.gmra.mrb[0].mxu0 %v847
    %v2588 = vpop.f32.mrb[0].mxu0
    %v2589 = vadd.f32 0.0, %v2588
    %v2590 = vpop.f32.mrb[0].mxu0
    %2591 = vmatprep.mubr.f32.mxu0 0.0
    %2592 = vmatmul.mubr.f32.gmra.mrb[0].mxu0 %v850
    %v2593 = vpop.f32.mrb[0].mxu0
    %v2594 = vadd.f32 0.0, %v2593
    %v2595 = vpop.f32.mrb[0].mxu0
    %2596 = vdwg.mxu0
    %2597 = vmatprep.subr.mxu0 0.0
    %2598 = vmatpush1.msra.mxu0 %v2508
    %2599 = vmatprep.subr.mxu0 0.0
    %2600 = vmatpush1.msra.mxu0 %v2509
    %2601 = vmatprep.subr.mxu0 0.0
    %2602 = vmatpush1.msra.mxu0 %v2510
    %2603 = vmatprep.subr.mxu0 0.0
    %2604 = vmatpush1.msra.mxu0 %v2511
    %2605 = vmatprep.subr.mxu0 0.0
    %2606 = vmatpush1.msra.mxu0 0.0
    %2607 = vmatprep.subr.mxu0 0.0
    %2608 = vmatpush1.msra.mxu0 0.0
    %2609 = vmatprep.subr.mxu0 0.0
    %2610 = vmatpush1.msra.mxu0 0.0
    %2611 = vmatprep.subr.mxu0 0.0
    %2612 = vmatpush1.msra.mxu0 0.0
    %2613 = vmatprep.subr.mxu0 0.0
    %2614 = vmatpush1.msra.mxu0 0.0
    %2615 = vmatprep.subr.mxu0 0.0
    %2616 = vmatpush1.msra.mxu0 0.0
    %2617 = vmatprep.subr.mxu0 0.0
    %2618 = vmatpush1.msra.mxu0 0.0
    %2619 = vmatprep.subr.mxu0 0.0
    %2620 = vmatpush1.msra.mxu0 0.0
    %2621 = vmatprep.subr.mxu0 0.0
    %2622 = vmatpush1.msra.mxu0 0.0
    %2623 = vmatprep.subr.mxu0 0.0
    %2624 = vmatpush1.msra.mxu0 0.0
    %2625 = vmatprep.subr.mxu0 0.0
    %2626 = vmatpush1.msra.mxu0 0.0
    %2627 = vmatprep.subr.mxu0 0.0
    %2628 = vmatpush1.msra.mxu0 0.0
    %2629 = vmatprep.subr.mxu0 0.0
    %2630 = vmatpush1.msra.mxu0 0.0
    %2631 = vmatprep.subr.mxu0 0.0
    %2632 = vmatpush1.msra.mxu0 0.0
    %2633 = vmatprep.subr.mxu0 0.0
    %2634 = vmatpush1.msra.mxu0 0.0
    %2635 = vmatprep.subr.mxu0 0.0
    %2636 = vmatpush1.msra.mxu0 0.0
    %2637 = vmatprep.subr.mxu0 0.0
    %2638 = vmatpush1.msra.mxu0 0.0
    %2639 = vmatprep.subr.mxu0 0.0
    %2640 = vmatpush1.msra.mxu0 0.0
    %2641 = vmatprep.subr.mxu0 0.0
    %2642 = vmatpush1.msra.mxu0 0.0
    %2643 = vmatprep.subr.mxu0 0.0
    %2644 = vmatpush1.msra.mxu0 0.0
    %2645 = vmatprep.subr.mxu0 0.0
    %2646 = vmatpush1.msra.mxu0 0.0
    %2647 = vmatprep.subr.mxu0 0.0
    %2648 = vmatpush1.msra.mxu0 0.0
    %2649 = vmatprep.subr.mxu0 0.0
    %2650 = vmatpush1.msra.mxu0 0.0
    %2651 = vmatprep.subr.mxu0 0.0
    %2652 = vmatpush1.msra.mxu0 0.0
    %2653 = vmatprep.subr.mxu0 0.0
    %2654 = vmatpush1.msra.mxu0 0.0
    %2655 = vmatprep.subr.mxu0 0.0
    %2656 = vmatpush1.msra.mxu0 0.0
    %2657 = vmatprep.subr.mxu0 0.0
    %2658 = vmatpush1.msra.mxu0 0.0
    %2659 = vmatprep.subr.mxu0 0.0
    %2660 = vmatpush1.msra.mxu0 0.0
    %2661 = vmatprep.mubr.f32.mxu0 0.0
    %2662 = vmatmul.mubr.f32.gmra.mrb[0].mxu0 %v938
    %v2663 = vpop.f32.mrb[0].mxu0
    %v2664 = vadd.f32 0.0, %v2663
    %v2665 = vpop.f32.mrb[0].mxu0
    %2666 = vmatprep.mubr.f32.mxu0 0.0
    %2667 = vmatmul.mubr.f32.gmra.mrb[0].mxu0 %v941
    %v2668 = vpop.f32.mrb[0].mxu0
    %v2669 = vadd.f32 0.0, %v2668
    %v2670 = vpop.f32.mrb[0].mxu0
    %2671 = vdwg.mxu0
    %s2672 = scalar_lea.vmem [#allocation10], 1
    %v2673 = vld [vmem:[%s2672] sm:$0x1]
    %s2674 = scalar_lea.vmem [#allocation11], 1
    %v2675 = vld [vmem:[%s2674] sm:$0x1]
    %s2676 = scalar_lea.vmem [#allocation13], 1
    %v2677 = vld [vmem:[%s2676] sm:$0x1]
    %v2679 = vsel %vm314, %v2673, 0
    %v2682 = vsel %vm314, %v2499, 0
    %v2685 = vsel %vm314, %v2504, 0
    %2687 = vmatprep.subr.mxu0 0.0
    %2688 = vmatpush1.xpose.msra.mxu0 %v2682
    %2689 = vmatprep.subr.mxu0 0.0
    %2690 = vmatpush1.xpose.msra.mxu0 %v2685
    %2691 = vmatprep.subr.mxu0 0.0
    %2692 = vmatpush1.xpose.msra.mxu0 0.0
    %2693 = vmatprep.subr.mxu0 0.0
    %2694 = vmatpush1.xpose.msra.mxu0 0.0
    %2695 = vmatprep.subr.mxu0 0.0
    %2696 = vmatpush1.xpose.msra.mxu0 0.0
    %2697 = vmatprep.subr.mxu0 0.0
    %2698 = vmatpush1.xpose.msra.mxu0 0.0
    %2699 = vmatprep.subr.mxu0 0.0
    %2700 = vmatpush1.xpose.msra.mxu0 0.0
    %2701 = vmatprep.subr.mxu0 0.0
    %2702 = vmatpush1.xpose.msra.mxu0 0.0
    %2703 = vmatprep.subr.mxu0 0.0
    %2704 = vmatpush1.xpose.msra.mxu0 0.0
    %2705 = vmatprep.subr.mxu0 0.0
    %2706 = vmatpush1.xpose.msra.mxu0 0.0
    %2707 = vmatprep.subr.mxu0 0.0
    %2708 = vmatpush1.xpose.msra.mxu0 0.0
    %2709 = vmatprep.subr.mxu0 0.0
    %2710 = vmatpush1.xpose.msra.mxu0 0.0
    %2711 = vmatprep.subr.mxu0 0.0
    %2712 = vmatpush1.xpose.msra.mxu0 0.0
    %2713 = vmatprep.subr.mxu0 0.0
    %2714 = vmatpush1.xpose.msra.mxu0 0.0
    %2715 = vmatprep.subr.mxu0 0.0
    %2716 = vmatpush1.xpose.msra.mxu0 0.0
    %2717 = vmatprep.subr.mxu0 0.0
    %2718 = vmatpush1.xpose.msra.mxu0 0.0
    %2719 = vmatprep.subr.mxu0 0.0
    %2720 = vmatpush1.xpose.msra.mxu0 0.0
    %2721 = vmatprep.subr.mxu0 0.0
    %2722 = vmatpush1.xpose.msra.mxu0 0.0
    %2723 = vmatprep.subr.mxu0 0.0
    %2724 = vmatpush1.xpose.msra.mxu0 0.0
    %2725 = vmatprep.subr.mxu0 0.0
    %2726 = vmatpush1.xpose.msra.mxu0 0.0
    %2727 = vmatprep.subr.mxu0 0.0
    %2728 = vmatpush1.xpose.msra.mxu0 0.0
    %2729 = vmatprep.subr.mxu0 0.0
    %2730 = vmatpush1.xpose.msra.mxu0 0.0
    %2731 = vmatprep.subr.mxu0 0.0
    %2732 = vmatpush1.xpose.msra.mxu0 0.0
    %2733 = vmatprep.subr.mxu0 0.0
    %2734 = vmatpush1.xpose.msra.mxu0 0.0
    %2735 = vmatprep.subr.mxu0 0.0
    %2736 = vmatpush1.xpose.msra.mxu0 0.0
    %2737 = vmatprep.subr.mxu0 0.0
    %2738 = vmatpush1.xpose.msra.mxu0 0.0
    %2739 = vmatprep.subr.mxu0 0.0
    %2740 = vmatpush1.xpose.msra.mxu0 0.0
    %2741 = vmatprep.subr.mxu0 0.0
    %2742 = vmatpush1.xpose.msra.mxu0 0.0
    %2743 = vmatprep.subr.mxu0 0.0
    %2744 = vmatpush1.xpose.msra.mxu0 0.0
    %2745 = vmatprep.subr.mxu0 0.0
    %2746 = vmatpush1.xpose.msra.mxu0 0.0
    %2747 = vmatprep.subr.mxu0 0.0
    %2748 = vmatpush1.xpose.msra.mxu0 0.0
    %2749 = vmatprep.subr.mxu0 0.0
    %2750 = vmatpush1.xpose.msra.mxu0 0.0
    %2751 = vmatprep.mubr.f32.mxu0 0.0
    %2752 = vmatmul.mubr.f32.gmra.mrb[0].mxu0 %v2679
    %v2753 = vpop.f32.mrb[0].mxu0
    %v2754 = vadd.f32 0.0, %v2753
    %v2755 = vpop.f32.mrb[0].mxu0
    %2756 = vdwg.mxu0
    %v2758 = vlaneseq
    %v2759 = vshrl.u32 %v2758, 7
    %v2760 = vsub.s32 0, %v2759
    %v2761 = vrot.slane %v2675, %v2760
    %v2763 = vmul.f32 %v2499, %v2761
    %v2764 = vmul.f32 %v2504, %v2761
    %v2765 = vsel %vm314, %v2763, 0.0
    %2766 = vadd.xlane.f32.xlu0 %v2765
    %v2767 = vpop.xlane.xlu0 %2766
    %v2768 = vsel %vm314, %v2764, 0.0
    %2769 = vadd.xlane.f32.xlu0 %v2768
    %v2770 = vpop.xlane.xlu0 %2769
    %v2772 = vlaneseq
    %v2773 = vshrl.u32 %v2772, 7
    %v2774 = vsub.s32 0, %v2773
    %v2775 = vrot.slane %v2677, %v2774
    %v2777 = vmul.f32 %v2579, %v2775
    %v2778 = vmul.f32 %v2584, %v2775
    %v2779 = vmul.f32 %v2589, %v2775
    %v2780 = vmul.f32 %v2594, %v2775
    %v2781 = vsel %vm314, %v2777, 0.0
    %2782 = vadd.xlane.f32.xlu0 %v2781
    %v2783 = vpop.xlane.xlu0 %2782
    %v2784 = vsel %vm314, %v2778, 0.0
    %2785 = vadd.xlane.f32.xlu0 %v2784
    %v2786 = vpop.xlane.xlu0 %2785
    %v2787 = vsel %vm314, %v2779, 0.0
    %2788 = vadd.xlane.f32.xlu0 %v2787
    %v2789 = vpop.xlane.xlu0 %2788
    %v2790 = vsel %vm314, %v2780, 0.0
    %2791 = vadd.xlane.f32.xlu0 %v2790
    %v2792 = vpop.xlane.xlu0 %2791
    %v2793 = vmul.f32 %v2664, %v2775
    %v2794 = vmul.f32 %v2669, %v2775
    %v2795 = vsel %vm314, %v2793, 0.0
    %2796 = vadd.xlane.f32.xlu0 %v2795
    %v2797 = vpop.xlane.xlu0 %2796
    %v2798 = vsel %vm314, %v2794, 0.0
    %2799 = vadd.xlane.f32.xlu0 %v2798
    %v2800 = vpop.xlane.xlu0 %2799
    %v2801 = vmul.f32 %v2783, %v304
    %v2802 = vmul.f32 %v2786, %v305
    %v2803 = vmul.f32 %v2789, %v306
    %v2804 = vmul.f32 %v2792, %v307
    %v2805 = vmul.f32 %v312, %v2797
    %v2806 = vmul.f32 %v313, %v2800
    %2807 = vmatprep.subr.mxu0 0.0
    %2808 = vmatpush1.msra.mxu0 %v2801
    %2809 = vmatprep.subr.mxu0 0.0
    %2810 = vmatpush1.msra.mxu0 %v2802
    %2811 = vmatprep.subr.mxu0 0.0
    %2812 = vmatpush1.msra.mxu0 %v2803
    %2813 = vmatprep.subr.mxu0 0.0
    %2814 = vmatpush1.msra.mxu0 %v2804
    %2815 = vmatprep.subr.mxu0 0.0
    %2816 = vmatpush1.msra.mxu0 0.0
    %2817 = vmatprep.subr.mxu0 0.0
    %2818 = vmatpush1.msra.mxu0 0.0
    %2819 = vmatprep.subr.mxu0 0.0
    %2820 = vmatpush1.msra.mxu0 0.0
    %2821 = vmatprep.subr.mxu0 0.0
    %2822 = vmatpush1.msra.mxu0 0.0
    %2823 = vmatprep.subr.mxu0 0.0
    %2824 = vmatpush1.msra.mxu0 0.0
    %2825 = vmatprep.subr.mxu0 0.0
    %2826 = vmatpush1.msra.mxu0 0.0
    %2827 = vmatprep.subr.mxu0 0.0
    %2828 = vmatpush1.msra.mxu0 0.0
    %2829 = vmatprep.subr.mxu0 0.0
    %2830 = vmatpush1.msra.mxu0 0.0
    %2831 = vmatprep.subr.mxu0 0.0
    %2832 = vmatpush1.msra.mxu0 0.0
    %2833 = vmatprep.subr.mxu0 0.0
    %2834 = vmatpush1.msra.mxu0 0.0
    %2835 = vmatprep.subr.mxu0 0.0
    %2836 = vmatpush1.msra.mxu0 0.0
    %2837 = vmatprep.subr.mxu0 0.0
    %2838 = vmatpush1.msra.mxu0 0.0
    %2839 = vmatprep.subr.mxu0 0.0
    %2840 = vmatpush1.msra.mxu0 0.0
    %2841 = vmatprep.subr.mxu0 0.0
    %2842 = vmatpush1.msra.mxu0 0.0
    %2843 = vmatprep.subr.mxu0 0.0
    %2844 = vmatpush1.msra.mxu0 0.0
    %2845 = vmatprep.subr.mxu0 0.0
    %2846 = vmatpush1.msra.mxu0 0.0
    %2847 = vmatprep.subr.mxu0 0.0
    %2848 = vmatpush1.msra.mxu0 0.0
    %2849 = vmatprep.subr.mxu0 0.0
    %2850 = vmatpush1.msra.mxu0 0.0
    %2851 = vmatprep.subr.mxu0 0.0
    %2852 = vmatpush1.msra.mxu0 0.0
    %2853 = vmatprep.subr.mxu0 0.0
    %2854 = vmatpush1.msra.mxu0 0.0
    %2855 = vmatprep.subr.mxu0 0.0
    %2856 = vmatpush1.msra.mxu0 0.0
    %2857 = vmatprep.subr.mxu0 0.0
    %2858 = vmatpush1.msra.mxu0 0.0
    %2859 = vmatprep.subr.mxu0 0.0
    %2860 = vmatpush1.msra.mxu0 0.0
    %2861 = vmatprep.subr.mxu0 0.0
    %2862 = vmatpush1.msra.mxu0 0.0
    %2863 = vmatprep.subr.mxu0 0.0
    %2864 = vmatpush1.msra.mxu0 0.0
    %2865 = vmatprep.subr.mxu0 0.0
    %2866 = vmatpush1.msra.mxu0 0.0
    %2867 = vmatprep.subr.mxu0 0.0
    %2868 = vmatpush1.msra.mxu0 0.0
    %2869 = vmatprep.subr.mxu0 0.0
    %2870 = vmatpush1.msra.mxu0 0.0
    %2871 = vmatprep.mubr.f32.mxu0 0.0
    %2872 = vmatmul.mubr.f32.gmra.mrb[0].mxu0 %v316
    %v2873 = vpop.f32.mrb[0].mxu0
    %v2874 = vadd.f32 %v2805, %v2873
    %v2875 = vpop.f32.mrb[0].mxu0
    %2876 = vmatprep.mubr.f32.mxu0 0.0
    %2877 = vmatmul.mubr.f32.gmra.mrb[0].mxu0 %v319
    %v2878 = vpop.f32.mrb[0].mxu0
    %v2879 = vadd.f32 %v2806, %v2878
    %v2880 = vpop.f32.mrb[0].mxu0
    %2881 = vdwg.mxu0
    %v2882 = vadd.f32 %v2874, %v2767
    %v2883 = vadd.f32 %v2879, %v2770
    %v2884 = vlaneseq
    %v2885 = vshrl.u32 %v2884, 7
    %v2886 = vsub.s32 0, %v2885
    %v2887 = vrot.slane %v2754, %v2886
    %v2888 = vadd.f32 %v2882, %v2887
    %v2889 = vadd.f32 %v2883, %v2887
    %vm2890 = vcmp.gt.f32.partialorder %v2888, 0.0
    %vm2891 = vcmp.gt.f32.partialorder %v2889, 0.0
    %v2892 = vmul.f32 %v2888, 0.2
    %v2893 = vmul.f32 %v2889, 0.2
    %v2894 = vsel %vm2890, %v2888, %v2892
    %v2895 = vsel %vm2891, %v2889, %v2893
    %v2896 = vsel %vm1239, %v2894, -1e+30
    %v2897 = vsel %vm1240, %v2895, -1e+30
    %v2898 = vsel %vm1243, %v2896, -inf
    %2899 = vmax.xlane.f32.xlu0 %v2898
    %v2900 = vpop.xlane.xlu0 %2899
    %v2901 = vsel %vm1243, %v2897, -inf
    %2902 = vmax.xlane.f32.xlu0 %v2901
    %v2903 = vpop.xlane.xlu0 %2902
    %v2904 = vsub.f32 %v2896, %v2900
    %v2905 = vsub.f32 %v2897, %v2903
    %v2906 = vmul.f32 %v2904, 1.442695
    %v2907 = vpow.pop %v2906
    %v2908 = vmul.f32 %v2905, 1.442695
    %v2909 = vpow.pop %v2908
    %v2910 = vsel %vm1243, %v2907, 0.0
    %2911 = vadd.xlane.f32.xlu0 %v2910
    %v2912 = vpop.xlane.xlu0 %2911
    %v2913 = vsel %vm1243, %v2909, 0.0
    %2914 = vadd.xlane.f32.xlu0 %v2913
    %v2915 = vpop.xlane.xlu0 %2914
    %v2916 = vrcp.pop %v2912
    %v2917 = vrcp.pop %v2915
    %v2918 = vmul.f32 %v2907, %v2916
    %v2919 = vmul.f32 %v2909, %v2917
    %v2920 = vlaneseq
    %v2921 = vshrl.u32 %v2920, 7
    %v2922 = vsub.s32 0, %v2921
    %v2923 = vrot.slane %v2673, %v2922
    %2924 = vrot.lane.b32.xlu0 %v2923, 96
    %v2925 = vpop.permute.xlu0 %2924
    %2926 = vrot.lane.b32.xlu0 %v2499, 96
    %v2927 = vpop.permute.xlu0 %2926
    %2928 = vrot.lane.b32.xlu0 %v2504, 96
    %v2929 = vpop.permute.xlu0 %2928
    %v2930 = vsel %vm314, %v2925, 0
    %v2932 = vsel %vm314, %v2927, 0
    %v2934 = vsel %vm314, %v2929, 0
    %2936 = vmatprep.subr.mxu0 0.0
    %2937 = vmatpush1.xpose.msra.mxu0 %v2932
    %2938 = vmatprep.subr.mxu0 0.0
    %2939 = vmatpush1.xpose.msra.mxu0 %v2934
    %2940 = vmatprep.subr.mxu0 0.0
    %2941 = vmatpush1.xpose.msra.mxu0 0.0
    %2942 = vmatprep.subr.mxu0 0.0
    %2943 = vmatpush1.xpose.msra.mxu0 0.0
    %2944 = vmatprep.subr.mxu0 0.0
    %2945 = vmatpush1.xpose.msra.mxu0 0.0
    %2946 = vmatprep.subr.mxu0 0.0
    %2947 = vmatpush1.xpose.msra.mxu0 0.0
    %2948 = vmatprep.subr.mxu0 0.0
    %2949 = vmatpush1.xpose.msra.mxu0 0.0
    %2950 = vmatprep.subr.mxu0 0.0
    %2951 = vmatpush1.xpose.msra.mxu0 0.0
    %2952 = vmatprep.subr.mxu0 0.0
    %2953 = vmatpush1.xpose.msra.mxu0 0.0
    %2954 = vmatprep.subr.mxu0 0.0
    %2955 = vmatpush1.xpose.msra.mxu0 0.0
    %2956 = vmatprep.subr.mxu0 0.0
    %2957 = vmatpush1.xpose.msra.mxu0 0.0
    %2958 = vmatprep.subr.mxu0 0.0
    %2959 = vmatpush1.xpose.msra.mxu0 0.0
    %2960 = vmatprep.subr.mxu0 0.0
    %2961 = vmatpush1.xpose.msra.mxu0 0.0
    %2962 = vmatprep.subr.mxu0 0.0
    %2963 = vmatpush1.xpose.msra.mxu0 0.0
    %2964 = vmatprep.subr.mxu0 0.0
    %2965 = vmatpush1.xpose.msra.mxu0 0.0
    %2966 = vmatprep.subr.mxu0 0.0
    %2967 = vmatpush1.xpose.msra.mxu0 0.0
    %2968 = vmatprep.subr.mxu0 0.0
    %2969 = vmatpush1.xpose.msra.mxu0 0.0
    %2970 = vmatprep.subr.mxu0 0.0
    %2971 = vmatpush1.xpose.msra.mxu0 0.0
    %2972 = vmatprep.subr.mxu0 0.0
    %2973 = vmatpush1.xpose.msra.mxu0 0.0
    %2974 = vmatprep.subr.mxu0 0.0
    %2975 = vmatpush1.xpose.msra.mxu0 0.0
    %2976 = vmatprep.subr.mxu0 0.0
    %2977 = vmatpush1.xpose.msra.mxu0 0.0
    %2978 = vmatprep.subr.mxu0 0.0
    %2979 = vmatpush1.xpose.msra.mxu0 0.0
    %2980 = vmatprep.subr.mxu0 0.0
    %2981 = vmatpush1.xpose.msra.mxu0 0.0
    %2982 = vmatprep.subr.mxu0 0.0
    %2983 = vmatpush1.xpose.msra.mxu0 0.0
    %2984 = vmatprep.subr.mxu0 0.0
    %2985 = vmatpush1.xpose.msra.mxu0 0.0
    %2986 = vmatprep.subr.mxu0 0.0
    %2987 = vmatpush1.xpose.msra.mxu0 0.0
    %2988 = vmatprep.subr.mxu0 0.0
    %2989 = vmatpush1.xpose.msra.mxu0 0.0
    %2990 = vmatprep.subr.mxu0 0.0
    %2991 = vmatpush1.xpose.msra.mxu0 0.0
    %2992 = vmatprep.subr.mxu0 0.0
    %2993 = vmatpush1.xpose.msra.mxu0 0.0
    %2994 = vmatprep.subr.mxu0 0.0
    %2995 = vmatpush1.xpose.msra.mxu0 0.0
    %2996 = vmatprep.subr.mxu0 0.0
    %2997 = vmatpush1.xpose.msra.mxu0 0.0
    %2998 = vmatprep.subr.mxu0 0.0
    %2999 = vmatpush1.xpose.msra.mxu0 0.0
    %3000 = vmatprep.mubr.f32.mxu0 0.0
    %3001 = vmatmul.mubr.f32.gmra.mrb[0].mxu0 %v2930
    %v3002 = vpop.f32.mrb[0].mxu0
    %v3003 = vadd.f32 0.0, %v3002
    %v3004 = vpop.f32.mrb[0].mxu0
    %3005 = vdwg.mxu0
    %3008 = vrot.lane.b32.xlu0 %v2763, 96
    %v3009 = vpop.permute.xlu0 %3008
    %3010 = vrot.lane.b32.xlu0 %v2764, 96
    %v3011 = vpop.permute.xlu0 %3010
    %v3014 = vsel %vm314, %v3009, 0.0
    %3015 = vadd.xlane.f32.xlu0 %v3014
    %v3016 = vpop.xlane.xlu0 %3015
    %v3017 = vsel %vm314, %v3011, 0.0
    %3018 = vadd.xlane.f32.xlu0 %v3017
    %v3019 = vpop.xlane.xlu0 %3018
    %3024 = vrot.lane.b32.xlu0 %v2777, 96
    %v3025 = vpop.permute.xlu0 %3024
    %3026 = vrot.lane.b32.xlu0 %v2778, 96
    %v3027 = vpop.permute.xlu0 %3026
    %3028 = vrot.lane.b32.xlu0 %v2779, 96
    %v3029 = vpop.permute.xlu0 %3028
    %3030 = vrot.lane.b32.xlu0 %v2780, 96
    %v3031 = vpop.permute.xlu0 %3030
    %v3036 = vsel %vm314, %v3025, 0.0
    %3037 = vadd.xlane.f32.xlu0 %v3036
    %v3038 = vpop.xlane.xlu0 %3037
    %v3039 = vsel %vm314, %v3027, 0.0
    %3040 = vadd.xlane.f32.xlu0 %v3039
    %v3041 = vpop.xlane.xlu0 %3040
    %v3042 = vsel %vm314, %v3029, 0.0
    %3043 = vadd.xlane.f32.xlu0 %v3042
    %v3044 = vpop.xlane.xlu0 %3043
    %v3045 = vsel %vm314, %v3031, 0.0
    %3046 = vadd.xlane.f32.xlu0 %v3045
    %v3047 = vpop.xlane.xlu0 %3046
    %3050 = vrot.lane.b32.xlu0 %v2793, 96
    %v3051 = vpop.permute.xlu0 %3050
    %3052 = vrot.lane.b32.xlu0 %v2794, 96
    %v3053 = vpop.permute.xlu0 %3052
    %v3056 = vsel %vm314, %v3051, 0.0
    %3057 = vadd.xlane.f32.xlu0 %v3056
    %v3058 = vpop.xlane.xlu0 %3057
    %v3059 = vsel %vm314, %v3053, 0.0
    %3060 = vadd.xlane.f32.xlu0 %v3059
    %v3061 = vpop.xlane.xlu0 %3060
    %v3062 = vmul.f32 %v3038, %v304
    %v3063 = vmul.f32 %v3041, %v305
    %v3064 = vmul.f32 %v3044, %v306
    %v3065 = vmul.f32 %v3047, %v307
    %v3066 = vmul.f32 %v312, %v3058
    %v3067 = vmul.f32 %v313, %v3061
    %3068 = vmatprep.subr.mxu0 0.0
    %3069 = vmatpush1.msra.mxu0 %v3062
    %3070 = vmatprep.subr.mxu0 0.0
    %3071 = vmatpush1.msra.mxu0 %v3063
    %3072 = vmatprep.subr.mxu0 0.0
    %3073 = vmatpush1.msra.mxu0 %v3064
    %3074 = vmatprep.subr.mxu0 0.0
    %3075 = vmatpush1.msra.mxu0 %v3065
    %3076 = vmatprep.subr.mxu0 0.0
    %3077 = vmatpush1.msra.mxu0 0.0
    %3078 = vmatprep.subr.mxu0 0.0
    %3079 = vmatpush1.msra.mxu0 0.0
    %3080 = vmatprep.subr.mxu0 0.0
    %3081 = vmatpush1.msra.mxu0 0.0
    %3082 = vmatprep.subr.mxu0 0.0
    %3083 = vmatpush1.msra.mxu0 0.0
    %3084 = vmatprep.subr.mxu0 0.0
    %3085 = vmatpush1.msra.mxu0 0.0
    %3086 = vmatprep.subr.mxu0 0.0
    %3087 = vmatpush1.msra.mxu0 0.0
    %3088 = vmatprep.subr.mxu0 0.0
    %3089 = vmatpush1.msra.mxu0 0.0
    %3090 = vmatprep.subr.mxu0 0.0
    %3091 = vmatpush1.msra.mxu0 0.0
    %3092 = vmatprep.subr.mxu0 0.0
    %3093 = vmatpush1.msra.mxu0 0.0
    %3094 = vmatprep.subr.mxu0 0.0
    %3095 = vmatpush1.msra.mxu0 0.0
    %3096 = vmatprep.subr.mxu0 0.0
    %3097 = vmatpush1.msra.mxu0 0.0
    %3098 = vmatprep.subr.mxu0 0.0
    %3099 = vmatpush1.msra.mxu0 0.0
    %3100 = vmatprep.subr.mxu0 0.0
    %3101 = vmatpush1.msra.mxu0 0.0
    %3102 = vmatprep.subr.mxu0 0.0
    %3103 = vmatpush1.msra.mxu0 0.0
    %3104 = vmatprep.subr.mxu0 0.0
    %3105 = vmatpush1.msra.mxu0 0.0
    %3106 = vmatprep.subr.mxu0 0.0
    %3107 = vmatpush1.msra.mxu0 0.0
    %3108 = vmatprep.subr.mxu0 0.0
    %3109 = vmatpush1.msra.mxu0 0.0
    %3110 = vmatprep.subr.mxu0 0.0
    %3111 = vmatpush1.msra.mxu0 0.0
    %3112 = vmatprep.subr.mxu0 0.0
    %3113 = vmatpush1.msra.mxu0 0.0
    %3114 = vmatprep.subr.mxu0 0.0
    %3115 = vmatpush1.msra.mxu0 0.0
    %3116 = vmatprep.subr.mxu0 0.0
    %3117 = vmatpush1.msra.mxu0 0.0
    %3118 = vmatprep.subr.mxu0 0.0
    %3119 = vmatpush1.msra.mxu0 0.0
    %3120 = vmatprep.subr.mxu0 0.0
    %3121 = vmatpush1.msra.mxu0 0.0
    %3122 = vmatprep.subr.mxu0 0.0
    %3123 = vmatpush1.msra.mxu0 0.0
    %3124 = vmatprep.subr.mxu0 0.0
    %3125 = vmatpush1.msra.mxu0 0.0
    %3126 = vmatprep.subr.mxu0 0.0
    %3127 = vmatpush1.msra.mxu0 0.0
    %3128 = vmatprep.subr.mxu0 0.0
    %3129 = vmatpush1.msra.mxu0 0.0
    %3130 = vmatprep.subr.mxu0 0.0
    %3131 = vmatpush1.msra.mxu0 0.0
    %3132 = vmatprep.mubr.f32.mxu0 0.0
    %3133 = vmatmul.mubr.f32.gmra.mrb[0].mxu0 %v316
    %v3134 = vpop.f32.mrb[0].mxu0
    %v3135 = vadd.f32 %v3066, %v3134
    %v3136 = vpop.f32.mrb[0].mxu0
    %3137 = vmatprep.mubr.f32.mxu0 0.0
    %3138 = vmatmul.mubr.f32.gmra.mrb[0].mxu0 %v319
    %v3139 = vpop.f32.mrb[0].mxu0
    %v3140 = vadd.f32 %v3067, %v3139
    %v3141 = vpop.f32.mrb[0].mxu0
    %3142 = vdwg.mxu0
    %v3143 = vadd.f32 %v3135, %v3016
    %v3144 = vadd.f32 %v3140, %v3019
    %v3145 = vlaneseq
    %v3146 = vshrl.u32 %v3145, 7
    %v3147 = vsub.s32 0, %v3146
    %v3148 = vrot.slane %v3003, %v3147
    %v3149 = vadd.f32 %v3143, %v3148
    %v3150 = vadd.f32 %v3144, %v3148
    %vm3151 = vcmp.gt.f32.partialorder %v3149, 0.0
    %vm3152 = vcmp.gt.f32.partialorder %v3150, 0.0
    %v3153 = vmul.f32 %v3149, 0.2
    %v3154 = vmul.f32 %v3150, 0.2
    %v3155 = vsel %vm3151, %v3149, %v3153
    %v3156 = vsel %vm3152, %v3150, %v3154
    %v3157 = vsel %vm1239, %v3155, -1e+30
    %v3158 = vsel %vm1240, %v3156, -1e+30
    %v3159 = vsel %vm1243, %v3157, -inf
    %3160 = vmax.xlane.f32.xlu0 %v3159
    %v3161 = vpop.xlane.xlu0 %3160
    %v3162 = vsel %vm1243, %v3158, -inf
    %3163 = vmax.xlane.f32.xlu0 %v3162
    %v3164 = vpop.xlane.xlu0 %3163
    %v3165 = vsub.f32 %v3157, %v3161
    %v3166 = vsub.f32 %v3158, %v3164
    %v3167 = vmul.f32 %v3165, 1.442695
    %v3168 = vpow.pop %v3167
    %v3169 = vmul.f32 %v3166, 1.442695
    %v3170 = vpow.pop %v3169
    %v3171 = vsel %vm1243, %v3168, 0.0
    %3172 = vadd.xlane.f32.xlu0 %v3171
    %v3173 = vpop.xlane.xlu0 %3172
    %v3174 = vsel %vm1243, %v3170, 0.0
    %3175 = vadd.xlane.f32.xlu0 %v3174
    %v3176 = vpop.xlane.xlu0 %3175
    %v3177 = vrcp.pop %v3173
    %v3178 = vrcp.pop %v3176
    %v3179 = vmul.f32 %v3168, %v3177
    %v3180 = vmul.f32 %v3170, %v3178
    %v3184 = vsel %vm1243, %v3179, 0
    %v3187 = vsel %vm1243, %v3180, 0
    %3189 = vmatprep.subr.mxu0 0.0
    %3190 = vmatpush1.msra.mxu0 %v2927
    %3191 = vmatprep.subr.mxu0 0.0
    %3192 = vmatpush1.msra.mxu0 %v2929
    %3193 = vmatprep.subr.mxu0 0.0
    %3194 = vmatpush1.msra.mxu0 0.0
    %3195 = vmatprep.subr.mxu0 0.0
    %3196 = vmatpush1.msra.mxu0 0.0
    %3197 = vmatprep.subr.mxu0 0.0
    %3198 = vmatpush1.msra.mxu0 0.0
    %3199 = vmatprep.subr.mxu0 0.0
    %3200 = vmatpush1.msra.mxu0 0.0
    %3201 = vmatprep.subr.mxu0 0.0
    %3202 = vmatpush1.msra.mxu0 0.0
    %3203 = vmatprep.subr.mxu0 0.0
    %3204 = vmatpush1.msra.mxu0 0.0
    %3205 = vmatprep.subr.mxu0 0.0
    %3206 = vmatpush1.msra.mxu0 0.0
    %3207 = vmatprep.subr.mxu0 0.0
    %3208 = vmatpush1.msra.mxu0 0.0
    %3209 = vmatprep.subr.mxu0 0.0
    %3210 = vmatpush1.msra.mxu0 0.0
    %3211 = vmatprep.subr.mxu0 0.0
    %3212 = vmatpush1.msra.mxu0 0.0
    %3213 = vmatprep.subr.mxu0 0.0
    %3214 = vmatpush1.msra.mxu0 0.0
    %3215 = vmatprep.subr.mxu0 0.0
    %3216 = vmatpush1.msra.mxu0 0.0
    %3217 = vmatprep.subr.mxu0 0.0
    %3218 = vmatpush1.msra.mxu0 0.0
    %3219 = vmatprep.subr.mxu0 0.0
    %3220 = vmatpush1.msra.mxu0 0.0
    %3221 = vmatprep.subr.mxu0 0.0
    %3222 = vmatpush1.msra.mxu0 0.0
    %3223 = vmatprep.subr.mxu0 0.0
    %3224 = vmatpush1.msra.mxu0 0.0
    %3225 = vmatprep.subr.mxu0 0.0
    %3226 = vmatpush1.msra.mxu0 0.0
    %3227 = vmatprep.subr.mxu0 0.0
    %3228 = vmatpush1.msra.mxu0 0.0
    %3229 = vmatprep.subr.mxu0 0.0
    %3230 = vmatpush1.msra.mxu0 0.0
    %3231 = vmatprep.subr.mxu0 0.0
    %3232 = vmatpush1.msra.mxu0 0.0
    %3233 = vmatprep.subr.mxu0 0.0
    %3234 = vmatpush1.msra.mxu0 0.0
    %3235 = vmatprep.subr.mxu0 0.0
    %3236 = vmatpush1.msra.mxu0 0.0
    %3237 = vmatprep.subr.mxu0 0.0
    %3238 = vmatpush1.msra.mxu0 0.0
    %3239 = vmatprep.subr.mxu0 0.0
    %3240 = vmatpush1.msra.mxu0 0.0
    %3241 = vmatprep.subr.mxu0 0.0
    %3242 = vmatpush1.msra.mxu0 0.0
    %3243 = vmatprep.subr.mxu0 0.0
    %3244 = vmatpush1.msra.mxu0 0.0
    %3245 = vmatprep.subr.mxu0 0.0
    %3246 = vmatpush1.msra.mxu0 0.0
    %3247 = vmatprep.subr.mxu0 0.0
    %3248 = vmatpush1.msra.mxu0 0.0
    %3249 = vmatprep.subr.mxu0 0.0
    %3250 = vmatpush1.msra.mxu0 0.0
    %3251 = vmatprep.subr.mxu0 0.0
    %3252 = vmatpush1.msra.mxu0 0.0
    %3253 = vmatprep.mubr.f32.mxu0 0.0
    %3254 = vmatmul.mubr.f32.gmra.mrb[0].mxu0 %v3184
    %v3255 = vpop.f32.mrb[0].mxu0
    %v3256 = vadd.f32 0.0, %v3255
    %v3257 = vpop.f32.mrb[0].mxu0
    %3258 = vmatprep.mubr.f32.mxu0 0.0
    %3259 = vmatmul.mubr.f32.gmra.mrb[0].mxu0 %v3187
    %v3260 = vpop.f32.mrb[0].mxu0
    %v3261 = vadd.f32 0.0, %v3260
    %v3262 = vpop.f32.mrb[0].mxu0
    %3263 = vdwg.mxu0
    %v3265 = vsel %vm1243, %v2918, 0
    %v3268 = vsel %vm1243, %v2919, 0
    %3270 = vmatprep.subr.mxu0 0.0
    %3271 = vmatpush1.msra.mxu0 %v2499
    %3272 = vmatprep.subr.mxu0 0.0
    %3273 = vmatpush1.msra.mxu0 %v2504
    %3274 = vmatprep.subr.mxu0 0.0
    %3275 = vmatpush1.msra.mxu0 0.0
    %3276 = vmatprep.subr.mxu0 0.0
    %3277 = vmatpush1.msra.mxu0 0.0
    %3278 = vmatprep.subr.mxu0 0.0
    %3279 = vmatpush1.msra.mxu0 0.0
    %3280 = vmatprep.subr.mxu0 0.0
    %3281 = vmatpush1.msra.mxu0 0.0
    %3282 = vmatprep.subr.mxu0 0.0
    %3283 = vmatpush1.msra.mxu0 0.0
    %3284 = vmatprep.subr.mxu0 0.0
    %3285 = vmatpush1.msra.mxu0 0.0
    %3286 = vmatprep.subr.mxu0 0.0
    %3287 = vmatpush1.msra.mxu0 0.0
    %3288 = vmatprep.subr.mxu0 0.0
    %3289 = vmatpush1.msra.mxu0 0.0
    %3290 = vmatprep.subr.mxu0 0.0
    %3291 = vmatpush1.msra.mxu0 0.0
    %3292 = vmatprep.subr.mxu0 0.0
    %3293 = vmatpush1.msra.mxu0 0.0
    %3294 = vmatprep.subr.mxu0 0.0
    %3295 = vmatpush1.msra.mxu0 0.0
    %3296 = vmatprep.subr.mxu0 0.0
    %3297 = vmatpush1.msra.mxu0 0.0
    %3298 = vmatprep.subr.mxu0 0.0
    %3299 = vmatpush1.msra.mxu0 0.0
    %3300 = vmatprep.subr.mxu0 0.0
    %3301 = vmatpush1.msra.mxu0 0.0
    %3302 = vmatprep.subr.mxu0 0.0
    %3303 = vmatpush1.msra.mxu0 0.0
    %3304 = vmatprep.subr.mxu0 0.0
    %3305 = vmatpush1.msra.mxu0 0.0
    %3306 = vmatprep.subr.mxu0 0.0
    %3307 = vmatpush1.msra.mxu0 0.0
    %3308 = vmatprep.subr.mxu0 0.0
    %3309 = vmatpush1.msra.mxu0 0.0
    %3310 = vmatprep.subr.mxu0 0.0
    %3311 = vmatpush1.msra.mxu0 0.0
    %3312 = vmatprep.subr.mxu0 0.0
    %3313 = vmatpush1.msra.mxu0 0.0
    %3314 = vmatprep.subr.mxu0 0.0
    %3315 = vmatpush1.msra.mxu0 0.0
    %3316 = vmatprep.subr.mxu0 0.0
    %3317 = vmatpush1.msra.mxu0 0.0
    %3318 = vmatprep.subr.mxu0 0.0
    %3319 = vmatpush1.msra.mxu0 0.0
    %3320 = vmatprep.subr.mxu0 0.0
    %3321 = vmatpush1.msra.mxu0 0.0
    %3322 = vmatprep.subr.mxu0 0.0
    %3323 = vmatpush1.msra.mxu0 0.0
    %3324 = vmatprep.subr.mxu0 0.0
    %3325 = vmatpush1.msra.mxu0 0.0
    %3326 = vmatprep.subr.mxu0 0.0
    %3327 = vmatpush1.msra.mxu0 0.0
    %3328 = vmatprep.subr.mxu0 0.0
    %3329 = vmatpush1.msra.mxu0 0.0
    %3330 = vmatprep.subr.mxu0 0.0
    %3331 = vmatpush1.msra.mxu0 0.0
    %3332 = vmatprep.subr.mxu0 0.0
    %3333 = vmatpush1.msra.mxu0 0.0
    %3334 = vmatprep.mubr.f32.mxu0 0.0
    %3335 = vmatmul.mubr.f32.gmra.mrb[0].mxu0 %v3265
    %v3336 = vpop.f32.mrb[0].mxu0
    %v3337 = vadd.f32 %v3256, %v3336
    %v3338 = vpop.f32.mrb[0].mxu0
    %3339 = vmatprep.mubr.f32.mxu0 0.0
    %3340 = vmatmul.mubr.f32.gmra.mrb[0].mxu0 %v3268
    %v3341 = vpop.f32.mrb[0].mxu0
    %v3342 = vadd.f32 %v3261, %v3341
    %v3343 = vpop.f32.mrb[0].mxu0
    %3344 = vdwg.mxu0
    %3345 = vrot.lane.b32.xlu0 %v2923, 64
    %v3346 = vpop.permute.xlu0 %3345
    %3347 = vrot.lane.b32.xlu0 %v2499, 64
    %v3348 = vpop.permute.xlu0 %3347
    %3349 = vrot.lane.b32.xlu0 %v2504, 64
    %v3350 = vpop.permute.xlu0 %3349
    %v3351 = vsel %vm314, %v3346, 0
    %v3353 = vsel %vm314, %v3348, 0
    %v3355 = vsel %vm314, %v3350, 0
    %3357 = vmatprep.subr.mxu0 0.0
    %3358 = vmatpush1.xpose.msra.mxu0 %v3353
    %3359 = vmatprep.subr.mxu0 0.0
    %3360 = vmatpush1.xpose.msra.mxu0 %v3355
    %3361 = vmatprep.subr.mxu0 0.0
    %3362 = vmatpush1.xpose.msra.mxu0 0.0
    %3363 = vmatprep.subr.mxu0 0.0
    %3364 = vmatpush1.xpose.msra.mxu0 0.0
    %3365 = vmatprep.subr.mxu0 0.0
    %3366 = vmatpush1.xpose.msra.mxu0 0.0
    %3367 = vmatprep.subr.mxu0 0.0
    %3368 = vmatpush1.xpose.msra.mxu0 0.0
    %3369 = vmatprep.subr.mxu0 0.0
    %3370 = vmatpush1.xpose.msra.mxu0 0.0
    %3371 = vmatprep.subr.mxu0 0.0
    %3372 = vmatpush1.xpose.msra.mxu0 0.0
    %3373 = vmatprep.subr.mxu0 0.0
    %3374 = vmatpush1.xpose.msra.mxu0 0.0
    %3375 = vmatprep.subr.mxu0 0.0
    %3376 = vmatpush1.xpose.msra.mxu0 0.0
    %3377 = vmatprep.subr.mxu0 0.0
    %3378 = vmatpush1.xpose.msra.mxu0 0.0
    %3379 = vmatprep.subr.mxu0 0.0
    %3380 = vmatpush1.xpose.msra.mxu0 0.0
    %3381 = vmatprep.subr.mxu0 0.0
    %3382 = vmatpush1.xpose.msra.mxu0 0.0
    %3383 = vmatprep.subr.mxu0 0.0
    %3384 = vmatpush1.xpose.msra.mxu0 0.0
    %3385 = vmatprep.subr.mxu0 0.0
    %3386 = vmatpush1.xpose.msra.mxu0 0.0
    %3387 = vmatprep.subr.mxu0 0.0
    %3388 = vmatpush1.xpose.msra.mxu0 0.0
    %3389 = vmatprep.subr.mxu0 0.0
    %3390 = vmatpush1.xpose.msra.mxu0 0.0
    %3391 = vmatprep.subr.mxu0 0.0
    %3392 = vmatpush1.xpose.msra.mxu0 0.0
    %3393 = vmatprep.subr.mxu0 0.0
    %3394 = vmatpush1.xpose.msra.mxu0 0.0
    %3395 = vmatprep.subr.mxu0 0.0
    %3396 = vmatpush1.xpose.msra.mxu0 0.0
    %3397 = vmatprep.subr.mxu0 0.0
    %3398 = vmatpush1.xpose.msra.mxu0 0.0
    %3399 = vmatprep.subr.mxu0 0.0
    %3400 = vmatpush1.xpose.msra.mxu0 0.0
    %3401 = vmatprep.subr.mxu0 0.0
    %3402 = vmatpush1.xpose.msra.mxu0 0.0
    %3403 = vmatprep.subr.mxu0 0.0
    %3404 = vmatpush1.xpose.msra.mxu0 0.0
    %3405 = vmatprep.subr.mxu0 0.0
    %3406 = vmatpush1.xpose.msra.mxu0 0.0
    %3407 = vmatprep.subr.mxu0 0.0
    %3408 = vmatpush1.xpose.msra.mxu0 0.0
    %3409 = vmatprep.subr.mxu0 0.0
    %3410 = vmatpush1.xpose.msra.mxu0 0.0
    %3411 = vmatprep.subr.mxu0 0.0
    %3412 = vmatpush1.xpose.msra.mxu0 0.0
    %3413 = vmatprep.subr.mxu0 0.0
    %3414 = vmatpush1.xpose.msra.mxu0 0.0
    %3415 = vmatprep.subr.mxu0 0.0
    %3416 = vmatpush1.xpose.msra.mxu0 0.0
    %3417 = vmatprep.subr.mxu0 0.0
    %3418 = vmatpush1.xpose.msra.mxu0 0.0
    %3419 = vmatprep.subr.mxu0 0.0
    %3420 = vmatpush1.xpose.msra.mxu0 0.0
    %3421 = vmatprep.mubr.f32.mxu0 0.0
    %3422 = vmatmul.mubr.f32.gmra.mrb[0].mxu0 %v3351
    %v3423 = vpop.f32.mrb[0].mxu0
    %v3424 = vadd.f32 0.0, %v3423
    %v3425 = vpop.f32.mrb[0].mxu0
    %3426 = vdwg.mxu0
    %3427 = vrot.lane.b32.xlu0 %v2763, 64
    %v3428 = vpop.permute.xlu0 %3427
    %3429 = vrot.lane.b32.xlu0 %v2764, 64
    %v3430 = vpop.permute.xlu0 %3429
    %v3433 = vsel %vm314, %v3428, 0.0
    %3434 = vadd.xlane.f32.xlu0 %v3433
    %v3435 = vpop.xlane.xlu0 %3434
    %v3436 = vsel %vm314, %v3430, 0.0
    %3437 = vadd.xlane.f32.xlu0 %v3436
    %v3438 = vpop.xlane.xlu0 %3437
    %3439 = vrot.lane.b32.xlu0 %v2777, 64
    %v3440 = vpop.permute.xlu0 %3439
    %3441 = vrot.lane.b32.xlu0 %v2778, 64
    %v3442 = vpop.permute.xlu0 %3441
    %3443 = vrot.lane.b32.xlu0 %v2779, 64
    %v3444 = vpop.permute.xlu0 %3443
    %3445 = vrot.lane.b32.xlu0 %v2780, 64
    %v3446 = vpop.permute.xlu0 %3445
    %v3451 = vsel %vm314, %v3440, 0.0
    %3452 = vadd.xlane.f32.xlu0 %v3451
    %v3453 = vpop.xlane.xlu0 %3452
    %v3454 = vsel %vm314, %v3442, 0.0
    %3455 = vadd.xlane.f32.xlu0 %v3454
    %v3456 = vpop.xlane.xlu0 %3455
    %v3457 = vsel %vm314, %v3444, 0.0
    %3458 = vadd.xlane.f32.xlu0 %v3457
    %v3459 = vpop.xlane.xlu0 %3458
    %v3460 = vsel %vm314, %v3446, 0.0
    %3461 = vadd.xlane.f32.xlu0 %v3460
    %v3462 = vpop.xlane.xlu0 %3461
    %3463 = vrot.lane.b32.xlu0 %v2793, 64
    %v3464 = vpop.permute.xlu0 %3463
    %3465 = vrot.lane.b32.xlu0 %v2794, 64
    %v3466 = vpop.permute.xlu0 %3465
    %v3469 = vsel %vm314, %v3464, 0.0
    %3470 = vadd.xlane.f32.xlu0 %v3469
    %v3471 = vpop.xlane.xlu0 %3470
    %v3472 = vsel %vm314, %v3466, 0.0
    %3473 = vadd.xlane.f32.xlu0 %v3472
    %v3474 = vpop.xlane.xlu0 %3473
    %v3475 = vmul.f32 %v3453, %v304
    %v3476 = vmul.f32 %v3456, %v305
    %v3477 = vmul.f32 %v3459, %v306
    %v3478 = vmul.f32 %v3462, %v307
    %v3479 = vmul.f32 %v312, %v3471
    %v3480 = vmul.f32 %v313, %v3474
    %3481 = vmatprep.subr.mxu0 0.0
    %3482 = vmatpush1.msra.mxu0 %v3475
    %3483 = vmatprep.subr.mxu0 0.0
    %3484 = vmatpush1.msra.mxu0 %v3476
    %3485 = vmatprep.subr.mxu0 0.0
    %3486 = vmatpush1.msra.mxu0 %v3477
    %3487 = vmatprep.subr.mxu0 0.0
    %3488 = vmatpush1.msra.mxu0 %v3478
    %3489 = vmatprep.subr.mxu0 0.0
    %3490 = vmatpush1.msra.mxu0 0.0
    %3491 = vmatprep.subr.mxu0 0.0
    %3492 = vmatpush1.msra.mxu0 0.0
    %3493 = vmatprep.subr.mxu0 0.0
    %3494 = vmatpush1.msra.mxu0 0.0
    %3495 = vmatprep.subr.mxu0 0.0
    %3496 = vmatpush1.msra.mxu0 0.0
    %3497 = vmatprep.subr.mxu0 0.0
    %3498 = vmatpush1.msra.mxu0 0.0
    %3499 = vmatprep.subr.mxu0 0.0
    %3500 = vmatpush1.msra.mxu0 0.0
    %3501 = vmatprep.subr.mxu0 0.0
    %3502 = vmatpush1.msra.mxu0 0.0
    %3503 = vmatprep.subr.mxu0 0.0
    %3504 = vmatpush1.msra.mxu0 0.0
    %3505 = vmatprep.subr.mxu0 0.0
    %3506 = vmatpush1.msra.mxu0 0.0
    %3507 = vmatprep.subr.mxu0 0.0
    %3508 = vmatpush1.msra.mxu0 0.0
    %3509 = vmatprep.subr.mxu0 0.0
    %3510 = vmatpush1.msra.mxu0 0.0
    %3511 = vmatprep.subr.mxu0 0.0
    %3512 = vmatpush1.msra.mxu0 0.0
    %3513 = vmatprep.subr.mxu0 0.0
    %3514 = vmatpush1.msra.mxu0 0.0
    %3515 = vmatprep.subr.mxu0 0.0
    %3516 = vmatpush1.msra.mxu0 0.0
    %3517 = vmatprep.subr.mxu0 0.0
    %3518 = vmatpush1.msra.mxu0 0.0
    %3519 = vmatprep.subr.mxu0 0.0
    %3520 = vmatpush1.msra.mxu0 0.0
    %3521 = vmatprep.subr.mxu0 0.0
    %3522 = vmatpush1.msra.mxu0 0.0
    %3523 = vmatprep.subr.mxu0 0.0
    %3524 = vmatpush1.msra.mxu0 0.0
    %3525 = vmatprep.subr.mxu0 0.0
    %3526 = vmatpush1.msra.mxu0 0.0
    %3527 = vmatprep.subr.mxu0 0.0
    %3528 = vmatpush1.msra.mxu0 0.0
    %3529 = vmatprep.subr.mxu0 0.0
    %3530 = vmatpush1.msra.mxu0 0.0
    %3531 = vmatprep.subr.mxu0 0.0
    %3532 = vmatpush1.msra.mxu0 0.0
    %3533 = vmatprep.subr.mxu0 0.0
    %3534 = vmatpush1.msra.mxu0 0.0
    %3535 = vmatprep.subr.mxu0 0.0
    %3536 = vmatpush1.msra.mxu0 0.0
    %3537 = vmatprep.subr.mxu0 0.0
    %3538 = vmatpush1.msra.mxu0 0.0
    %3539 = vmatprep.subr.mxu0 0.0
    %3540 = vmatpush1.msra.mxu0 0.0
    %3541 = vmatprep.subr.mxu0 0.0
    %3542 = vmatpush1.msra.mxu0 0.0
    %3543 = vmatprep.subr.mxu0 0.0
    %3544 = vmatpush1.msra.mxu0 0.0
    %3545 = vmatprep.mubr.f32.mxu0 0.0
    %3546 = vmatmul.mubr.f32.gmra.mrb[0].mxu0 %v316
    %v3547 = vpop.f32.mrb[0].mxu0
    %v3548 = vadd.f32 %v3479, %v3547
    %v3549 = vpop.f32.mrb[0].mxu0
    %3550 = vmatprep.mubr.f32.mxu0 0.0
    %3551 = vmatmul.mubr.f32.gmra.mrb[0].mxu0 %v319
    %v3552 = vpop.f32.mrb[0].mxu0
    %v3553 = vadd.f32 %v3480, %v3552
    %v3554 = vpop.f32.mrb[0].mxu0
    %3555 = vdwg.mxu0
    %v3556 = vadd.f32 %v3548, %v3435
    %v3557 = vadd.f32 %v3553, %v3438
    %v3558 = vlaneseq
    %v3559 = vshrl.u32 %v3558, 7
    %v3560 = vsub.s32 0, %v3559
    %v3561 = vrot.slane %v3424, %v3560
    %v3562 = vadd.f32 %v3556, %v3561
    %v3563 = vadd.f32 %v3557, %v3561
    %vm3564 = vcmp.gt.f32.partialorder %v3562, 0.0
    %vm3565 = vcmp.gt.f32.partialorder %v3563, 0.0
    %v3566 = vmul.f32 %v3562, 0.2
    %v3567 = vmul.f32 %v3563, 0.2
    %v3568 = vsel %vm3564, %v3562, %v3566
    %v3569 = vsel %vm3565, %v3563, %v3567
    %v3570 = vsel %vm1239, %v3568, -1e+30
    %v3571 = vsel %vm1240, %v3569, -1e+30
    %v3572 = vsel %vm1243, %v3570, -inf
    %3573 = vmax.xlane.f32.xlu0 %v3572
    %v3574 = vpop.xlane.xlu0 %3573
    %v3575 = vsel %vm1243, %v3571, -inf
    %3576 = vmax.xlane.f32.xlu0 %v3575
    %v3577 = vpop.xlane.xlu0 %3576
    %v3578 = vsub.f32 %v3570, %v3574
    %v3579 = vsub.f32 %v3571, %v3577
    %v3580 = vmul.f32 %v3578, 1.442695
    %v3581 = vpow.pop %v3580
    %v3582 = vmul.f32 %v3579, 1.442695
    %v3583 = vpow.pop %v3582
    %v3584 = vsel %vm1243, %v3581, 0.0
    %3585 = vadd.xlane.f32.xlu0 %v3584
    %v3586 = vpop.xlane.xlu0 %3585
    %v3587 = vsel %vm1243, %v3583, 0.0
    %3588 = vadd.xlane.f32.xlu0 %v3587
    %v3589 = vpop.xlane.xlu0 %3588
    %v3590 = vrcp.pop %v3586
    %v3591 = vrcp.pop %v3589
    %v3592 = vmul.f32 %v3581, %v3590
    %v3593 = vmul.f32 %v3583, %v3591
    %v3597 = vsel %vm1243, %v3592, 0
    %v3600 = vsel %vm1243, %v3593, 0
    %3602 = vmatprep.subr.mxu0 0.0
    %3603 = vmatpush1.msra.mxu0 %v3348
    %3604 = vmatprep.subr.mxu0 0.0
    %3605 = vmatpush1.msra.mxu0 %v3350
    %3606 = vmatprep.subr.mxu0 0.0
    %3607 = vmatpush1.msra.mxu0 0.0
    %3608 = vmatprep.subr.mxu0 0.0
    %3609 = vmatpush1.msra.mxu0 0.0
    %3610 = vmatprep.subr.mxu0 0.0
    %3611 = vmatpush1.msra.mxu0 0.0
    %3612 = vmatprep.subr.mxu0 0.0
    %3613 = vmatpush1.msra.mxu0 0.0
    %3614 = vmatprep.subr.mxu0 0.0
    %3615 = vmatpush1.msra.mxu0 0.0
    %3616 = vmatprep.subr.mxu0 0.0
    %3617 = vmatpush1.msra.mxu0 0.0
    %3618 = vmatprep.subr.mxu0 0.0
    %3619 = vmatpush1.msra.mxu0 0.0
    %3620 = vmatprep.subr.mxu0 0.0
    %3621 = vmatpush1.msra.mxu0 0.0
    %3622 = vmatprep.subr.mxu0 0.0
    %3623 = vmatpush1.msra.mxu0 0.0
    %3624 = vmatprep.subr.mxu0 0.0
    %3625 = vmatpush1.msra.mxu0 0.0
    %3626 = vmatprep.subr.mxu0 0.0
    %3627 = vmatpush1.msra.mxu0 0.0
    %3628 = vmatprep.subr.mxu0 0.0
    %3629 = vmatpush1.msra.mxu0 0.0
    %3630 = vmatprep.subr.mxu0 0.0
    %3631 = vmatpush1.msra.mxu0 0.0
    %3632 = vmatprep.subr.mxu0 0.0
    %3633 = vmatpush1.msra.mxu0 0.0
    %3634 = vmatprep.subr.mxu0 0.0
    %3635 = vmatpush1.msra.mxu0 0.0
    %3636 = vmatprep.subr.mxu0 0.0
    %3637 = vmatpush1.msra.mxu0 0.0
    %3638 = vmatprep.subr.mxu0 0.0
    %3639 = vmatpush1.msra.mxu0 0.0
    %3640 = vmatprep.subr.mxu0 0.0
    %3641 = vmatpush1.msra.mxu0 0.0
    %3642 = vmatprep.subr.mxu0 0.0
    %3643 = vmatpush1.msra.mxu0 0.0
    %3644 = vmatprep.subr.mxu0 0.0
    %3645 = vmatpush1.msra.mxu0 0.0
    %3646 = vmatprep.subr.mxu0 0.0
    %3647 = vmatpush1.msra.mxu0 0.0
    %3648 = vmatprep.subr.mxu0 0.0
    %3649 = vmatpush1.msra.mxu0 0.0
    %3650 = vmatprep.subr.mxu0 0.0
    %3651 = vmatpush1.msra.mxu0 0.0
    %3652 = vmatprep.subr.mxu0 0.0
    %3653 = vmatpush1.msra.mxu0 0.0
    %3654 = vmatprep.subr.mxu0 0.0
    %3655 = vmatpush1.msra.mxu0 0.0
    %3656 = vmatprep.subr.mxu0 0.0
    %3657 = vmatpush1.msra.mxu0 0.0
    %3658 = vmatprep.subr.mxu0 0.0
    %3659 = vmatpush1.msra.mxu0 0.0
    %3660 = vmatprep.subr.mxu0 0.0
    %3661 = vmatpush1.msra.mxu0 0.0
    %3662 = vmatprep.subr.mxu0 0.0
    %3663 = vmatpush1.msra.mxu0 0.0
    %3664 = vmatprep.subr.mxu0 0.0
    %3665 = vmatpush1.msra.mxu0 0.0
    %3666 = vmatprep.mubr.f32.mxu0 0.0
    %3667 = vmatmul.mubr.f32.gmra.mrb[0].mxu0 %v3597
    %v3668 = vpop.f32.mrb[0].mxu0
    %v3669 = vadd.f32 0.0, %v3668
    %v3670 = vpop.f32.mrb[0].mxu0
    %3671 = vmatprep.mubr.f32.mxu0 0.0
    %3672 = vmatmul.mubr.f32.gmra.mrb[0].mxu0 %v3600
    %v3673 = vpop.f32.mrb[0].mxu0
    %v3674 = vadd.f32 0.0, %v3673
    %v3675 = vpop.f32.mrb[0].mxu0
    %3676 = vdwg.mxu0
    %v3677 = vadd.f32 %v3337, %v3669
    %v3678 = vadd.f32 %v3342, %v3674
    %3679 = vrot.lane.b32.xlu0 %v2923, 32
    %v3680 = vpop.permute.xlu0 %3679
    %3681 = vrot.lane.b32.xlu0 %v2499, 32
    %v3682 = vpop.permute.xlu0 %3681
    %3683 = vrot.lane.b32.xlu0 %v2504, 32
    %v3684 = vpop.permute.xlu0 %3683
    %v3685 = vsel %vm314, %v3680, 0
    %v3687 = vsel %vm314, %v3682, 0
    %v3689 = vsel %vm314, %v3684, 0
    %3691 = vmatprep.subr.mxu0 0.0
    %3692 = vmatpush1.xpose.msra.mxu0 %v3687
    %3693 = vmatprep.subr.mxu0 0.0
    %3694 = vmatpush1.xpose.msra.mxu0 %v3689
    %3695 = vmatprep.subr.mxu0 0.0
    %3696 = vmatpush1.xpose.msra.mxu0 0.0
    %3697 = vmatprep.subr.mxu0 0.0
    %3698 = vmatpush1.xpose.msra.mxu0 0.0
    %3699 = vmatprep.subr.mxu0 0.0
    %3700 = vmatpush1.xpose.msra.mxu0 0.0
    %3701 = vmatprep.subr.mxu0 0.0
    %3702 = vmatpush1.xpose.msra.mxu0 0.0
    %3703 = vmatprep.subr.mxu0 0.0
    %3704 = vmatpush1.xpose.msra.mxu0 0.0
    %3705 = vmatprep.subr.mxu0 0.0
    %3706 = vmatpush1.xpose.msra.mxu0 0.0
    %3707 = vmatprep.subr.mxu0 0.0
    %3708 = vmatpush1.xpose.msra.mxu0 0.0
    %3709 = vmatprep.subr.mxu0 0.0
    %3710 = vmatpush1.xpose.msra.mxu0 0.0
    %3711 = vmatprep.subr.mxu0 0.0
    %3712 = vmatpush1.xpose.msra.mxu0 0.0
    %3713 = vmatprep.subr.mxu0 0.0
    %3714 = vmatpush1.xpose.msra.mxu0 0.0
    %3715 = vmatprep.subr.mxu0 0.0
    %3716 = vmatpush1.xpose.msra.mxu0 0.0
    %3717 = vmatprep.subr.mxu0 0.0
    %3718 = vmatpush1.xpose.msra.mxu0 0.0
    %3719 = vmatprep.subr.mxu0 0.0
    %3720 = vmatpush1.xpose.msra.mxu0 0.0
    %3721 = vmatprep.subr.mxu0 0.0
    %3722 = vmatpush1.xpose.msra.mxu0 0.0
    %3723 = vmatprep.subr.mxu0 0.0
    %3724 = vmatpush1.xpose.msra.mxu0 0.0
    %3725 = vmatprep.subr.mxu0 0.0
    %3726 = vmatpush1.xpose.msra.mxu0 0.0
    %3727 = vmatprep.subr.mxu0 0.0
    %3728 = vmatpush1.xpose.msra.mxu0 0.0
    %3729 = vmatprep.subr.mxu0 0.0
    %3730 = vmatpush1.xpose.msra.mxu0 0.0
    %3731 = vmatprep.subr.mxu0 0.0
    %3732 = vmatpush1.xpose.msra.mxu0 0.0
    %3733 = vmatprep.subr.mxu0 0.0
    %3734 = vmatpush1.xpose.msra.mxu0 0.0
    %3735 = vmatprep.subr.mxu0 0.0
    %3736 = vmatpush1.xpose.msra.mxu0 0.0
    %3737 = vmatprep.subr.mxu0 0.0
    %3738 = vmatpush1.xpose.msra.mxu0 0.0
    %3739 = vmatprep.subr.mxu0 0.0
    %3740 = vmatpush1.xpose.msra.mxu0 0.0
    %3741 = vmatprep.subr.mxu0 0.0
    %3742 = vmatpush1.xpose.msra.mxu0 0.0
    %3743 = vmatprep.subr.mxu0 0.0
    %3744 = vmatpush1.xpose.msra.mxu0 0.0
    %3745 = vmatprep.subr.mxu0 0.0
    %3746 = vmatpush1.xpose.msra.mxu0 0.0
    %3747 = vmatprep.subr.mxu0 0.0
    %3748 = vmatpush1.xpose.msra.mxu0 0.0
    %3749 = vmatprep.subr.mxu0 0.0
    %3750 = vmatpush1.xpose.msra.mxu0 0.0
    %3751 = vmatprep.subr.mxu0 0.0
    %3752 = vmatpush1.xpose.msra.mxu0 0.0
    %3753 = vmatprep.subr.mxu0 0.0
    %3754 = vmatpush1.xpose.msra.mxu0 0.0
    %3755 = vmatprep.mubr.f32.mxu0 0.0
    %3756 = vmatmul.mubr.f32.gmra.mrb[0].mxu0 %v3685
    %v3757 = vpop.f32.mrb[0].mxu0
    %v3758 = vadd.f32 0.0, %v3757
    %v3759 = vpop.f32.mrb[0].mxu0
    %3760 = vdwg.mxu0
    %3761 = vrot.lane.b32.xlu0 %v2763, 32
    %v3762 = vpop.permute.xlu0 %3761
    %3763 = vrot.lane.b32.xlu0 %v2764, 32
    %v3764 = vpop.permute.xlu0 %3763
    %v3767 = vsel %vm314, %v3762, 0.0
    %3768 = vadd.xlane.f32.xlu0 %v3767
    %v3769 = vpop.xlane.xlu0 %3768
    %v3770 = vsel %vm314, %v3764, 0.0
    %3771 = vadd.xlane.f32.xlu0 %v3770
    %v3772 = vpop.xlane.xlu0 %3771
    %3773 = vrot.lane.b32.xlu0 %v2777, 32
    %v3774 = vpop.permute.xlu0 %3773
    %3775 = vrot.lane.b32.xlu0 %v2778, 32
    %v3776 = vpop.permute.xlu0 %3775
    %3777 = vrot.lane.b32.xlu0 %v2779, 32
    %v3778 = vpop.permute.xlu0 %3777
    %3779 = vrot.lane.b32.xlu0 %v2780, 32
    %v3780 = vpop.permute.xlu0 %3779
    %v3785 = vsel %vm314, %v3774, 0.0
    %3786 = vadd.xlane.f32.xlu0 %v3785
    %v3787 = vpop.xlane.xlu0 %3786
    %v3788 = vsel %vm314, %v3776, 0.0
    %3789 = vadd.xlane.f32.xlu0 %v3788
    %v3790 = vpop.xlane.xlu0 %3789
    %v3791 = vsel %vm314, %v3778, 0.0
    %3792 = vadd.xlane.f32.xlu0 %v3791
    %v3793 = vpop.xlane.xlu0 %3792
    %v3794 = vsel %vm314, %v3780, 0.0
    %3795 = vadd.xlane.f32.xlu0 %v3794
    %v3796 = vpop.xlane.xlu0 %3795
    %3797 = vrot.lane.b32.xlu0 %v2793, 32
    %v3798 = vpop.permute.xlu0 %3797
    %3799 = vrot.lane.b32.xlu0 %v2794, 32
    %v3800 = vpop.permute.xlu0 %3799
    %v3803 = vsel %vm314, %v3798, 0.0
    %3804 = vadd.xlane.f32.xlu0 %v3803
    %v3805 = vpop.xlane.xlu0 %3804
    %v3806 = vsel %vm314, %v3800, 0.0
    %3807 = vadd.xlane.f32.xlu0 %v3806
    %v3808 = vpop.xlane.xlu0 %3807
    %v3809 = vmul.f32 %v3787, %v304
    %v3810 = vmul.f32 %v3790, %v305
    %v3811 = vmul.f32 %v3793, %v306
    %v3812 = vmul.f32 %v3796, %v307
    %v3813 = vmul.f32 %v312, %v3805
    %v3814 = vmul.f32 %v313, %v3808
    %3815 = vmatprep.subr.mxu0 0.0
    %3816 = vmatpush1.msra.mxu0 %v3809
    %3817 = vmatprep.subr.mxu0 0.0
    %3818 = vmatpush1.msra.mxu0 %v3810
    %3819 = vmatprep.subr.mxu0 0.0
    %3820 = vmatpush1.msra.mxu0 %v3811
    %3821 = vmatprep.subr.mxu0 0.0
    %3822 = vmatpush1.msra.mxu0 %v3812
    %3823 = vmatprep.subr.mxu0 0.0
    %3824 = vmatpush1.msra.mxu0 0.0
    %3825 = vmatprep.subr.mxu0 0.0
    %3826 = vmatpush1.msra.mxu0 0.0
    %3827 = vmatprep.subr.mxu0 0.0
    %3828 = vmatpush1.msra.mxu0 0.0
    %3829 = vmatprep.subr.mxu0 0.0
    %3830 = vmatpush1.msra.mxu0 0.0
    %3831 = vmatprep.subr.mxu0 0.0
    %3832 = vmatpush1.msra.mxu0 0.0
    %3833 = vmatprep.subr.mxu0 0.0
    %3834 = vmatpush1.msra.mxu0 0.0
    %3835 = vmatprep.subr.mxu0 0.0
    %3836 = vmatpush1.msra.mxu0 0.0
    %3837 = vmatprep.subr.mxu0 0.0
    %3838 = vmatpush1.msra.mxu0 0.0
    %3839 = vmatprep.subr.mxu0 0.0
    %3840 = vmatpush1.msra.mxu0 0.0
    %3841 = vmatprep.subr.mxu0 0.0
    %3842 = vmatpush1.msra.mxu0 0.0
    %3843 = vmatprep.subr.mxu0 0.0
    %3844 = vmatpush1.msra.mxu0 0.0
    %3845 = vmatprep.subr.mxu0 0.0
    %3846 = vmatpush1.msra.mxu0 0.0
    %3847 = vmatprep.subr.mxu0 0.0
    %3848 = vmatpush1.msra.mxu0 0.0
    %3849 = vmatprep.subr.mxu0 0.0
    %3850 = vmatpush1.msra.mxu0 0.0
    %3851 = vmatprep.subr.mxu0 0.0
    %3852 = vmatpush1.msra.mxu0 0.0
    %3853 = vmatprep.subr.mxu0 0.0
    %3854 = vmatpush1.msra.mxu0 0.0
    %3855 = vmatprep.subr.mxu0 0.0
    %3856 = vmatpush1.msra.mxu0 0.0
    %3857 = vmatprep.subr.mxu0 0.0
    %3858 = vmatpush1.msra.mxu0 0.0
    %3859 = vmatprep.subr.mxu0 0.0
    %3860 = vmatpush1.msra.mxu0 0.0
    %3861 = vmatprep.subr.mxu0 0.0
    %3862 = vmatpush1.msra.mxu0 0.0
    %3863 = vmatprep.subr.mxu0 0.0
    %3864 = vmatpush1.msra.mxu0 0.0
    %3865 = vmatprep.subr.mxu0 0.0
    %3866 = vmatpush1.msra.mxu0 0.0
    %3867 = vmatprep.subr.mxu0 0.0
    %3868 = vmatpush1.msra.mxu0 0.0
    %3869 = vmatprep.subr.mxu0 0.0
    %3870 = vmatpush1.msra.mxu0 0.0
    %3871 = vmatprep.subr.mxu0 0.0
    %3872 = vmatpush1.msra.mxu0 0.0
    %3873 = vmatprep.subr.mxu0 0.0
    %3874 = vmatpush1.msra.mxu0 0.0
    %3875 = vmatprep.subr.mxu0 0.0
    %3876 = vmatpush1.msra.mxu0 0.0
    %3877 = vmatprep.subr.mxu0 0.0
    %3878 = vmatpush1.msra.mxu0 0.0
    %3879 = vmatprep.mubr.f32.mxu0 0.0
    %3880 = vmatmul.mubr.f32.gmra.mrb[0].mxu0 %v316
    %v3881 = vpop.f32.mrb[0].mxu0
    %v3882 = vadd.f32 %v3813, %v3881
    %v3883 = vpop.f32.mrb[0].mxu0
    %3884 = vmatprep.mubr.f32.mxu0 0.0
    %3885 = vmatmul.mubr.f32.gmra.mrb[0].mxu0 %v319
    %v3886 = vpop.f32.mrb[0].mxu0
    %v3887 = vadd.f32 %v3814, %v3886
    %v3888 = vpop.f32.mrb[0].mxu0
    %3889 = vdwg.mxu0
    %v3890 = vadd.f32 %v3882, %v3769
    %v3891 = vadd.f32 %v3887, %v3772
    %v3892 = vlaneseq
    %v3893 = vshrl.u32 %v3892, 7
    %v3894 = vsub.s32 0, %v3893
    %v3895 = vrot.slane %v3758, %v3894
    %v3896 = vadd.f32 %v3890, %v3895
    %v3897 = vadd.f32 %v3891, %v3895
    %vm3898 = vcmp.gt.f32.partialorder %v3896, 0.0
    %vm3899 = vcmp.gt.f32.partialorder %v3897, 0.0
    %v3900 = vmul.f32 %v3896, 0.2
    %v3901 = vmul.f32 %v3897, 0.2
    %v3902 = vsel %vm3898, %v3896, %v3900
    %v3903 = vsel %vm3899, %v3897, %v3901
    %v3904 = vsel %vm1239, %v3902, -1e+30
    %v3905 = vsel %vm1240, %v3903, -1e+30
    %v3906 = vsel %vm1243, %v3904, -inf
    %3907 = vmax.xlane.f32.xlu0 %v3906
    %v3908 = vpop.xlane.xlu0 %3907
    %v3909 = vsel %vm1243, %v3905, -inf
    %3910 = vmax.xlane.f32.xlu0 %v3909
    %v3911 = vpop.xlane.xlu0 %3910
    %v3912 = vsub.f32 %v3904, %v3908
    %v3913 = vsub.f32 %v3905, %v3911
    %v3914 = vmul.f32 %v3912, 1.442695
    %v3915 = vpow.pop %v3914
    %v3916 = vmul.f32 %v3913, 1.442695
    %v3917 = vpow.pop %v3916
    %v3918 = vsel %vm1243, %v3915, 0.0
    %3919 = vadd.xlane.f32.xlu0 %v3918
    %v3920 = vpop.xlane.xlu0 %3919
    %v3921 = vsel %vm1243, %v3917, 0.0
    %3922 = vadd.xlane.f32.xlu0 %v3921
    %v3923 = vpop.xlane.xlu0 %3922
    %v3924 = vrcp.pop %v3920
    %v3925 = vrcp.pop %v3923
    %v3926 = vmul.f32 %v3915, %v3924
    %v3927 = vmul.f32 %v3917, %v3925
    %v3931 = vsel %vm1243, %v3926, 0
    %v3934 = vsel %vm1243, %v3927, 0
    %3936 = vmatprep.subr.mxu0 0.0
    %3937 = vmatpush1.msra.mxu0 %v3682
    %3938 = vmatprep.subr.mxu0 0.0
    %3939 = vmatpush1.msra.mxu0 %v3684
    %3940 = vmatprep.subr.mxu0 0.0
    %3941 = vmatpush1.msra.mxu0 0.0
    %3942 = vmatprep.subr.mxu0 0.0
    %3943 = vmatpush1.msra.mxu0 0.0
    %3944 = vmatprep.subr.mxu0 0.0
    %3945 = vmatpush1.msra.mxu0 0.0
    %3946 = vmatprep.subr.mxu0 0.0
    %3947 = vmatpush1.msra.mxu0 0.0
    %3948 = vmatprep.subr.mxu0 0.0
    %3949 = vmatpush1.msra.mxu0 0.0
    %3950 = vmatprep.subr.mxu0 0.0
    %3951 = vmatpush1.msra.mxu0 0.0
    %3952 = vmatprep.subr.mxu0 0.0
    %3953 = vmatpush1.msra.mxu0 0.0
    %3954 = vmatprep.subr.mxu0 0.0
    %3955 = vmatpush1.msra.mxu0 0.0
    %3956 = vmatprep.subr.mxu0 0.0
    %3957 = vmatpush1.msra.mxu0 0.0
    %3958 = vmatprep.subr.mxu0 0.0
    %3959 = vmatpush1.msra.mxu0 0.0
    %3960 = vmatprep.subr.mxu0 0.0
    %3961 = vmatpush1.msra.mxu0 0.0
    %3962 = vmatprep.subr.mxu0 0.0
    %3963 = vmatpush1.msra.mxu0 0.0
    %3964 = vmatprep.subr.mxu0 0.0
    %3965 = vmatpush1.msra.mxu0 0.0
    %3966 = vmatprep.subr.mxu0 0.0
    %3967 = vmatpush1.msra.mxu0 0.0
    %3968 = vmatprep.subr.mxu0 0.0
    %3969 = vmatpush1.msra.mxu0 0.0
    %3970 = vmatprep.subr.mxu0 0.0
    %3971 = vmatpush1.msra.mxu0 0.0
    %3972 = vmatprep.subr.mxu0 0.0
    %3973 = vmatpush1.msra.mxu0 0.0
    %3974 = vmatprep.subr.mxu0 0.0
    %3975 = vmatpush1.msra.mxu0 0.0
    %3976 = vmatprep.subr.mxu0 0.0
    %3977 = vmatpush1.msra.mxu0 0.0
    %3978 = vmatprep.subr.mxu0 0.0
    %3979 = vmatpush1.msra.mxu0 0.0
    %3980 = vmatprep.subr.mxu0 0.0
    %3981 = vmatpush1.msra.mxu0 0.0
    %3982 = vmatprep.subr.mxu0 0.0
    %3983 = vmatpush1.msra.mxu0 0.0
    %3984 = vmatprep.subr.mxu0 0.0
    %3985 = vmatpush1.msra.mxu0 0.0
    %3986 = vmatprep.subr.mxu0 0.0
    %3987 = vmatpush1.msra.mxu0 0.0
    %3988 = vmatprep.subr.mxu0 0.0
    %3989 = vmatpush1.msra.mxu0 0.0
    %3990 = vmatprep.subr.mxu0 0.0
    %3991 = vmatpush1.msra.mxu0 0.0
    %3992 = vmatprep.subr.mxu0 0.0
    %3993 = vmatpush1.msra.mxu0 0.0
    %3994 = vmatprep.subr.mxu0 0.0
    %3995 = vmatpush1.msra.mxu0 0.0
    %3996 = vmatprep.subr.mxu0 0.0
    %3997 = vmatpush1.msra.mxu0 0.0
    %3998 = vmatprep.subr.mxu0 0.0
    %3999 = vmatpush1.msra.mxu0 0.0
    %4000 = vmatprep.mubr.f32.mxu0 0.0
    %4001 = vmatmul.mubr.f32.gmra.mrb[0].mxu0 %v3931
    %v4002 = vpop.f32.mrb[0].mxu0
    %v4003 = vadd.f32 0.0, %v4002
    %v4004 = vpop.f32.mrb[0].mxu0
    %4005 = vmatprep.mubr.f32.mxu0 0.0
    %4006 = vmatmul.mubr.f32.gmra.mrb[0].mxu0 %v3934
    %v4007 = vpop.f32.mrb[0].mxu0
    %v4008 = vadd.f32 0.0, %v4007
    %v4009 = vpop.f32.mrb[0].mxu0
    %4010 = vdwg.mxu0
    %v4011 = vadd.f32 %v3677, %v4003
    %v4012 = vadd.f32 %v3678, %v4008
    %v4013 = vmul.f32 %v4011, 0.25
    %v4014 = vmul.f32 %v4012, 0.25
    %s4015 = scalar_lea.vmem [#allocation14], 1
    %v4016 = vld [vmem:[%s4015] sm:$0x1]
    %v4018 = vlaneseq
    %v4019 = vshrl.u32 %v4018, 7
    %v4020 = vsub.s32 0, %v4019
    %v4021 = vrot.slane %v4016, %v4020
    %v4023 = vadd.f32 %v4013, %v4021
    %v4024 = vadd.f32 %v4014, %v4021
    %v4025 = vsel %vm314, %v4023, 0.0
    %v4026 = vsel %vm314, %v4024, 0.0
    %v4027 = vadd.f32 %v4025, %v4026
    %v4028 = vrot.slane %v4027, 4
    %v4029 = vadd.f32 %v4027, %v4028
    %v4030 = vrot.slane %v4029, 2
    %v4031 = vadd.f32 %v4029, %v4030
    %v4032 = vrot.slane %v4031, 1
    %v4033 = vadd.f32 %v4031, %v4032
    %v4034 = vmul.f32 %v4033, %v2379
    %v4035 = vsub.f32 %v4023, %v4034
    %v4036 = vsub.f32 %v4024, %v4034
    %v4037 = vmul.f32 %v4035, %v4035
    %v4038 = vmul.f32 %v4036, %v4036
    %v4039 = vsel %vm314, %v4037, 0.0
    %v4040 = vsel %vm314, %v4038, 0.0
    %v4041 = vadd.f32 %v4039, %v4040
    %v4042 = vrot.slane %v4041, 4
    %v4043 = vadd.f32 %v4041, %v4042
    %v4044 = vrot.slane %v4043, 2
    %v4045 = vadd.f32 %v4043, %v4044
    %v4046 = vrot.slane %v4045, 1
    %v4047 = vadd.f32 %v4045, %v4046
    %v4048 = vmul.f32 %v4047, %v2379
    %v4049 = vadd.f32 %v4048, 1e-05
    %v4050 = vrsqrt.pop %v4049
    %v4051 = vmul.f32 %v4035, %v4050
    %v4052 = vmul.f32 %v4036, %v4050
    %s4053 = scalar_lea.vmem [#allocation16], 1
    %v4054 = vld [vmem:[%s4053] sm:$0x1]
    %v4056 = vlaneseq
    %v4057 = vshrl.u32 %v4056, 7
    %v4058 = vsub.s32 0, %v4057
    %v4059 = vrot.slane %v4054, %v4058
    %v4061 = vmul.f32 %v4051, %v4059
    %v4062 = vmul.f32 %v4052, %v4059
    %s4063 = scalar_lea.vmem [#allocation17], 1
    %v4064 = vld [vmem:[%s4063] sm:$0x1]
    %v4066 = vlaneseq
    %v4067 = vshrl.u32 %v4066, 7
    %v4068 = vsub.s32 0, %v4067
    %v4069 = vrot.slane %v4064, %v4068
    %v4071 = vadd.f32 %v4061, %v4069
    %v4072 = vadd.f32 %v4062, %v4069
    %v4073 = vmax.f32 %v4071, 0.0
    %v4074 = vmax.f32 %v4072, 0.0
    %v4075 = vadd.f32 %v4073, %v2419
    %v4076 = vadd.f32 %v4074, %v2420
    %s4077 = scalar_lea.vmem %s8, 64
    %v4078 = vld [vmem:[%s4077] sm:$0xff]
    %v4079 = vld [vmem:[%s4077 + $0x8] sm:$0xff]
    %v4080 = vld [vmem:[%s4077 + $0x10] sm:$0xff]
    %v4081 = vld [vmem:[%s4077 + $0x18] sm:$0xff]
    %v4083 = vsel %vm314, %v4075, 0
    %v4086 = vsel %vm314, %v4076, 0
    %4088 = vmatprep.subr.mxu0 0.0
    %4089 = vmatpush1.msra.mxu0 %v4078
    %4090 = vmatprep.subr.mxu0 0.0
    %4091 = vmatpush1.msra.mxu0 %v4079
    %4092 = vmatprep.subr.mxu0 0.0
    %4093 = vmatpush1.msra.mxu0 %v4080
    %4094 = vmatprep.subr.mxu0 0.0
    %4095 = vmatpush1.msra.mxu0 %v4081
    %4096 = vmatprep.subr.mxu0 0.0
    %4097 = vmatpush1.msra.mxu0 0.0
    %4098 = vmatprep.subr.mxu0 0.0
    %4099 = vmatpush1.msra.mxu0 0.0
    %4100 = vmatprep.subr.mxu0 0.0
    %4101 = vmatpush1.msra.mxu0 0.0
    %4102 = vmatprep.subr.mxu0 0.0
    %4103 = vmatpush1.msra.mxu0 0.0
    %4104 = vmatprep.subr.mxu0 0.0
    %4105 = vmatpush1.msra.mxu0 0.0
    %4106 = vmatprep.subr.mxu0 0.0
    %4107 = vmatpush1.msra.mxu0 0.0
    %4108 = vmatprep.subr.mxu0 0.0
    %4109 = vmatpush1.msra.mxu0 0.0
    %4110 = vmatprep.subr.mxu0 0.0
    %4111 = vmatpush1.msra.mxu0 0.0
    %4112 = vmatprep.subr.mxu0 0.0
    %4113 = vmatpush1.msra.mxu0 0.0
    %4114 = vmatprep.subr.mxu0 0.0
    %4115 = vmatpush1.msra.mxu0 0.0
    %4116 = vmatprep.subr.mxu0 0.0
    %4117 = vmatpush1.msra.mxu0 0.0
    %4118 = vmatprep.subr.mxu0 0.0
    %4119 = vmatpush1.msra.mxu0 0.0
    %4120 = vmatprep.subr.mxu0 0.0
    %4121 = vmatpush1.msra.mxu0 0.0
    %4122 = vmatprep.subr.mxu0 0.0
    %4123 = vmatpush1.msra.mxu0 0.0
    %4124 = vmatprep.subr.mxu0 0.0
    %4125 = vmatpush1.msra.mxu0 0.0
    %4126 = vmatprep.subr.mxu0 0.0
    %4127 = vmatpush1.msra.mxu0 0.0
    %4128 = vmatprep.subr.mxu0 0.0
    %4129 = vmatpush1.msra.mxu0 0.0
    %4130 = vmatprep.subr.mxu0 0.0
    %4131 = vmatpush1.msra.mxu0 0.0
    %4132 = vmatprep.subr.mxu0 0.0
    %4133 = vmatpush1.msra.mxu0 0.0
    %4134 = vmatprep.subr.mxu0 0.0
    %4135 = vmatpush1.msra.mxu0 0.0
    %4136 = vmatprep.subr.mxu0 0.0
    %4137 = vmatpush1.msra.mxu0 0.0
    %4138 = vmatprep.subr.mxu0 0.0
    %4139 = vmatpush1.msra.mxu0 0.0
    %4140 = vmatprep.subr.mxu0 0.0
    %4141 = vmatpush1.msra.mxu0 0.0
    %4142 = vmatprep.subr.mxu0 0.0
    %4143 = vmatpush1.msra.mxu0 0.0
    %4144 = vmatprep.subr.mxu0 0.0
    %4145 = vmatpush1.msra.mxu0 0.0
    %4146 = vmatprep.subr.mxu0 0.0
    %4147 = vmatpush1.msra.mxu0 0.0
    %4148 = vmatprep.subr.mxu0 0.0
    %4149 = vmatpush1.msra.mxu0 0.0
    %4150 = vmatprep.subr.mxu0 0.0
    %4151 = vmatpush1.msra.mxu0 0.0
    %4152 = vmatprep.mubr.f32.mxu0 0.0
    %4153 = vmatmul.mubr.f32.gmra.mrb[0].mxu0 %v4083
    %v4154 = vpop.f32.mrb[0].mxu0
    %v4155 = vadd.f32 0.0, %v4154
    %v4156 = vpop.f32.mrb[0].mxu0
    %4157 = vmatprep.mubr.f32.mxu0 0.0
    %4158 = vmatmul.mubr.f32.gmra.mrb[0].mxu0 %v4086
    %v4159 = vpop.f32.mrb[0].mxu0
    %v4160 = vadd.f32 0.0, %v4159
    %v4161 = vpop.f32.mrb[0].mxu0
    %4162 = vdwg.mxu0
    %s4163 = scalar_lea.vmem %s9, 64
    %v4164 = vld [vmem:[%s4163] sm:$0xff]
    %v4165 = vld [vmem:[%s4163 + $0x8] sm:$0xff]
    %v4166 = vld [vmem:[%s4163 + $0x10] sm:$0xff]
    %v4167 = vld [vmem:[%s4163 + $0x18] sm:$0xff]
    %4168 = vmatprep.subr.mxu0 0.0
    %4169 = vmatpush1.msra.mxu0 %v4164
    %4170 = vmatprep.subr.mxu0 0.0
    %4171 = vmatpush1.msra.mxu0 %v4165
    %4172 = vmatprep.subr.mxu0 0.0
    %4173 = vmatpush1.msra.mxu0 %v4166
    %4174 = vmatprep.subr.mxu0 0.0
    %4175 = vmatpush1.msra.mxu0 %v4167
    %4176 = vmatprep.subr.mxu0 0.0
    %4177 = vmatpush1.msra.mxu0 0.0
    %4178 = vmatprep.subr.mxu0 0.0
    %4179 = vmatpush1.msra.mxu0 0.0
    %4180 = vmatprep.subr.mxu0 0.0
    %4181 = vmatpush1.msra.mxu0 0.0
    %4182 = vmatprep.subr.mxu0 0.0
    %4183 = vmatpush1.msra.mxu0 0.0
    %4184 = vmatprep.subr.mxu0 0.0
    %4185 = vmatpush1.msra.mxu0 0.0
    %4186 = vmatprep.subr.mxu0 0.0
    %4187 = vmatpush1.msra.mxu0 0.0
    %4188 = vmatprep.subr.mxu0 0.0
    %4189 = vmatpush1.msra.mxu0 0.0
    %4190 = vmatprep.subr.mxu0 0.0
    %4191 = vmatpush1.msra.mxu0 0.0
    %4192 = vmatprep.subr.mxu0 0.0
    %4193 = vmatpush1.msra.mxu0 0.0
    %4194 = vmatprep.subr.mxu0 0.0
    %4195 = vmatpush1.msra.mxu0 0.0
    %4196 = vmatprep.subr.mxu0 0.0
    %4197 = vmatpush1.msra.mxu0 0.0
    %4198 = vmatprep.subr.mxu0 0.0
    %4199 = vmatpush1.msra.mxu0 0.0
    %4200 = vmatprep.subr.mxu0 0.0
    %4201 = vmatpush1.msra.mxu0 0.0
    %4202 = vmatprep.subr.mxu0 0.0
    %4203 = vmatpush1.msra.mxu0 0.0
    %4204 = vmatprep.subr.mxu0 0.0
    %4205 = vmatpush1.msra.mxu0 0.0
    %4206 = vmatprep.subr.mxu0 0.0
    %4207 = vmatpush1.msra.mxu0 0.0
    %4208 = vmatprep.subr.mxu0 0.0
    %4209 = vmatpush1.msra.mxu0 0.0
    %4210 = vmatprep.subr.mxu0 0.0
    %4211 = vmatpush1.msra.mxu0 0.0
    %4212 = vmatprep.subr.mxu0 0.0
    %4213 = vmatpush1.msra.mxu0 0.0
    %4214 = vmatprep.subr.mxu0 0.0
    %4215 = vmatpush1.msra.mxu0 0.0
    %4216 = vmatprep.subr.mxu0 0.0
    %4217 = vmatpush1.msra.mxu0 0.0
    %4218 = vmatprep.subr.mxu0 0.0
    %4219 = vmatpush1.msra.mxu0 0.0
    %4220 = vmatprep.subr.mxu0 0.0
    %4221 = vmatpush1.msra.mxu0 0.0
    %4222 = vmatprep.subr.mxu0 0.0
    %4223 = vmatpush1.msra.mxu0 0.0
    %4224 = vmatprep.subr.mxu0 0.0
    %4225 = vmatpush1.msra.mxu0 0.0
    %4226 = vmatprep.subr.mxu0 0.0
    %4227 = vmatpush1.msra.mxu0 0.0
    %4228 = vmatprep.subr.mxu0 0.0
    %4229 = vmatpush1.msra.mxu0 0.0
    %4230 = vmatprep.subr.mxu0 0.0
    %4231 = vmatpush1.msra.mxu0 0.0
    %4232 = vmatprep.mubr.f32.mxu0 0.0
    %4233 = vmatmul.mubr.f32.gmra.mrb[0].mxu0 %v841
    %v4234 = vpop.f32.mrb[0].mxu0
    %v4235 = vadd.f32 0.0, %v4234
    %v4236 = vpop.f32.mrb[0].mxu0
    %4237 = vmatprep.mubr.f32.mxu0 0.0
    %4238 = vmatmul.mubr.f32.gmra.mrb[0].mxu0 %v844
    %v4239 = vpop.f32.mrb[0].mxu0
    %v4240 = vadd.f32 0.0, %v4239
    %v4241 = vpop.f32.mrb[0].mxu0
    %4242 = vmatprep.mubr.f32.mxu0 0.0
    %4243 = vmatmul.mubr.f32.gmra.mrb[0].mxu0 %v847
    %v4244 = vpop.f32.mrb[0].mxu0
    %v4245 = vadd.f32 0.0, %v4244
    %v4246 = vpop.f32.mrb[0].mxu0
    %4247 = vmatprep.mubr.f32.mxu0 0.0
    %4248 = vmatmul.mubr.f32.gmra.mrb[0].mxu0 %v850
    %v4249 = vpop.f32.mrb[0].mxu0
    %v4250 = vadd.f32 0.0, %v4249
    %v4251 = vpop.f32.mrb[0].mxu0
    %4252 = vdwg.mxu0
    %4253 = vmatprep.subr.mxu0 0.0
    %4254 = vmatpush1.msra.mxu0 %v4164
    %4255 = vmatprep.subr.mxu0 0.0
    %4256 = vmatpush1.msra.mxu0 %v4165
    %4257 = vmatprep.subr.mxu0 0.0
    %4258 = vmatpush1.msra.mxu0 %v4166
    %4259 = vmatprep.subr.mxu0 0.0
    %4260 = vmatpush1.msra.mxu0 %v4167
    %4261 = vmatprep.subr.mxu0 0.0
    %4262 = vmatpush1.msra.mxu0 0.0
    %4263 = vmatprep.subr.mxu0 0.0
    %4264 = vmatpush1.msra.mxu0 0.0
    %4265 = vmatprep.subr.mxu0 0.0
    %4266 = vmatpush1.msra.mxu0 0.0
    %4267 = vmatprep.subr.mxu0 0.0
    %4268 = vmatpush1.msra.mxu0 0.0
    %4269 = vmatprep.subr.mxu0 0.0
    %4270 = vmatpush1.msra.mxu0 0.0
    %4271 = vmatprep.subr.mxu0 0.0
    %4272 = vmatpush1.msra.mxu0 0.0
    %4273 = vmatprep.subr.mxu0 0.0
    %4274 = vmatpush1.msra.mxu0 0.0
    %4275 = vmatprep.subr.mxu0 0.0
    %4276 = vmatpush1.msra.mxu0 0.0
    %4277 = vmatprep.subr.mxu0 0.0
    %4278 = vmatpush1.msra.mxu0 0.0
    %4279 = vmatprep.subr.mxu0 0.0
    %4280 = vmatpush1.msra.mxu0 0.0
    %4281 = vmatprep.subr.mxu0 0.0
    %4282 = vmatpush1.msra.mxu0 0.0
    %4283 = vmatprep.subr.mxu0 0.0
    %4284 = vmatpush1.msra.mxu0 0.0
    %4285 = vmatprep.subr.mxu0 0.0
    %4286 = vmatpush1.msra.mxu0 0.0
    %4287 = vmatprep.subr.mxu0 0.0
    %4288 = vmatpush1.msra.mxu0 0.0
    %4289 = vmatprep.subr.mxu0 0.0
    %4290 = vmatpush1.msra.mxu0 0.0
    %4291 = vmatprep.subr.mxu0 0.0
    %4292 = vmatpush1.msra.mxu0 0.0
    %4293 = vmatprep.subr.mxu0 0.0
    %4294 = vmatpush1.msra.mxu0 0.0
    %4295 = vmatprep.subr.mxu0 0.0
    %4296 = vmatpush1.msra.mxu0 0.0
    %4297 = vmatprep.subr.mxu0 0.0
    %4298 = vmatpush1.msra.mxu0 0.0
    %4299 = vmatprep.subr.mxu0 0.0
    %4300 = vmatpush1.msra.mxu0 0.0
    %4301 = vmatprep.subr.mxu0 0.0
    %4302 = vmatpush1.msra.mxu0 0.0
    %4303 = vmatprep.subr.mxu0 0.0
    %4304 = vmatpush1.msra.mxu0 0.0
    %4305 = vmatprep.subr.mxu0 0.0
    %4306 = vmatpush1.msra.mxu0 0.0
    %4307 = vmatprep.subr.mxu0 0.0
    %4308 = vmatpush1.msra.mxu0 0.0
    %4309 = vmatprep.subr.mxu0 0.0
    %4310 = vmatpush1.msra.mxu0 0.0
    %4311 = vmatprep.subr.mxu0 0.0
    %4312 = vmatpush1.msra.mxu0 0.0
    %4313 = vmatprep.subr.mxu0 0.0
    %4314 = vmatpush1.msra.mxu0 0.0
    %4315 = vmatprep.subr.mxu0 0.0
    %4316 = vmatpush1.msra.mxu0 0.0
    %4317 = vmatprep.mubr.f32.mxu0 0.0
    %4318 = vmatmul.mubr.f32.gmra.mrb[0].mxu0 %v938
    %v4319 = vpop.f32.mrb[0].mxu0
    %v4320 = vadd.f32 0.0, %v4319
    %v4321 = vpop.f32.mrb[0].mxu0
    %4322 = vmatprep.mubr.f32.mxu0 0.0
    %4323 = vmatmul.mubr.f32.gmra.mrb[0].mxu0 %v941
    %v4324 = vpop.f32.mrb[0].mxu0
    %v4325 = vadd.f32 0.0, %v4324
    %v4326 = vpop.f32.mrb[0].mxu0
    %4327 = vdwg.mxu0
    %s4328 = scalar_lea.vmem [#allocation10], 2
    %v4329 = vld [vmem:[%s4328] sm:$0x1]
    %s4330 = scalar_lea.vmem [#allocation11], 2
    %v4331 = vld [vmem:[%s4330] sm:$0x1]
    %s4332 = scalar_lea.vmem [#allocation13], 2
    %v4333 = vld [vmem:[%s4332] sm:$0x1]
    %v4335 = vsel %vm314, %v4329, 0
    %v4338 = vsel %vm314, %v4155, 0
    %v4341 = vsel %vm314, %v4160, 0
    %4343 = vmatprep.subr.mxu0 0.0
    %4344 = vmatpush1.xpose.msra.mxu0 %v4338
    %4345 = vmatprep.subr.mxu0 0.0
    %4346 = vmatpush1.xpose.msra.mxu0 %v4341
    %4347 = vmatprep.subr.mxu0 0.0
    %4348 = vmatpush1.xpose.msra.mxu0 0.0
    %4349 = vmatprep.subr.mxu0 0.0
    %4350 = vmatpush1.xpose.msra.mxu0 0.0
    %4351 = vmatprep.subr.mxu0 0.0
    %4352 = vmatpush1.xpose.msra.mxu0 0.0
    %4353 = vmatprep.subr.mxu0 0.0
    %4354 = vmatpush1.xpose.msra.mxu0 0.0
    %4355 = vmatprep.subr.mxu0 0.0
    %4356 = vmatpush1.xpose.msra.mxu0 0.0
    %4357 = vmatprep.subr.mxu0 0.0
    %4358 = vmatpush1.xpose.msra.mxu0 0.0
    %4359 = vmatprep.subr.mxu0 0.0
    %4360 = vmatpush1.xpose.msra.mxu0 0.0
    %4361 = vmatprep.subr.mxu0 0.0
    %4362 = vmatpush1.xpose.msra.mxu0 0.0
    %4363 = vmatprep.subr.mxu0 0.0
    %4364 = vmatpush1.xpose.msra.mxu0 0.0
    %4365 = vmatprep.subr.mxu0 0.0
    %4366 = vmatpush1.xpose.msra.mxu0 0.0
    %4367 = vmatprep.subr.mxu0 0.0
    %4368 = vmatpush1.xpose.msra.mxu0 0.0
    %4369 = vmatprep.subr.mxu0 0.0
    %4370 = vmatpush1.xpose.msra.mxu0 0.0
    %4371 = vmatprep.subr.mxu0 0.0
    %4372 = vmatpush1.xpose.msra.mxu0 0.0
    %4373 = vmatprep.subr.mxu0 0.0
    %4374 = vmatpush1.xpose.msra.mxu0 0.0
    %4375 = vmatprep.subr.mxu0 0.0
    %4376 = vmatpush1.xpose.msra.mxu0 0.0
    %4377 = vmatprep.subr.mxu0 0.0
    %4378 = vmatpush1.xpose.msra.mxu0 0.0
    %4379 = vmatprep.subr.mxu0 0.0
    %4380 = vmatpush1.xpose.msra.mxu0 0.0
    %4381 = vmatprep.subr.mxu0 0.0
    %4382 = vmatpush1.xpose.msra.mxu0 0.0
    %4383 = vmatprep.subr.mxu0 0.0
    %4384 = vmatpush1.xpose.msra.mxu0 0.0
    %4385 = vmatprep.subr.mxu0 0.0
    %4386 = vmatpush1.xpose.msra.mxu0 0.0
    %4387 = vmatprep.subr.mxu0 0.0
    %4388 = vmatpush1.xpose.msra.mxu0 0.0
    %4389 = vmatprep.subr.mxu0 0.0
    %4390 = vmatpush1.xpose.msra.mxu0 0.0
    %4391 = vmatprep.subr.mxu0 0.0
    %4392 = vmatpush1.xpose.msra.mxu0 0.0
    %4393 = vmatprep.subr.mxu0 0.0
    %4394 = vmatpush1.xpose.msra.mxu0 0.0
    %4395 = vmatprep.subr.mxu0 0.0
    %4396 = vmatpush1.xpose.msra.mxu0 0.0
    %4397 = vmatprep.subr.mxu0 0.0
    %4398 = vmatpush1.xpose.msra.mxu0 0.0
    %4399 = vmatprep.subr.mxu0 0.0
    %4400 = vmatpush1.xpose.msra.mxu0 0.0
    %4401 = vmatprep.subr.mxu0 0.0
    %4402 = vmatpush1.xpose.msra.mxu0 0.0
    %4403 = vmatprep.subr.mxu0 0.0
    %4404 = vmatpush1.xpose.msra.mxu0 0.0
    %4405 = vmatprep.subr.mxu0 0.0
    %4406 = vmatpush1.xpose.msra.mxu0 0.0
    %4407 = vmatprep.mubr.f32.mxu0 0.0
    %4408 = vmatmul.mubr.f32.gmra.mrb[0].mxu0 %v4335
    %v4409 = vpop.f32.mrb[0].mxu0
    %v4410 = vadd.f32 0.0, %v4409
    %v4411 = vpop.f32.mrb[0].mxu0
    %4412 = vdwg.mxu0
    %v4414 = vlaneseq
    %v4415 = vshrl.u32 %v4414, 7
    %v4416 = vsub.s32 0, %v4415
    %v4417 = vrot.slane %v4331, %v4416
    %v4419 = vmul.f32 %v4155, %v4417
    %v4420 = vmul.f32 %v4160, %v4417
    %v4421 = vsel %vm314, %v4419, 0.0
    %4422 = vadd.xlane.f32.xlu0 %v4421
    %v4423 = vpop.xlane.xlu0 %4422
    %v4424 = vsel %vm314, %v4420, 0.0
    %4425 = vadd.xlane.f32.xlu0 %v4424
    %v4426 = vpop.xlane.xlu0 %4425
    %v4428 = vlaneseq
    %v4429 = vshrl.u32 %v4428, 7
    %v4430 = vsub.s32 0, %v4429
    %v4431 = vrot.slane %v4333, %v4430
    %v4433 = vmul.f32 %v4235, %v4431
    %v4434 = vmul.f32 %v4240, %v4431
    %v4435 = vmul.f32 %v4245, %v4431
    %v4436 = vmul.f32 %v4250, %v4431
    %v4437 = vsel %vm314, %v4433, 0.0
    %4438 = vadd.xlane.f32.xlu0 %v4437
    %v4439 = vpop.xlane.xlu0 %4438
    %v4440 = vsel %vm314, %v4434, 0.0
    %4441 = vadd.xlane.f32.xlu0 %v4440
    %v4442 = vpop.xlane.xlu0 %4441
    %v4443 = vsel %vm314, %v4435, 0.0
    %4444 = vadd.xlane.f32.xlu0 %v4443
    %v4445 = vpop.xlane.xlu0 %4444
    %v4446 = vsel %vm314, %v4436, 0.0
    %4447 = vadd.xlane.f32.xlu0 %v4446
    %v4448 = vpop.xlane.xlu0 %4447
    %v4449 = vmul.f32 %v4320, %v4431
    %v4450 = vmul.f32 %v4325, %v4431
    %v4451 = vsel %vm314, %v4449, 0.0
    %4452 = vadd.xlane.f32.xlu0 %v4451
    %v4453 = vpop.xlane.xlu0 %4452
    %v4454 = vsel %vm314, %v4450, 0.0
    %4455 = vadd.xlane.f32.xlu0 %v4454
    %v4456 = vpop.xlane.xlu0 %4455
    %v4457 = vmul.f32 %v4439, %v304
    %v4458 = vmul.f32 %v4442, %v305
    %v4459 = vmul.f32 %v4445, %v306
    %v4460 = vmul.f32 %v4448, %v307
    %v4461 = vmul.f32 %v312, %v4453
    %v4462 = vmul.f32 %v313, %v4456
    %4463 = vmatprep.subr.mxu0 0.0
    %4464 = vmatpush1.msra.mxu0 %v4457
    %4465 = vmatprep.subr.mxu0 0.0
    %4466 = vmatpush1.msra.mxu0 %v4458
    %4467 = vmatprep.subr.mxu0 0.0
    %4468 = vmatpush1.msra.mxu0 %v4459
    %4469 = vmatprep.subr.mxu0 0.0
    %4470 = vmatpush1.msra.mxu0 %v4460
    %4471 = vmatprep.subr.mxu0 0.0
    %4472 = vmatpush1.msra.mxu0 0.0
    %4473 = vmatprep.subr.mxu0 0.0
    %4474 = vmatpush1.msra.mxu0 0.0
    %4475 = vmatprep.subr.mxu0 0.0
    %4476 = vmatpush1.msra.mxu0 0.0
    %4477 = vmatprep.subr.mxu0 0.0
    %4478 = vmatpush1.msra.mxu0 0.0
    %4479 = vmatprep.subr.mxu0 0.0
    %4480 = vmatpush1.msra.mxu0 0.0
    %4481 = vmatprep.subr.mxu0 0.0
    %4482 = vmatpush1.msra.mxu0 0.0
    %4483 = vmatprep.subr.mxu0 0.0
    %4484 = vmatpush1.msra.mxu0 0.0
    %4485 = vmatprep.subr.mxu0 0.0
    %4486 = vmatpush1.msra.mxu0 0.0
    %4487 = vmatprep.subr.mxu0 0.0
    %4488 = vmatpush1.msra.mxu0 0.0
    %4489 = vmatprep.subr.mxu0 0.0
    %4490 = vmatpush1.msra.mxu0 0.0
    %4491 = vmatprep.subr.mxu0 0.0
    %4492 = vmatpush1.msra.mxu0 0.0
    %4493 = vmatprep.subr.mxu0 0.0
    %4494 = vmatpush1.msra.mxu0 0.0
    %4495 = vmatprep.subr.mxu0 0.0
    %4496 = vmatpush1.msra.mxu0 0.0
    %4497 = vmatprep.subr.mxu0 0.0
    %4498 = vmatpush1.msra.mxu0 0.0
    %4499 = vmatprep.subr.mxu0 0.0
    %4500 = vmatpush1.msra.mxu0 0.0
    %4501 = vmatprep.subr.mxu0 0.0
    %4502 = vmatpush1.msra.mxu0 0.0
    %4503 = vmatprep.subr.mxu0 0.0
    %4504 = vmatpush1.msra.mxu0 0.0
    %4505 = vmatprep.subr.mxu0 0.0
    %4506 = vmatpush1.msra.mxu0 0.0
    %4507 = vmatprep.subr.mxu0 0.0
    %4508 = vmatpush1.msra.mxu0 0.0
    %4509 = vmatprep.subr.mxu0 0.0
    %4510 = vmatpush1.msra.mxu0 0.0
    %4511 = vmatprep.subr.mxu0 0.0
    %4512 = vmatpush1.msra.mxu0 0.0
    %4513 = vmatprep.subr.mxu0 0.0
    %4514 = vmatpush1.msra.mxu0 0.0
    %4515 = vmatprep.subr.mxu0 0.0
    %4516 = vmatpush1.msra.mxu0 0.0
    %4517 = vmatprep.subr.mxu0 0.0
    %4518 = vmatpush1.msra.mxu0 0.0
    %4519 = vmatprep.subr.mxu0 0.0
    %4520 = vmatpush1.msra.mxu0 0.0
    %4521 = vmatprep.subr.mxu0 0.0
    %4522 = vmatpush1.msra.mxu0 0.0
    %4523 = vmatprep.subr.mxu0 0.0
    %4524 = vmatpush1.msra.mxu0 0.0
    %4525 = vmatprep.subr.mxu0 0.0
    %4526 = vmatpush1.msra.mxu0 0.0
    %4527 = vmatprep.mubr.f32.mxu0 0.0
    %4528 = vmatmul.mubr.f32.gmra.mrb[0].mxu0 %v316
    %v4529 = vpop.f32.mrb[0].mxu0
    %v4530 = vadd.f32 %v4461, %v4529
    %v4531 = vpop.f32.mrb[0].mxu0
    %4532 = vmatprep.mubr.f32.mxu0 0.0
    %4533 = vmatmul.mubr.f32.gmra.mrb[0].mxu0 %v319
    %v4534 = vpop.f32.mrb[0].mxu0
    %v4535 = vadd.f32 %v4462, %v4534
    %v4536 = vpop.f32.mrb[0].mxu0
    %4537 = vdwg.mxu0
    %v4538 = vadd.f32 %v4530, %v4423
    %v4539 = vadd.f32 %v4535, %v4426
    %v4540 = vlaneseq
    %v4541 = vshrl.u32 %v4540, 7
    %v4542 = vsub.s32 0, %v4541
    %v4543 = vrot.slane %v4410, %v4542
    %v4544 = vadd.f32 %v4538, %v4543
    %v4545 = vadd.f32 %v4539, %v4543
    %vm4546 = vcmp.gt.f32.partialorder %v4544, 0.0
    %vm4547 = vcmp.gt.f32.partialorder %v4545, 0.0
    %v4548 = vmul.f32 %v4544, 0.2
    %v4549 = vmul.f32 %v4545, 0.2
    %v4550 = vsel %vm4546, %v4544, %v4548
    %v4551 = vsel %vm4547, %v4545, %v4549
    %v4552 = vsel %vm1239, %v4550, -1e+30
    %v4553 = vsel %vm1240, %v4551, -1e+30
    %v4554 = vsel %vm1243, %v4552, -inf
    %4555 = vmax.xlane.f32.xlu0 %v4554
    %v4556 = vpop.xlane.xlu0 %4555
    %v4557 = vsel %vm1243, %v4553, -inf
    %4558 = vmax.xlane.f32.xlu0 %v4557
    %v4559 = vpop.xlane.xlu0 %4558
    %v4560 = vsub.f32 %v4552, %v4556
    %v4561 = vsub.f32 %v4553, %v4559
    %v4562 = vmul.f32 %v4560, 1.442695
    %v4563 = vpow.pop %v4562
    %v4564 = vmul.f32 %v4561, 1.442695
    %v4565 = vpow.pop %v4564
    %v4566 = vsel %vm1243, %v4563, 0.0
    %4567 = vadd.xlane.f32.xlu0 %v4566
    %v4568 = vpop.xlane.xlu0 %4567
    %v4569 = vsel %vm1243, %v4565, 0.0
    %4570 = vadd.xlane.f32.xlu0 %v4569
    %v4571 = vpop.xlane.xlu0 %4570
    %v4572 = vrcp.pop %v4568
    %v4573 = vrcp.pop %v4571
    %v4574 = vmul.f32 %v4563, %v4572
    %v4575 = vmul.f32 %v4565, %v4573
    %v4576 = vlaneseq
    %v4577 = vshrl.u32 %v4576, 7
    %v4578 = vsub.s32 0, %v4577
    %v4579 = vrot.slane %v4329, %v4578
    %4580 = vrot.lane.b32.xlu0 %v4579, 96
    %v4581 = vpop.permute.xlu0 %4580
    %4582 = vrot.lane.b32.xlu0 %v4155, 96
    %v4583 = vpop.permute.xlu0 %4582
    %4584 = vrot.lane.b32.xlu0 %v4160, 96
    %v4585 = vpop.permute.xlu0 %4584
    %v4586 = vsel %vm314, %v4581, 0
    %v4588 = vsel %vm314, %v4583, 0
    %v4590 = vsel %vm314, %v4585, 0
    %4592 = vmatprep.subr.mxu0 0.0
    %4593 = vmatpush1.xpose.msra.mxu0 %v4588
    %4594 = vmatprep.subr.mxu0 0.0
    %4595 = vmatpush1.xpose.msra.mxu0 %v4590
    %4596 = vmatprep.subr.mxu0 0.0
    %4597 = vmatpush1.xpose.msra.mxu0 0.0
    %4598 = vmatprep.subr.mxu0 0.0
    %4599 = vmatpush1.xpose.msra.mxu0 0.0
    %4600 = vmatprep.subr.mxu0 0.0
    %4601 = vmatpush1.xpose.msra.mxu0 0.0
    %4602 = vmatprep.subr.mxu0 0.0
    %4603 = vmatpush1.xpose.msra.mxu0 0.0
    %4604 = vmatprep.subr.mxu0 0.0
    %4605 = vmatpush1.xpose.msra.mxu0 0.0
    %4606 = vmatprep.subr.mxu0 0.0
    %4607 = vmatpush1.xpose.msra.mxu0 0.0
    %4608 = vmatprep.subr.mxu0 0.0
    %4609 = vmatpush1.xpose.msra.mxu0 0.0
    %4610 = vmatprep.subr.mxu0 0.0
    %4611 = vmatpush1.xpose.msra.mxu0 0.0
    %4612 = vmatprep.subr.mxu0 0.0
    %4613 = vmatpush1.xpose.msra.mxu0 0.0
    %4614 = vmatprep.subr.mxu0 0.0
    %4615 = vmatpush1.xpose.msra.mxu0 0.0
    %4616 = vmatprep.subr.mxu0 0.0
    %4617 = vmatpush1.xpose.msra.mxu0 0.0
    %4618 = vmatprep.subr.mxu0 0.0
    %4619 = vmatpush1.xpose.msra.mxu0 0.0
    %4620 = vmatprep.subr.mxu0 0.0
    %4621 = vmatpush1.xpose.msra.mxu0 0.0
    %4622 = vmatprep.subr.mxu0 0.0
    %4623 = vmatpush1.xpose.msra.mxu0 0.0
    %4624 = vmatprep.subr.mxu0 0.0
    %4625 = vmatpush1.xpose.msra.mxu0 0.0
    %4626 = vmatprep.subr.mxu0 0.0
    %4627 = vmatpush1.xpose.msra.mxu0 0.0
    %4628 = vmatprep.subr.mxu0 0.0
    %4629 = vmatpush1.xpose.msra.mxu0 0.0
    %4630 = vmatprep.subr.mxu0 0.0
    %4631 = vmatpush1.xpose.msra.mxu0 0.0
    %4632 = vmatprep.subr.mxu0 0.0
    %4633 = vmatpush1.xpose.msra.mxu0 0.0
    %4634 = vmatprep.subr.mxu0 0.0
    %4635 = vmatpush1.xpose.msra.mxu0 0.0
    %4636 = vmatprep.subr.mxu0 0.0
    %4637 = vmatpush1.xpose.msra.mxu0 0.0
    %4638 = vmatprep.subr.mxu0 0.0
    %4639 = vmatpush1.xpose.msra.mxu0 0.0
    %4640 = vmatprep.subr.mxu0 0.0
    %4641 = vmatpush1.xpose.msra.mxu0 0.0
    %4642 = vmatprep.subr.mxu0 0.0
    %4643 = vmatpush1.xpose.msra.mxu0 0.0
    %4644 = vmatprep.subr.mxu0 0.0
    %4645 = vmatpush1.xpose.msra.mxu0 0.0
    %4646 = vmatprep.subr.mxu0 0.0
    %4647 = vmatpush1.xpose.msra.mxu0 0.0
    %4648 = vmatprep.subr.mxu0 0.0
    %4649 = vmatpush1.xpose.msra.mxu0 0.0
    %4650 = vmatprep.subr.mxu0 0.0
    %4651 = vmatpush1.xpose.msra.mxu0 0.0
    %4652 = vmatprep.subr.mxu0 0.0
    %4653 = vmatpush1.xpose.msra.mxu0 0.0
    %4654 = vmatprep.subr.mxu0 0.0
    %4655 = vmatpush1.xpose.msra.mxu0 0.0
    %4656 = vmatprep.mubr.f32.mxu0 0.0
    %4657 = vmatmul.mubr.f32.gmra.mrb[0].mxu0 %v4586
    %v4658 = vpop.f32.mrb[0].mxu0
    %v4659 = vadd.f32 0.0, %v4658
    %v4660 = vpop.f32.mrb[0].mxu0
    %4661 = vdwg.mxu0
    %4664 = vrot.lane.b32.xlu0 %v4419, 96
    %v4665 = vpop.permute.xlu0 %4664
    %4666 = vrot.lane.b32.xlu0 %v4420, 96
    %v4667 = vpop.permute.xlu0 %4666
    %v4670 = vsel %vm314, %v4665, 0.0
    %4671 = vadd.xlane.f32.xlu0 %v4670
    %v4672 = vpop.xlane.xlu0 %4671
    %v4673 = vsel %vm314, %v4667, 0.0
    %4674 = vadd.xlane.f32.xlu0 %v4673
    %v4675 = vpop.xlane.xlu0 %4674
    %4680 = vrot.lane.b32.xlu0 %v4433, 96
    %v4681 = vpop.permute.xlu0 %4680
    %4682 = vrot.lane.b32.xlu0 %v4434, 96
    %v4683 = vpop.permute.xlu0 %4682
    %4684 = vrot.lane.b32.xlu0 %v4435, 96
    %v4685 = vpop.permute.xlu0 %4684
    %4686 = vrot.lane.b32.xlu0 %v4436, 96
    %v4687 = vpop.permute.xlu0 %4686
    %v4692 = vsel %vm314, %v4681, 0.0
    %4693 = vadd.xlane.f32.xlu0 %v4692
    %v4694 = vpop.xlane.xlu0 %4693
    %v4695 = vsel %vm314, %v4683, 0.0
    %4696 = vadd.xlane.f32.xlu0 %v4695
    %v4697 = vpop.xlane.xlu0 %4696
    %v4698 = vsel %vm314, %v4685, 0.0
    %4699 = vadd.xlane.f32.xlu0 %v4698
    %v4700 = vpop.xlane.xlu0 %4699
    %v4701 = vsel %vm314, %v4687, 0.0
    %4702 = vadd.xlane.f32.xlu0 %v4701
    %v4703 = vpop.xlane.xlu0 %4702
    %4706 = vrot.lane.b32.xlu0 %v4449, 96
    %v4707 = vpop.permute.xlu0 %4706
    %4708 = vrot.lane.b32.xlu0 %v4450, 96
    %v4709 = vpop.permute.xlu0 %4708
    %v4712 = vsel %vm314, %v4707, 0.0
    %4713 = vadd.xlane.f32.xlu0 %v4712
    %v4714 = vpop.xlane.xlu0 %4713
    %v4715 = vsel %vm314, %v4709, 0.0
    %4716 = vadd.xlane.f32.xlu0 %v4715
    %v4717 = vpop.xlane.xlu0 %4716
    %v4718 = vmul.f32 %v4694, %v304
    %v4719 = vmul.f32 %v4697, %v305
    %v4720 = vmul.f32 %v4700, %v306
    %v4721 = vmul.f32 %v4703, %v307
    %v4722 = vmul.f32 %v312, %v4714
    %v4723 = vmul.f32 %v313, %v4717
    %4724 = vmatprep.subr.mxu0 0.0
    %4725 = vmatpush1.msra.mxu0 %v4718
    %4726 = vmatprep.subr.mxu0 0.0
    %4727 = vmatpush1.msra.mxu0 %v4719
    %4728 = vmatprep.subr.mxu0 0.0
    %4729 = vmatpush1.msra.mxu0 %v4720
    %4730 = vmatprep.subr.mxu0 0.0
    %4731 = vmatpush1.msra.mxu0 %v4721
    %4732 = vmatprep.subr.mxu0 0.0
    %4733 = vmatpush1.msra.mxu0 0.0
    %4734 = vmatprep.subr.mxu0 0.0
    %4735 = vmatpush1.msra.mxu0 0.0
    %4736 = vmatprep.subr.mxu0 0.0
    %4737 = vmatpush1.msra.mxu0 0.0
    %4738 = vmatprep.subr.mxu0 0.0
    %4739 = vmatpush1.msra.mxu0 0.0
    %4740 = vmatprep.subr.mxu0 0.0
    %4741 = vmatpush1.msra.mxu0 0.0
    %4742 = vmatprep.subr.mxu0 0.0
    %4743 = vmatpush1.msra.mxu0 0.0
    %4744 = vmatprep.subr.mxu0 0.0
    %4745 = vmatpush1.msra.mxu0 0.0
    %4746 = vmatprep.subr.mxu0 0.0
    %4747 = vmatpush1.msra.mxu0 0.0
    %4748 = vmatprep.subr.mxu0 0.0
    %4749 = vmatpush1.msra.mxu0 0.0
    %4750 = vmatprep.subr.mxu0 0.0
    %4751 = vmatpush1.msra.mxu0 0.0
    %4752 = vmatprep.subr.mxu0 0.0
    %4753 = vmatpush1.msra.mxu0 0.0
    %4754 = vmatprep.subr.mxu0 0.0
    %4755 = vmatpush1.msra.mxu0 0.0
    %4756 = vmatprep.subr.mxu0 0.0
    %4757 = vmatpush1.msra.mxu0 0.0
    %4758 = vmatprep.subr.mxu0 0.0
    %4759 = vmatpush1.msra.mxu0 0.0
    %4760 = vmatprep.subr.mxu0 0.0
    %4761 = vmatpush1.msra.mxu0 0.0
    %4762 = vmatprep.subr.mxu0 0.0
    %4763 = vmatpush1.msra.mxu0 0.0
    %4764 = vmatprep.subr.mxu0 0.0
    %4765 = vmatpush1.msra.mxu0 0.0
    %4766 = vmatprep.subr.mxu0 0.0
    %4767 = vmatpush1.msra.mxu0 0.0
    %4768 = vmatprep.subr.mxu0 0.0
    %4769 = vmatpush1.msra.mxu0 0.0
    %4770 = vmatprep.subr.mxu0 0.0
    %4771 = vmatpush1.msra.mxu0 0.0
    %4772 = vmatprep.subr.mxu0 0.0
    %4773 = vmatpush1.msra.mxu0 0.0
    %4774 = vmatprep.subr.mxu0 0.0
    %4775 = vmatpush1.msra.mxu0 0.0
    %4776 = vmatprep.subr.mxu0 0.0
    %4777 = vmatpush1.msra.mxu0 0.0
    %4778 = vmatprep.subr.mxu0 0.0
    %4779 = vmatpush1.msra.mxu0 0.0
    %4780 = vmatprep.subr.mxu0 0.0
    %4781 = vmatpush1.msra.mxu0 0.0
    %4782 = vmatprep.subr.mxu0 0.0
    %4783 = vmatpush1.msra.mxu0 0.0
    %4784 = vmatprep.subr.mxu0 0.0
    %4785 = vmatpush1.msra.mxu0 0.0
    %4786 = vmatprep.subr.mxu0 0.0
    %4787 = vmatpush1.msra.mxu0 0.0
    %4788 = vmatprep.mubr.f32.mxu0 0.0
    %4789 = vmatmul.mubr.f32.gmra.mrb[0].mxu0 %v316
    %v4790 = vpop.f32.mrb[0].mxu0
    %v4791 = vadd.f32 %v4722, %v4790
    %v4792 = vpop.f32.mrb[0].mxu0
    %4793 = vmatprep.mubr.f32.mxu0 0.0
    %4794 = vmatmul.mubr.f32.gmra.mrb[0].mxu0 %v319
    %v4795 = vpop.f32.mrb[0].mxu0
    %v4796 = vadd.f32 %v4723, %v4795
    %v4797 = vpop.f32.mrb[0].mxu0
    %4798 = vdwg.mxu0
    %v4799 = vadd.f32 %v4791, %v4672
    %v4800 = vadd.f32 %v4796, %v4675
    %v4801 = vlaneseq
    %v4802 = vshrl.u32 %v4801, 7
    %v4803 = vsub.s32 0, %v4802
    %v4804 = vrot.slane %v4659, %v4803
    %v4805 = vadd.f32 %v4799, %v4804
    %v4806 = vadd.f32 %v4800, %v4804
    %vm4807 = vcmp.gt.f32.partialorder %v4805, 0.0
    %vm4808 = vcmp.gt.f32.partialorder %v4806, 0.0
    %v4809 = vmul.f32 %v4805, 0.2
    %v4810 = vmul.f32 %v4806, 0.2
    %v4811 = vsel %vm4807, %v4805, %v4809
    %v4812 = vsel %vm4808, %v4806, %v4810
    %v4813 = vsel %vm1239, %v4811, -1e+30
    %v4814 = vsel %vm1240, %v4812, -1e+30
    %v4815 = vsel %vm1243, %v4813, -inf
    %4816 = vmax.xlane.f32.xlu0 %v4815
    %v4817 = vpop.xlane.xlu0 %4816
    %v4818 = vsel %vm1243, %v4814, -inf
    %4819 = vmax.xlane.f32.xlu0 %v4818
    %v4820 = vpop.xlane.xlu0 %4819
    %v4821 = vsub.f32 %v4813, %v4817
    %v4822 = vsub.f32 %v4814, %v4820
    %v4823 = vmul.f32 %v4821, 1.442695
    %v4824 = vpow.pop %v4823
    %v4825 = vmul.f32 %v4822, 1.442695
    %v4826 = vpow.pop %v4825
    %v4827 = vsel %vm1243, %v4824, 0.0
    %4828 = vadd.xlane.f32.xlu0 %v4827
    %v4829 = vpop.xlane.xlu0 %4828
    %v4830 = vsel %vm1243, %v4826, 0.0
    %4831 = vadd.xlane.f32.xlu0 %v4830
    %v4832 = vpop.xlane.xlu0 %4831
    %v4833 = vrcp.pop %v4829
    %v4834 = vrcp.pop %v4832
    %v4835 = vmul.f32 %v4824, %v4833
    %v4836 = vmul.f32 %v4826, %v4834
    %v4840 = vsel %vm1243, %v4835, 0
    %v4843 = vsel %vm1243, %v4836, 0
    %4845 = vmatprep.subr.mxu0 0.0
    %4846 = vmatpush1.msra.mxu0 %v4583
    %4847 = vmatprep.subr.mxu0 0.0
    %4848 = vmatpush1.msra.mxu0 %v4585
    %4849 = vmatprep.subr.mxu0 0.0
    %4850 = vmatpush1.msra.mxu0 0.0
    %4851 = vmatprep.subr.mxu0 0.0
    %4852 = vmatpush1.msra.mxu0 0.0
    %4853 = vmatprep.subr.mxu0 0.0
    %4854 = vmatpush1.msra.mxu0 0.0
    %4855 = vmatprep.subr.mxu0 0.0
    %4856 = vmatpush1.msra.mxu0 0.0
    %4857 = vmatprep.subr.mxu0 0.0
    %4858 = vmatpush1.msra.mxu0 0.0
    %4859 = vmatprep.subr.mxu0 0.0
    %4860 = vmatpush1.msra.mxu0 0.0
    %4861 = vmatprep.subr.mxu0 0.0
    %4862 = vmatpush1.msra.mxu0 0.0
    %4863 = vmatprep.subr.mxu0 0.0
    %4864 = vmatpush1.msra.mxu0 0.0
    %4865 = vmatprep.subr.mxu0 0.0
    %4866 = vmatpush1.msra.mxu0 0.0
    %4867 = vmatprep.subr.mxu0 0.0
    %4868 = vmatpush1.msra.mxu0 0.0
    %4869 = vmatprep.subr.mxu0 0.0
    %4870 = vmatpush1.msra.mxu0 0.0
    %4871 = vmatprep.subr.mxu0 0.0
    %4872 = vmatpush1.msra.mxu0 0.0
    %4873 = vmatprep.subr.mxu0 0.0
    %4874 = vmatpush1.msra.mxu0 0.0
    %4875 = vmatprep.subr.mxu0 0.0
    %4876 = vmatpush1.msra.mxu0 0.0
    %4877 = vmatprep.subr.mxu0 0.0
    %4878 = vmatpush1.msra.mxu0 0.0
    %4879 = vmatprep.subr.mxu0 0.0
    %4880 = vmatpush1.msra.mxu0 0.0
    %4881 = vmatprep.subr.mxu0 0.0
    %4882 = vmatpush1.msra.mxu0 0.0
    %4883 = vmatprep.subr.mxu0 0.0
    %4884 = vmatpush1.msra.mxu0 0.0
    %4885 = vmatprep.subr.mxu0 0.0
    %4886 = vmatpush1.msra.mxu0 0.0
    %4887 = vmatprep.subr.mxu0 0.0
    %4888 = vmatpush1.msra.mxu0 0.0
    %4889 = vmatprep.subr.mxu0 0.0
    %4890 = vmatpush1.msra.mxu0 0.0
    %4891 = vmatprep.subr.mxu0 0.0
    %4892 = vmatpush1.msra.mxu0 0.0
    %4893 = vmatprep.subr.mxu0 0.0
    %4894 = vmatpush1.msra.mxu0 0.0
    %4895 = vmatprep.subr.mxu0 0.0
    %4896 = vmatpush1.msra.mxu0 0.0
    %4897 = vmatprep.subr.mxu0 0.0
    %4898 = vmatpush1.msra.mxu0 0.0
    %4899 = vmatprep.subr.mxu0 0.0
    %4900 = vmatpush1.msra.mxu0 0.0
    %4901 = vmatprep.subr.mxu0 0.0
    %4902 = vmatpush1.msra.mxu0 0.0
    %4903 = vmatprep.subr.mxu0 0.0
    %4904 = vmatpush1.msra.mxu0 0.0
    %4905 = vmatprep.subr.mxu0 0.0
    %4906 = vmatpush1.msra.mxu0 0.0
    %4907 = vmatprep.subr.mxu0 0.0
    %4908 = vmatpush1.msra.mxu0 0.0
    %4909 = vmatprep.mubr.f32.mxu0 0.0
    %4910 = vmatmul.mubr.f32.gmra.mrb[0].mxu0 %v4840
    %v4911 = vpop.f32.mrb[0].mxu0
    %v4912 = vadd.f32 0.0, %v4911
    %v4913 = vpop.f32.mrb[0].mxu0
    %4914 = vmatprep.mubr.f32.mxu0 0.0
    %4915 = vmatmul.mubr.f32.gmra.mrb[0].mxu0 %v4843
    %v4916 = vpop.f32.mrb[0].mxu0
    %v4917 = vadd.f32 0.0, %v4916
    %v4918 = vpop.f32.mrb[0].mxu0
    %4919 = vdwg.mxu0
    %v4921 = vsel %vm1243, %v4574, 0
    %v4924 = vsel %vm1243, %v4575, 0
    %4926 = vmatprep.subr.mxu0 0.0
    %4927 = vmatpush1.msra.mxu0 %v4155
    %4928 = vmatprep.subr.mxu0 0.0
    %4929 = vmatpush1.msra.mxu0 %v4160
    %4930 = vmatprep.subr.mxu0 0.0
    %4931 = vmatpush1.msra.mxu0 0.0
    %4932 = vmatprep.subr.mxu0 0.0
    %4933 = vmatpush1.msra.mxu0 0.0
    %4934 = vmatprep.subr.mxu0 0.0
    %4935 = vmatpush1.msra.mxu0 0.0
    %4936 = vmatprep.subr.mxu0 0.0
    %4937 = vmatpush1.msra.mxu0 0.0
    %4938 = vmatprep.subr.mxu0 0.0
    %4939 = vmatpush1.msra.mxu0 0.0
    %4940 = vmatprep.subr.mxu0 0.0
    %4941 = vmatpush1.msra.mxu0 0.0
    %4942 = vmatprep.subr.mxu0 0.0
    %4943 = vmatpush1.msra.mxu0 0.0
    %4944 = vmatprep.subr.mxu0 0.0
    %4945 = vmatpush1.msra.mxu0 0.0
    %4946 = vmatprep.subr.mxu0 0.0
    %4947 = vmatpush1.msra.mxu0 0.0
    %4948 = vmatprep.subr.mxu0 0.0
    %4949 = vmatpush1.msra.mxu0 0.0
    %4950 = vmatprep.subr.mxu0 0.0
    %4951 = vmatpush1.msra.mxu0 0.0
    %4952 = vmatprep.subr.mxu0 0.0
    %4953 = vmatpush1.msra.mxu0 0.0
    %4954 = vmatprep.subr.mxu0 0.0
    %4955 = vmatpush1.msra.mxu0 0.0
    %4956 = vmatprep.subr.mxu0 0.0
    %4957 = vmatpush1.msra.mxu0 0.0
    %4958 = vmatprep.subr.mxu0 0.0
    %4959 = vmatpush1.msra.mxu0 0.0
    %4960 = vmatprep.subr.mxu0 0.0
    %4961 = vmatpush1.msra.mxu0 0.0
    %4962 = vmatprep.subr.mxu0 0.0
    %4963 = vmatpush1.msra.mxu0 0.0
    %4964 = vmatprep.subr.mxu0 0.0
    %4965 = vmatpush1.msra.mxu0 0.0
    %4966 = vmatprep.subr.mxu0 0.0
    %4967 = vmatpush1.msra.mxu0 0.0
    %4968 = vmatprep.subr.mxu0 0.0
    %4969 = vmatpush1.msra.mxu0 0.0
    %4970 = vmatprep.subr.mxu0 0.0
    %4971 = vmatpush1.msra.mxu0 0.0
    %4972 = vmatprep.subr.mxu0 0.0
    %4973 = vmatpush1.msra.mxu0 0.0
    %4974 = vmatprep.subr.mxu0 0.0
    %4975 = vmatpush1.msra.mxu0 0.0
    %4976 = vmatprep.subr.mxu0 0.0
    %4977 = vmatpush1.msra.mxu0 0.0
    %4978 = vmatprep.subr.mxu0 0.0
    %4979 = vmatpush1.msra.mxu0 0.0
    %4980 = vmatprep.subr.mxu0 0.0
    %4981 = vmatpush1.msra.mxu0 0.0
    %4982 = vmatprep.subr.mxu0 0.0
    %4983 = vmatpush1.msra.mxu0 0.0
    %4984 = vmatprep.subr.mxu0 0.0
    %4985 = vmatpush1.msra.mxu0 0.0
    %4986 = vmatprep.subr.mxu0 0.0
    %4987 = vmatpush1.msra.mxu0 0.0
    %4988 = vmatprep.subr.mxu0 0.0
    %4989 = vmatpush1.msra.mxu0 0.0
    %4990 = vmatprep.mubr.f32.mxu0 0.0
    %4991 = vmatmul.mubr.f32.gmra.mrb[0].mxu0 %v4921
    %v4992 = vpop.f32.mrb[0].mxu0
    %v4993 = vadd.f32 %v4912, %v4992
    %v4994 = vpop.f32.mrb[0].mxu0
    %4995 = vmatprep.mubr.f32.mxu0 0.0
    %4996 = vmatmul.mubr.f32.gmra.mrb[0].mxu0 %v4924
    %v4997 = vpop.f32.mrb[0].mxu0
    %v4998 = vadd.f32 %v4917, %v4997
    %v4999 = vpop.f32.mrb[0].mxu0
    %5000 = vdwg.mxu0
    %5001 = vrot.lane.b32.xlu0 %v4579, 64
    %v5002 = vpop.permute.xlu0 %5001
    %5003 = vrot.lane.b32.xlu0 %v4155, 64
    %v5004 = vpop.permute.xlu0 %5003
    %5005 = vrot.lane.b32.xlu0 %v4160, 64
    %v5006 = vpop.permute.xlu0 %5005
    %v5007 = vsel %vm314, %v5002, 0
    %v5009 = vsel %vm314, %v5004, 0
    %v5011 = vsel %vm314, %v5006, 0
    %5013 = vmatprep.subr.mxu0 0.0
    %5014 = vmatpush1.xpose.msra.mxu0 %v5009
    %5015 = vmatprep.subr.mxu0 0.0
    %5016 = vmatpush1.xpose.msra.mxu0 %v5011
    %5017 = vmatprep.subr.mxu0 0.0
    %5018 = vmatpush1.xpose.msra.mxu0 0.0
    %5019 = vmatprep.subr.mxu0 0.0
    %5020 = vmatpush1.xpose.msra.mxu0 0.0
    %5021 = vmatprep.subr.mxu0 0.0
    %5022 = vmatpush1.xpose.msra.mxu0 0.0
    %5023 = vmatprep.subr.mxu0 0.0
    %5024 = vmatpush1.xpose.msra.mxu0 0.0
    %5025 = vmatprep.subr.mxu0 0.0
    %5026 = vmatpush1.xpose.msra.mxu0 0.0
    %5027 = vmatprep.subr.mxu0 0.0
    %5028 = vmatpush1.xpose.msra.mxu0 0.0
    %5029 = vmatprep.subr.mxu0 0.0
    %5030 = vmatpush1.xpose.msra.mxu0 0.0
    %5031 = vmatprep.subr.mxu0 0.0
    %5032 = vmatpush1.xpose.msra.mxu0 0.0
    %5033 = vmatprep.subr.mxu0 0.0
    %5034 = vmatpush1.xpose.msra.mxu0 0.0
    %5035 = vmatprep.subr.mxu0 0.0
    %5036 = vmatpush1.xpose.msra.mxu0 0.0
    %5037 = vmatprep.subr.mxu0 0.0
    %5038 = vmatpush1.xpose.msra.mxu0 0.0
    %5039 = vmatprep.subr.mxu0 0.0
    %5040 = vmatpush1.xpose.msra.mxu0 0.0
    %5041 = vmatprep.subr.mxu0 0.0
    %5042 = vmatpush1.xpose.msra.mxu0 0.0
    %5043 = vmatprep.subr.mxu0 0.0
    %5044 = vmatpush1.xpose.msra.mxu0 0.0
    %5045 = vmatprep.subr.mxu0 0.0
    %5046 = vmatpush1.xpose.msra.mxu0 0.0
    %5047 = vmatprep.subr.mxu0 0.0
    %5048 = vmatpush1.xpose.msra.mxu0 0.0
    %5049 = vmatprep.subr.mxu0 0.0
    %5050 = vmatpush1.xpose.msra.mxu0 0.0
    %5051 = vmatprep.subr.mxu0 0.0
    %5052 = vmatpush1.xpose.msra.mxu0 0.0
    %5053 = vmatprep.subr.mxu0 0.0
    %5054 = vmatpush1.xpose.msra.mxu0 0.0
    %5055 = vmatprep.subr.mxu0 0.0
    %5056 = vmatpush1.xpose.msra.mxu0 0.0
    %5057 = vmatprep.subr.mxu0 0.0
    %5058 = vmatpush1.xpose.msra.mxu0 0.0
    %5059 = vmatprep.subr.mxu0 0.0
    %5060 = vmatpush1.xpose.msra.mxu0 0.0
    %5061 = vmatprep.subr.mxu0 0.0
    %5062 = vmatpush1.xpose.msra.mxu0 0.0
    %5063 = vmatprep.subr.mxu0 0.0
    %5064 = vmatpush1.xpose.msra.mxu0 0.0
    %5065 = vmatprep.subr.mxu0 0.0
    %5066 = vmatpush1.xpose.msra.mxu0 0.0
    %5067 = vmatprep.subr.mxu0 0.0
    %5068 = vmatpush1.xpose.msra.mxu0 0.0
    %5069 = vmatprep.subr.mxu0 0.0
    %5070 = vmatpush1.xpose.msra.mxu0 0.0
    %5071 = vmatprep.subr.mxu0 0.0
    %5072 = vmatpush1.xpose.msra.mxu0 0.0
    %5073 = vmatprep.subr.mxu0 0.0
    %5074 = vmatpush1.xpose.msra.mxu0 0.0
    %5075 = vmatprep.subr.mxu0 0.0
    %5076 = vmatpush1.xpose.msra.mxu0 0.0
    %5077 = vmatprep.mubr.f32.mxu0 0.0
    %5078 = vmatmul.mubr.f32.gmra.mrb[0].mxu0 %v5007
    %v5079 = vpop.f32.mrb[0].mxu0
    %v5080 = vadd.f32 0.0, %v5079
    %v5081 = vpop.f32.mrb[0].mxu0
    %5082 = vdwg.mxu0
    %5083 = vrot.lane.b32.xlu0 %v4419, 64
    %v5084 = vpop.permute.xlu0 %5083
    %5085 = vrot.lane.b32.xlu0 %v4420, 64
    %v5086 = vpop.permute.xlu0 %5085
    %v5089 = vsel %vm314, %v5084, 0.0
    %5090 = vadd.xlane.f32.xlu0 %v5089
    %v5091 = vpop.xlane.xlu0 %5090
    %v5092 = vsel %vm314, %v5086, 0.0
    %5093 = vadd.xlane.f32.xlu0 %v5092
    %v5094 = vpop.xlane.xlu0 %5093
    %5095 = vrot.lane.b32.xlu0 %v4433, 64
    %v5096 = vpop.permute.xlu0 %5095
    %5097 = vrot.lane.b32.xlu0 %v4434, 64
    %v5098 = vpop.permute.xlu0 %5097
    %5099 = vrot.lane.b32.xlu0 %v4435, 64
    %v5100 = vpop.permute.xlu0 %5099
    %5101 = vrot.lane.b32.xlu0 %v4436, 64
    %v5102 = vpop.permute.xlu0 %5101
    %v5107 = vsel %vm314, %v5096, 0.0
    %5108 = vadd.xlane.f32.xlu0 %v5107
    %v5109 = vpop.xlane.xlu0 %5108
    %v5110 = vsel %vm314, %v5098, 0.0
    %5111 = vadd.xlane.f32.xlu0 %v5110
    %v5112 = vpop.xlane.xlu0 %5111
    %v5113 = vsel %vm314, %v5100, 0.0
    %5114 = vadd.xlane.f32.xlu0 %v5113
    %v5115 = vpop.xlane.xlu0 %5114
    %v5116 = vsel %vm314, %v5102, 0.0
    %5117 = vadd.xlane.f32.xlu0 %v5116
    %v5118 = vpop.xlane.xlu0 %5117
    %5119 = vrot.lane.b32.xlu0 %v4449, 64
    %v5120 = vpop.permute.xlu0 %5119
    %5121 = vrot.lane.b32.xlu0 %v4450, 64
    %v5122 = vpop.permute.xlu0 %5121
    %v5125 = vsel %vm314, %v5120, 0.0
    %5126 = vadd.xlane.f32.xlu0 %v5125
    %v5127 = vpop.xlane.xlu0 %5126
    %v5128 = vsel %vm314, %v5122, 0.0
    %5129 = vadd.xlane.f32.xlu0 %v5128
    %v5130 = vpop.xlane.xlu0 %5129
    %v5131 = vmul.f32 %v5109, %v304
    %v5132 = vmul.f32 %v5112, %v305
    %v5133 = vmul.f32 %v5115, %v306
    %v5134 = vmul.f32 %v5118, %v307
    %v5135 = vmul.f32 %v312, %v5127
    %v5136 = vmul.f32 %v313, %v5130
    %5137 = vmatprep.subr.mxu0 0.0
    %5138 = vmatpush1.msra.mxu0 %v5131
    %5139 = vmatprep.subr.mxu0 0.0
    %5140 = vmatpush1.msra.mxu0 %v5132
    %5141 = vmatprep.subr.mxu0 0.0
    %5142 = vmatpush1.msra.mxu0 %v5133
    %5143 = vmatprep.subr.mxu0 0.0
    %5144 = vmatpush1.msra.mxu0 %v5134
    %5145 = vmatprep.subr.mxu0 0.0
    %5146 = vmatpush1.msra.mxu0 0.0
    %5147 = vmatprep.subr.mxu0 0.0
    %5148 = vmatpush1.msra.mxu0 0.0
    %5149 = vmatprep.subr.mxu0 0.0
    %5150 = vmatpush1.msra.mxu0 0.0
    %5151 = vmatprep.subr.mxu0 0.0
    %5152 = vmatpush1.msra.mxu0 0.0
    %5153 = vmatprep.subr.mxu0 0.0
    %5154 = vmatpush1.msra.mxu0 0.0
    %5155 = vmatprep.subr.mxu0 0.0
    %5156 = vmatpush1.msra.mxu0 0.0
    %5157 = vmatprep.subr.mxu0 0.0
    %5158 = vmatpush1.msra.mxu0 0.0
    %5159 = vmatprep.subr.mxu0 0.0
    %5160 = vmatpush1.msra.mxu0 0.0
    %5161 = vmatprep.subr.mxu0 0.0
    %5162 = vmatpush1.msra.mxu0 0.0
    %5163 = vmatprep.subr.mxu0 0.0
    %5164 = vmatpush1.msra.mxu0 0.0
    %5165 = vmatprep.subr.mxu0 0.0
    %5166 = vmatpush1.msra.mxu0 0.0
    %5167 = vmatprep.subr.mxu0 0.0
    %5168 = vmatpush1.msra.mxu0 0.0
    %5169 = vmatprep.subr.mxu0 0.0
    %5170 = vmatpush1.msra.mxu0 0.0
    %5171 = vmatprep.subr.mxu0 0.0
    %5172 = vmatpush1.msra.mxu0 0.0
    %5173 = vmatprep.subr.mxu0 0.0
    %5174 = vmatpush1.msra.mxu0 0.0
    %5175 = vmatprep.subr.mxu0 0.0
    %5176 = vmatpush1.msra.mxu0 0.0
    %5177 = vmatprep.subr.mxu0 0.0
    %5178 = vmatpush1.msra.mxu0 0.0
    %5179 = vmatprep.subr.mxu0 0.0
    %5180 = vmatpush1.msra.mxu0 0.0
    %5181 = vmatprep.subr.mxu0 0.0
    %5182 = vmatpush1.msra.mxu0 0.0
    %5183 = vmatprep.subr.mxu0 0.0
    %5184 = vmatpush1.msra.mxu0 0.0
    %5185 = vmatprep.subr.mxu0 0.0
    %5186 = vmatpush1.msra.mxu0 0.0
    %5187 = vmatprep.subr.mxu0 0.0
    %5188 = vmatpush1.msra.mxu0 0.0
    %5189 = vmatprep.subr.mxu0 0.0
    %5190 = vmatpush1.msra.mxu0 0.0
    %5191 = vmatprep.subr.mxu0 0.0
    %5192 = vmatpush1.msra.mxu0 0.0
    %5193 = vmatprep.subr.mxu0 0.0
    %5194 = vmatpush1.msra.mxu0 0.0
    %5195 = vmatprep.subr.mxu0 0.0
    %5196 = vmatpush1.msra.mxu0 0.0
    %5197 = vmatprep.subr.mxu0 0.0
    %5198 = vmatpush1.msra.mxu0 0.0
    %5199 = vmatprep.subr.mxu0 0.0
    %5200 = vmatpush1.msra.mxu0 0.0
    %5201 = vmatprep.mubr.f32.mxu0 0.0
    %5202 = vmatmul.mubr.f32.gmra.mrb[0].mxu0 %v316
    %v5203 = vpop.f32.mrb[0].mxu0
    %v5204 = vadd.f32 %v5135, %v5203
    %v5205 = vpop.f32.mrb[0].mxu0
    %5206 = vmatprep.mubr.f32.mxu0 0.0
    %5207 = vmatmul.mubr.f32.gmra.mrb[0].mxu0 %v319
    %v5208 = vpop.f32.mrb[0].mxu0
    %v5209 = vadd.f32 %v5136, %v5208
    %v5210 = vpop.f32.mrb[0].mxu0
    %5211 = vdwg.mxu0
    %v5212 = vadd.f32 %v5204, %v5091
    %v5213 = vadd.f32 %v5209, %v5094
    %v5214 = vlaneseq
    %v5215 = vshrl.u32 %v5214, 7
    %v5216 = vsub.s32 0, %v5215
    %v5217 = vrot.slane %v5080, %v5216
    %v5218 = vadd.f32 %v5212, %v5217
    %v5219 = vadd.f32 %v5213, %v5217
    %vm5220 = vcmp.gt.f32.partialorder %v5218, 0.0
    %vm5221 = vcmp.gt.f32.partialorder %v5219, 0.0
    %v5222 = vmul.f32 %v5218, 0.2
    %v5223 = vmul.f32 %v5219, 0.2
    %v5224 = vsel %vm5220, %v5218, %v5222
    %v5225 = vsel %vm5221, %v5219, %v5223
    %v5226 = vsel %vm1239, %v5224, -1e+30
    %v5227 = vsel %vm1240, %v5225, -1e+30
    %v5228 = vsel %vm1243, %v5226, -inf
    %5229 = vmax.xlane.f32.xlu0 %v5228
    %v5230 = vpop.xlane.xlu0 %5229
    %v5231 = vsel %vm1243, %v5227, -inf
    %5232 = vmax.xlane.f32.xlu0 %v5231
    %v5233 = vpop.xlane.xlu0 %5232
    %v5234 = vsub.f32 %v5226, %v5230
    %v5235 = vsub.f32 %v5227, %v5233
    %v5236 = vmul.f32 %v5234, 1.442695
    %v5237 = vpow.pop %v5236
    %v5238 = vmul.f32 %v5235, 1.442695
    %v5239 = vpow.pop %v5238
    %v5240 = vsel %vm1243, %v5237, 0.0
    %5241 = vadd.xlane.f32.xlu0 %v5240
    %v5242 = vpop.xlane.xlu0 %5241
    %v5243 = vsel %vm1243, %v5239, 0.0
    %5244 = vadd.xlane.f32.xlu0 %v5243
    %v5245 = vpop.xlane.xlu0 %5244
    %v5246 = vrcp.pop %v5242
    %v5247 = vrcp.pop %v5245
    %v5248 = vmul.f32 %v5237, %v5246
    %v5249 = vmul.f32 %v5239, %v5247
    %v5253 = vsel %vm1243, %v5248, 0
    %v5256 = vsel %vm1243, %v5249, 0
    %5258 = vmatprep.subr.mxu0 0.0
    %5259 = vmatpush1.msra.mxu0 %v5004
    %5260 = vmatprep.subr.mxu0 0.0
    %5261 = vmatpush1.msra.mxu0 %v5006
    %5262 = vmatprep.subr.mxu0 0.0
    %5263 = vmatpush1.msra.mxu0 0.0
    %5264 = vmatprep.subr.mxu0 0.0
    %5265 = vmatpush1.msra.mxu0 0.0
    %5266 = vmatprep.subr.mxu0 0.0
    %5267 = vmatpush1.msra.mxu0 0.0
    %5268 = vmatprep.subr.mxu0 0.0
    %5269 = vmatpush1.msra.mxu0 0.0
    %5270 = vmatprep.subr.mxu0 0.0
    %5271 = vmatpush1.msra.mxu0 0.0
    %5272 = vmatprep.subr.mxu0 0.0
    %5273 = vmatpush1.msra.mxu0 0.0
    %5274 = vmatprep.subr.mxu0 0.0
    %5275 = vmatpush1.msra.mxu0 0.0
    %5276 = vmatprep.subr.mxu0 0.0
    %5277 = vmatpush1.msra.mxu0 0.0
    %5278 = vmatprep.subr.mxu0 0.0
    %5279 = vmatpush1.msra.mxu0 0.0
    %5280 = vmatprep.subr.mxu0 0.0
    %5281 = vmatpush1.msra.mxu0 0.0
    %5282 = vmatprep.subr.mxu0 0.0
    %5283 = vmatpush1.msra.mxu0 0.0
    %5284 = vmatprep.subr.mxu0 0.0
    %5285 = vmatpush1.msra.mxu0 0.0
    %5286 = vmatprep.subr.mxu0 0.0
    %5287 = vmatpush1.msra.mxu0 0.0
    %5288 = vmatprep.subr.mxu0 0.0
    %5289 = vmatpush1.msra.mxu0 0.0
    %5290 = vmatprep.subr.mxu0 0.0
    %5291 = vmatpush1.msra.mxu0 0.0
    %5292 = vmatprep.subr.mxu0 0.0
    %5293 = vmatpush1.msra.mxu0 0.0
    %5294 = vmatprep.subr.mxu0 0.0
    %5295 = vmatpush1.msra.mxu0 0.0
    %5296 = vmatprep.subr.mxu0 0.0
    %5297 = vmatpush1.msra.mxu0 0.0
    %5298 = vmatprep.subr.mxu0 0.0
    %5299 = vmatpush1.msra.mxu0 0.0
    %5300 = vmatprep.subr.mxu0 0.0
    %5301 = vmatpush1.msra.mxu0 0.0
    %5302 = vmatprep.subr.mxu0 0.0
    %5303 = vmatpush1.msra.mxu0 0.0
    %5304 = vmatprep.subr.mxu0 0.0
    %5305 = vmatpush1.msra.mxu0 0.0
    %5306 = vmatprep.subr.mxu0 0.0
    %5307 = vmatpush1.msra.mxu0 0.0
    %5308 = vmatprep.subr.mxu0 0.0
    %5309 = vmatpush1.msra.mxu0 0.0
    %5310 = vmatprep.subr.mxu0 0.0
    %5311 = vmatpush1.msra.mxu0 0.0
    %5312 = vmatprep.subr.mxu0 0.0
    %5313 = vmatpush1.msra.mxu0 0.0
    %5314 = vmatprep.subr.mxu0 0.0
    %5315 = vmatpush1.msra.mxu0 0.0
    %5316 = vmatprep.subr.mxu0 0.0
    %5317 = vmatpush1.msra.mxu0 0.0
    %5318 = vmatprep.subr.mxu0 0.0
    %5319 = vmatpush1.msra.mxu0 0.0
    %5320 = vmatprep.subr.mxu0 0.0
    %5321 = vmatpush1.msra.mxu0 0.0
    %5322 = vmatprep.mubr.f32.mxu0 0.0
    %5323 = vmatmul.mubr.f32.gmra.mrb[0].mxu0 %v5253
    %v5324 = vpop.f32.mrb[0].mxu0
    %v5325 = vadd.f32 0.0, %v5324
    %v5326 = vpop.f32.mrb[0].mxu0
    %5327 = vmatprep.mubr.f32.mxu0 0.0
    %5328 = vmatmul.mubr.f32.gmra.mrb[0].mxu0 %v5256
    %v5329 = vpop.f32.mrb[0].mxu0
    %v5330 = vadd.f32 0.0, %v5329
    %v5331 = vpop.f32.mrb[0].mxu0
    %5332 = vdwg.mxu0
    %v5333 = vadd.f32 %v4993, %v5325
    %v5334 = vadd.f32 %v4998, %v5330
    %5335 = vrot.lane.b32.xlu0 %v4579, 32
    %v5336 = vpop.permute.xlu0 %5335
    %5337 = vrot.lane.b32.xlu0 %v4155, 32
    %v5338 = vpop.permute.xlu0 %5337
    %5339 = vrot.lane.b32.xlu0 %v4160, 32
    %v5340 = vpop.permute.xlu0 %5339
    %v5341 = vsel %vm314, %v5336, 0
    %v5343 = vsel %vm314, %v5338, 0
    %v5345 = vsel %vm314, %v5340, 0
    %5347 = vmatprep.subr.mxu0 0.0
    %5348 = vmatpush1.xpose.msra.mxu0 %v5343
    %5349 = vmatprep.subr.mxu0 0.0
    %5350 = vmatpush1.xpose.msra.mxu0 %v5345
    %5351 = vmatprep.subr.mxu0 0.0
    %5352 = vmatpush1.xpose.msra.mxu0 0.0
    %5353 = vmatprep.subr.mxu0 0.0
    %5354 = vmatpush1.xpose.msra.mxu0 0.0
    %5355 = vmatprep.subr.mxu0 0.0
    %5356 = vmatpush1.xpose.msra.mxu0 0.0
    %5357 = vmatprep.subr.mxu0 0.0
    %5358 = vmatpush1.xpose.msra.mxu0 0.0
    %5359 = vmatprep.subr.mxu0 0.0
    %5360 = vmatpush1.xpose.msra.mxu0 0.0
    %5361 = vmatprep.subr.mxu0 0.0
    %5362 = vmatpush1.xpose.msra.mxu0 0.0
    %5363 = vmatprep.subr.mxu0 0.0
    %5364 = vmatpush1.xpose.msra.mxu0 0.0
    %5365 = vmatprep.subr.mxu0 0.0
    %5366 = vmatpush1.xpose.msra.mxu0 0.0
    %5367 = vmatprep.subr.mxu0 0.0
    %5368 = vmatpush1.xpose.msra.mxu0 0.0
    %5369 = vmatprep.subr.mxu0 0.0
    %5370 = vmatpush1.xpose.msra.mxu0 0.0
    %5371 = vmatprep.subr.mxu0 0.0
    %5372 = vmatpush1.xpose.msra.mxu0 0.0
    %5373 = vmatprep.subr.mxu0 0.0
    %5374 = vmatpush1.xpose.msra.mxu0 0.0
    %5375 = vmatprep.subr.mxu0 0.0
    %5376 = vmatpush1.xpose.msra.mxu0 0.0
    %5377 = vmatprep.subr.mxu0 0.0
    %5378 = vmatpush1.xpose.msra.mxu0 0.0
    %5379 = vmatprep.subr.mxu0 0.0
    %5380 = vmatpush1.xpose.msra.mxu0 0.0
    %5381 = vmatprep.subr.mxu0 0.0
    %5382 = vmatpush1.xpose.msra.mxu0 0.0
    %5383 = vmatprep.subr.mxu0 0.0
    %5384 = vmatpush1.xpose.msra.mxu0 0.0
    %5385 = vmatprep.subr.mxu0 0.0
    %5386 = vmatpush1.xpose.msra.mxu0 0.0
    %5387 = vmatprep.subr.mxu0 0.0
    %5388 = vmatpush1.xpose.msra.mxu0 0.0
    %5389 = vmatprep.subr.mxu0 0.0
    %5390 = vmatpush1.xpose.msra.mxu0 0.0
    %5391 = vmatprep.subr.mxu0 0.0
    %5392 = vmatpush1.xpose.msra.mxu0 0.0
    %5393 = vmatprep.subr.mxu0 0.0
    %5394 = vmatpush1.xpose.msra.mxu0 0.0
    %5395 = vmatprep.subr.mxu0 0.0
    %5396 = vmatpush1.xpose.msra.mxu0 0.0
    %5397 = vmatprep.subr.mxu0 0.0
    %5398 = vmatpush1.xpose.msra.mxu0 0.0
    %5399 = vmatprep.subr.mxu0 0.0
    %5400 = vmatpush1.xpose.msra.mxu0 0.0
    %5401 = vmatprep.subr.mxu0 0.0
    %5402 = vmatpush1.xpose.msra.mxu0 0.0
    %5403 = vmatprep.subr.mxu0 0.0
    %5404 = vmatpush1.xpose.msra.mxu0 0.0
    %5405 = vmatprep.subr.mxu0 0.0
    %5406 = vmatpush1.xpose.msra.mxu0 0.0
    %5407 = vmatprep.subr.mxu0 0.0
    %5408 = vmatpush1.xpose.msra.mxu0 0.0
    %5409 = vmatprep.subr.mxu0 0.0
    %5410 = vmatpush1.xpose.msra.mxu0 0.0
    %5411 = vmatprep.mubr.f32.mxu0 0.0
    %5412 = vmatmul.mubr.f32.gmra.mrb[0].mxu0 %v5341
    %v5413 = vpop.f32.mrb[0].mxu0
    %v5414 = vadd.f32 0.0, %v5413
    %v5415 = vpop.f32.mrb[0].mxu0
    %5416 = vdwg.mxu0
    %5417 = vrot.lane.b32.xlu0 %v4419, 32
    %v5418 = vpop.permute.xlu0 %5417
    %5419 = vrot.lane.b32.xlu0 %v4420, 32
    %v5420 = vpop.permute.xlu0 %5419
    %v5423 = vsel %vm314, %v5418, 0.0
    %5424 = vadd.xlane.f32.xlu0 %v5423
    %v5425 = vpop.xlane.xlu0 %5424
    %v5426 = vsel %vm314, %v5420, 0.0
    %5427 = vadd.xlane.f32.xlu0 %v5426
    %v5428 = vpop.xlane.xlu0 %5427
    %5429 = vrot.lane.b32.xlu0 %v4433, 32
    %v5430 = vpop.permute.xlu0 %5429
    %5431 = vrot.lane.b32.xlu0 %v4434, 32
    %v5432 = vpop.permute.xlu0 %5431
    %5433 = vrot.lane.b32.xlu0 %v4435, 32
    %v5434 = vpop.permute.xlu0 %5433
    %5435 = vrot.lane.b32.xlu0 %v4436, 32
    %v5436 = vpop.permute.xlu0 %5435
    %v5441 = vsel %vm314, %v5430, 0.0
    %5442 = vadd.xlane.f32.xlu0 %v5441
    %v5443 = vpop.xlane.xlu0 %5442
    %v5444 = vsel %vm314, %v5432, 0.0
    %5445 = vadd.xlane.f32.xlu0 %v5444
    %v5446 = vpop.xlane.xlu0 %5445
    %v5447 = vsel %vm314, %v5434, 0.0
    %5448 = vadd.xlane.f32.xlu0 %v5447
    %v5449 = vpop.xlane.xlu0 %5448
    %v5450 = vsel %vm314, %v5436, 0.0
    %5451 = vadd.xlane.f32.xlu0 %v5450
    %v5452 = vpop.xlane.xlu0 %5451
    %5453 = vrot.lane.b32.xlu0 %v4449, 32
    %v5454 = vpop.permute.xlu0 %5453
    %5455 = vrot.lane.b32.xlu0 %v4450, 32
    %v5456 = vpop.permute.xlu0 %5455
    %v5459 = vsel %vm314, %v5454, 0.0
    %5460 = vadd.xlane.f32.xlu0 %v5459
    %v5461 = vpop.xlane.xlu0 %5460
    %v5462 = vsel %vm314, %v5456, 0.0
    %5463 = vadd.xlane.f32.xlu0 %v5462
    %v5464 = vpop.xlane.xlu0 %5463
    %v5465 = vmul.f32 %v5443, %v304
    %v5466 = vmul.f32 %v5446, %v305
    %v5467 = vmul.f32 %v5449, %v306
    %v5468 = vmul.f32 %v5452, %v307
    %v5469 = vmul.f32 %v312, %v5461
    %v5470 = vmul.f32 %v313, %v5464
    %5471 = vmatprep.subr.mxu0 0.0
    %5472 = vmatpush1.msra.mxu0 %v5465
    %5473 = vmatprep.subr.mxu0 0.0
    %5474 = vmatpush1.msra.mxu0 %v5466
    %5475 = vmatprep.subr.mxu0 0.0
    %5476 = vmatpush1.msra.mxu0 %v5467
    %5477 = vmatprep.subr.mxu0 0.0
    %5478 = vmatpush1.msra.mxu0 %v5468
    %5479 = vmatprep.subr.mxu0 0.0
    %5480 = vmatpush1.msra.mxu0 0.0
    %5481 = vmatprep.subr.mxu0 0.0
    %5482 = vmatpush1.msra.mxu0 0.0
    %5483 = vmatprep.subr.mxu0 0.0
    %5484 = vmatpush1.msra.mxu0 0.0
    %5485 = vmatprep.subr.mxu0 0.0
    %5486 = vmatpush1.msra.mxu0 0.0
    %5487 = vmatprep.subr.mxu0 0.0
    %5488 = vmatpush1.msra.mxu0 0.0
    %5489 = vmatprep.subr.mxu0 0.0
    %5490 = vmatpush1.msra.mxu0 0.0
    %5491 = vmatprep.subr.mxu0 0.0
    %5492 = vmatpush1.msra.mxu0 0.0
    %5493 = vmatprep.subr.mxu0 0.0
    %5494 = vmatpush1.msra.mxu0 0.0
    %5495 = vmatprep.subr.mxu0 0.0
    %5496 = vmatpush1.msra.mxu0 0.0
    %5497 = vmatprep.subr.mxu0 0.0
    %5498 = vmatpush1.msra.mxu0 0.0
    %5499 = vmatprep.subr.mxu0 0.0
    %5500 = vmatpush1.msra.mxu0 0.0
    %5501 = vmatprep.subr.mxu0 0.0
    %5502 = vmatpush1.msra.mxu0 0.0
    %5503 = vmatprep.subr.mxu0 0.0
    %5504 = vmatpush1.msra.mxu0 0.0
    %5505 = vmatprep.subr.mxu0 0.0
    %5506 = vmatpush1.msra.mxu0 0.0
    %5507 = vmatprep.subr.mxu0 0.0
    %5508 = vmatpush1.msra.mxu0 0.0
    %5509 = vmatprep.subr.mxu0 0.0
    %5510 = vmatpush1.msra.mxu0 0.0
    %5511 = vmatprep.subr.mxu0 0.0
    %5512 = vmatpush1.msra.mxu0 0.0
    %5513 = vmatprep.subr.mxu0 0.0
    %5514 = vmatpush1.msra.mxu0 0.0
    %5515 = vmatprep.subr.mxu0 0.0
    %5516 = vmatpush1.msra.mxu0 0.0
    %5517 = vmatprep.subr.mxu0 0.0
    %5518 = vmatpush1.msra.mxu0 0.0
    %5519 = vmatprep.subr.mxu0 0.0
    %5520 = vmatpush1.msra.mxu0 0.0
    %5521 = vmatprep.subr.mxu0 0.0
    %5522 = vmatpush1.msra.mxu0 0.0
    %5523 = vmatprep.subr.mxu0 0.0
    %5524 = vmatpush1.msra.mxu0 0.0
    %5525 = vmatprep.subr.mxu0 0.0
    %5526 = vmatpush1.msra.mxu0 0.0
    %5527 = vmatprep.subr.mxu0 0.0
    %5528 = vmatpush1.msra.mxu0 0.0
    %5529 = vmatprep.subr.mxu0 0.0
    %5530 = vmatpush1.msra.mxu0 0.0
    %5531 = vmatprep.subr.mxu0 0.0
    %5532 = vmatpush1.msra.mxu0 0.0
    %5533 = vmatprep.subr.mxu0 0.0
    %5534 = vmatpush1.msra.mxu0 0.0
    %5535 = vmatprep.mubr.f32.mxu0 0.0
    %5536 = vmatmul.mubr.f32.gmra.mrb[0].mxu0 %v316
    %v5537 = vpop.f32.mrb[0].mxu0
    %v5538 = vadd.f32 %v5469, %v5537
    %v5539 = vpop.f32.mrb[0].mxu0
    %5540 = vmatprep.mubr.f32.mxu0 0.0
    %5541 = vmatmul.mubr.f32.gmra.mrb[0].mxu0 %v319
    %v5542 = vpop.f32.mrb[0].mxu0
    %v5543 = vadd.f32 %v5470, %v5542
    %v5544 = vpop.f32.mrb[0].mxu0
    %5545 = vdwg.mxu0
    %v5546 = vadd.f32 %v5538, %v5425
    %v5547 = vadd.f32 %v5543, %v5428
    %v5548 = vlaneseq
    %v5549 = vshrl.u32 %v5548, 7
    %v5550 = vsub.s32 0, %v5549
    %v5551 = vrot.slane %v5414, %v5550
    %v5552 = vadd.f32 %v5546, %v5551
    %v5553 = vadd.f32 %v5547, %v5551
    %vm5554 = vcmp.gt.f32.partialorder %v5552, 0.0
    %vm5555 = vcmp.gt.f32.partialorder %v5553, 0.0
    %v5556 = vmul.f32 %v5552, 0.2
    %v5557 = vmul.f32 %v5553, 0.2
    %v5558 = vsel %vm5554, %v5552, %v5556
    %v5559 = vsel %vm5555, %v5553, %v5557
    %v5560 = vsel %vm1239, %v5558, -1e+30
    %v5561 = vsel %vm1240, %v5559, -1e+30
    %v5562 = vsel %vm1243, %v5560, -inf
    %5563 = vmax.xlane.f32.xlu0 %v5562
    %v5564 = vpop.xlane.xlu0 %5563
    %v5565 = vsel %vm1243, %v5561, -inf
    %5566 = vmax.xlane.f32.xlu0 %v5565
    %v5567 = vpop.xlane.xlu0 %5566
    %v5568 = vsub.f32 %v5560, %v5564
    %v5569 = vsub.f32 %v5561, %v5567
    %v5570 = vmul.f32 %v5568, 1.442695
    %v5571 = vpow.pop %v5570
    %v5572 = vmul.f32 %v5569, 1.442695
    %v5573 = vpow.pop %v5572
    %v5574 = vsel %vm1243, %v5571, 0.0
    %5575 = vadd.xlane.f32.xlu0 %v5574
    %v5576 = vpop.xlane.xlu0 %5575
    %v5577 = vsel %vm1243, %v5573, 0.0
    %5578 = vadd.xlane.f32.xlu0 %v5577
    %v5579 = vpop.xlane.xlu0 %5578
    %v5580 = vrcp.pop %v5576
    %v5581 = vrcp.pop %v5579
    %v5582 = vmul.f32 %v5571, %v5580
    %v5583 = vmul.f32 %v5573, %v5581
    %v5587 = vsel %vm1243, %v5582, 0
    %v5590 = vsel %vm1243, %v5583, 0
    %5592 = vmatprep.subr.mxu0 0.0
    %5593 = vmatpush1.msra.mxu0 %v5338
    %5594 = vmatprep.subr.mxu0 0.0
    %5595 = vmatpush1.msra.mxu0 %v5340
    %5596 = vmatprep.subr.mxu0 0.0
    %5597 = vmatpush1.msra.mxu0 0.0
    %5598 = vmatprep.subr.mxu0 0.0
    %5599 = vmatpush1.msra.mxu0 0.0
    %5600 = vmatprep.subr.mxu0 0.0
    %5601 = vmatpush1.msra.mxu0 0.0
    %5602 = vmatprep.subr.mxu0 0.0
    %5603 = vmatpush1.msra.mxu0 0.0
    %5604 = vmatprep.subr.mxu0 0.0
    %5605 = vmatpush1.msra.mxu0 0.0
    %5606 = vmatprep.subr.mxu0 0.0
    %5607 = vmatpush1.msra.mxu0 0.0
    %5608 = vmatprep.subr.mxu0 0.0
    %5609 = vmatpush1.msra.mxu0 0.0
    %5610 = vmatprep.subr.mxu0 0.0
    %5611 = vmatpush1.msra.mxu0 0.0
    %5612 = vmatprep.subr.mxu0 0.0
    %5613 = vmatpush1.msra.mxu0 0.0
    %5614 = vmatprep.subr.mxu0 0.0
    %5615 = vmatpush1.msra.mxu0 0.0
    %5616 = vmatprep.subr.mxu0 0.0
    %5617 = vmatpush1.msra.mxu0 0.0
    %5618 = vmatprep.subr.mxu0 0.0
    %5619 = vmatpush1.msra.mxu0 0.0
    %5620 = vmatprep.subr.mxu0 0.0
    %5621 = vmatpush1.msra.mxu0 0.0
    %5622 = vmatprep.subr.mxu0 0.0
    %5623 = vmatpush1.msra.mxu0 0.0
    %5624 = vmatprep.subr.mxu0 0.0
    %5625 = vmatpush1.msra.mxu0 0.0
    %5626 = vmatprep.subr.mxu0 0.0
    %5627 = vmatpush1.msra.mxu0 0.0
    %5628 = vmatprep.subr.mxu0 0.0
    %5629 = vmatpush1.msra.mxu0 0.0
    %5630 = vmatprep.subr.mxu0 0.0
    %5631 = vmatpush1.msra.mxu0 0.0
    %5632 = vmatprep.subr.mxu0 0.0
    %5633 = vmatpush1.msra.mxu0 0.0
    %5634 = vmatprep.subr.mxu0 0.0
    %5635 = vmatpush1.msra.mxu0 0.0
    %5636 = vmatprep.subr.mxu0 0.0
    %5637 = vmatpush1.msra.mxu0 0.0
    %5638 = vmatprep.subr.mxu0 0.0
    %5639 = vmatpush1.msra.mxu0 0.0
    %5640 = vmatprep.subr.mxu0 0.0
    %5641 = vmatpush1.msra.mxu0 0.0
    %5642 = vmatprep.subr.mxu0 0.0
    %5643 = vmatpush1.msra.mxu0 0.0
    %5644 = vmatprep.subr.mxu0 0.0
    %5645 = vmatpush1.msra.mxu0 0.0
    %5646 = vmatprep.subr.mxu0 0.0
    %5647 = vmatpush1.msra.mxu0 0.0
    %5648 = vmatprep.subr.mxu0 0.0
    %5649 = vmatpush1.msra.mxu0 0.0
    %5650 = vmatprep.subr.mxu0 0.0
    %5651 = vmatpush1.msra.mxu0 0.0
    %5652 = vmatprep.subr.mxu0 0.0
    %5653 = vmatpush1.msra.mxu0 0.0
    %5654 = vmatprep.subr.mxu0 0.0
    %5655 = vmatpush1.msra.mxu0 0.0
    %5656 = vmatprep.mubr.f32.mxu0 0.0
    %5657 = vmatmul.mubr.f32.gmra.mrb[0].mxu0 %v5587
    %v5658 = vpop.f32.mrb[0].mxu0
    %v5659 = vadd.f32 0.0, %v5658
    %v5660 = vpop.f32.mrb[0].mxu0
    %5661 = vmatprep.mubr.f32.mxu0 0.0
    %5662 = vmatmul.mubr.f32.gmra.mrb[0].mxu0 %v5590
    %v5663 = vpop.f32.mrb[0].mxu0
    %v5664 = vadd.f32 0.0, %v5663
    %v5665 = vpop.f32.mrb[0].mxu0
    %5666 = vdwg.mxu0
    %v5667 = vadd.f32 %v5333, %v5659
    %v5668 = vadd.f32 %v5334, %v5664
    %v5669 = vmul.f32 %v5667, 0.25
    %v5670 = vmul.f32 %v5668, 0.25
    %s5671 = scalar_lea.vmem [#allocation14], 2
    %v5672 = vld [vmem:[%s5671] sm:$0x1]
    %v5674 = vlaneseq
    %v5675 = vshrl.u32 %v5674, 7
    %v5676 = vsub.s32 0, %v5675
    %v5677 = vrot.slane %v5672, %v5676
    %v5679 = vadd.f32 %v5669, %v5677
    %v5680 = vadd.f32 %v5670, %v5677
    %v5681 = vsel %vm314, %v5679, 0.0
    %v5682 = vsel %vm314, %v5680, 0.0
    %v5683 = vadd.f32 %v5681, %v5682
    %v5684 = vrot.slane %v5683, 4
    %v5685 = vadd.f32 %v5683, %v5684
    %v5686 = vrot.slane %v5685, 2
    %v5687 = vadd.f32 %v5685, %v5686
    %v5688 = vrot.slane %v5687, 1
    %v5689 = vadd.f32 %v5687, %v5688
    %v5690 = vmul.f32 %v5689, %v2379
    %v5691 = vsub.f32 %v5679, %v5690
    %v5692 = vsub.f32 %v5680, %v5690
    %v5693 = vmul.f32 %v5691, %v5691
    %v5694 = vmul.f32 %v5692, %v5692
    %v5695 = vsel %vm314, %v5693, 0.0
    %v5696 = vsel %vm314, %v5694, 0.0
    %v5697 = vadd.f32 %v5695, %v5696
    %v5698 = vrot.slane %v5697, 4
    %v5699 = vadd.f32 %v5697, %v5698
    %v5700 = vrot.slane %v5699, 2
    %v5701 = vadd.f32 %v5699, %v5700
    %v5702 = vrot.slane %v5701, 1
    %v5703 = vadd.f32 %v5701, %v5702
    %v5704 = vmul.f32 %v5703, %v2379
    %v5705 = vadd.f32 %v5704, 1e-05
    %v5706 = vrsqrt.pop %v5705
    %v5707 = vmul.f32 %v5691, %v5706
    %v5708 = vmul.f32 %v5692, %v5706
    %s5709 = scalar_lea.vmem [#allocation16], 2
    %v5710 = vld [vmem:[%s5709] sm:$0x1]
    %v5712 = vlaneseq
    %v5713 = vshrl.u32 %v5712, 7
    %v5714 = vsub.s32 0, %v5713
    %v5715 = vrot.slane %v5710, %v5714
    %v5717 = vmul.f32 %v5707, %v5715
    %v5718 = vmul.f32 %v5708, %v5715
    %s5719 = scalar_lea.vmem [#allocation17], 2
    %v5720 = vld [vmem:[%s5719] sm:$0x1]
    %v5722 = vlaneseq
    %v5723 = vshrl.u32 %v5722, 7
    %v5724 = vsub.s32 0, %v5723
    %v5725 = vrot.slane %v5720, %v5724
    %v5727 = vadd.f32 %v5717, %v5725
    %v5728 = vadd.f32 %v5718, %v5725
    %v5729 = vmax.f32 %v5727, 0.0
    %v5730 = vmax.f32 %v5728, 0.0
    %v5731 = vadd.f32 %v5729, %v4075
    %v5732 = vadd.f32 %v5730, %v4076
    %v5733 = vld [vmem:[#allocation19] sm:$0xff]
    %v5734 = vld [vmem:[#allocation19 + $0x8] sm:$0xff]
    %v5735 = vld [vmem:[#allocation19 + $0x10] sm:$0xff]
    %v5736 = vld [vmem:[#allocation19 + $0x18] sm:$0xff]
    %v5737 = vld [vmem:[#allocation19 + $0x20] sm:$0xff]
    %v5738 = vld [vmem:[#allocation19 + $0x28] sm:$0xff]
    %v5739 = vld [vmem:[#allocation19 + $0x30] sm:$0xff]
    %v5740 = vld [vmem:[#allocation19 + $0x38] sm:$0xff]
    %v5741 = vld [vmem:[#allocation20] sm:$0xff]
    %v5742 = vld [vmem:[#allocation20 + $0x8] sm:$0xff]
    %v5743 = vld [vmem:[#allocation20 + $0x10] sm:$0xff]
    %v5744 = vld [vmem:[#allocation20 + $0x18] sm:$0xff]
    %v5745 = vld [vmem:[#allocation22] sm:$0x1]
    %v5747 = vsel %vm314, 0.0, 0
    %5749 = vmatprep.subr.mxu0 0.0
    %5750 = vmatpush1.msra.mxu0 %v5737
    %5751 = vmatprep.subr.mxu0 0.0
    %5752 = vmatpush1.msra.mxu0 %v5738
    %5753 = vmatprep.subr.mxu0 0.0
    %5754 = vmatpush1.msra.mxu0 %v5739
    %5755 = vmatprep.subr.mxu0 0.0
    %5756 = vmatpush1.msra.mxu0 %v5740
    %5757 = vmatprep.subr.mxu0 0.0
    %5758 = vmatpush1.msra.mxu0 0.0
    %5759 = vmatprep.subr.mxu0 0.0
    %5760 = vmatpush1.msra.mxu0 0.0
    %5761 = vmatprep.subr.mxu0 0.0
    %5762 = vmatpush1.msra.mxu0 0.0
    %5763 = vmatprep.subr.mxu0 0.0
    %5764 = vmatpush1.msra.mxu0 0.0
    %5765 = vmatprep.subr.mxu0 0.0
    %5766 = vmatpush1.msra.mxu0 0.0
    %5767 = vmatprep.subr.mxu0 0.0
    %5768 = vmatpush1.msra.mxu0 0.0
    %5769 = vmatprep.subr.mxu0 0.0
    %5770 = vmatpush1.msra.mxu0 0.0
    %5771 = vmatprep.subr.mxu0 0.0
    %5772 = vmatpush1.msra.mxu0 0.0
    %5773 = vmatprep.subr.mxu0 0.0
    %5774 = vmatpush1.msra.mxu0 0.0
    %5775 = vmatprep.subr.mxu0 0.0
    %5776 = vmatpush1.msra.mxu0 0.0
    %5777 = vmatprep.subr.mxu0 0.0
    %5778 = vmatpush1.msra.mxu0 0.0
    %5779 = vmatprep.subr.mxu0 0.0
    %5780 = vmatpush1.msra.mxu0 0.0
    %5781 = vmatprep.subr.mxu0 0.0
    %5782 = vmatpush1.msra.mxu0 0.0
    %5783 = vmatprep.subr.mxu0 0.0
    %5784 = vmatpush1.msra.mxu0 0.0
    %5785 = vmatprep.subr.mxu0 0.0
    %5786 = vmatpush1.msra.mxu0 0.0
    %5787 = vmatprep.subr.mxu0 0.0
    %5788 = vmatpush1.msra.mxu0 0.0
    %5789 = vmatprep.subr.mxu0 0.0
    %5790 = vmatpush1.msra.mxu0 0.0
    %5791 = vmatprep.subr.mxu0 0.0
    %5792 = vmatpush1.msra.mxu0 0.0
    %5793 = vmatprep.subr.mxu0 0.0
    %5794 = vmatpush1.msra.mxu0 0.0
    %5795 = vmatprep.subr.mxu0 0.0
    %5796 = vmatpush1.msra.mxu0 0.0
    %5797 = vmatprep.subr.mxu0 0.0
    %5798 = vmatpush1.msra.mxu0 0.0
    %5799 = vmatprep.subr.mxu0 0.0
    %5800 = vmatpush1.msra.mxu0 0.0
    %5801 = vmatprep.subr.mxu0 0.0
    %5802 = vmatpush1.msra.mxu0 0.0
    %5803 = vmatprep.subr.mxu0 0.0
    %5804 = vmatpush1.msra.mxu0 0.0
    %5805 = vmatprep.subr.mxu0 0.0
    %5806 = vmatpush1.msra.mxu0 0.0
    %5807 = vmatprep.subr.mxu0 0.0
    %5808 = vmatpush1.msra.mxu0 0.0
    %5809 = vmatprep.subr.mxu0 0.0
    %5810 = vmatpush1.msra.mxu0 0.0
    %5811 = vmatprep.subr.mxu0 0.0
    %5812 = vmatpush1.msra.mxu0 0.0
    %5813 = vmatprep.mubr.f32.mxu0 0.0
    %5814 = vmatmul.mubr.f32.gmra.mrb[0].mxu0 %v5747
    %v5815 = vpop.f32.mrb[0].mxu0
    %v5816 = vadd.f32 0.0, %v5815
    %v5817 = vpop.f32.mrb[0].mxu0
    %5818 = vdwg.mxu0
    %5819 = vmatprep.subr.mxu0 0.0
    %5820 = vmatpush1.msra.mxu0 %v5733
    %5821 = vmatprep.subr.mxu0 0.0
    %5822 = vmatpush1.msra.mxu0 %v5734
    %5823 = vmatprep.subr.mxu0 0.0
    %5824 = vmatpush1.msra.mxu0 %v5735
    %5825 = vmatprep.subr.mxu0 0.0
    %5826 = vmatpush1.msra.mxu0 %v5736
    %5827 = vmatprep.subr.mxu0 0.0
    %5828 = vmatpush1.msra.mxu0 0.0
    %5829 = vmatprep.subr.mxu0 0.0
    %5830 = vmatpush1.msra.mxu0 0.0
    %5831 = vmatprep.subr.mxu0 0.0
    %5832 = vmatpush1.msra.mxu0 0.0
    %5833 = vmatprep.subr.mxu0 0.0
    %5834 = vmatpush1.msra.mxu0 0.0
    %5835 = vmatprep.subr.mxu0 0.0
    %5836 = vmatpush1.msra.mxu0 0.0
    %5837 = vmatprep.subr.mxu0 0.0
    %5838 = vmatpush1.msra.mxu0 0.0
    %5839 = vmatprep.subr.mxu0 0.0
    %5840 = vmatpush1.msra.mxu0 0.0
    %5841 = vmatprep.subr.mxu0 0.0
    %5842 = vmatpush1.msra.mxu0 0.0
    %5843 = vmatprep.subr.mxu0 0.0
    %5844 = vmatpush1.msra.mxu0 0.0
    %5845 = vmatprep.subr.mxu0 0.0
    %5846 = vmatpush1.msra.mxu0 0.0
    %5847 = vmatprep.subr.mxu0 0.0
    %5848 = vmatpush1.msra.mxu0 0.0
    %5849 = vmatprep.subr.mxu0 0.0
    %5850 = vmatpush1.msra.mxu0 0.0
    %5851 = vmatprep.subr.mxu0 0.0
    %5852 = vmatpush1.msra.mxu0 0.0
    %5853 = vmatprep.subr.mxu0 0.0
    %5854 = vmatpush1.msra.mxu0 0.0
    %5855 = vmatprep.subr.mxu0 0.0
    %5856 = vmatpush1.msra.mxu0 0.0
    %5857 = vmatprep.subr.mxu0 0.0
    %5858 = vmatpush1.msra.mxu0 0.0
    %5859 = vmatprep.subr.mxu0 0.0
    %5860 = vmatpush1.msra.mxu0 0.0
    %5861 = vmatprep.subr.mxu0 0.0
    %5862 = vmatpush1.msra.mxu0 0.0
    %5863 = vmatprep.subr.mxu0 0.0
    %5864 = vmatpush1.msra.mxu0 0.0
    %5865 = vmatprep.subr.mxu0 0.0
    %5866 = vmatpush1.msra.mxu0 0.0
    %5867 = vmatprep.subr.mxu0 0.0
    %5868 = vmatpush1.msra.mxu0 0.0
    %5869 = vmatprep.subr.mxu0 0.0
    %5870 = vmatpush1.msra.mxu0 0.0
    %5871 = vmatprep.subr.mxu0 0.0
    %5872 = vmatpush1.msra.mxu0 0.0
    %5873 = vmatprep.subr.mxu0 0.0
    %5874 = vmatpush1.msra.mxu0 0.0
    %5875 = vmatprep.subr.mxu0 0.0
    %5876 = vmatpush1.msra.mxu0 0.0
    %5877 = vmatprep.subr.mxu0 0.0
    %5878 = vmatpush1.msra.mxu0 0.0
    %5879 = vmatprep.subr.mxu0 0.0
    %5880 = vmatpush1.msra.mxu0 0.0
    %5881 = vmatprep.subr.mxu0 0.0
    %5882 = vmatpush1.msra.mxu0 0.0
    %5883 = vmatprep.mubr.f32.mxu0 0.0
    %5884 = vmatmul.mubr.f32.gmra.mrb[0].mxu0 %v5747
    %v5885 = vpop.f32.mrb[0].mxu0
    %v5886 = vadd.f32 %v5816, %v5885
    %v5887 = vpop.f32.mrb[0].mxu0
    %5888 = vdwg.mxu0
    %5889 = vmatprep.subr.mxu0 0.0
    %5890 = vmatpush1.msra.mxu0 %v5741
    %5891 = vmatprep.subr.mxu0 0.0
    %5892 = vmatpush1.msra.mxu0 %v5742
    %5893 = vmatprep.subr.mxu0 0.0
    %5894 = vmatpush1.msra.mxu0 %v5743
    %5895 = vmatprep.subr.mxu0 0.0
    %5896 = vmatpush1.msra.mxu0 %v5744
    %5897 = vmatprep.subr.mxu0 0.0
    %5898 = vmatpush1.msra.mxu0 0.0
    %5899 = vmatprep.subr.mxu0 0.0
    %5900 = vmatpush1.msra.mxu0 0.0
    %5901 = vmatprep.subr.mxu0 0.0
    %5902 = vmatpush1.msra.mxu0 0.0
    %5903 = vmatprep.subr.mxu0 0.0
    %5904 = vmatpush1.msra.mxu0 0.0
    %5905 = vmatprep.subr.mxu0 0.0
    %5906 = vmatpush1.msra.mxu0 0.0
    %5907 = vmatprep.subr.mxu0 0.0
    %5908 = vmatpush1.msra.mxu0 0.0
    %5909 = vmatprep.subr.mxu0 0.0
    %5910 = vmatpush1.msra.mxu0 0.0
    %5911 = vmatprep.subr.mxu0 0.0
    %5912 = vmatpush1.msra.mxu0 0.0
    %5913 = vmatprep.subr.mxu0 0.0
    %5914 = vmatpush1.msra.mxu0 0.0
    %5915 = vmatprep.subr.mxu0 0.0
    %5916 = vmatpush1.msra.mxu0 0.0
    %5917 = vmatprep.subr.mxu0 0.0
    %5918 = vmatpush1.msra.mxu0 0.0
    %5919 = vmatprep.subr.mxu0 0.0
    %5920 = vmatpush1.msra.mxu0 0.0
    %5921 = vmatprep.subr.mxu0 0.0
    %5922 = vmatpush1.msra.mxu0 0.0
    %5923 = vmatprep.subr.mxu0 0.0
    %5924 = vmatpush1.msra.mxu0 0.0
    %5925 = vmatprep.subr.mxu0 0.0
    %5926 = vmatpush1.msra.mxu0 0.0
    %5927 = vmatprep.subr.mxu0 0.0
    %5928 = vmatpush1.msra.mxu0 0.0
    %5929 = vmatprep.subr.mxu0 0.0
    %5930 = vmatpush1.msra.mxu0 0.0
    %5931 = vmatprep.subr.mxu0 0.0
    %5932 = vmatpush1.msra.mxu0 0.0
    %5933 = vmatprep.subr.mxu0 0.0
    %5934 = vmatpush1.msra.mxu0 0.0
    %5935 = vmatprep.subr.mxu0 0.0
    %5936 = vmatpush1.msra.mxu0 0.0
    %5937 = vmatprep.subr.mxu0 0.0
    %5938 = vmatpush1.msra.mxu0 0.0
    %5939 = vmatprep.subr.mxu0 0.0
    %5940 = vmatpush1.msra.mxu0 0.0
    %5941 = vmatprep.subr.mxu0 0.0
    %5942 = vmatpush1.msra.mxu0 0.0
    %5943 = vmatprep.subr.mxu0 0.0
    %5944 = vmatpush1.msra.mxu0 0.0
    %5945 = vmatprep.subr.mxu0 0.0
    %5946 = vmatpush1.msra.mxu0 0.0
    %5947 = vmatprep.subr.mxu0 0.0
    %5948 = vmatpush1.msra.mxu0 0.0
    %5949 = vmatprep.subr.mxu0 0.0
    %5950 = vmatpush1.msra.mxu0 0.0
    %5951 = vmatprep.subr.mxu0 0.0
    %5952 = vmatpush1.msra.mxu0 0.0
    %5953 = vmatprep.mubr.f32.mxu0 0.0
    %5954 = vmatmul.mubr.f32.gmra.mrb[0].mxu0 %v5747
    %v5955 = vpop.f32.mrb[0].mxu0
    %v5956 = vadd.f32 0.0, %v5955
    %v5957 = vpop.f32.mrb[0].mxu0
    %5958 = vdwg.mxu0
    %v5959 = vadd.f32 %v5886, %v5956
    %v5960 = vadd.f32 %v5959, %v5745
    %v5961 = vxor.u32 %v5960, 2147483648
    %v5962 = vmul.f32 %v5961, 1.442695
    %v5963 = vpow.pop %v5962
    %v5964 = vadd.f32 %v5963, 1.0
    %v5965 = vrcp.pop %v5964
    %v5966 = vmul.f32 1.0, %v5965
    %v5967 = vtanh.pop %v5960
    %v5968 = vmul.f32 %v5966, 0.0
    %5970 = vrot.lane.b32.xlu0 %v5967, 64
    %v5971 = vpop.permute.xlu0 %5970
    %v5973 = vmul.f32 %v5966, %v5971
    %5975 = vrot.lane.b32.xlu0 %v5973, 32
    %v5976 = vpop.permute.xlu0 %5975
    %v5978 = vadd.f32 %v5968, %v5976
    %v5979 = vtanh.pop %v5978
    %5981 = vrot.lane.b32.xlu0 %v5979, 64
    %v5982 = vpop.permute.xlu0 %5981
    %v5984 = vmul.f32 %v5966, %v5982
    %v5985 = vlaneseq
    %v5986 = vshrl.u32 %v5985, 7
    %v5987 = vsub.s32 0, %v5986
    %v5988 = vrot.slane %v5984, %v5987
    %5990 = vrot.lane.b32.xlu0 %v5988, 32
    %v5991 = vpop.permute.xlu0 %5990
    %v5993 = vmul.f32 %v5731, %v5991
    %v5994 = vmul.f32 %v5732, %v5991
    %v5995 = vsel %vm314, %v5993, 0.0
    %5996 = vadd.xlane.f32.xlu0 %v5995
    %v5997 = vpop.xlane.xlu0 %5996
    %v5998 = vsel %vm314, %v5994, 0.0
    %5999 = vadd.xlane.f32.xlu0 %v5998
    %v6000 = vpop.xlane.xlu0 %5999
    %v6001 = vmax.f32 %v5997, %v6000
    %v6002 = vrot.slane %v6001, 4
    %v6003 = vmax.f32 %v6001, %v6002
    %v6004 = vrot.slane %v6003, 2
    %v6005 = vmax.f32 %v6003, %v6004
    %v6006 = vrot.slane %v6005, 1
    %v6007 = vmax.f32 %v6005, %v6006
    %v6008 = vsub.f32 %v5997, %v6007
    %v6009 = vsub.f32 %v6000, %v6007
    %v6010 = vmul.f32 %v6008, 1.442695
    %v6011 = vpow.pop %v6010
    %v6012 = vmul.f32 %v6009, 1.442695
    %v6013 = vpow.pop %v6012
    %v6014 = vadd.f32 %v6011, %v6013
    %v6015 = vrot.slane %v6014, 4
    %v6016 = vadd.f32 %v6014, %v6015
    %v6017 = vrot.slane %v6016, 2
    %v6018 = vadd.f32 %v6016, %v6017
    %v6019 = vrot.slane %v6018, 1
    %v6020 = vadd.f32 %v6018, %v6019
    %v6021 = vrcp.pop %v6020
    %v6022 = vmul.f32 %v6011, %v6021
    %v6023 = vmul.f32 %v6013, %v6021
    %v6024 = vmul.f32 %v6022, %v5731
    %v6025 = vmul.f32 %v6023, %v5732
    %v6026 = vsel %vm314, %v6024, 0.0
    %v6027 = vsel %vm314, %v6025, 0.0
    %v6028 = vadd.f32 %v6026, %v6027
    %v6029 = vrot.slane %v6028, 4
    %v6030 = vadd.f32 %v6028, %v6029
    %v6031 = vrot.slane %v6030, 2
    %v6032 = vadd.f32 %v6030, %v6031
    %v6033 = vrot.slane %v6032, 1
    %v6034 = vadd.f32 %v6032, %v6033
    %v6036 = vsel %vm314, %v6034, 0
    %6038 = vmatprep.subr.mxu0 0.0
    %6039 = vmatpush1.msra.mxu0 %v5737
    %6040 = vmatprep.subr.mxu0 0.0
    %6041 = vmatpush1.msra.mxu0 %v5738
    %6042 = vmatprep.subr.mxu0 0.0
    %6043 = vmatpush1.msra.mxu0 %v5739
    %6044 = vmatprep.subr.mxu0 0.0
    %6045 = vmatpush1.msra.mxu0 %v5740
    %6046 = vmatprep.subr.mxu0 0.0
    %6047 = vmatpush1.msra.mxu0 0.0
    %6048 = vmatprep.subr.mxu0 0.0
    %6049 = vmatpush1.msra.mxu0 0.0
    %6050 = vmatprep.subr.mxu0 0.0
    %6051 = vmatpush1.msra.mxu0 0.0
    %6052 = vmatprep.subr.mxu0 0.0
    %6053 = vmatpush1.msra.mxu0 0.0
    %6054 = vmatprep.subr.mxu0 0.0
    %6055 = vmatpush1.msra.mxu0 0.0
    %6056 = vmatprep.subr.mxu0 0.0
    %6057 = vmatpush1.msra.mxu0 0.0
    %6058 = vmatprep.subr.mxu0 0.0
    %6059 = vmatpush1.msra.mxu0 0.0
    %6060 = vmatprep.subr.mxu0 0.0
    %6061 = vmatpush1.msra.mxu0 0.0
    %6062 = vmatprep.subr.mxu0 0.0
    %6063 = vmatpush1.msra.mxu0 0.0
    %6064 = vmatprep.subr.mxu0 0.0
    %6065 = vmatpush1.msra.mxu0 0.0
    %6066 = vmatprep.subr.mxu0 0.0
    %6067 = vmatpush1.msra.mxu0 0.0
    %6068 = vmatprep.subr.mxu0 0.0
    %6069 = vmatpush1.msra.mxu0 0.0
    %6070 = vmatprep.subr.mxu0 0.0
    %6071 = vmatpush1.msra.mxu0 0.0
    %6072 = vmatprep.subr.mxu0 0.0
    %6073 = vmatpush1.msra.mxu0 0.0
    %6074 = vmatprep.subr.mxu0 0.0
    %6075 = vmatpush1.msra.mxu0 0.0
    %6076 = vmatprep.subr.mxu0 0.0
    %6077 = vmatpush1.msra.mxu0 0.0
    %6078 = vmatprep.subr.mxu0 0.0
    %6079 = vmatpush1.msra.mxu0 0.0
    %6080 = vmatprep.subr.mxu0 0.0
    %6081 = vmatpush1.msra.mxu0 0.0
    %6082 = vmatprep.subr.mxu0 0.0
    %6083 = vmatpush1.msra.mxu0 0.0
    %6084 = vmatprep.subr.mxu0 0.0
    %6085 = vmatpush1.msra.mxu0 0.0
    %6086 = vmatprep.subr.mxu0 0.0
    %6087 = vmatpush1.msra.mxu0 0.0
    %6088 = vmatprep.subr.mxu0 0.0
    %6089 = vmatpush1.msra.mxu0 0.0
    %6090 = vmatprep.subr.mxu0 0.0
    %6091 = vmatpush1.msra.mxu0 0.0
    %6092 = vmatprep.subr.mxu0 0.0
    %6093 = vmatpush1.msra.mxu0 0.0
    %6094 = vmatprep.subr.mxu0 0.0
    %6095 = vmatpush1.msra.mxu0 0.0
    %6096 = vmatprep.subr.mxu0 0.0
    %6097 = vmatpush1.msra.mxu0 0.0
    %6098 = vmatprep.subr.mxu0 0.0
    %6099 = vmatpush1.msra.mxu0 0.0
    %6100 = vmatprep.subr.mxu0 0.0
    %6101 = vmatpush1.msra.mxu0 0.0
    %6102 = vmatprep.mubr.f32.mxu0 0.0
    %6103 = vmatmul.mubr.f32.gmra.mrb[0].mxu0 %v6036
    %v6104 = vpop.f32.mrb[0].mxu0
    %v6105 = vadd.f32 0.0, %v6104
    %v6106 = vpop.f32.mrb[0].mxu0
    %6107 = vdwg.mxu0
    %6109 = vrot.lane.b32.xlu0 %v5984, 32
    %v6110 = vpop.permute.xlu0 %6109
    %v6111 = vsel %vm314, %v6110, 0
    %6113 = vmatprep.subr.mxu0 0.0
    %6114 = vmatpush1.msra.mxu0 %v5733
    %6115 = vmatprep.subr.mxu0 0.0
    %6116 = vmatpush1.msra.mxu0 %v5734
    %6117 = vmatprep.subr.mxu0 0.0
    %6118 = vmatpush1.msra.mxu0 %v5735
    %6119 = vmatprep.subr.mxu0 0.0
    %6120 = vmatpush1.msra.mxu0 %v5736
    %6121 = vmatprep.subr.mxu0 0.0
    %6122 = vmatpush1.msra.mxu0 0.0
    %6123 = vmatprep.subr.mxu0 0.0
    %6124 = vmatpush1.msra.mxu0 0.0
    %6125 = vmatprep.subr.mxu0 0.0
    %6126 = vmatpush1.msra.mxu0 0.0
    %6127 = vmatprep.subr.mxu0 0.0
    %6128 = vmatpush1.msra.mxu0 0.0
    %6129 = vmatprep.subr.mxu0 0.0
    %6130 = vmatpush1.msra.mxu0 0.0
    %6131 = vmatprep.subr.mxu0 0.0
    %6132 = vmatpush1.msra.mxu0 0.0
    %6133 = vmatprep.subr.mxu0 0.0
    %6134 = vmatpush1.msra.mxu0 0.0
    %6135 = vmatprep.subr.mxu0 0.0
    %6136 = vmatpush1.msra.mxu0 0.0
    %6137 = vmatprep.subr.mxu0 0.0
    %6138 = vmatpush1.msra.mxu0 0.0
    %6139 = vmatprep.subr.mxu0 0.0
    %6140 = vmatpush1.msra.mxu0 0.0
    %6141 = vmatprep.subr.mxu0 0.0
    %6142 = vmatpush1.msra.mxu0 0.0
    %6143 = vmatprep.subr.mxu0 0.0
    %6144 = vmatpush1.msra.mxu0 0.0
    %6145 = vmatprep.subr.mxu0 0.0
    %6146 = vmatpush1.msra.mxu0 0.0
    %6147 = vmatprep.subr.mxu0 0.0
    %6148 = vmatpush1.msra.mxu0 0.0
    %6149 = vmatprep.subr.mxu0 0.0
    %6150 = vmatpush1.msra.mxu0 0.0
    %6151 = vmatprep.subr.mxu0 0.0
    %6152 = vmatpush1.msra.mxu0 0.0
    %6153 = vmatprep.subr.mxu0 0.0
    %6154 = vmatpush1.msra.mxu0 0.0
    %6155 = vmatprep.subr.mxu0 0.0
    %6156 = vmatpush1.msra.mxu0 0.0
    %6157 = vmatprep.subr.mxu0 0.0
    %6158 = vmatpush1.msra.mxu0 0.0
    %6159 = vmatprep.subr.mxu0 0.0
    %6160 = vmatpush1.msra.mxu0 0.0
    %6161 = vmatprep.subr.mxu0 0.0
    %6162 = vmatpush1.msra.mxu0 0.0
    %6163 = vmatprep.subr.mxu0 0.0
    %6164 = vmatpush1.msra.mxu0 0.0
    %6165 = vmatprep.subr.mxu0 0.0
    %6166 = vmatpush1.msra.mxu0 0.0
    %6167 = vmatprep.subr.mxu0 0.0
    %6168 = vmatpush1.msra.mxu0 0.0
    %6169 = vmatprep.subr.mxu0 0.0
    %6170 = vmatpush1.msra.mxu0 0.0
    %6171 = vmatprep.subr.mxu0 0.0
    %6172 = vmatpush1.msra.mxu0 0.0
    %6173 = vmatprep.subr.mxu0 0.0
    %6174 = vmatpush1.msra.mxu0 0.0
    %6175 = vmatprep.subr.mxu0 0.0
    %6176 = vmatpush1.msra.mxu0 0.0
    %6177 = vmatprep.mubr.f32.mxu0 0.0
    %6178 = vmatmul.mubr.f32.gmra.mrb[0].mxu0 %v6111
    %v6179 = vpop.f32.mrb[0].mxu0
    %v6180 = vadd.f32 %v6105, %v6179
    %v6181 = vpop.f32.mrb[0].mxu0
    %6182 = vdwg.mxu0
    %6183 = vmatprep.subr.mxu0 0.0
    %6184 = vmatpush1.msra.mxu0 %v5741
    %6185 = vmatprep.subr.mxu0 0.0
    %6186 = vmatpush1.msra.mxu0 %v5742
    %6187 = vmatprep.subr.mxu0 0.0
    %6188 = vmatpush1.msra.mxu0 %v5743
    %6189 = vmatprep.subr.mxu0 0.0
    %6190 = vmatpush1.msra.mxu0 %v5744
    %6191 = vmatprep.subr.mxu0 0.0
    %6192 = vmatpush1.msra.mxu0 0.0
    %6193 = vmatprep.subr.mxu0 0.0
    %6194 = vmatpush1.msra.mxu0 0.0
    %6195 = vmatprep.subr.mxu0 0.0
    %6196 = vmatpush1.msra.mxu0 0.0
    %6197 = vmatprep.subr.mxu0 0.0
    %6198 = vmatpush1.msra.mxu0 0.0
    %6199 = vmatprep.subr.mxu0 0.0
    %6200 = vmatpush1.msra.mxu0 0.0
    %6201 = vmatprep.subr.mxu0 0.0
    %6202 = vmatpush1.msra.mxu0 0.0
    %6203 = vmatprep.subr.mxu0 0.0
    %6204 = vmatpush1.msra.mxu0 0.0
    %6205 = vmatprep.subr.mxu0 0.0
    %6206 = vmatpush1.msra.mxu0 0.0
    %6207 = vmatprep.subr.mxu0 0.0
    %6208 = vmatpush1.msra.mxu0 0.0
    %6209 = vmatprep.subr.mxu0 0.0
    %6210 = vmatpush1.msra.mxu0 0.0
    %6211 = vmatprep.subr.mxu0 0.0
    %6212 = vmatpush1.msra.mxu0 0.0
    %6213 = vmatprep.subr.mxu0 0.0
    %6214 = vmatpush1.msra.mxu0 0.0
    %6215 = vmatprep.subr.mxu0 0.0
    %6216 = vmatpush1.msra.mxu0 0.0
    %6217 = vmatprep.subr.mxu0 0.0
    %6218 = vmatpush1.msra.mxu0 0.0
    %6219 = vmatprep.subr.mxu0 0.0
    %6220 = vmatpush1.msra.mxu0 0.0
    %6221 = vmatprep.subr.mxu0 0.0
    %6222 = vmatpush1.msra.mxu0 0.0
    %6223 = vmatprep.subr.mxu0 0.0
    %6224 = vmatpush1.msra.mxu0 0.0
    %6225 = vmatprep.subr.mxu0 0.0
    %6226 = vmatpush1.msra.mxu0 0.0
    %6227 = vmatprep.subr.mxu0 0.0
    %6228 = vmatpush1.msra.mxu0 0.0
    %6229 = vmatprep.subr.mxu0 0.0
    %6230 = vmatpush1.msra.mxu0 0.0
    %6231 = vmatprep.subr.mxu0 0.0
    %6232 = vmatpush1.msra.mxu0 0.0
    %6233 = vmatprep.subr.mxu0 0.0
    %6234 = vmatpush1.msra.mxu0 0.0
    %6235 = vmatprep.subr.mxu0 0.0
    %6236 = vmatpush1.msra.mxu0 0.0
    %6237 = vmatprep.subr.mxu0 0.0
    %6238 = vmatpush1.msra.mxu0 0.0
    %6239 = vmatprep.subr.mxu0 0.0
    %6240 = vmatpush1.msra.mxu0 0.0
    %6241 = vmatprep.subr.mxu0 0.0
    %6242 = vmatpush1.msra.mxu0 0.0
    %6243 = vmatprep.subr.mxu0 0.0
    %6244 = vmatpush1.msra.mxu0 0.0
    %6245 = vmatprep.subr.mxu0 0.0
    %6246 = vmatpush1.msra.mxu0 0.0
    %6247 = vmatprep.mubr.f32.mxu0 0.0
    %6248 = vmatmul.mubr.f32.gmra.mrb[0].mxu0 %v6111
    %v6249 = vpop.f32.mrb[0].mxu0
    %v6250 = vadd.f32 0.0, %v6249
    %v6251 = vpop.f32.mrb[0].mxu0
    %6252 = vdwg.mxu0
    %v6253 = vadd.f32 %v6180, %v6250
    %v6254 = vadd.f32 %v6253, %v5745
    %v6255 = vxor.u32 %v6254, 2147483648
    %v6256 = vmul.f32 %v6255, 1.442695
    %v6257 = vpow.pop %v6256
    %v6258 = vadd.f32 %v6257, 1.0
    %v6259 = vrcp.pop %v6258
    %v6260 = vmul.f32 1.0, %v6259
    %v6261 = vtanh.pop %v6254
    %v6262 = vmul.f32 %v6260, %v5978
    %6264 = vrot.lane.b32.xlu0 %v6261, 64
    %v6265 = vpop.permute.xlu0 %6264
    %v6267 = vmul.f32 %v6260, %v6265
    %6269 = vrot.lane.b32.xlu0 %v6267, 32
    %v6270 = vpop.permute.xlu0 %6269
    %v6272 = vadd.f32 %v6262, %v6270
    %v6273 = vtanh.pop %v6272
    %6275 = vrot.lane.b32.xlu0 %v6273, 64
    %v6276 = vpop.permute.xlu0 %6275
    %v6278 = vmul.f32 %v6260, %v6276
    %v6279 = vlaneseq
    %v6280 = vshrl.u32 %v6279, 7
    %v6281 = vsub.s32 0, %v6280
    %v6282 = vrot.slane %v6278, %v6281
    %6284 = vrot.lane.b32.xlu0 %v6282, 32
    %v6285 = vpop.permute.xlu0 %6284
    %v6287 = vmul.f32 %v5731, %v6285
    %v6288 = vmul.f32 %v5732, %v6285
    %v6289 = vsel %vm314, %v6287, 0.0
    %6290 = vadd.xlane.f32.xlu0 %v6289
    %v6291 = vpop.xlane.xlu0 %6290
    %v6292 = vsel %vm314, %v6288, 0.0
    %6293 = vadd.xlane.f32.xlu0 %v6292
    %v6294 = vpop.xlane.xlu0 %6293
    %v6295 = vmax.f32 %v6291, %v6294
    %v6296 = vrot.slane %v6295, 4
    %v6297 = vmax.f32 %v6295, %v6296
    %v6298 = vrot.slane %v6297, 2
    %v6299 = vmax.f32 %v6297, %v6298
    %v6300 = vrot.slane %v6299, 1
    %v6301 = vmax.f32 %v6299, %v6300
    %v6302 = vsub.f32 %v6291, %v6301
    %v6303 = vsub.f32 %v6294, %v6301
    %v6304 = vmul.f32 %v6302, 1.442695
    %v6305 = vpow.pop %v6304
    %v6306 = vmul.f32 %v6303, 1.442695
    %v6307 = vpow.pop %v6306
    %v6308 = vadd.f32 %v6305, %v6307
    %v6309 = vrot.slane %v6308, 4
    %v6310 = vadd.f32 %v6308, %v6309
    %v6311 = vrot.slane %v6310, 2
    %v6312 = vadd.f32 %v6310, %v6311
    %v6313 = vrot.slane %v6312, 1
    %v6314 = vadd.f32 %v6312, %v6313
    %v6315 = vrcp.pop %v6314
    %v6316 = vmul.f32 %v6305, %v6315
    %v6317 = vmul.f32 %v6307, %v6315
    %v6318 = vmul.f32 %v6316, %v5731
    %v6319 = vmul.f32 %v6317, %v5732
    %v6320 = vsel %vm314, %v6318, 0.0
    %v6321 = vsel %vm314, %v6319, 0.0
    %v6322 = vadd.f32 %v6320, %v6321
    %v6323 = vrot.slane %v6322, 4
    %v6324 = vadd.f32 %v6322, %v6323
    %v6325 = vrot.slane %v6324, 2
    %v6326 = vadd.f32 %v6324, %v6325
    %v6327 = vrot.slane %v6326, 1
    %v6328 = vadd.f32 %v6326, %v6327
    %v6330 = vsel %vm314, %v6328, 0
    %6332 = vmatprep.subr.mxu0 0.0
    %6333 = vmatpush1.msra.mxu0 %v5737
    %6334 = vmatprep.subr.mxu0 0.0
    %6335 = vmatpush1.msra.mxu0 %v5738
    %6336 = vmatprep.subr.mxu0 0.0
    %6337 = vmatpush1.msra.mxu0 %v5739
    %6338 = vmatprep.subr.mxu0 0.0
    %6339 = vmatpush1.msra.mxu0 %v5740
    %6340 = vmatprep.subr.mxu0 0.0
    %6341 = vmatpush1.msra.mxu0 0.0
    %6342 = vmatprep.subr.mxu0 0.0
    %6343 = vmatpush1.msra.mxu0 0.0
    %6344 = vmatprep.subr.mxu0 0.0
    %6345 = vmatpush1.msra.mxu0 0.0
    %6346 = vmatprep.subr.mxu0 0.0
    %6347 = vmatpush1.msra.mxu0 0.0
    %6348 = vmatprep.subr.mxu0 0.0
    %6349 = vmatpush1.msra.mxu0 0.0
    %6350 = vmatprep.subr.mxu0 0.0
    %6351 = vmatpush1.msra.mxu0 0.0
    %6352 = vmatprep.subr.mxu0 0.0
    %6353 = vmatpush1.msra.mxu0 0.0
    %6354 = vmatprep.subr.mxu0 0.0
    %6355 = vmatpush1.msra.mxu0 0.0
    %6356 = vmatprep.subr.mxu0 0.0
    %6357 = vmatpush1.msra.mxu0 0.0
    %6358 = vmatprep.subr.mxu0 0.0
    %6359 = vmatpush1.msra.mxu0 0.0
    %6360 = vmatprep.subr.mxu0 0.0
    %6361 = vmatpush1.msra.mxu0 0.0
    %6362 = vmatprep.subr.mxu0 0.0
    %6363 = vmatpush1.msra.mxu0 0.0
    %6364 = vmatprep.subr.mxu0 0.0
    %6365 = vmatpush1.msra.mxu0 0.0
    %6366 = vmatprep.subr.mxu0 0.0
    %6367 = vmatpush1.msra.mxu0 0.0
    %6368 = vmatprep.subr.mxu0 0.0
    %6369 = vmatpush1.msra.mxu0 0.0
    %6370 = vmatprep.subr.mxu0 0.0
    %6371 = vmatpush1.msra.mxu0 0.0
    %6372 = vmatprep.subr.mxu0 0.0
    %6373 = vmatpush1.msra.mxu0 0.0
    %6374 = vmatprep.subr.mxu0 0.0
    %6375 = vmatpush1.msra.mxu0 0.0
    %6376 = vmatprep.subr.mxu0 0.0
    %6377 = vmatpush1.msra.mxu0 0.0
    %6378 = vmatprep.subr.mxu0 0.0
    %6379 = vmatpush1.msra.mxu0 0.0
    %6380 = vmatprep.subr.mxu0 0.0
    %6381 = vmatpush1.msra.mxu0 0.0
    %6382 = vmatprep.subr.mxu0 0.0
    %6383 = vmatpush1.msra.mxu0 0.0
    %6384 = vmatprep.subr.mxu0 0.0
    %6385 = vmatpush1.msra.mxu0 0.0
    %6386 = vmatprep.subr.mxu0 0.0
    %6387 = vmatpush1.msra.mxu0 0.0
    %6388 = vmatprep.subr.mxu0 0.0
    %6389 = vmatpush1.msra.mxu0 0.0
    %6390 = vmatprep.subr.mxu0 0.0
    %6391 = vmatpush1.msra.mxu0 0.0
    %6392 = vmatprep.subr.mxu0 0.0
    %6393 = vmatpush1.msra.mxu0 0.0
    %6394 = vmatprep.subr.mxu0 0.0
    %6395 = vmatpush1.msra.mxu0 0.0
    %6396 = vmatprep.mubr.f32.mxu0 0.0
    %6397 = vmatmul.mubr.f32.gmra.mrb[0].mxu0 %v6330
    %v6398 = vpop.f32.mrb[0].mxu0
    %v6399 = vadd.f32 0.0, %v6398
    %v6400 = vpop.f32.mrb[0].mxu0
    %6401 = vdwg.mxu0
    %6403 = vrot.lane.b32.xlu0 %v6278, 32
    %v6404 = vpop.permute.xlu0 %6403
    %v6405 = vsel %vm314, %v6404, 0
    %6407 = vmatprep.subr.mxu0 0.0
    %6408 = vmatpush1.msra.mxu0 %v5733
    %6409 = vmatprep.subr.mxu0 0.0
    %6410 = vmatpush1.msra.mxu0 %v5734
    %6411 = vmatprep.subr.mxu0 0.0
    %6412 = vmatpush1.msra.mxu0 %v5735
    %6413 = vmatprep.subr.mxu0 0.0
    %6414 = vmatpush1.msra.mxu0 %v5736
    %6415 = vmatprep.subr.mxu0 0.0
    %6416 = vmatpush1.msra.mxu0 0.0
    %6417 = vmatprep.subr.mxu0 0.0
    %6418 = vmatpush1.msra.mxu0 0.0
    %6419 = vmatprep.subr.mxu0 0.0
    %6420 = vmatpush1.msra.mxu0 0.0
    %6421 = vmatprep.subr.mxu0 0.0
    %6422 = vmatpush1.msra.mxu0 0.0
    %6423 = vmatprep.subr.mxu0 0.0
    %6424 = vmatpush1.msra.mxu0 0.0
    %6425 = vmatprep.subr.mxu0 0.0
    %6426 = vmatpush1.msra.mxu0 0.0
    %6427 = vmatprep.subr.mxu0 0.0
    %6428 = vmatpush1.msra.mxu0 0.0
    %6429 = vmatprep.subr.mxu0 0.0
    %6430 = vmatpush1.msra.mxu0 0.0
    %6431 = vmatprep.subr.mxu0 0.0
    %6432 = vmatpush1.msra.mxu0 0.0
    %6433 = vmatprep.subr.mxu0 0.0
    %6434 = vmatpush1.msra.mxu0 0.0
    %6435 = vmatprep.subr.mxu0 0.0
    %6436 = vmatpush1.msra.mxu0 0.0
    %6437 = vmatprep.subr.mxu0 0.0
    %6438 = vmatpush1.msra.mxu0 0.0
    %6439 = vmatprep.subr.mxu0 0.0
    %6440 = vmatpush1.msra.mxu0 0.0
    %6441 = vmatprep.subr.mxu0 0.0
    %6442 = vmatpush1.msra.mxu0 0.0
    %6443 = vmatprep.subr.mxu0 0.0
    %6444 = vmatpush1.msra.mxu0 0.0
    %6445 = vmatprep.subr.mxu0 0.0
    %6446 = vmatpush1.msra.mxu0 0.0
    %6447 = vmatprep.subr.mxu0 0.0
    %6448 = vmatpush1.msra.mxu0 0.0
    %6449 = vmatprep.subr.mxu0 0.0
    %6450 = vmatpush1.msra.mxu0 0.0
    %6451 = vmatprep.subr.mxu0 0.0
    %6452 = vmatpush1.msra.mxu0 0.0
    %6453 = vmatprep.subr.mxu0 0.0
    %6454 = vmatpush1.msra.mxu0 0.0
    %6455 = vmatprep.subr.mxu0 0.0
    %6456 = vmatpush1.msra.mxu0 0.0
    %6457 = vmatprep.subr.mxu0 0.0
    %6458 = vmatpush1.msra.mxu0 0.0
    %6459 = vmatprep.subr.mxu0 0.0
    %6460 = vmatpush1.msra.mxu0 0.0
    %6461 = vmatprep.subr.mxu0 0.0
    %6462 = vmatpush1.msra.mxu0 0.0
    %6463 = vmatprep.subr.mxu0 0.0
    %6464 = vmatpush1.msra.mxu0 0.0
    %6465 = vmatprep.subr.mxu0 0.0
    %6466 = vmatpush1.msra.mxu0 0.0
    %6467 = vmatprep.subr.mxu0 0.0
    %6468 = vmatpush1.msra.mxu0 0.0
    %6469 = vmatprep.subr.mxu0 0.0
    %6470 = vmatpush1.msra.mxu0 0.0
    %6471 = vmatprep.mubr.f32.mxu0 0.0
    %6472 = vmatmul.mubr.f32.gmra.mrb[0].mxu0 %v6405
    %v6473 = vpop.f32.mrb[0].mxu0
    %v6474 = vadd.f32 %v6399, %v6473
    %v6475 = vpop.f32.mrb[0].mxu0
    %6476 = vdwg.mxu0
    %6477 = vmatprep.subr.mxu0 0.0
    %6478 = vmatpush1.msra.mxu0 %v5741
    %6479 = vmatprep.subr.mxu0 0.0
    %6480 = vmatpush1.msra.mxu0 %v5742
    %6481 = vmatprep.subr.mxu0 0.0
    %6482 = vmatpush1.msra.mxu0 %v5743
    %6483 = vmatprep.subr.mxu0 0.0
    %6484 = vmatpush1.msra.mxu0 %v5744
    %6485 = vmatprep.subr.mxu0 0.0
    %6486 = vmatpush1.msra.mxu0 0.0
    %6487 = vmatprep.subr.mxu0 0.0
    %6488 = vmatpush1.msra.mxu0 0.0
    %6489 = vmatprep.subr.mxu0 0.0
    %6490 = vmatpush1.msra.mxu0 0.0
    %6491 = vmatprep.subr.mxu0 0.0
    %6492 = vmatpush1.msra.mxu0 0.0
    %6493 = vmatprep.subr.mxu0 0.0
    %6494 = vmatpush1.msra.mxu0 0.0
    %6495 = vmatprep.subr.mxu0 0.0
    %6496 = vmatpush1.msra.mxu0 0.0
    %6497 = vmatprep.subr.mxu0 0.0
    %6498 = vmatpush1.msra.mxu0 0.0
    %6499 = vmatprep.subr.mxu0 0.0
    %6500 = vmatpush1.msra.mxu0 0.0
    %6501 = vmatprep.subr.mxu0 0.0
    %6502 = vmatpush1.msra.mxu0 0.0
    %6503 = vmatprep.subr.mxu0 0.0
    %6504 = vmatpush1.msra.mxu0 0.0
    %6505 = vmatprep.subr.mxu0 0.0
    %6506 = vmatpush1.msra.mxu0 0.0
    %6507 = vmatprep.subr.mxu0 0.0
    %6508 = vmatpush1.msra.mxu0 0.0
    %6509 = vmatprep.subr.mxu0 0.0
    %6510 = vmatpush1.msra.mxu0 0.0
    %6511 = vmatprep.subr.mxu0 0.0
    %6512 = vmatpush1.msra.mxu0 0.0
    %6513 = vmatprep.subr.mxu0 0.0
    %6514 = vmatpush1.msra.mxu0 0.0
    %6515 = vmatprep.subr.mxu0 0.0
    %6516 = vmatpush1.msra.mxu0 0.0
    %6517 = vmatprep.subr.mxu0 0.0
    %6518 = vmatpush1.msra.mxu0 0.0
    %6519 = vmatprep.subr.mxu0 0.0
    %6520 = vmatpush1.msra.mxu0 0.0
    %6521 = vmatprep.subr.mxu0 0.0
    %6522 = vmatpush1.msra.mxu0 0.0
    %6523 = vmatprep.subr.mxu0 0.0
    %6524 = vmatpush1.msra.mxu0 0.0
    %6525 = vmatprep.subr.mxu0 0.0
    %6526 = vmatpush1.msra.mxu0 0.0
    %6527 = vmatprep.subr.mxu0 0.0
    %6528 = vmatpush1.msra.mxu0 0.0
    %6529 = vmatprep.subr.mxu0 0.0
    %6530 = vmatpush1.msra.mxu0 0.0
    %6531 = vmatprep.subr.mxu0 0.0
    %6532 = vmatpush1.msra.mxu0 0.0
    %6533 = vmatprep.subr.mxu0 0.0
    %6534 = vmatpush1.msra.mxu0 0.0
    %6535 = vmatprep.subr.mxu0 0.0
    %6536 = vmatpush1.msra.mxu0 0.0
    %6537 = vmatprep.subr.mxu0 0.0
    %6538 = vmatpush1.msra.mxu0 0.0
    %6539 = vmatprep.subr.mxu0 0.0
    %6540 = vmatpush1.msra.mxu0 0.0
    %6541 = vmatprep.mubr.f32.mxu0 0.0
    %6542 = vmatmul.mubr.f32.gmra.mrb[0].mxu0 %v6405
    %v6543 = vpop.f32.mrb[0].mxu0
    %v6544 = vadd.f32 0.0, %v6543
    %v6545 = vpop.f32.mrb[0].mxu0
    %6546 = vdwg.mxu0
    %v6547 = vadd.f32 %v6474, %v6544
    %v6548 = vadd.f32 %v6547, %v5745
    %v6549 = vxor.u32 %v6548, 2147483648
    %v6550 = vmul.f32 %v6549, 1.442695
    %v6551 = vpow.pop %v6550
    %v6552 = vadd.f32 %v6551, 1.0
    %v6553 = vrcp.pop %v6552
    %v6554 = vmul.f32 1.0, %v6553
    %v6555 = vtanh.pop %v6548
    %v6556 = vmul.f32 %v6554, %v6272
    %6558 = vrot.lane.b32.xlu0 %v6555, 64
    %v6559 = vpop.permute.xlu0 %6558
    %v6561 = vmul.f32 %v6554, %v6559
    %6563 = vrot.lane.b32.xlu0 %v6561, 32
    %v6564 = vpop.permute.xlu0 %6563
    %v6566 = vadd.f32 %v6556, %v6564
    %v6567 = vtanh.pop %v6566
    %6569 = vrot.lane.b32.xlu0 %v6567, 64
    %v6570 = vpop.permute.xlu0 %6569
    %v6572 = vmul.f32 %v6554, %v6570
    %v6573 = vlaneseq
    %v6574 = vshrl.u32 %v6573, 7
    %v6575 = vsub.s32 0, %v6574
    %v6576 = vrot.slane %v6572, %v6575
    %6578 = vrot.lane.b32.xlu0 %v6576, 32
    %v6579 = vpop.permute.xlu0 %6578
    %v6581 = vmul.f32 %v5731, %v6579
    %v6582 = vmul.f32 %v5732, %v6579
    %v6583 = vsel %vm314, %v6581, 0.0
    %6584 = vadd.xlane.f32.xlu0 %v6583
    %v6585 = vpop.xlane.xlu0 %6584
    %v6586 = vsel %vm314, %v6582, 0.0
    %6587 = vadd.xlane.f32.xlu0 %v6586
    %v6588 = vpop.xlane.xlu0 %6587
    %v6589 = vmax.f32 %v6585, %v6588
    %v6590 = vrot.slane %v6589, 4
    %v6591 = vmax.f32 %v6589, %v6590
    %v6592 = vrot.slane %v6591, 2
    %v6593 = vmax.f32 %v6591, %v6592
    %v6594 = vrot.slane %v6593, 1
    %v6595 = vmax.f32 %v6593, %v6594
    %v6596 = vsub.f32 %v6585, %v6595
    %v6597 = vsub.f32 %v6588, %v6595
    %v6598 = vmul.f32 %v6596, 1.442695
    %v6599 = vpow.pop %v6598
    %v6600 = vmul.f32 %v6597, 1.442695
    %v6601 = vpow.pop %v6600
    %v6602 = vadd.f32 %v6599, %v6601
    %v6603 = vrot.slane %v6602, 4
    %v6604 = vadd.f32 %v6602, %v6603
    %v6605 = vrot.slane %v6604, 2
    %v6606 = vadd.f32 %v6604, %v6605
    %v6607 = vrot.slane %v6606, 1
    %v6608 = vadd.f32 %v6606, %v6607
    %v6609 = vrcp.pop %v6608
    %v6610 = vmul.f32 %v6599, %v6609
    %v6611 = vmul.f32 %v6601, %v6609
    %v6612 = vmul.f32 %v6610, %v5731
    %v6613 = vmul.f32 %v6611, %v5732
    %v6614 = vsel %vm314, %v6612, 0.0
    %v6615 = vsel %vm314, %v6613, 0.0
    %v6616 = vadd.f32 %v6614, %v6615
    %v6617 = vrot.slane %v6616, 4
    %v6618 = vadd.f32 %v6616, %v6617
    %v6619 = vrot.slane %v6618, 2
    %v6620 = vadd.f32 %v6618, %v6619
    %v6621 = vrot.slane %v6620, 1
    %v6622 = vadd.f32 %v6620, %v6621
    %v6623 = vld [vmem:[%s19] sm:$0xff]
    %v6624 = vld [vmem:[%s19 + $0x8] sm:$0xff]
    %v6625 = vld [vmem:[%s19 + $0x10] sm:$0xff]
    %v6626 = vld [vmem:[%s19 + $0x18] sm:$0xff]
    %v6627 = vld [vmem:[%s19 + $0x20] sm:$0xff]
    %v6628 = vld [vmem:[%s19 + $0x28] sm:$0xff]
    %v6629 = vld [vmem:[%s19 + $0x30] sm:$0xff]
    %v6630 = vld [vmem:[%s19 + $0x38] sm:$0xff]
    %v6632 = vsel %vm314, %v6622, 0
    %6634 = vmatprep.subr.mxu0 0.0
    %6635 = vmatpush1.msra.mxu0 %v6627
    %6636 = vmatprep.subr.mxu0 0.0
    %6637 = vmatpush1.msra.mxu0 %v6628
    %6638 = vmatprep.subr.mxu0 0.0
    %6639 = vmatpush1.msra.mxu0 %v6629
    %6640 = vmatprep.subr.mxu0 0.0
    %6641 = vmatpush1.msra.mxu0 %v6630
    %6642 = vmatprep.subr.mxu0 0.0
    %6643 = vmatpush1.msra.mxu0 0.0
    %6644 = vmatprep.subr.mxu0 0.0
    %6645 = vmatpush1.msra.mxu0 0.0
    %6646 = vmatprep.subr.mxu0 0.0
    %6647 = vmatpush1.msra.mxu0 0.0
    %6648 = vmatprep.subr.mxu0 0.0
    %6649 = vmatpush1.msra.mxu0 0.0
    %6650 = vmatprep.subr.mxu0 0.0
    %6651 = vmatpush1.msra.mxu0 0.0
    %6652 = vmatprep.subr.mxu0 0.0
    %6653 = vmatpush1.msra.mxu0 0.0
    %6654 = vmatprep.subr.mxu0 0.0
    %6655 = vmatpush1.msra.mxu0 0.0
    %6656 = vmatprep.subr.mxu0 0.0
    %6657 = vmatpush1.msra.mxu0 0.0
    %6658 = vmatprep.subr.mxu0 0.0
    %6659 = vmatpush1.msra.mxu0 0.0
    %6660 = vmatprep.subr.mxu0 0.0
    %6661 = vmatpush1.msra.mxu0 0.0
    %6662 = vmatprep.subr.mxu0 0.0
    %6663 = vmatpush1.msra.mxu0 0.0
    %6664 = vmatprep.subr.mxu0 0.0
    %6665 = vmatpush1.msra.mxu0 0.0
    %6666 = vmatprep.subr.mxu0 0.0
    %6667 = vmatpush1.msra.mxu0 0.0
    %6668 = vmatprep.subr.mxu0 0.0
    %6669 = vmatpush1.msra.mxu0 0.0
    %6670 = vmatprep.subr.mxu0 0.0
    %6671 = vmatpush1.msra.mxu0 0.0
    %6672 = vmatprep.subr.mxu0 0.0
    %6673 = vmatpush1.msra.mxu0 0.0
    %6674 = vmatprep.subr.mxu0 0.0
    %6675 = vmatpush1.msra.mxu0 0.0
    %6676 = vmatprep.subr.mxu0 0.0
    %6677 = vmatpush1.msra.mxu0 0.0
    %6678 = vmatprep.subr.mxu0 0.0
    %6679 = vmatpush1.msra.mxu0 0.0
    %6680 = vmatprep.subr.mxu0 0.0
    %6681 = vmatpush1.msra.mxu0 0.0
    %6682 = vmatprep.subr.mxu0 0.0
    %6683 = vmatpush1.msra.mxu0 0.0
    %6684 = vmatprep.subr.mxu0 0.0
    %6685 = vmatpush1.msra.mxu0 0.0
    %6686 = vmatprep.subr.mxu0 0.0
    %6687 = vmatpush1.msra.mxu0 0.0
    %6688 = vmatprep.subr.mxu0 0.0
    %6689 = vmatpush1.msra.mxu0 0.0
    %6690 = vmatprep.subr.mxu0 0.0
    %6691 = vmatpush1.msra.mxu0 0.0
    %6692 = vmatprep.subr.mxu0 0.0
    %6693 = vmatpush1.msra.mxu0 0.0
    %6694 = vmatprep.subr.mxu0 0.0
    %6695 = vmatpush1.msra.mxu0 0.0
    %6696 = vmatprep.subr.mxu0 0.0
    %6697 = vmatpush1.msra.mxu0 0.0
    %6698 = vmatprep.mubr.f32.mxu0 0.0
    %6699 = vmatmul.mubr.f32.gmra.mrb[0].mxu0 %v6632
    %v6700 = vpop.f32.mrb[0].mxu0
    %v6701 = vadd.f32 0.0, %v6700
    %v6702 = vpop.f32.mrb[0].mxu0
    %6703 = vdwg.mxu0
    %6705 = vrot.lane.b32.xlu0 %v6572, 32
    %v6706 = vpop.permute.xlu0 %6705
    %v6707 = vsel %vm314, %v6706, 0
    %6709 = vmatprep.subr.mxu0 0.0
    %6710 = vmatpush1.msra.mxu0 %v6623
    %6711 = vmatprep.subr.mxu0 0.0
    %6712 = vmatpush1.msra.mxu0 %v6624
    %6713 = vmatprep.subr.mxu0 0.0
    %6714 = vmatpush1.msra.mxu0 %v6625
    %6715 = vmatprep.subr.mxu0 0.0
    %6716 = vmatpush1.msra.mxu0 %v6626
    %6717 = vmatprep.subr.mxu0 0.0
    %6718 = vmatpush1.msra.mxu0 0.0
    %6719 = vmatprep.subr.mxu0 0.0
    %6720 = vmatpush1.msra.mxu0 0.0
    %6721 = vmatprep.subr.mxu0 0.0
    %6722 = vmatpush1.msra.mxu0 0.0
    %6723 = vmatprep.subr.mxu0 0.0
    %6724 = vmatpush1.msra.mxu0 0.0
    %6725 = vmatprep.subr.mxu0 0.0
    %6726 = vmatpush1.msra.mxu0 0.0
    %6727 = vmatprep.subr.mxu0 0.0
    %6728 = vmatpush1.msra.mxu0 0.0
    %6729 = vmatprep.subr.mxu0 0.0
    %6730 = vmatpush1.msra.mxu0 0.0
    %6731 = vmatprep.subr.mxu0 0.0
    %6732 = vmatpush1.msra.mxu0 0.0
    %6733 = vmatprep.subr.mxu0 0.0
    %6734 = vmatpush1.msra.mxu0 0.0
    %6735 = vmatprep.subr.mxu0 0.0
    %6736 = vmatpush1.msra.mxu0 0.0
    %6737 = vmatprep.subr.mxu0 0.0
    %6738 = vmatpush1.msra.mxu0 0.0
    %6739 = vmatprep.subr.mxu0 0.0
    %6740 = vmatpush1.msra.mxu0 0.0
    %6741 = vmatprep.subr.mxu0 0.0
    %6742 = vmatpush1.msra.mxu0 0.0
    %6743 = vmatprep.subr.mxu0 0.0
    %6744 = vmatpush1.msra.mxu0 0.0
    %6745 = vmatprep.subr.mxu0 0.0
    %6746 = vmatpush1.msra.mxu0 0.0
    %6747 = vmatprep.subr.mxu0 0.0
    %6748 = vmatpush1.msra.mxu0 0.0
    %6749 = vmatprep.subr.mxu0 0.0
    %6750 = vmatpush1.msra.mxu0 0.0
    %6751 = vmatprep.subr.mxu0 0.0
    %6752 = vmatpush1.msra.mxu0 0.0
    %6753 = vmatprep.subr.mxu0 0.0
    %6754 = vmatpush1.msra.mxu0 0.0
    %6755 = vmatprep.subr.mxu0 0.0
    %6756 = vmatpush1.msra.mxu0 0.0
    %6757 = vmatprep.subr.mxu0 0.0
    %6758 = vmatpush1.msra.mxu0 0.0
    %6759 = vmatprep.subr.mxu0 0.0
    %6760 = vmatpush1.msra.mxu0 0.0
    %6761 = vmatprep.subr.mxu0 0.0
    %6762 = vmatpush1.msra.mxu0 0.0
    %6763 = vmatprep.subr.mxu0 0.0
    %6764 = vmatpush1.msra.mxu0 0.0
    %6765 = vmatprep.subr.mxu0 0.0
    %6766 = vmatpush1.msra.mxu0 0.0
    %6767 = vmatprep.subr.mxu0 0.0
    %6768 = vmatpush1.msra.mxu0 0.0
    %6769 = vmatprep.subr.mxu0 0.0
    %6770 = vmatpush1.msra.mxu0 0.0
    %6771 = vmatprep.subr.mxu0 0.0
    %6772 = vmatpush1.msra.mxu0 0.0
    %6773 = vmatprep.mubr.f32.mxu0 0.0
    %6774 = vmatmul.mubr.f32.gmra.mrb[0].mxu0 %v6707
    %v6775 = vpop.f32.mrb[0].mxu0
    %v6776 = vadd.f32 %v6701, %v6775
    %v6777 = vpop.f32.mrb[0].mxu0
    %6778 = vdwg.mxu0
    %v6779 = vld [vmem:[#allocation23] sm:$0x1]
    %v6780 = vadd.f32 %v6776, %v6779
    %v6781 = vmax.f32 %v6780, 0.0
    %v6782 = vld [vmem:[%s21] sm:$0xff]
    %v6783 = vld [vmem:[%s21 + $0x8] sm:$0xff]
    %v6784 = vld [vmem:[%s21 + $0x10] sm:$0xff]
    %v6785 = vld [vmem:[%s21 + $0x18] sm:$0xff]
    %v6786 = vld [vmem:[#allocation25] sm:$0x1]
    %v6788 = vsel %vm314, %v6781, 0
    %6790 = vmatprep.subr.mxu0 0.0
    %6791 = vmatpush1.msra.mxu0 %v6782
    %6792 = vmatprep.subr.mxu0 0.0
    %6793 = vmatpush1.msra.mxu0 %v6783
    %6794 = vmatprep.subr.mxu0 0.0
    %6795 = vmatpush1.msra.mxu0 %v6784
    %6796 = vmatprep.subr.mxu0 0.0
    %6797 = vmatpush1.msra.mxu0 %v6785
    %6798 = vmatprep.subr.mxu0 0.0
    %6799 = vmatpush1.msra.mxu0 0.0
    %6800 = vmatprep.subr.mxu0 0.0
    %6801 = vmatpush1.msra.mxu0 0.0
    %6802 = vmatprep.subr.mxu0 0.0
    %6803 = vmatpush1.msra.mxu0 0.0
    %6804 = vmatprep.subr.mxu0 0.0
    %6805 = vmatpush1.msra.mxu0 0.0
    %6806 = vmatprep.subr.mxu0 0.0
    %6807 = vmatpush1.msra.mxu0 0.0
    %6808 = vmatprep.subr.mxu0 0.0
    %6809 = vmatpush1.msra.mxu0 0.0
    %6810 = vmatprep.subr.mxu0 0.0
    %6811 = vmatpush1.msra.mxu0 0.0
    %6812 = vmatprep.subr.mxu0 0.0
    %6813 = vmatpush1.msra.mxu0 0.0
    %6814 = vmatprep.subr.mxu0 0.0
    %6815 = vmatpush1.msra.mxu0 0.0
    %6816 = vmatprep.subr.mxu0 0.0
    %6817 = vmatpush1.msra.mxu0 0.0
    %6818 = vmatprep.subr.mxu0 0.0
    %6819 = vmatpush1.msra.mxu0 0.0
    %6820 = vmatprep.subr.mxu0 0.0
    %6821 = vmatpush1.msra.mxu0 0.0
    %6822 = vmatprep.subr.mxu0 0.0
    %6823 = vmatpush1.msra.mxu0 0.0
    %6824 = vmatprep.subr.mxu0 0.0
    %6825 = vmatpush1.msra.mxu0 0.0
    %6826 = vmatprep.subr.mxu0 0.0
    %6827 = vmatpush1.msra.mxu0 0.0
    %6828 = vmatprep.subr.mxu0 0.0
    %6829 = vmatpush1.msra.mxu0 0.0
    %6830 = vmatprep.subr.mxu0 0.0
    %6831 = vmatpush1.msra.mxu0 0.0
    %6832 = vmatprep.subr.mxu0 0.0
    %6833 = vmatpush1.msra.mxu0 0.0
    %6834 = vmatprep.subr.mxu0 0.0
    %6835 = vmatpush1.msra.mxu0 0.0
    %6836 = vmatprep.subr.mxu0 0.0
    %6837 = vmatpush1.msra.mxu0 0.0
    %6838 = vmatprep.subr.mxu0 0.0
    %6839 = vmatpush1.msra.mxu0 0.0
    %6840 = vmatprep.subr.mxu0 0.0
    %6841 = vmatpush1.msra.mxu0 0.0
    %6842 = vmatprep.subr.mxu0 0.0
    %6843 = vmatpush1.msra.mxu0 0.0
    %6844 = vmatprep.subr.mxu0 0.0
    %6845 = vmatpush1.msra.mxu0 0.0
    %6846 = vmatprep.subr.mxu0 0.0
    %6847 = vmatpush1.msra.mxu0 0.0
    %6848 = vmatprep.subr.mxu0 0.0
    %6849 = vmatpush1.msra.mxu0 0.0
    %6850 = vmatprep.subr.mxu0 0.0
    %6851 = vmatpush1.msra.mxu0 0.0
    %6852 = vmatprep.subr.mxu0 0.0
    %6853 = vmatpush1.msra.mxu0 0.0
    %6854 = vmatprep.mubr.f32.mxu0 0.0
    %6855 = vmatmul.mubr.f32.gmra.mrb[0].mxu0 %v6788
    %v6856 = vpop.f32.mrb[0].mxu0
    %v6857 = vadd.f32 %v6786, %v6856
    %v6858 = vpop.f32.mrb[0].mxu0
    %6859 = vdwg.mxu0
    %v6860 = vmax.f32 %v6857, 0.0
    %v6861 = vmul.f32 %v6860, %v6860
    %vm6862 = vcmask 516096
    %v6863 = vsel %vm6862, %v6861, 0.0
    %6864 = vadd.xlane.f32.xlu0 %v6863
    %v6865 = vpop.xlane.xlu0 %6864
    %v6866 = vrsqrt.pop %v6865
    %v6867 = vmul.f32 %v6865, %v6866
    %vm6868 = vcmp.eq.f32.partialorder %v6865, inf
    %v6869 = vsel %vm6868, %v6865, %v6867
    %vm6870 = vcmp.eq.f32.partialorder %v6865, 0.0
    %v6871 = vand.u32 %v6865, 2147483648
    %v6872 = vsel %vm6870, %v6871, %v6869
    %v6873 = vmax.f32 %v6872, 1e-12
    %v6874 = vrcp.pop %v6873
    %v6875 = vmul.f32 %v6860, %v6874
    %6876 = vst.msk [vmem:[#allocation26] sm:$0x1] %vm6862, %v6875
    // Predicated region
    $region154: #{gnn_encoder_forward.1} parent=1 // pred_check
      _
    $region155: #{gnn_encoder_forward.1} parent=1 // pred_check_branch
      %6878 = sbr.rel (0) target = $region157
    $region156: #{gnn_encoder_forward.1} parent=1 // pred_region
      %s6880 = ssub.s32 16, 16
      %6881 = vsyncadd [#allocation4], %s6880
      %s6883 = sshll.u32 [#allocation26], 4
      %s6884 = int_to_ptr.vmem [resolvable:$true] %s6883
      %6886 = dma.vmem_to_hbm [thread:$0]  %s6884, 16, %s23, [#allocation4]
    $region157: #{gnn_encoder_forward.1} parent=1 // pred_fallthru
      _
    // Predicated region
    $region158: #{gnn_encoder_forward.1} parent=1 // pred_check
      _
    $region159: #{gnn_encoder_forward.1} parent=1 // pred_check_branch
      %6888 = sbr.rel (0) target = $region161
    $region160: #{gnn_encoder_forward.1} parent=1 // pred_region
      %6889 = dma.done [#allocation4], 16
    $region161: #{gnn_encoder_forward.1} parent=1 // pred_fallthru
      _
    %6890 = vsyncpa [#allocation3], 1
    %6891 = vsyncpa [#allocation6], 1
    %6892 = vsyncpa [#allocation9], 1
    %6893 = vsyncpa [#allocation12], 1
    %6894 = vsyncpa [#allocation15], 1
    %6895 = vsyncpa [#allocation18], 1
    %6896 = vsyncpa [#allocation21], 1
    %6897 = vsyncpa [#allocation24], 1
    %6898 = vsyncpa [#allocation4], 1

</llo_original>
